<compile_context>
chip_gen: v5e
topology: v5e:2x2
jax: 0.10.0
libtpu: 0.0.40
codegen_flags: <defaults>
</compile_context>

<pallas_src>
import jax
import jax.numpy as jnp
from jax import lax
from jax.experimental import pallas as pl
from jax.experimental.pallas import tpu as pltpu

F32 = jnp.float32
BF16 = jnp.bfloat16


# ----------------------------- conv kernel ----------------------------------

def conv_taps(xs, taps, w_taps, t_out):
    """1-D conv as a sum of shifted matmuls, NCT layout, per-batch grid.

    xs     : list of inputs, each (B, Cin, T_i) float32 (already padded /
             de-interleaved so every tap is an unstrided slice).
    taps   : static list of (source_index, lane_offset), one per tap.
    w_taps : (K, Cout, Cin) float32 stacked tap weights.
    t_out  : output length.

    Returns y (B, Cout, t_out) float32 and per-batch [sum, sum^2] over time
    (B, Cout, 2) for fused BatchNorm statistics.
    """
    n_x = len(xs)
    B, cin = xs[0].shape[0], xs[0].shape[1]
    K, cout, _ = w_taps.shape
    assert K == len(taps)

    def kernel(*refs):
        x_refs = refs[:n_x]
        w_ref = refs[n_x]
        y_ref = refs[n_x + 1]
        s_ref = refs[n_x + 2]
        acc = None
        for k, (src, off) in enumerate(taps):
            xk = x_refs[src][0, :, off:off + t_out].astype(BF16)   # (Cin, t_out)
            wk = w_ref[k].astype(BF16)                             # (Cout, Cin)
            d = jnp.dot(wk, xk, preferred_element_type=jnp.float32)
            acc = d if acc is None else acc + d
        y_ref[0] = acc
        s_ref[0, :, 0:1] = jnp.sum(acc, axis=1, keepdims=True)
        s_ref[0, :, 1:2] = jnp.sum(acc * acc, axis=1, keepdims=True)

    in_specs = [pl.BlockSpec((1, cin, x.shape[2]), lambda b: (b, 0, 0)) for x in xs]
    in_specs.append(pl.BlockSpec((K, cout, cin), lambda b: (0, 0, 0)))

    y, sums = pl.pallas_call(
        kernel,
        out_shape=(jax.ShapeDtypeStruct((B, cout, t_out), F32),
                   jax.ShapeDtypeStruct((B, cout, 2), F32)),
        grid=(B,),
        in_specs=in_specs,
        out_specs=(pl.BlockSpec((1, cout, t_out), lambda b: (b, 0, 0)),
                   pl.BlockSpec((1, cout, 2), lambda b: (b, 0, 0))),
        compiler_params=pltpu.CompilerParams(dimension_semantics=("parallel",)),
    )(*[x.astype(F32) for x in xs], w_taps.astype(F32))
    return y, sums


def conv_k3(x, w, stride=1):
    """Conv1d(kernel=3, padding=1, stride in {1,2}).  Returns (y, stats, strided view)."""
    B, cin, T = x.shape
    wt = jnp.transpose(w, (2, 0, 1))                       # (3, Cout, Cin)
    xp = jnp.pad(x, ((0, 0), (0, 0), (1, 1)))
    if stride == 1:
        y, sums = conv_taps([xp], [(0, 0), (0, 1), (0, 2)], wt, T)
        return y, sums, None
    assert stride == 2 and T % 2 == 0
    # De-interleave once so every tap of the strided conv is an unstrided slice.
    xr = xp.reshape(B, cin, (T + 2) // 2, 2)
    xe = xr[..., 0]                                        # xp[0], xp[2], ...
    xo = xr[..., 1]                                        # xp[1], xp[3], ... = x[0], x[2], ...
    t_out = T // 2
    # out[t] = w0 @ xp[2t] + w1 @ xp[2t+1] + w2 @ xp[2t+2]
    y, sums = conv_taps([xe, xo], [(0, 0), (1, 0), (0, 1)], wt, t_out)
    return y, sums, xo


def conv_1x1(x_sub, w, t_out):
    """Pointwise conv on an already-strided view x_sub (B, Cin, >= t_out)."""
    wt = jnp.transpose(w, (2, 0, 1))                       # (1, Cout, Cin)
    return conv_taps([x_sub], [(0, 0)], wt, t_out)


# --------------------- fused BN apply / residual / act ----------------------

def affine_act(y, scale, shift, act="relu", residual=None,
               res_scale=None, res_shift=None, emit_chan_pool=False):
    """out = act(y*scale + shift [+ residual(*res_scale + res_shift)]).

    scale/shift are per-channel vectors broadcast inside the kernel.  If
    emit_chan_pool, also emits per-(batch, channel) mean/max over time of the
    activated output (feeds the CBAM channel-attention MLP with no extra pass).
    """
    B, C, T = y.shape
    has_res = residual is not None
    has_res_aff = res_scale is not None

    inputs = [y.astype(F32),
              scale.reshape(C, 1).astype(F32),
              shift.reshape(C, 1).astype(F32)]
    in_specs = [pl.BlockSpec((1, C, T), lambda b: (b, 0, 0)),
                pl.BlockSpec((C, 1), lambda b: (0, 0)),
                pl.BlockSpec((C, 1), lambda b: (0, 0))]
    if has_res:
        inputs.append(residual.astype(F32))
        in_specs.append(pl.BlockSpec((1, C, T), lambda b: (b, 0, 0)))
        if has_res_aff:
            inputs += [res_scale.reshape(C, 1).astype(F32),
                       res_shift.reshape(C, 1).astype(F32)]
            in_specs += [pl.BlockSpec((C, 1), lambda b: (0, 0)),
                         pl.BlockSpec((C, 1), lambda b: (0, 0))]
    n_in = len(inputs)

    def kernel(*refs):
        y_ref, s_ref, t_ref = refs[0], refs[1], refs[2]
        o_ref = refs[n_in]
        v = y_ref[0] * s_ref[...] + t_ref[...]
        if has_res:
            r = refs[3][0]
            if has_res_aff:
                r = r * refs[4][...] + refs[5][...]
            v = v + r
        if act == "relu":
            v = jnp.maximum(v, 0.0)
        o_ref[0] = v
        if emit_chan_pool:
            p_ref = refs[n_in + 1]
            p_ref[0, :, 0:1] = jnp.mean(v, axis=1, keepdims=True)
            p_ref[0, :, 1:2] = jnp.max(v, axis=1, keepdims=True)

    out_shape = [jax.ShapeDtypeStruct((B, C, T), F32)]
    out_specs = [pl.BlockSpec((1, C, T), lambda b: (b, 0, 0))]
    if emit_chan_pool:
        out_shape.append(jax.ShapeDtypeStruct((B, C, 2), F32))
        out_specs.append(pl.BlockSpec((1, C, 2), lambda b: (b, 0, 0)))

    outs = pl.pallas_call(
        kernel,
        out_shape=tuple(out_shape),
        grid=(B,),
        in_specs=in_specs,
        out_specs=tuple(out_specs),
        compiler_params=pltpu.CompilerParams(dimension_semantics=("parallel",)),
    )(*inputs)
    return outs if emit_chan_pool else outs[0]


def bn_affine(sums, count, gamma, beta, eps=1e-5):
    """Training-mode BatchNorm1d (biased batch variance) -> per-channel scale/shift."""
    s = jnp.sum(sums[:, :, 0], axis=0)
    ss = jnp.sum(sums[:, :, 1], axis=0)
    mean = s / count
    var = jnp.maximum(ss / count - mean * mean, 0.0)
    scale = gamma * lax.rsqrt(var + eps)
    return scale, beta - mean * scale


# --------------------------------- CBAM --------------------------------------

def cbam_spatial_apply(x, scale_ch, w_sp):
    """Apply channel scale, then spatial attention (k=7 conv over [avg;max]) in one kernel."""
    B, C, T = x.shape
    ks = w_sp.shape[-1]
    pad = ks // 2
    w2 = w_sp.reshape(2, ks).astype(F32)                   # row0: avg taps, row1: max taps
    sch = scale_ch.reshape(B, C, 1).astype(F32)

    def kernel(x_ref, ch_ref, w_ref, o_ref, sp_ref):
        xv = x_ref[0] * ch_ref[0]                          # (C, T) channel-scaled
        sp_ref[...] = jnp.zeros_like(sp_ref)
        sp_ref[0:1, pad:pad + T] = jnp.mean(xv, axis=0, keepdims=True)
        sp_ref[1:2, pad:pad + T] = jnp.max(xv, axis=0, keepdims=True)
        acc = jnp.zeros((1, T), F32)
        for k in range(ks):
            acc = (acc
                   + w_ref[0:1, k:k + 1] * sp_ref[0:1, k:k + T]
                   + w_ref[1:2, k:k + 1] * sp_ref[1:2, k:k + T])
        o_ref[0] = xv * jax.nn.sigmoid(acc)

    return pl.pallas_call(
        kernel,
        out_shape=jax.ShapeDtypeStruct((B, C, T), F32),
        grid=(B,),
        in_specs=[pl.BlockSpec((1, C, T), lambda b: (b, 0, 0)),
                  pl.BlockSpec((1, C, 1), lambda b: (b, 0, 0)),
                  pl.BlockSpec((2, ks), lambda b: (0, 0))],
        out_specs=pl.BlockSpec((1, C, T), lambda b: (b, 0, 0)),
        scratch_shapes=[pltpu.VMEM((2, T + 2 * pad), F32)],
        compiler_params=pltpu.CompilerParams(dimension_semantics=("parallel",)),
    )(x.astype(F32), sch, w2)


def cbam_apply(x, pool, p):
    # Channel-attention MLP on (B, C) pooled stats: microscopic, kept in XLA on purpose.
    avg, mx = pool[:, :, 0], pool[:, :, 1]

    def mlp(v):
        return jnp.maximum(v @ p["fc1_w"].T, 0.0) @ p["fc2_w"].T

    scale_ch = jax.nn.sigmoid(mlp(avg) + mlp(mx))          # (B, C)
    return cbam_spatial_apply(x, scale_ch, p["conv_sp_w"])


# --------------------------- fused linear layers -----------------------------

def _largest_tile(k, cap=2048):
    best = 0
    for d in range(8, min(k, cap) + 1, 8):
        if k % d == 0:
            best = d
    return best


def linear(x, w, b, act="none"):
    """x @ w.T + b with fused bias/activation epilogue (bf16 MXU, f32 accumulate)."""
    M, K = x.shape
    N = w.shape[0]
    wt = jnp.transpose(w).astype(F32)                      # (K, N)
    b2 = b.reshape(1, N).astype(F32)
    x = x.astype(F32)

    if K <= 2048:
        def small_kernel(x_ref, w_ref, b_ref, o_ref):
            v = jnp.dot(x_ref[...].astype(BF16), w_ref[...].astype(BF16),
                        preferred_element_type=jnp.float32) + b_ref[...]
            if act == "relu":
                v = jnp.maximum(v, 0.0)
            o_ref[...] = v

        return pl.pallas_call(
            small_kernel, out_shape=jax.ShapeDtypeStruct((M, N), F32),
        )(x, wt, b2)

    tk = _largest_tile(K)
    assert tk > 0, f"no valid K tile for K={K}"
    nk = K // tk
    xt = jnp.transpose(x)                                  # (K, M)

    def kernel(x_ref, w_ref, b_ref, o_ref, acc_ref):
        @pl.when(pl.program_id(0) == 0)
        def _():
            acc_ref[...] = jnp.zeros_like(acc_ref)

        acc_ref[...] += lax.dot_general(
            x_ref[...].astype(BF16), w_ref[...].astype(BF16),
            dimension_numbers=(((0,), (0,)), ((), ())),
            preferred_element_type=jnp.float32)

        @pl.when(pl.program_id(0) == nk - 1)
        def _():
            v = acc_ref[...] + b_ref[...]
            if act == "relu":
                v = jnp.maximum(v, 0.0)
            o_ref[...] = v

    return pl.pallas_call(
        kernel,
        out_shape=jax.ShapeDtypeStruct((M, N), F32),
        grid=(nk,),
        in_specs=[pl.BlockSpec((tk, M), lambda k: (k, 0)),
                  pl.BlockSpec((tk, N), lambda k: (k, 0)),
                  pl.BlockSpec((1, N), lambda k: (0, 0))],
        out_specs=pl.BlockSpec((M, N), lambda k: (0, 0)),
        scratch_shapes=[pltpu.VMEM((M, N), jnp.float32)],
        compiler_params=pltpu.CompilerParams(dimension_semantics=("arbitrary",)),
    )(xt, wt, b2)


# --------------------------------- model ------------------------------------

def res_block(x, p, stride, use_cbam):
    B = x.shape[0]
    y1, s1, x_strided = conv_k3(x, p["conv1_w"], stride=stride)
    t_out = y1.shape[2]
    sc1, sh1 = bn_affine(s1, B * t_out, p["bn1_g"], p["bn1_b"])
    a1 = affine_act(y1, sc1, sh1, act="relu")

    y2, s2, _ = conv_k3(a1, p["conv2_w"], stride=1)
    sc2, sh2 = bn_affine(s2, B * t_out, p["bn2_g"], p["bn2_b"])

    if "down_w" in p:
        x_sub = x_strided if x_strided is not None else x
        yd, sd = conv_1x1(x_sub, p["down_w"], t_out)
        scd, shd = bn_affine(sd, B * t_out, p["dbn_g"], p["dbn_b"])
        out = affine_act(y2, sc2, sh2, act="relu",
                         residual=yd, res_scale=scd, res_shift=shd,
                         emit_chan_pool=use_cbam)
    else:
        out = affine_act(y2, sc2, sh2, act="relu", residual=x,
                         emit_chan_pool=use_cbam)

    if use_cbam:
        out, pool = out
        out = cbam_apply(out, pool, p["cbam"])
    return out


def forward(params, wave, extra):
    """wave: (B, 2, T), extra: (B, 6) -> (B, 2)."""
    B, _, T = wave.shape
    y0, s0, _ = conv_k3(wave, params["conv1_w"], stride=1)
    sc0, sh0 = bn_affine(s0, B * T, params["bn1_g"], params["bn1_b"])
    x = affine_act(y0, sc0, sh0, act="relu")

    x = res_block(x, params["res1"], stride=1, use_cbam=False)
    x = res_block(x, params["res2"], stride=2, use_cbam=True)
    x = res_block(x, params["res3"], stride=1, use_cbam=False)

    flat = x.reshape(B, -1)                                # (B, 2*base_ch*(T//2))
    h = linear(flat, params["fc_hidden_w"], params["fc_hidden_b"], act="relu")
    dem = linear(extra, params["dem_fc_w"], params["dem_fc_b"], act="relu")
    cat = jnp.concatenate([h, dem], axis=1)
    c = linear(cat, params["fc_dem_w"], params["fc_dem_b"], act="relu")
    return linear(c, params["fc_out_w"], params["fc_out_b"], act="none")


# --------------------------- deterministic init ------------------------------

def init_params(key, base_ch=32, T=1250):
    keys = iter(jax.random.split(key, 32))

    def w(shape):
        return 0.05 * jax.random.normal(next(keys), shape, F32)

    def bn(c):
        return jnp.ones((c,), F32), jnp.zeros((c,), F32)

    def resblock(in_ch, out_ch, stride, use_cbam, reduction=16):
        p = {"conv1_w": w((out_ch, in_ch, 3)),
             "conv2_w": w((out_ch, out_ch, 3))}
        p["bn1_g"], p["bn1_b"] = bn(out_ch)
        p["bn2_g"], p["bn2_b"] = bn(out_ch)
        if stride != 1 or in_ch != out_ch:
            p["down_w"] = w((out_ch, in_ch, 1))
            p["dbn_g"], p["dbn_b"] = bn(out_ch)
        if use_cbam:
            p["cbam"] = {"fc1_w": w((out_ch // reduction, out_ch)),
                         "fc2_w": w((out_ch, out_ch // reduction)),
                         "conv_sp_w": w((1, 2, 7))}
        return p

    params = {"conv1_w": w((base_ch, 2, 3))}
    params["bn1_g"], params["bn1_b"] = bn(base_ch)
    params["res1"] = resblock(base_ch, base_ch, 1, False)
    params["res2"] = resblock(base_ch, base_ch * 2, 2, True)
    params["res3"] = resblock(base_ch * 2, base_ch * 2, 1, False)
    params["dem_fc_w"] = w((base_ch, 6))
    params["dem_fc_b"] = w((base_ch,))
    flat_dim = base_ch * 2 * (T // 2)
    params["fc_hidden_w"] = w((128, flat_dim))
    params["fc_hidden_b"] = w((128,))
    params["fc_dem_w"] = w((64, base_ch + 128))
    params["fc_dem_b"] = w((64,))
    params["fc_out_w"] = w((2, 64))
    params["fc_out_b"] = w((2,))
    return params


# --------------------------------- driver ------------------------------------

if __name__ == "__main__":
    # Small shapes consistent with the module: (B, 2, T) wave, (B, 6) demographics.
    B, T, base_ch = 2, 128, 32
    key = jax.random.PRNGKey(0)
    k_wave, k_extra, k_params = jax.random.split(key, 3)
    wave = jax.random.normal(k_wave, (B, 2, T), F32)
    extra = jax.random.normal(k_extra, (B, 6), F32)
    params = init_params(k_params, base_ch=base_ch, T=T)

    fwd = jax.jit(forward)
    out = jax.block_until_ready(fwd(params, wave, extra))
    assert out.shape == (B, 2) and out.dtype == F32
    print("KERNEL_OK")
</pallas_src>

<mosaic_0001>
module attributes {stable_mosaic.version = 11 : i64} {
  func.func @kernel(%arg0: i32, %arg1: memref<1x2x130xf32, #tpu.memory_space<vmem>>, %arg2: memref<3x32x2xf32, #tpu.memory_space<vmem>>, %arg3: memref<1x32x128xf32, #tpu.memory_space<vmem>>, %arg4: memref<1x32x2xf32, #tpu.memory_space<vmem>>) attributes {dimension_semantics = [#tpu.dimension_semantics<parallel>], iteration_bounds = array<i64: 2>, scalar_prefetch = 0 : i64, scratch_operands = 0 : i64, tpu.core_type = #tpu.core_type<tc>, window_params = [{transform_indices = @transform_0, window_bounds = array<i64: 1, 2, 130>}, {pipeline_mode = #tpu.pipeline_mode<synchronous>, transform_indices = @transform_1, window_bounds = array<i64: 3, 32, 2>}, {transform_indices = @transform_2, window_bounds = array<i64: 1, 32, 128>}, {transform_indices = @transform_3, window_bounds = array<i64: 1, 32, 2>}]} {
    %c0 = arith.constant 0 : index
    %c0_0 = arith.constant 0 : index
    %c0_1 = arith.constant 0 : index
    %0 = vector.load %arg1[%c0, %c0_0, %c0_1] : memref<1x2x130xf32, #tpu.memory_space<vmem>>, vector<1x2x128xf32>
    %1 = vector.shape_cast %0 : vector<1x2x128xf32> to vector<2x128xf32>
    %2 = arith.truncf %1 : vector<2x128xf32> to vector<2x128xbf16>
    %c0_2 = arith.constant 0 : index
    %c0_3 = arith.constant 0 : index
    %c0_4 = arith.constant 0 : index
    %3 = vector.load %arg2[%c0_2, %c0_3, %c0_4] : memref<3x32x2xf32, #tpu.memory_space<vmem>>, vector<1x32x2xf32>
    %4 = vector.shape_cast %3 : vector<1x32x2xf32> to vector<32x2xf32>
    %5 = arith.truncf %4 : vector<32x2xf32> to vector<32x2xbf16>
    %cst = arith.constant dense<0.000000e+00> : vector<32x128xf32>
    %6 = tpu.matmul %5, %2, %cst {dimension_numbers = #tpu.dot_dimension_numbers<[1], [0], [0], [1], [0, 0, 1, 1], [], []>} : vector<32x2xbf16>, vector<2x128xbf16>, vector<32x128xf32> -> vector<32x128xf32>
    %c0_5 = arith.constant 0 : index
    %c0_6 = arith.constant 0 : index
    %c1 = arith.constant 1 : index
    %7 = vector.load %arg1[%c0_5, %c0_6, %c1] : memref<1x2x130xf32, #tpu.memory_space<vmem>>, vector<1x2x128xf32>
    %8 = vector.shape_cast %7 : vector<1x2x128xf32> to vector<2x128xf32>
    %9 = arith.truncf %8 : vector<2x128xf32> to vector<2x128xbf16>
    %c1_7 = arith.constant 1 : index
    %c0_8 = arith.constant 0 : index
    %c0_9 = arith.constant 0 : index
    %10 = vector.load %arg2[%c1_7, %c0_8, %c0_9] : memref<3x32x2xf32, #tpu.memory_space<vmem>>, vector<1x32x2xf32>
    %11 = vector.shape_cast %10 : vector<1x32x2xf32> to vector<32x2xf32>
    %12 = arith.truncf %11 : vector<32x2xf32> to vector<32x2xbf16>
    %cst_10 = arith.constant dense<0.000000e+00> : vector<32x128xf32>
    %13 = tpu.matmul %12, %9, %cst_10 {dimension_numbers = #tpu.dot_dimension_numbers<[1], [0], [0], [1], [0, 0, 1, 1], [], []>} : vector<32x2xbf16>, vector<2x128xbf16>, vector<32x128xf32> -> vector<32x128xf32>
    %14 = arith.addf %6, %13 : vector<32x128xf32>
    %c0_11 = arith.constant 0 : index
    %c0_12 = arith.constant 0 : index
    %c2 = arith.constant 2 : index
    %15 = vector.load %arg1[%c0_11, %c0_12, %c2] : memref<1x2x130xf32, #tpu.memory_space<vmem>>, vector<1x2x128xf32>
    %16 = vector.shape_cast %15 : vector<1x2x128xf32> to vector<2x128xf32>
    %17 = arith.truncf %16 : vector<2x128xf32> to vector<2x128xbf16>
    %c2_13 = arith.constant 2 : index
    %c0_14 = arith.constant 0 : index
    %c0_15 = arith.constant 0 : index
    %18 = vector.load %arg2[%c2_13, %c0_14, %c0_15] : memref<3x32x2xf32, #tpu.memory_space<vmem>>, vector<1x32x2xf32>
    %19 = vector.shape_cast %18 : vector<1x32x2xf32> to vector<32x2xf32>
    %20 = arith.truncf %19 : vector<32x2xf32> to vector<32x2xbf16>
    %cst_16 = arith.constant dense<0.000000e+00> : vector<32x128xf32>
    %21 = tpu.matmul %20, %17, %cst_16 {dimension_numbers = #tpu.dot_dimension_numbers<[1], [0], [0], [1], [0, 0, 1, 1], [], []>} : vector<32x2xbf16>, vector<2x128xbf16>, vector<32x128xf32> -> vector<32x128xf32>
    %22 = arith.addf %14, %21 : vector<32x128xf32>
    %c0_17 = arith.constant 0 : index
    %c0_18 = arith.constant 0 : index
    %c0_19 = arith.constant 0 : index
    %23 = vector.load %arg3[%c0_17, %c0_18, %c0_19] : memref<1x32x128xf32, #tpu.memory_space<vmem>>, vector<1x32x128xf32>
    %24 = vector.shape_cast %23 : vector<1x32x128xf32> to vector<32x128xf32>
    %25 = vector.shape_cast %22 : vector<32x128xf32> to vector<1x32x128xf32>
    tpu.vector_store %arg3[%c0_17, %c0_18, %c0_19], %25 {strides = array<i32>} : memref<1x32x128xf32, #tpu.memory_space<vmem>>, vector<1x32x128xf32>,
    %cst_20 = arith.constant dense<0.000000e+00> : vector<32xf32>
    %26 = vector.multi_reduction <add>, %22, %cst_20 [1] : vector<32x128xf32> to vector<32xf32>
    %27 = vector.shape_cast %26 : vector<32xf32> to vector<32x1xf32>
    %c0_21 = arith.constant 0 : index
    %c0_22 = arith.constant 0 : index
    %c0_23 = arith.constant 0 : index
    %28 = vector.load %arg4[%c0_21, %c0_22, %c0_23] : memref<1x32x2xf32, #tpu.memory_space<vmem>>, vector<1x32x1xf32>
    %29 = vector.shape_cast %28 : vector<1x32x1xf32> to vector<32x1xf32>
    %30 = vector.shape_cast %27 : vector<32x1xf32> to vector<1x32x1xf32>
    tpu.vector_store %arg4[%c0_21, %c0_22, %c0_23], %30 {strides = array<i32>} : memref<1x32x2xf32, #tpu.memory_space<vmem>>, vector<1x32x1xf32>,
    %31 = arith.mulf %22, %22 : vector<32x128xf32>
    %cst_24 = arith.constant dense<0.000000e+00> : vector<32xf32>
    %32 = vector.multi_reduction <add>, %31, %cst_24 [1] : vector<32x128xf32> to vector<32xf32>
    %33 = vector.shape_cast %32 : vector<32xf32> to vector<32x1xf32>
    %c0_25 = arith.constant 0 : index
    %c0_26 = arith.constant 0 : index
    %c1_27 = arith.constant 1 : index
    %34 = vector.load %arg4[%c0_25, %c0_26, %c1_27] : memref<1x32x2xf32, #tpu.memory_space<vmem>>, vector<1x32x1xf32>
    %35 = vector.shape_cast %34 : vector<1x32x1xf32> to vector<32x1xf32>
    %36 = vector.shape_cast %33 : vector<32x1xf32> to vector<1x32x1xf32>
    tpu.vector_store %arg4[%c0_25, %c0_26, %c1_27], %36 {strides = array<i32>} : memref<1x32x2xf32, #tpu.memory_space<vmem>>, vector<1x32x1xf32>,
    return
  }
  func.func @transform_0(%arg0: i32) -> (i32, i32, i32) {
    %c0_i32 = arith.constant 0 : i32
    %c0_i32_0 = arith.constant 0 : i32
    %c0_i32_1 = arith.constant 0 : i32
    return %arg0, %c0_i32, %c0_i32_0 : i32, i32, i32
  }
  func.func @transform_1(%arg0: i32) -> (i32, i32, i32) {
    %c0_i32 = arith.constant 0 : i32
    %c0_i32_0 = arith.constant 0 : i32
    %c0_i32_1 = arith.constant 0 : i32
    %c0_i32_2 = arith.constant 0 : i32
    return %c0_i32, %c0_i32_0, %c0_i32_1 : i32, i32, i32
  }
  func.func @transform_2(%arg0: i32) -> (i32, i32, i32) {
    %c0_i32 = arith.constant 0 : i32
    %c0_i32_0 = arith.constant 0 : i32
    %c0_i32_1 = arith.constant 0 : i32
    return %arg0, %c0_i32, %c0_i32_0 : i32, i32, i32
  }
  func.func @transform_3(%arg0: i32) -> (i32, i32, i32) {
    %c0_i32 = arith.constant 0 : i32
    %c0_i32_0 = arith.constant 0 : i32
    %c0_i32_1 = arith.constant 0 : i32
    return %arg0, %c0_i32, %c0_i32_0 : i32, i32, i32
  }
}

module attributes {stable_mosaic.version = 11 : i64} {
  func.func @kernel(%arg0: i32, %arg1: memref<1x32x128xf32, #tpu.memory_space<vmem>>, %arg2: memref<32x1xf32, #tpu.memory_space<vmem>>, %arg3: memref<32x1xf32, #tpu.memory_space<vmem>>, %arg4: memref<1x32x128xf32, #tpu.memory_space<vmem>>) attributes {dimension_semantics = [#tpu.dimension_semantics<parallel>], iteration_bounds = array<i64: 2>, scalar_prefetch = 0 : i64, scratch_operands = 0 : i64, tpu.core_type = #tpu.core_type<tc>, window_params = [{transform_indices = @transform_0, window_bounds = array<i64: 1, 32, 128>}, {pipeline_mode = #tpu.pipeline_mode<synchronous>, transform_indices = @transform_1, window_bounds = array<i64: 32, 1>}, {pipeline_mode = #tpu.pipeline_mode<synchronous>, transform_indices = @transform_2, window_bounds = array<i64: 32, 1>}, {transform_indices = @transform_3, window_bounds = array<i64: 1, 32, 128>}]} {
    %c0 = arith.constant 0 : index
    %c0_0 = arith.constant 0 : index
    %c0_1 = arith.constant 0 : index
    %0 = vector.load %arg1[%c0, %c0_0, %c0_1] : memref<1x32x128xf32, #tpu.memory_space<vmem>>, vector<1x32x128xf32>
    %1 = vector.shape_cast %0 : vector<1x32x128xf32> to vector<32x128xf32>
    %c0_2 = arith.constant 0 : index
    %c0_3 = arith.constant 0 : index
    %2 = vector.load %arg2[%c0_2, %c0_3] : memref<32x1xf32, #tpu.memory_space<vmem>>, vector<32x1xf32>
    %3 = vector.broadcast %2 : vector<32x1xf32> to vector<32x128xf32>
    %4 = arith.mulf %1, %3 : vector<32x128xf32>
    %c0_4 = arith.constant 0 : index
    %c0_5 = arith.constant 0 : index
    %5 = vector.load %arg3[%c0_4, %c0_5] : memref<32x1xf32, #tpu.memory_space<vmem>>, vector<32x1xf32>
    %6 = vector.broadcast %5 : vector<32x1xf32> to vector<32x128xf32>
    %7 = arith.addf %4, %6 : vector<32x128xf32>
    %cst = arith.constant 0.000000e+00 : f32
    %8 = vector.broadcast %cst : f32 to vector<32x128xf32>
    %9 = arith.maximumf %7, %8 : vector<32x128xf32>
    %c0_6 = arith.constant 0 : index
    %c0_7 = arith.constant 0 : index
    %c0_8 = arith.constant 0 : index
    %10 = vector.load %arg4[%c0_6, %c0_7, %c0_8] : memref<1x32x128xf32, #tpu.memory_space<vmem>>, vector<1x32x128xf32>
    %11 = vector.shape_cast %10 : vector<1x32x128xf32> to vector<32x128xf32>
    %12 = vector.shape_cast %9 : vector<32x128xf32> to vector<1x32x128xf32>
    tpu.vector_store %arg4[%c0_6, %c0_7, %c0_8], %12 {strides = array<i32>} : memref<1x32x128xf32, #tpu.memory_space<vmem>>, vector<1x32x128xf32>,
    return
  }
  func.func @transform_0(%arg0: i32) -> (i32, i32, i32) {
    %c0_i32 = arith.constant 0 : i32
    %c0_i32_0 = arith.constant 0 : i32
    %c0_i32_1 = arith.constant 0 : i32
    return %arg0, %c0_i32, %c0_i32_0 : i32, i32, i32
  }
  func.func @transform_1(%arg0: i32) -> (i32, i32) {
    %c0_i32 = arith.constant 0 : i32
    %c0_i32_0 = arith.constant 0 : i32
    %c0_i32_1 = arith.constant 0 : i32
    return %c0_i32, %c0_i32_0 : i32, i32
  }
  func.func @transform_2(%arg0: i32) -> (i32, i32) {
    %c0_i32 = arith.constant 0 : i32
    %c0_i32_0 = arith.constant 0 : i32
    %c0_i32_1 = arith.constant 0 : i32
    return %c0_i32, %c0_i32_0 : i32, i32
  }
  func.func @transform_3(%arg0: i32) -> (i32, i32, i32) {
    %c0_i32 = arith.constant 0 : i32
    %c0_i32_0 = arith.constant 0 : i32
    %c0_i32_1 = arith.constant 0 : i32
    return %arg0, %c0_i32, %c0_i32_0 : i32, i32, i32
  }
}

module attributes {stable_mosaic.version = 11 : i64} {
  func.func @kernel(%arg0: i32, %arg1: memref<1x32x130xf32, #tpu.memory_space<vmem>>, %arg2: memref<3x32x32xf32, #tpu.memory_space<vmem>>, %arg3: memref<1x32x128xf32, #tpu.memory_space<vmem>>, %arg4: memref<1x32x2xf32, #tpu.memory_space<vmem>>) attributes {dimension_semantics = [#tpu.dimension_semantics<parallel>], iteration_bounds = array<i64: 2>, scalar_prefetch = 0 : i64, scratch_operands = 0 : i64, tpu.core_type = #tpu.core_type<tc>, window_params = [{transform_indices = @transform_0, window_bounds = array<i64: 1, 32, 130>}, {pipeline_mode = #tpu.pipeline_mode<synchronous>, transform_indices = @transform_1, window_bounds = array<i64: 3, 32, 32>}, {transform_indices = @transform_2, window_bounds = array<i64: 1, 32, 128>}, {transform_indices = @transform_3, window_bounds = array<i64: 1, 32, 2>}]} {
    %c0 = arith.constant 0 : index
    %c0_0 = arith.constant 0 : index
    %c0_1 = arith.constant 0 : index
    %0 = vector.load %arg1[%c0, %c0_0, %c0_1] : memref<1x32x130xf32, #tpu.memory_space<vmem>>, vector<1x32x128xf32>
    %1 = vector.shape_cast %0 : vector<1x32x128xf32> to vector<32x128xf32>
    %2 = arith.truncf %1 : vector<32x128xf32> to vector<32x128xbf16>
    %c0_2 = arith.constant 0 : index
    %c0_3 = arith.constant 0 : index
    %c0_4 = arith.constant 0 : index
    %3 = vector.load %arg2[%c0_2, %c0_3, %c0_4] : memref<3x32x32xf32, #tpu.memory_space<vmem>>, vector<1x32x32xf32>
    %4 = vector.shape_cast %3 : vector<1x32x32xf32> to vector<32x32xf32>
    %5 = arith.truncf %4 : vector<32x32xf32> to vector<32x32xbf16>
    %cst = arith.constant dense<0.000000e+00> : vector<32x128xf32>
    %6 = tpu.matmul %5, %2, %cst {dimension_numbers = #tpu.dot_dimension_numbers<[1], [0], [0], [1], [0, 0, 1, 1], [], []>} : vector<32x32xbf16>, vector<32x128xbf16>, vector<32x128xf32> -> vector<32x128xf32>
    %c0_5 = arith.constant 0 : index
    %c0_6 = arith.constant 0 : index
    %c1 = arith.constant 1 : index
    %7 = vector.load %arg1[%c0_5, %c0_6, %c1] : memref<1x32x130xf32, #tpu.memory_space<vmem>>, vector<1x32x128xf32>
    %8 = vector.shape_cast %7 : vector<1x32x128xf32> to vector<32x128xf32>
    %9 = arith.truncf %8 : vector<32x128xf32> to vector<32x128xbf16>
    %c1_7 = arith.constant 1 : index
    %c0_8 = arith.constant 0 : index
    %c0_9 = arith.constant 0 : index
    %10 = vector.load %arg2[%c1_7, %c0_8, %c0_9] : memref<3x32x32xf32, #tpu.memory_space<vmem>>, vector<1x32x32xf32>
    %11 = vector.shape_cast %10 : vector<1x32x32xf32> to vector<32x32xf32>
    %12 = arith.truncf %11 : vector<32x32xf32> to vector<32x32xbf16>
    %cst_10 = arith.constant dense<0.000000e+00> : vector<32x128xf32>
    %13 = tpu.matmul %12, %9, %cst_10 {dimension_numbers = #tpu.dot_dimension_numbers<[1], [0], [0], [1], [0, 0, 1, 1], [], []>} : vector<32x32xbf16>, vector<32x128xbf16>, vector<32x128xf32> -> vector<32x128xf32>
    %14 = arith.addf %6, %13 : vector<32x128xf32>
    %c0_11 = arith.constant 0 : index
    %c0_12 = arith.constant 0 : index
    %c2 = arith.constant 2 : index
    %15 = vector.load %arg1[%c0_11, %c0_12, %c2] : memref<1x32x130xf32, #tpu.memory_space<vmem>>, vector<1x32x128xf32>
    %16 = vector.shape_cast %15 : vector<1x32x128xf32> to vector<32x128xf32>
    %17 = arith.truncf %16 : vector<32x128xf32> to vector<32x128xbf16>
    %c2_13 = arith.constant 2 : index
    %c0_14 = arith.constant 0 : index
    %c0_15 = arith.constant 0 : index
    %18 = vector.load %arg2[%c2_13, %c0_14, %c0_15] : memref<3x32x32xf32, #tpu.memory_space<vmem>>, vector<1x32x32xf32>
    %19 = vector.shape_cast %18 : vector<1x32x32xf32> to vector<32x32xf32>
    %20 = arith.truncf %19 : vector<32x32xf32> to vector<32x32xbf16>
    %cst_16 = arith.constant dense<0.000000e+00> : vector<32x128xf32>
    %21 = tpu.matmul %20, %17, %cst_16 {dimension_numbers = #tpu.dot_dimension_numbers<[1], [0], [0], [1], [0, 0, 1, 1], [], []>} : vector<32x32xbf16>, vector<32x128xbf16>, vector<32x128xf32> -> vector<32x128xf32>
    %22 = arith.addf %14, %21 : vector<32x128xf32>
    %c0_17 = arith.constant 0 : index
    %c0_18 = arith.constant 0 : index
    %c0_19 = arith.constant 0 : index
    %23 = vector.load %arg3[%c0_17, %c0_18, %c0_19] : memref<1x32x128xf32, #tpu.memory_space<vmem>>, vector<1x32x128xf32>
    %24 = vector.shape_cast %23 : vector<1x32x128xf32> to vector<32x128xf32>
    %25 = vector.shape_cast %22 : vector<32x128xf32> to vector<1x32x128xf32>
    tpu.vector_store %arg3[%c0_17, %c0_18, %c0_19], %25 {strides = array<i32>} : memref<1x32x128xf32, #tpu.memory_space<vmem>>, vector<1x32x128xf32>,
    %cst_20 = arith.constant dense<0.000000e+00> : vector<32xf32>
    %26 = vector.multi_reduction <add>, %22, %cst_20 [1] : vector<32x128xf32> to vector<32xf32>
    %27 = vector.shape_cast %26 : vector<32xf32> to vector<32x1xf32>
    %c0_21 = arith.constant 0 : index
    %c0_22 = arith.constant 0 : index
    %c0_23 = arith.constant 0 : index
    %28 = vector.load %arg4[%c0_21, %c0_22, %c0_23] : memref<1x32x2xf32, #tpu.memory_space<vmem>>, vector<1x32x1xf32>
    %29 = vector.shape_cast %28 : vector<1x32x1xf32> to vector<32x1xf32>
    %30 = vector.shape_cast %27 : vector<32x1xf32> to vector<1x32x1xf32>
    tpu.vector_store %arg4[%c0_21, %c0_22, %c0_23], %30 {strides = array<i32>} : memref<1x32x2xf32, #tpu.memory_space<vmem>>, vector<1x32x1xf32>,
    %31 = arith.mulf %22, %22 : vector<32x128xf32>
    %cst_24 = arith.constant dense<0.000000e+00> : vector<32xf32>
    %32 = vector.multi_reduction <add>, %31, %cst_24 [1] : vector<32x128xf32> to vector<32xf32>
    %33 = vector.shape_cast %32 : vector<32xf32> to vector<32x1xf32>
    %c0_25 = arith.constant 0 : index
    %c0_26 = arith.constant 0 : index
    %c1_27 = arith.constant 1 : index
    %34 = vector.load %arg4[%c0_25, %c0_26, %c1_27] : memref<1x32x2xf32, #tpu.memory_space<vmem>>, vector<1x32x1xf32>
    %35 = vector.shape_cast %34 : vector<1x32x1xf32> to vector<32x1xf32>
    %36 = vector.shape_cast %33 : vector<32x1xf32> to vector<1x32x1xf32>
    tpu.vector_store %arg4[%c0_25, %c0_26, %c1_27], %36 {strides = array<i32>} : memref<1x32x2xf32, #tpu.memory_space<vmem>>, vector<1x32x1xf32>,
    return
  }
  func.func @transform_0(%arg0: i32) -> (i32, i32, i32) {
    %c0_i32 = arith.constant 0 : i32
    %c0_i32_0 = arith.constant 0 : i32
    %c0_i32_1 = arith.constant 0 : i32
    return %arg0, %c0_i32, %c0_i32_0 : i32, i32, i32
  }
  func.func @transform_1(%arg0: i32) -> (i32, i32, i32) {
    %c0_i32 = arith.constant 0 : i32
    %c0_i32_0 = arith.constant 0 : i32
    %c0_i32_1 = arith.constant 0 : i32
    %c0_i32_2 = arith.constant 0 : i32
    return %c0_i32, %c0_i32_0, %c0_i32_1 : i32, i32, i32
  }
  func.func @transform_2(%arg0: i32) -> (i32, i32, i32) {
    %c0_i32 = arith.constant 0 : i32
    %c0_i32_0 = arith.constant 0 : i32
    %c0_i32_1 = arith.constant 0 : i32
    return %arg0, %c0_i32, %c0_i32_0 : i32, i32, i32
  }
  func.func @transform_3(%arg0: i32) -> (i32, i32, i32) {
    %c0_i32 = arith.constant 0 : i32
    %c0_i32_0 = arith.constant 0 : i32
    %c0_i32_1 = arith.constant 0 : i32
    return %arg0, %c0_i32, %c0_i32_0 : i32, i32, i32
  }
}

module attributes {stable_mosaic.version = 11 : i64} {
  func.func @kernel(%arg0: i32, %arg1: memref<1x32x128xf32, #tpu.memory_space<vmem>>, %arg2: memref<32x1xf32, #tpu.memory_space<vmem>>, %arg3: memref<32x1xf32, #tpu.memory_space<vmem>>, %arg4: memref<1x32x128xf32, #tpu.memory_space<vmem>>, %arg5: memref<1x32x128xf32, #tpu.memory_space<vmem>>) attributes {dimension_semantics = [#tpu.dimension_semantics<parallel>], iteration_bounds = array<i64: 2>, scalar_prefetch = 0 : i64, scratch_operands = 0 : i64, tpu.core_type = #tpu.core_type<tc>, window_params = [{transform_indices = @transform_0, window_bounds = array<i64: 1, 32, 128>}, {pipeline_mode = #tpu.pipeline_mode<synchronous>, transform_indices = @transform_1, window_bounds = array<i64: 32, 1>}, {pipeline_mode = #tpu.pipeline_mode<synchronous>, transform_indices = @transform_2, window_bounds = array<i64: 32, 1>}, {transform_indices = @transform_3, window_bounds = array<i64: 1, 32, 128>}, {transform_indices = @transform_4, window_bounds = array<i64: 1, 32, 128>}]} {
    %c0 = arith.constant 0 : index
    %c0_0 = arith.constant 0 : index
    %c0_1 = arith.constant 0 : index
    %0 = vector.load %arg1[%c0, %c0_0, %c0_1] : memref<1x32x128xf32, #tpu.memory_space<vmem>>, vector<1x32x128xf32>
    %1 = vector.shape_cast %0 : vector<1x32x128xf32> to vector<32x128xf32>
    %c0_2 = arith.constant 0 : index
    %c0_3 = arith.constant 0 : index
    %2 = vector.load %arg2[%c0_2, %c0_3] : memref<32x1xf32, #tpu.memory_space<vmem>>, vector<32x1xf32>
    %3 = vector.broadcast %2 : vector<32x1xf32> to vector<32x128xf32>
    %4 = arith.mulf %1, %3 : vector<32x128xf32>
    %c0_4 = arith.constant 0 : index
    %c0_5 = arith.constant 0 : index
    %5 = vector.load %arg3[%c0_4, %c0_5] : memref<32x1xf32, #tpu.memory_space<vmem>>, vector<32x1xf32>
    %6 = vector.broadcast %5 : vector<32x1xf32> to vector<32x128xf32>
    %7 = arith.addf %4, %6 : vector<32x128xf32>
    %c0_6 = arith.constant 0 : index
    %c0_7 = arith.constant 0 : index
    %c0_8 = arith.constant 0 : index
    %8 = vector.load %arg4[%c0_6, %c0_7, %c0_8] : memref<1x32x128xf32, #tpu.memory_space<vmem>>, vector<1x32x128xf32>
    %9 = vector.shape_cast %8 : vector<1x32x128xf32> to vector<32x128xf32>
    %10 = arith.addf %7, %9 : vector<32x128xf32>
    %cst = arith.constant 0.000000e+00 : f32
    %11 = vector.broadcast %cst : f32 to vector<32x128xf32>
    %12 = arith.maximumf %10, %11 : vector<32x128xf32>
    %c0_9 = arith.constant 0 : index
    %c0_10 = arith.constant 0 : index
    %c0_11 = arith.constant 0 : index
    %13 = vector.load %arg5[%c0_9, %c0_10, %c0_11] : memref<1x32x128xf32, #tpu.memory_space<vmem>>, vector<1x32x128xf32>
    %14 = vector.shape_cast %13 : vector<1x32x128xf32> to vector<32x128xf32>
    %15 = vector.shape_cast %12 : vector<32x128xf32> to vector<1x32x128xf32>
    tpu.vector_store %arg5[%c0_9, %c0_10, %c0_11], %15 {strides = array<i32>} : memref<1x32x128xf32, #tpu.memory_space<vmem>>, vector<1x32x128xf32>,
    return
  }
  func.func @transform_0(%arg0: i32) -> (i32, i32, i32) {
    %c0_i32 = arith.constant 0 : i32
    %c0_i32_0 = arith.constant 0 : i32
    %c0_i32_1 = arith.constant 0 : i32
    return %arg0, %c0_i32, %c0_i32_0 : i32, i32, i32
  }
  func.func @transform_1(%arg0: i32) -> (i32, i32) {
    %c0_i32 = arith.constant 0 : i32
    %c0_i32_0 = arith.constant 0 : i32
    %c0_i32_1 = arith.constant 0 : i32
    return %c0_i32, %c0_i32_0 : i32, i32
  }
  func.func @transform_2(%arg0: i32) -> (i32, i32) {
    %c0_i32 = arith.constant 0 : i32
    %c0_i32_0 = arith.constant 0 : i32
    %c0_i32_1 = arith.constant 0 : i32
    return %c0_i32, %c0_i32_0 : i32, i32
  }
  func.func @transform_3(%arg0: i32) -> (i32, i32, i32) {
    %c0_i32 = arith.constant 0 : i32
    %c0_i32_0 = arith.constant 0 : i32
    %c0_i32_1 = arith.constant 0 : i32
    return %arg0, %c0_i32, %c0_i32_0 : i32, i32, i32
  }
  func.func @transform_4(%arg0: i32) -> (i32, i32, i32) {
    %c0_i32 = arith.constant 0 : i32
    %c0_i32_0 = arith.constant 0 : i32
    %c0_i32_1 = arith.constant 0 : i32
    return %arg0, %c0_i32, %c0_i32_0 : i32, i32, i32
  }
}

module attributes {stable_mosaic.version = 11 : i64} {
  func.func @kernel(%arg0: i32, %arg1: memref<1x32x65xf32, #tpu.memory_space<vmem>>, %arg2: memref<1x64x32xf32, #tpu.memory_space<vmem>>, %arg3: memref<1x64x64xf32, #tpu.memory_space<vmem>>, %arg4: memref<1x64x2xf32, #tpu.memory_space<vmem>>) attributes {dimension_semantics = [#tpu.dimension_semantics<parallel>], iteration_bounds = array<i64: 2>, scalar_prefetch = 0 : i64, scratch_operands = 0 : i64, tpu.core_type = #tpu.core_type<tc>, window_params = [{transform_indices = @transform_0, window_bounds = array<i64: 1, 32, 65>}, {pipeline_mode = #tpu.pipeline_mode<synchronous>, transform_indices = @transform_1, window_bounds = array<i64: 1, 64, 32>}, {transform_indices = @transform_2, window_bounds = array<i64: 1, 64, 64>}, {transform_indices = @transform_3, window_bounds = array<i64: 1, 64, 2>}]} {
    %c0 = arith.constant 0 : index
    %c0_0 = arith.constant 0 : index
    %c0_1 = arith.constant 0 : index
    %0 = vector.load %arg1[%c0, %c0_0, %c0_1] : memref<1x32x65xf32, #tpu.memory_space<vmem>>, vector<1x32x64xf32>
    %1 = vector.shape_cast %0 : vector<1x32x64xf32> to vector<32x64xf32>
    %2 = arith.truncf %1 : vector<32x64xf32> to vector<32x64xbf16>
    %c0_2 = arith.constant 0 : index
    %c0_3 = arith.constant 0 : index
    %c0_4 = arith.constant 0 : index
    %3 = vector.load %arg2[%c0_2, %c0_3, %c0_4] : memref<1x64x32xf32, #tpu.memory_space<vmem>>, vector<1x64x32xf32>
    %4 = vector.shape_cast %3 : vector<1x64x32xf32> to vector<64x32xf32>
    %5 = arith.truncf %4 : vector<64x32xf32> to vector<64x32xbf16>
    %cst = arith.constant dense<0.000000e+00> : vector<64x64xf32>
    %6 = tpu.matmul %5, %2, %cst {dimension_numbers = #tpu.dot_dimension_numbers<[1], [0], [0], [1], [0, 0, 1, 1], [], []>} : vector<64x32xbf16>, vector<32x64xbf16>, vector<64x64xf32> -> vector<64x64xf32>
    %c0_5 = arith.constant 0 : index
    %c0_6 = arith.constant 0 : index
    %c0_7 = arith.constant 0 : index
    %7 = vector.load %arg3[%c0_5, %c0_6, %c0_7] : memref<1x64x64xf32, #tpu.memory_space<vmem>>, vector<1x64x64xf32>
    %8 = vector.shape_cast %7 : vector<1x64x64xf32> to vector<64x64xf32>
    %9 = vector.shape_cast %6 : vector<64x64xf32> to vector<1x64x64xf32>
    tpu.vector_store %arg3[%c0_5, %c0_6, %c0_7], %9 {strides = array<i32>} : memref<1x64x64xf32, #tpu.memory_space<vmem>>, vector<1x64x64xf32>,
    %cst_8 = arith.constant dense<0.000000e+00> : vector<64xf32>
    %10 = vector.multi_reduction <add>, %6, %cst_8 [1] : vector<64x64xf32> to vector<64xf32>
    %11 = vector.shape_cast %10 : vector<64xf32> to vector<64x1xf32>
    %c0_9 = arith.constant 0 : index
    %c0_10 = arith.constant 0 : index
    %c0_11 = arith.constant 0 : index
    %12 = vector.load %arg4[%c0_9, %c0_10, %c0_11] : memref<1x64x2xf32, #tpu.memory_space<vmem>>, vector<1x64x1xf32>
    %13 = vector.shape_cast %12 : vector<1x64x1xf32> to vector<64x1xf32>
    %14 = vector.shape_cast %11 : vector<64x1xf32> to vector<1x64x1xf32>
    tpu.vector_store %arg4[%c0_9, %c0_10, %c0_11], %14 {strides = array<i32>} : memref<1x64x2xf32, #tpu.memory_space<vmem>>, vector<1x64x1xf32>,
    %15 = arith.mulf %6, %6 : vector<64x64xf32>
    %cst_12 = arith.constant dense<0.000000e+00> : vector<64xf32>
    %16 = vector.multi_reduction <add>, %15, %cst_12 [1] : vector<64x64xf32> to vector<64xf32>
    %17 = vector.shape_cast %16 : vector<64xf32> to vector<64x1xf32>
    %c0_13 = arith.constant 0 : index
    %c0_14 = arith.constant 0 : index
    %c1 = arith.constant 1 : index
    %18 = vector.load %arg4[%c0_13, %c0_14, %c1] : memref<1x64x2xf32, #tpu.memory_space<vmem>>, vector<1x64x1xf32>
    %19 = vector.shape_cast %18 : vector<1x64x1xf32> to vector<64x1xf32>
    %20 = vector.shape_cast %17 : vector<64x1xf32> to vector<1x64x1xf32>
    tpu.vector_store %arg4[%c0_13, %c0_14, %c1], %20 {strides = array<i32>} : memref<1x64x2xf32, #tpu.memory_space<vmem>>, vector<1x64x1xf32>,
    return
  }
  func.func @transform_0(%arg0: i32) -> (i32, i32, i32) {
    %c0_i32 = arith.constant 0 : i32
    %c0_i32_0 = arith.constant 0 : i32
    %c0_i32_1 = arith.constant 0 : i32
    return %arg0, %c0_i32, %c0_i32_0 : i32, i32, i32
  }
  func.func @transform_1(%arg0: i32) -> (i32, i32, i32) {
    %c0_i32 = arith.constant 0 : i32
    %c0_i32_0 = arith.constant 0 : i32
    %c0_i32_1 = arith.constant 0 : i32
    %c0_i32_2 = arith.constant 0 : i32
    return %c0_i32, %c0_i32_0, %c0_i32_1 : i32, i32, i32
  }
  func.func @transform_2(%arg0: i32) -> (i32, i32, i32) {
    %c0_i32 = arith.constant 0 : i32
    %c0_i32_0 = arith.constant 0 : i32
    %c0_i32_1 = arith.constant 0 : i32
    return %arg0, %c0_i32, %c0_i32_0 : i32, i32, i32
  }
  func.func @transform_3(%arg0: i32) -> (i32, i32, i32) {
    %c0_i32 = arith.constant 0 : i32
    %c0_i32_0 = arith.constant 0 : i32
    %c0_i32_1 = arith.constant 0 : i32
    return %arg0, %c0_i32, %c0_i32_0 : i32, i32, i32
  }
}

module attributes {stable_mosaic.version = 11 : i64} {
  func.func @kernel(%arg0: i32, %arg1: memref<1x64x64xf32, #tpu.memory_space<vmem>>, %arg2: memref<64x1xf32, #tpu.memory_space<vmem>>, %arg3: memref<64x1xf32, #tpu.memory_space<vmem>>, %arg4: memref<1x64x64xf32, #tpu.memory_space<vmem>>) attributes {dimension_semantics = [#tpu.dimension_semantics<parallel>], iteration_bounds = array<i64: 2>, scalar_prefetch = 0 : i64, scratch_operands = 0 : i64, tpu.core_type = #tpu.core_type<tc>, window_params = [{transform_indices = @transform_0, window_bounds = array<i64: 1, 64, 64>}, {pipeline_mode = #tpu.pipeline_mode<synchronous>, transform_indices = @transform_1, window_bounds = array<i64: 64, 1>}, {pipeline_mode = #tpu.pipeline_mode<synchronous>, transform_indices = @transform_2, window_bounds = array<i64: 64, 1>}, {transform_indices = @transform_3, window_bounds = array<i64: 1, 64, 64>}]} {
    %c0 = arith.constant 0 : index
    %c0_0 = arith.constant 0 : index
    %c0_1 = arith.constant 0 : index
    %0 = vector.load %arg1[%c0, %c0_0, %c0_1] : memref<1x64x64xf32, #tpu.memory_space<vmem>>, vector<1x64x64xf32>
    %1 = vector.shape_cast %0 : vector<1x64x64xf32> to vector<64x64xf32>
    %c0_2 = arith.constant 0 : index
    %c0_3 = arith.constant 0 : index
    %2 = vector.load %arg2[%c0_2, %c0_3] : memref<64x1xf32, #tpu.memory_space<vmem>>, vector<64x1xf32>
    %3 = vector.broadcast %2 : vector<64x1xf32> to vector<64x64xf32>
    %4 = arith.mulf %1, %3 : vector<64x64xf32>
    %c0_4 = arith.constant 0 : index
    %c0_5 = arith.constant 0 : index
    %5 = vector.load %arg3[%c0_4, %c0_5] : memref<64x1xf32, #tpu.memory_space<vmem>>, vector<64x1xf32>
    %6 = vector.broadcast %5 : vector<64x1xf32> to vector<64x64xf32>
    %7 = arith.addf %4, %6 : vector<64x64xf32>
    %cst = arith.constant 0.000000e+00 : f32
    %8 = vector.broadcast %cst : f32 to vector<64x64xf32>
    %9 = arith.maximumf %7, %8 : vector<64x64xf32>
    %c0_6 = arith.constant 0 : index
    %c0_7 = arith.constant 0 : index
    %c0_8 = arith.constant 0 : index
    %10 = vector.load %arg4[%c0_6, %c0_7, %c0_8] : memref<1x64x64xf32, #tpu.memory_space<vmem>>, vector<1x64x64xf32>
    %11 = vector.shape_cast %10 : vector<1x64x64xf32> to vector<64x64xf32>
    %12 = vector.shape_cast %9 : vector<64x64xf32> to vector<1x64x64xf32>
    tpu.vector_store %arg4[%c0_6, %c0_7, %c0_8], %12 {strides = array<i32>} : memref<1x64x64xf32, #tpu.memory_space<vmem>>, vector<1x64x64xf32>,
    return
  }
  func.func @transform_0(%arg0: i32) -> (i32, i32, i32) {
    %c0_i32 = arith.constant 0 : i32
    %c0_i32_0 = arith.constant 0 : i32
    %c0_i32_1 = arith.constant 0 : i32
    return %arg0, %c0_i32, %c0_i32_0 : i32, i32, i32
  }
  func.func @transform_1(%arg0: i32) -> (i32, i32) {
    %c0_i32 = arith.constant 0 : i32
    %c0_i32_0 = arith.constant 0 : i32
    %c0_i32_1 = arith.constant 0 : i32
    return %c0_i32, %c0_i32_0 : i32, i32
  }
  func.func @transform_2(%arg0: i32) -> (i32, i32) {
    %c0_i32 = arith.constant 0 : i32
    %c0_i32_0 = arith.constant 0 : i32
    %c0_i32_1 = arith.constant 0 : i32
    return %c0_i32, %c0_i32_0 : i32, i32
  }
  func.func @transform_3(%arg0: i32) -> (i32, i32, i32) {
    %c0_i32 = arith.constant 0 : i32
    %c0_i32_0 = arith.constant 0 : i32
    %c0_i32_1 = arith.constant 0 : i32
    return %arg0, %c0_i32, %c0_i32_0 : i32, i32, i32
  }
}

module attributes {stable_mosaic.version = 11 : i64} {
  func.func @kernel(%arg0: i32, %arg1: memref<1x32x65xf32, #tpu.memory_space<vmem>>, %arg2: memref<1x32x65xf32, #tpu.memory_space<vmem>>, %arg3: memref<3x64x32xf32, #tpu.memory_space<vmem>>, %arg4: memref<1x64x64xf32, #tpu.memory_space<vmem>>, %arg5: memref<1x64x2xf32, #tpu.memory_space<vmem>>) attributes {dimension_semantics = [#tpu.dimension_semantics<parallel>], iteration_bounds = array<i64: 2>, scalar_prefetch = 0 : i64, scratch_operands = 0 : i64, tpu.core_type = #tpu.core_type<tc>, window_params = [{transform_indices = @transform_0, window_bounds = array<i64: 1, 32, 65>}, {transform_indices = @transform_1, window_bounds = array<i64: 1, 32, 65>}, {pipeline_mode = #tpu.pipeline_mode<synchronous>, transform_indices = @transform_2, window_bounds = array<i64: 3, 64, 32>}, {transform_indices = @transform_3, window_bounds = array<i64: 1, 64, 64>}, {transform_indices = @transform_4, window_bounds = array<i64: 1, 64, 2>}]} {
    %c0 = arith.constant 0 : index
    %c0_0 = arith.constant 0 : index
    %c0_1 = arith.constant 0 : index
    %0 = vector.load %arg1[%c0, %c0_0, %c0_1] : memref<1x32x65xf32, #tpu.memory_space<vmem>>, vector<1x32x64xf32>
    %1 = vector.shape_cast %0 : vector<1x32x64xf32> to vector<32x64xf32>
    %2 = arith.truncf %1 : vector<32x64xf32> to vector<32x64xbf16>
    %c0_2 = arith.constant 0 : index
    %c0_3 = arith.constant 0 : index
    %c0_4 = arith.constant 0 : index
    %3 = vector.load %arg3[%c0_2, %c0_3, %c0_4] : memref<3x64x32xf32, #tpu.memory_space<vmem>>, vector<1x64x32xf32>
    %4 = vector.shape_cast %3 : vector<1x64x32xf32> to vector<64x32xf32>
    %5 = arith.truncf %4 : vector<64x32xf32> to vector<64x32xbf16>
    %cst = arith.constant dense<0.000000e+00> : vector<64x64xf32>
    %6 = tpu.matmul %5, %2, %cst {dimension_numbers = #tpu.dot_dimension_numbers<[1], [0], [0], [1], [0, 0, 1, 1], [], []>} : vector<64x32xbf16>, vector<32x64xbf16>, vector<64x64xf32> -> vector<64x64xf32>
    %c0_5 = arith.constant 0 : index
    %c0_6 = arith.constant 0 : index
    %c0_7 = arith.constant 0 : index
    %7 = vector.load %arg2[%c0_5, %c0_6, %c0_7] : memref<1x32x65xf32, #tpu.memory_space<vmem>>, vector<1x32x64xf32>
    %8 = vector.shape_cast %7 : vector<1x32x64xf32> to vector<32x64xf32>
    %9 = arith.truncf %8 : vector<32x64xf32> to vector<32x64xbf16>
    %c1 = arith.constant 1 : index
    %c0_8 = arith.constant 0 : index
    %c0_9 = arith.constant 0 : index
    %10 = vector.load %arg3[%c1, %c0_8, %c0_9] : memref<3x64x32xf32, #tpu.memory_space<vmem>>, vector<1x64x32xf32>
    %11 = vector.shape_cast %10 : vector<1x64x32xf32> to vector<64x32xf32>
    %12 = arith.truncf %11 : vector<64x32xf32> to vector<64x32xbf16>
    %cst_10 = arith.constant dense<0.000000e+00> : vector<64x64xf32>
    %13 = tpu.matmul %12, %9, %cst_10 {dimension_numbers = #tpu.dot_dimension_numbers<[1], [0], [0], [1], [0, 0, 1, 1], [], []>} : vector<64x32xbf16>, vector<32x64xbf16>, vector<64x64xf32> -> vector<64x64xf32>
    %14 = arith.addf %6, %13 : vector<64x64xf32>
    %c0_11 = arith.constant 0 : index
    %c0_12 = arith.constant 0 : index
    %c1_13 = arith.constant 1 : index
    %15 = vector.load %arg1[%c0_11, %c0_12, %c1_13] : memref<1x32x65xf32, #tpu.memory_space<vmem>>, vector<1x32x64xf32>
    %16 = vector.shape_cast %15 : vector<1x32x64xf32> to vector<32x64xf32>
    %17 = arith.truncf %16 : vector<32x64xf32> to vector<32x64xbf16>
    %c2 = arith.constant 2 : index
    %c0_14 = arith.constant 0 : index
    %c0_15 = arith.constant 0 : index
    %18 = vector.load %arg3[%c2, %c0_14, %c0_15] : memref<3x64x32xf32, #tpu.memory_space<vmem>>, vector<1x64x32xf32>
    %19 = vector.shape_cast %18 : vector<1x64x32xf32> to vector<64x32xf32>
    %20 = arith.truncf %19 : vector<64x32xf32> to vector<64x32xbf16>
    %cst_16 = arith.constant dense<0.000000e+00> : vector<64x64xf32>
    %21 = tpu.matmul %20, %17, %cst_16 {dimension_numbers = #tpu.dot_dimension_numbers<[1], [0], [0], [1], [0, 0, 1, 1], [], []>} : vector<64x32xbf16>, vector<32x64xbf16>, vector<64x64xf32> -> vector<64x64xf32>
    %22 = arith.addf %14, %21 : vector<64x64xf32>
    %c0_17 = arith.constant 0 : index
    %c0_18 = arith.constant 0 : index
    %c0_19 = arith.constant 0 : index
    %23 = vector.load %arg4[%c0_17, %c0_18, %c0_19] : memref<1x64x64xf32, #tpu.memory_space<vmem>>, vector<1x64x64xf32>
    %24 = vector.shape_cast %23 : vector<1x64x64xf32> to vector<64x64xf32>
    %25 = vector.shape_cast %22 : vector<64x64xf32> to vector<1x64x64xf32>
    tpu.vector_store %arg4[%c0_17, %c0_18, %c0_19], %25 {strides = array<i32>} : memref<1x64x64xf32, #tpu.memory_space<vmem>>, vector<1x64x64xf32>,
    %cst_20 = arith.constant dense<0.000000e+00> : vector<64xf32>
    %26 = vector.multi_reduction <add>, %22, %cst_20 [1] : vector<64x64xf32> to vector<64xf32>
    %27 = vector.shape_cast %26 : vector<64xf32> to vector<64x1xf32>
    %c0_21 = arith.constant 0 : index
    %c0_22 = arith.constant 0 : index
    %c0_23 = arith.constant 0 : index
    %28 = vector.load %arg5[%c0_21, %c0_22, %c0_23] : memref<1x64x2xf32, #tpu.memory_space<vmem>>, vector<1x64x1xf32>
    %29 = vector.shape_cast %28 : vector<1x64x1xf32> to vector<64x1xf32>
    %30 = vector.shape_cast %27 : vector<64x1xf32> to vector<1x64x1xf32>
    tpu.vector_store %arg5[%c0_21, %c0_22, %c0_23], %30 {strides = array<i32>} : memref<1x64x2xf32, #tpu.memory_space<vmem>>, vector<1x64x1xf32>,
    %31 = arith.mulf %22, %22 : vector<64x64xf32>
    %cst_24 = arith.constant dense<0.000000e+00> : vector<64xf32>
    %32 = vector.multi_reduction <add>, %31, %cst_24 [1] : vector<64x64xf32> to vector<64xf32>
    %33 = vector.shape_cast %32 : vector<64xf32> to vector<64x1xf32>
    %c0_25 = arith.constant 0 : index
    %c0_26 = arith.constant 0 : index
    %c1_27 = arith.constant 1 : index
    %34 = vector.load %arg5[%c0_25, %c0_26, %c1_27] : memref<1x64x2xf32, #tpu.memory_space<vmem>>, vector<1x64x1xf32>
    %35 = vector.shape_cast %34 : vector<1x64x1xf32> to vector<64x1xf32>
    %36 = vector.shape_cast %33 : vector<64x1xf32> to vector<1x64x1xf32>
    tpu.vector_store %arg5[%c0_25, %c0_26, %c1_27], %36 {strides = array<i32>} : memref<1x64x2xf32, #tpu.memory_space<vmem>>, vector<1x64x1xf32>,
    return
  }
  func.func @transform_0(%arg0: i32) -> (i32, i32, i32) {
    %c0_i32 = arith.constant 0 : i32
    %c0_i32_0 = arith.constant 0 : i32
    %c0_i32_1 = arith.constant 0 : i32
    return %arg0, %c0_i32, %c0_i32_0 : i32, i32, i32
  }
  func.func @transform_1(%arg0: i32) -> (i32, i32, i32) {
    %c0_i32 = arith.constant 0 : i32
    %c0_i32_0 = arith.constant 0 : i32
    %c0_i32_1 = arith.constant 0 : i32
    return %arg0, %c0_i32, %c0_i32_0 : i32, i32, i32
  }
  func.func @transform_2(%arg0: i32) -> (i32, i32, i32) {
    %c0_i32 = arith.constant 0 : i32
    %c0_i32_0 = arith.constant 0 : i32
    %c0_i32_1 = arith.constant 0 : i32
    %c0_i32_2 = arith.constant 0 : i32
    return %c0_i32, %c0_i32_0, %c0_i32_1 : i32, i32, i32
  }
  func.func @transform_3(%arg0: i32) -> (i32, i32, i32) {
    %c0_i32 = arith.constant 0 : i32
    %c0_i32_0 = arith.constant 0 : i32
    %c0_i32_1 = arith.constant 0 : i32
    return %arg0, %c0_i32, %c0_i32_0 : i32, i32, i32
  }
  func.func @transform_4(%arg0: i32) -> (i32, i32, i32) {
    %c0_i32 = arith.constant 0 : i32
    %c0_i32_0 = arith.constant 0 : i32
    %c0_i32_1 = arith.constant 0 : i32
    return %arg0, %c0_i32, %c0_i32_0 : i32, i32, i32
  }
}

module attributes {stable_mosaic.version = 11 : i64} {
  func.func @kernel(%arg0: i32, %arg1: memref<1x64x66xf32, #tpu.memory_space<vmem>>, %arg2: memref<3x64x64xf32, #tpu.memory_space<vmem>>, %arg3: memref<1x64x64xf32, #tpu.memory_space<vmem>>, %arg4: memref<1x64x2xf32, #tpu.memory_space<vmem>>) attributes {dimension_semantics = [#tpu.dimension_semantics<parallel>], iteration_bounds = array<i64: 2>, scalar_prefetch = 0 : i64, scratch_operands = 0 : i64, tpu.core_type = #tpu.core_type<tc>, window_params = [{transform_indices = @transform_0, window_bounds = array<i64: 1, 64, 66>}, {pipeline_mode = #tpu.pipeline_mode<synchronous>, transform_indices = @transform_1, window_bounds = array<i64: 3, 64, 64>}, {transform_indices = @transform_2, window_bounds = array<i64: 1, 64, 64>}, {transform_indices = @transform_3, window_bounds = array<i64: 1, 64, 2>}]} {
    %c0 = arith.constant 0 : index
    %c0_0 = arith.constant 0 : index
    %c0_1 = arith.constant 0 : index
    %0 = vector.load %arg1[%c0, %c0_0, %c0_1] : memref<1x64x66xf32, #tpu.memory_space<vmem>>, vector<1x64x64xf32>
    %1 = vector.shape_cast %0 : vector<1x64x64xf32> to vector<64x64xf32>
    %2 = arith.truncf %1 : vector<64x64xf32> to vector<64x64xbf16>
    %c0_2 = arith.constant 0 : index
    %c0_3 = arith.constant 0 : index
    %c0_4 = arith.constant 0 : index
    %3 = vector.load %arg2[%c0_2, %c0_3, %c0_4] : memref<3x64x64xf32, #tpu.memory_space<vmem>>, vector<1x64x64xf32>
    %4 = vector.shape_cast %3 : vector<1x64x64xf32> to vector<64x64xf32>
    %5 = arith.truncf %4 : vector<64x64xf32> to vector<64x64xbf16>
    %cst = arith.constant dense<0.000000e+00> : vector<64x64xf32>
    %6 = tpu.matmul %5, %2, %cst {dimension_numbers = #tpu.dot_dimension_numbers<[1], [0], [0], [1], [0, 0, 1, 1], [], []>} : vector<64x64xbf16>, vector<64x64xbf16>, vector<64x64xf32> -> vector<64x64xf32>
    %c0_5 = arith.constant 0 : index
    %c0_6 = arith.constant 0 : index
    %c1 = arith.constant 1 : index
    %7 = vector.load %arg1[%c0_5, %c0_6, %c1] : memref<1x64x66xf32, #tpu.memory_space<vmem>>, vector<1x64x64xf32>
    %8 = vector.shape_cast %7 : vector<1x64x64xf32> to vector<64x64xf32>
    %9 = arith.truncf %8 : vector<64x64xf32> to vector<64x64xbf16>
    %c1_7 = arith.constant 1 : index
    %c0_8 = arith.constant 0 : index
    %c0_9 = arith.constant 0 : index
    %10 = vector.load %arg2[%c1_7, %c0_8, %c0_9] : memref<3x64x64xf32, #tpu.memory_space<vmem>>, vector<1x64x64xf32>
    %11 = vector.shape_cast %10 : vector<1x64x64xf32> to vector<64x64xf32>
    %12 = arith.truncf %11 : vector<64x64xf32> to vector<64x64xbf16>
    %cst_10 = arith.constant dense<0.000000e+00> : vector<64x64xf32>
    %13 = tpu.matmul %12, %9, %cst_10 {dimension_numbers = #tpu.dot_dimension_numbers<[1], [0], [0], [1], [0, 0, 1, 1], [], []>} : vector<64x64xbf16>, vector<64x64xbf16>, vector<64x64xf32> -> vector<64x64xf32>
    %14 = arith.addf %6, %13 : vector<64x64xf32>
    %c0_11 = arith.constant 0 : index
    %c0_12 = arith.constant 0 : index
    %c2 = arith.constant 2 : index
    %15 = vector.load %arg1[%c0_11, %c0_12, %c2] : memref<1x64x66xf32, #tpu.memory_space<vmem>>, vector<1x64x64xf32>
    %16 = vector.shape_cast %15 : vector<1x64x64xf32> to vector<64x64xf32>
    %17 = arith.truncf %16 : vector<64x64xf32> to vector<64x64xbf16>
    %c2_13 = arith.constant 2 : index
    %c0_14 = arith.constant 0 : index
    %c0_15 = arith.constant 0 : index
    %18 = vector.load %arg2[%c2_13, %c0_14, %c0_15] : memref<3x64x64xf32, #tpu.memory_space<vmem>>, vector<1x64x64xf32>
    %19 = vector.shape_cast %18 : vector<1x64x64xf32> to vector<64x64xf32>
    %20 = arith.truncf %19 : vector<64x64xf32> to vector<64x64xbf16>
    %cst_16 = arith.constant dense<0.000000e+00> : vector<64x64xf32>
    %21 = tpu.matmul %20, %17, %cst_16 {dimension_numbers = #tpu.dot_dimension_numbers<[1], [0], [0], [1], [0, 0, 1, 1], [], []>} : vector<64x64xbf16>, vector<64x64xbf16>, vector<64x64xf32> -> vector<64x64xf32>
    %22 = arith.addf %14, %21 : vector<64x64xf32>
    %c0_17 = arith.constant 0 : index
    %c0_18 = arith.constant 0 : index
    %c0_19 = arith.constant 0 : index
    %23 = vector.load %arg3[%c0_17, %c0_18, %c0_19] : memref<1x64x64xf32, #tpu.memory_space<vmem>>, vector<1x64x64xf32>
    %24 = vector.shape_cast %23 : vector<1x64x64xf32> to vector<64x64xf32>
    %25 = vector.shape_cast %22 : vector<64x64xf32> to vector<1x64x64xf32>
    tpu.vector_store %arg3[%c0_17, %c0_18, %c0_19], %25 {strides = array<i32>} : memref<1x64x64xf32, #tpu.memory_space<vmem>>, vector<1x64x64xf32>,
    %cst_20 = arith.constant dense<0.000000e+00> : vector<64xf32>
    %26 = vector.multi_reduction <add>, %22, %cst_20 [1] : vector<64x64xf32> to vector<64xf32>
    %27 = vector.shape_cast %26 : vector<64xf32> to vector<64x1xf32>
    %c0_21 = arith.constant 0 : index
    %c0_22 = arith.constant 0 : index
    %c0_23 = arith.constant 0 : index
    %28 = vector.load %arg4[%c0_21, %c0_22, %c0_23] : memref<1x64x2xf32, #tpu.memory_space<vmem>>, vector<1x64x1xf32>
    %29 = vector.shape_cast %28 : vector<1x64x1xf32> to vector<64x1xf32>
    %30 = vector.shape_cast %27 : vector<64x1xf32> to vector<1x64x1xf32>
    tpu.vector_store %arg4[%c0_21, %c0_22, %c0_23], %30 {strides = array<i32>} : memref<1x64x2xf32, #tpu.memory_space<vmem>>, vector<1x64x1xf32>,
    %31 = arith.mulf %22, %22 : vector<64x64xf32>
    %cst_24 = arith.constant dense<0.000000e+00> : vector<64xf32>
    %32 = vector.multi_reduction <add>, %31, %cst_24 [1] : vector<64x64xf32> to vector<64xf32>
    %33 = vector.shape_cast %32 : vector<64xf32> to vector<64x1xf32>
    %c0_25 = arith.constant 0 : index
    %c0_26 = arith.constant 0 : index
    %c1_27 = arith.constant 1 : index
    %34 = vector.load %arg4[%c0_25, %c0_26, %c1_27] : memref<1x64x2xf32, #tpu.memory_space<vmem>>, vector<1x64x1xf32>
    %35 = vector.shape_cast %34 : vector<1x64x1xf32> to vector<64x1xf32>
    %36 = vector.shape_cast %33 : vector<64x1xf32> to vector<1x64x1xf32>
    tpu.vector_store %arg4[%c0_25, %c0_26, %c1_27], %36 {strides = array<i32>} : memref<1x64x2xf32, #tpu.memory_space<vmem>>, vector<1x64x1xf32>,
    return
  }
  func.func @transform_0(%arg0: i32) -> (i32, i32, i32) {
    %c0_i32 = arith.constant 0 : i32
    %c0_i32_0 = arith.constant 0 : i32
    %c0_i32_1 = arith.constant 0 : i32
    return %arg0, %c0_i32, %c0_i32_0 : i32, i32, i32
  }
  func.func @transform_1(%arg0: i32) -> (i32, i32, i32) {
    %c0_i32 = arith.constant 0 : i32
    %c0_i32_0 = arith.constant 0 : i32
    %c0_i32_1 = arith.constant 0 : i32
    %c0_i32_2 = arith.constant 0 : i32
    return %c0_i32, %c0_i32_0, %c0_i32_1 : i32, i32, i32
  }
  func.func @transform_2(%arg0: i32) -> (i32, i32, i32) {
    %c0_i32 = arith.constant 0 : i32
    %c0_i32_0 = arith.constant 0 : i32
    %c0_i32_1 = arith.constant 0 : i32
    return %arg0, %c0_i32, %c0_i32_0 : i32, i32, i32
  }
  func.func @transform_3(%arg0: i32) -> (i32, i32, i32) {
    %c0_i32 = arith.constant 0 : i32
    %c0_i32_0 = arith.constant 0 : i32
    %c0_i32_1 = arith.constant 0 : i32
    return %arg0, %c0_i32, %c0_i32_0 : i32, i32, i32
  }
}

module attributes {stable_mosaic.version = 11 : i64} {
  func.func @kernel(%arg0: i32, %arg1: memref<1x64x64xf32, #tpu.memory_space<vmem>>, %arg2: memref<64x1xf32, #tpu.memory_space<vmem>>, %arg3: memref<64x1xf32, #tpu.memory_space<vmem>>, %arg4: memref<1x64x64xf32, #tpu.memory_space<vmem>>, %arg5: memref<64x1xf32, #tpu.memory_space<vmem>>, %arg6: memref<64x1xf32, #tpu.memory_space<vmem>>, %arg7: memref<1x64x64xf32, #tpu.memory_space<vmem>>, %arg8: memref<1x64x2xf32, #tpu.memory_space<vmem>>) attributes {dimension_semantics = [#tpu.dimension_semantics<parallel>], iteration_bounds = array<i64: 2>, scalar_prefetch = 0 : i64, scratch_operands = 0 : i64, tpu.core_type = #tpu.core_type<tc>, window_params = [{transform_indices = @transform_0, window_bounds = array<i64: 1, 64, 64>}, {pipeline_mode = #tpu.pipeline_mode<synchronous>, transform_indices = @transform_1, window_bounds = array<i64: 64, 1>}, {pipeline_mode = #tpu.pipeline_mode<synchronous>, transform_indices = @transform_2, window_bounds = array<i64: 64, 1>}, {transform_indices = @transform_3, window_bounds = array<i64: 1, 64, 64>}, {pipeline_mode = #tpu.pipeline_mode<synchronous>, transform_indices = @transform_4, window_bounds = array<i64: 64, 1>}, {pipeline_mode = #tpu.pipeline_mode<synchronous>, transform_indices = @transform_5, window_bounds = array<i64: 64, 1>}, {transform_indices = @transform_6, window_bounds = array<i64: 1, 64, 64>}, {transform_indices = @transform_7, window_bounds = array<i64: 1, 64, 2>}]} {
    %c0 = arith.constant 0 : index
    %c0_0 = arith.constant 0 : index
    %c0_1 = arith.constant 0 : index
    %0 = vector.load %arg1[%c0, %c0_0, %c0_1] : memref<1x64x64xf32, #tpu.memory_space<vmem>>, vector<1x64x64xf32>
    %1 = vector.shape_cast %0 : vector<1x64x64xf32> to vector<64x64xf32>
    %c0_2 = arith.constant 0 : index
    %c0_3 = arith.constant 0 : index
    %2 = vector.load %arg2[%c0_2, %c0_3] : memref<64x1xf32, #tpu.memory_space<vmem>>, vector<64x1xf32>
    %3 = vector.broadcast %2 : vector<64x1xf32> to vector<64x64xf32>
    %4 = arith.mulf %1, %3 : vector<64x64xf32>
    %c0_4 = arith.constant 0 : index
    %c0_5 = arith.constant 0 : index
    %5 = vector.load %arg3[%c0_4, %c0_5] : memref<64x1xf32, #tpu.memory_space<vmem>>, vector<64x1xf32>
    %6 = vector.broadcast %5 : vector<64x1xf32> to vector<64x64xf32>
    %7 = arith.addf %4, %6 : vector<64x64xf32>
    %c0_6 = arith.constant 0 : index
    %c0_7 = arith.constant 0 : index
    %c0_8 = arith.constant 0 : index
    %8 = vector.load %arg4[%c0_6, %c0_7, %c0_8] : memref<1x64x64xf32, #tpu.memory_space<vmem>>, vector<1x64x64xf32>
    %9 = vector.shape_cast %8 : vector<1x64x64xf32> to vector<64x64xf32>
    %c0_9 = arith.constant 0 : index
    %c0_10 = arith.constant 0 : index
    %10 = vector.load %arg5[%c0_9, %c0_10] : memref<64x1xf32, #tpu.memory_space<vmem>>, vector<64x1xf32>
    %11 = vector.broadcast %10 : vector<64x1xf32> to vector<64x64xf32>
    %12 = arith.mulf %9, %11 : vector<64x64xf32>
    %c0_11 = arith.constant 0 : index
    %c0_12 = arith.constant 0 : index
    %13 = vector.load %arg6[%c0_11, %c0_12] : memref<64x1xf32, #tpu.memory_space<vmem>>, vector<64x1xf32>
    %14 = vector.broadcast %13 : vector<64x1xf32> to vector<64x64xf32>
    %15 = arith.addf %12, %14 : vector<64x64xf32>
    %16 = arith.addf %7, %15 : vector<64x64xf32>
    %cst = arith.constant 0.000000e+00 : f32
    %17 = vector.broadcast %cst : f32 to vector<64x64xf32>
    %18 = arith.maximumf %16, %17 : vector<64x64xf32>
    %c0_13 = arith.constant 0 : index
    %c0_14 = arith.constant 0 : index
    %c0_15 = arith.constant 0 : index
    %19 = vector.load %arg7[%c0_13, %c0_14, %c0_15] : memref<1x64x64xf32, #tpu.memory_space<vmem>>, vector<1x64x64xf32>
    %20 = vector.shape_cast %19 : vector<1x64x64xf32> to vector<64x64xf32>
    %21 = vector.shape_cast %18 : vector<64x64xf32> to vector<1x64x64xf32>
    tpu.vector_store %arg7[%c0_13, %c0_14, %c0_15], %21 {strides = array<i32>} : memref<1x64x64xf32, #tpu.memory_space<vmem>>, vector<1x64x64xf32>,
    %cst_16 = arith.constant dense<0.000000e+00> : vector<64xf32>
    %22 = vector.multi_reduction <add>, %18, %cst_16 [1] : vector<64x64xf32> to vector<64xf32>
    %23 = vector.shape_cast %22 : vector<64xf32> to vector<64x1xf32>
    %cst_17 = arith.constant 6.400000e+01 : f32
    %24 = vector.broadcast %cst_17 : f32 to vector<64x1xf32>
    %25 = arith.divf %23, %24 : vector<64x1xf32>
    %c0_18 = arith.constant 0 : index
    %c0_19 = arith.constant 0 : index
    %c0_20 = arith.constant 0 : index
    %26 = vector.load %arg8[%c0_18, %c0_19, %c0_20] : memref<1x64x2xf32, #tpu.memory_space<vmem>>, vector<1x64x1xf32>
    %27 = vector.shape_cast %26 : vector<1x64x1xf32> to vector<64x1xf32>
    %28 = vector.shape_cast %25 : vector<64x1xf32> to vector<1x64x1xf32>
    tpu.vector_store %arg8[%c0_18, %c0_19, %c0_20], %28 {strides = array<i32>} : memref<1x64x2xf32, #tpu.memory_space<vmem>>, vector<1x64x1xf32>,
    %cst_21 = arith.constant dense<0xFF800000> : vector<64xf32>
    %29 = vector.multi_reduction <maximumf>, %18, %cst_21 [1] : vector<64x64xf32> to vector<64xf32>
    %30 = vector.shape_cast %29 : vector<64xf32> to vector<64x1xf32>
    %c0_22 = arith.constant 0 : index
    %c0_23 = arith.constant 0 : index
    %c1 = arith.constant 1 : index
    %31 = vector.load %arg8[%c0_22, %c0_23, %c1] : memref<1x64x2xf32, #tpu.memory_space<vmem>>, vector<1x64x1xf32>
    %32 = vector.shape_cast %31 : vector<1x64x1xf32> to vector<64x1xf32>
    %33 = vector.shape_cast %30 : vector<64x1xf32> to vector<1x64x1xf32>
    tpu.vector_store %arg8[%c0_22, %c0_23, %c1], %33 {strides = array<i32>} : memref<1x64x2xf32, #tpu.memory_space<vmem>>, vector<1x64x1xf32>,
    return
  }
  func.func @transform_0(%arg0: i32) -> (i32, i32, i32) {
    %c0_i32 = arith.constant 0 : i32
    %c0_i32_0 = arith.constant 0 : i32
    %c0_i32_1 = arith.constant 0 : i32
    return %arg0, %c0_i32, %c0_i32_0 : i32, i32, i32
  }
  func.func @transform_1(%arg0: i32) -> (i32, i32) {
    %c0_i32 = arith.constant 0 : i32
    %c0_i32_0 = arith.constant 0 : i32
    %c0_i32_1 = arith.constant 0 : i32
    return %c0_i32, %c0_i32_0 : i32, i32
  }
  func.func @transform_2(%arg0: i32) -> (i32, i32) {
    %c0_i32 = arith.constant 0 : i32
    %c0_i32_0 = arith.constant 0 : i32
    %c0_i32_1 = arith.constant 0 : i32
    return %c0_i32, %c0_i32_0 : i32, i32
  }
  func.func @transform_3(%arg0: i32) -> (i32, i32, i32) {
    %c0_i32 = arith.constant 0 : i32
    %c0_i32_0 = arith.constant 0 : i32
    %c0_i32_1 = arith.constant 0 : i32
    return %arg0, %c0_i32, %c0_i32_0 : i32, i32, i32
  }
  func.func @transform_4(%arg0: i32) -> (i32, i32) {
    %c0_i32 = arith.constant 0 : i32
    %c0_i32_0 = arith.constant 0 : i32
    %c0_i32_1 = arith.constant 0 : i32
    return %c0_i32, %c0_i32_0 : i32, i32
  }
  func.func @transform_5(%arg0: i32) -> (i32, i32) {
    %c0_i32 = arith.constant 0 : i32
    %c0_i32_0 = arith.constant 0 : i32
    %c0_i32_1 = arith.constant 0 : i32
    return %c0_i32, %c0_i32_0 : i32, i32
  }
  func.func @transform_6(%arg0: i32) -> (i32, i32, i32) {
    %c0_i32 = arith.constant 0 : i32
    %c0_i32_0 = arith.constant 0 : i32
    %c0_i32_1 = arith.constant 0 : i32
    return %arg0, %c0_i32, %c0_i32_0 : i32, i32, i32
  }
  func.func @transform_7(%arg0: i32) -> (i32, i32, i32) {
    %c0_i32 = arith.constant 0 : i32
    %c0_i32_0 = arith.constant 0 : i32
    %c0_i32_1 = arith.constant 0 : i32
    return %arg0, %c0_i32, %c0_i32_0 : i32, i32, i32
  }
}

module attributes {stable_mosaic.version = 11 : i64} {
  func.func @kernel(%arg0: i32, %arg1: memref<1x64x64xf32, #tpu.memory_space<vmem>>, %arg2: memref<64x1xf32, #tpu.memory_space<vmem>>, %arg3: memref<64x1xf32, #tpu.memory_space<vmem>>, %arg4: memref<1x64x64xf32, #tpu.memory_space<vmem>>, %arg5: memref<1x64x64xf32, #tpu.memory_space<vmem>>) attributes {dimension_semantics = [#tpu.dimension_semantics<parallel>], iteration_bounds = array<i64: 2>, scalar_prefetch = 0 : i64, scratch_operands = 0 : i64, tpu.core_type = #tpu.core_type<tc>, window_params = [{transform_indices = @transform_0, window_bounds = array<i64: 1, 64, 64>}, {pipeline_mode = #tpu.pipeline_mode<synchronous>, transform_indices = @transform_1, window_bounds = array<i64: 64, 1>}, {pipeline_mode = #tpu.pipeline_mode<synchronous>, transform_indices = @transform_2, window_bounds = array<i64: 64, 1>}, {transform_indices = @transform_3, window_bounds = array<i64: 1, 64, 64>}, {transform_indices = @transform_4, window_bounds = array<i64: 1, 64, 64>}]} {
    %c0 = arith.constant 0 : index
    %c0_0 = arith.constant 0 : index
    %c0_1 = arith.constant 0 : index
    %0 = vector.load %arg1[%c0, %c0_0, %c0_1] : memref<1x64x64xf32, #tpu.memory_space<vmem>>, vector<1x64x64xf32>
    %1 = vector.shape_cast %0 : vector<1x64x64xf32> to vector<64x64xf32>
    %c0_2 = arith.constant 0 : index
    %c0_3 = arith.constant 0 : index
    %2 = vector.load %arg2[%c0_2, %c0_3] : memref<64x1xf32, #tpu.memory_space<vmem>>, vector<64x1xf32>
    %3 = vector.broadcast %2 : vector<64x1xf32> to vector<64x64xf32>
    %4 = arith.mulf %1, %3 : vector<64x64xf32>
    %c0_4 = arith.constant 0 : index
    %c0_5 = arith.constant 0 : index
    %5 = vector.load %arg3[%c0_4, %c0_5] : memref<64x1xf32, #tpu.memory_space<vmem>>, vector<64x1xf32>
    %6 = vector.broadcast %5 : vector<64x1xf32> to vector<64x64xf32>
    %7 = arith.addf %4, %6 : vector<64x64xf32>
    %c0_6 = arith.constant 0 : index
    %c0_7 = arith.constant 0 : index
    %c0_8 = arith.constant 0 : index
    %8 = vector.load %arg4[%c0_6, %c0_7, %c0_8] : memref<1x64x64xf32, #tpu.memory_space<vmem>>, vector<1x64x64xf32>
    %9 = vector.shape_cast %8 : vector<1x64x64xf32> to vector<64x64xf32>
    %10 = arith.addf %7, %9 : vector<64x64xf32>
    %cst = arith.constant 0.000000e+00 : f32
    %11 = vector.broadcast %cst : f32 to vector<64x64xf32>
    %12 = arith.maximumf %10, %11 : vector<64x64xf32>
    %c0_9 = arith.constant 0 : index
    %c0_10 = arith.constant 0 : index
    %c0_11 = arith.constant 0 : index
    %13 = vector.load %arg5[%c0_9, %c0_10, %c0_11] : memref<1x64x64xf32, #tpu.memory_space<vmem>>, vector<1x64x64xf32>
    %14 = vector.shape_cast %13 : vector<1x64x64xf32> to vector<64x64xf32>
    %15 = vector.shape_cast %12 : vector<64x64xf32> to vector<1x64x64xf32>
    tpu.vector_store %arg5[%c0_9, %c0_10, %c0_11], %15 {strides = array<i32>} : memref<1x64x64xf32, #tpu.memory_space<vmem>>, vector<1x64x64xf32>,
    return
  }
  func.func @transform_0(%arg0: i32) -> (i32, i32, i32) {
    %c0_i32 = arith.constant 0 : i32
    %c0_i32_0 = arith.constant 0 : i32
    %c0_i32_1 = arith.constant 0 : i32
    return %arg0, %c0_i32, %c0_i32_0 : i32, i32, i32
  }
  func.func @transform_1(%arg0: i32) -> (i32, i32) {
    %c0_i32 = arith.constant 0 : i32
    %c0_i32_0 = arith.constant 0 : i32
    %c0_i32_1 = arith.constant 0 : i32
    return %c0_i32, %c0_i32_0 : i32, i32
  }
  func.func @transform_2(%arg0: i32) -> (i32, i32) {
    %c0_i32 = arith.constant 0 : i32
    %c0_i32_0 = arith.constant 0 : i32
    %c0_i32_1 = arith.constant 0 : i32
    return %c0_i32, %c0_i32_0 : i32, i32
  }
  func.func @transform_3(%arg0: i32) -> (i32, i32, i32) {
    %c0_i32 = arith.constant 0 : i32
    %c0_i32_0 = arith.constant 0 : i32
    %c0_i32_1 = arith.constant 0 : i32
    return %arg0, %c0_i32, %c0_i32_0 : i32, i32, i32
  }
  func.func @transform_4(%arg0: i32) -> (i32, i32, i32) {
    %c0_i32 = arith.constant 0 : i32
    %c0_i32_0 = arith.constant 0 : i32
    %c0_i32_1 = arith.constant 0 : i32
    return %arg0, %c0_i32, %c0_i32_0 : i32, i32, i32
  }
}

module attributes {stable_mosaic.version = 11 : i64} {
  func.func @kernel(%arg0: i32, %arg1: memref<1x64x66xf32, #tpu.memory_space<vmem>>, %arg2: memref<3x64x64xf32, #tpu.memory_space<vmem>>, %arg3: memref<1x64x64xf32, #tpu.memory_space<vmem>>, %arg4: memref<1x64x2xf32, #tpu.memory_space<vmem>>) attributes {dimension_semantics = [#tpu.dimension_semantics<parallel>], iteration_bounds = array<i64: 2>, scalar_prefetch = 0 : i64, scratch_operands = 0 : i64, tpu.core_type = #tpu.core_type<tc>, window_params = [{transform_indices = @transform_0, window_bounds = array<i64: 1, 64, 66>}, {pipeline_mode = #tpu.pipeline_mode<synchronous>, transform_indices = @transform_1, window_bounds = array<i64: 3, 64, 64>}, {transform_indices = @transform_2, window_bounds = array<i64: 1, 64, 64>}, {transform_indices = @transform_3, window_bounds = array<i64: 1, 64, 2>}]} {
    %c0 = arith.constant 0 : index
    %c0_0 = arith.constant 0 : index
    %c0_1 = arith.constant 0 : index
    %0 = vector.load %arg1[%c0, %c0_0, %c0_1] : memref<1x64x66xf32, #tpu.memory_space<vmem>>, vector<1x64x64xf32>
    %1 = vector.shape_cast %0 : vector<1x64x64xf32> to vector<64x64xf32>
    %2 = arith.truncf %1 : vector<64x64xf32> to vector<64x64xbf16>
    %c0_2 = arith.constant 0 : index
    %c0_3 = arith.constant 0 : index
    %c0_4 = arith.constant 0 : index
    %3 = vector.load %arg2[%c0_2, %c0_3, %c0_4] : memref<3x64x64xf32, #tpu.memory_space<vmem>>, vector<1x64x64xf32>
    %4 = vector.shape_cast %3 : vector<1x64x64xf32> to vector<64x64xf32>
    %5 = arith.truncf %4 : vector<64x64xf32> to vector<64x64xbf16>
    %cst = arith.constant dense<0.000000e+00> : vector<64x64xf32>
    %6 = tpu.matmul %5, %2, %cst {dimension_numbers = #tpu.dot_dimension_numbers<[1], [0], [0], [1], [0, 0, 1, 1], [], []>} : vector<64x64xbf16>, vector<64x64xbf16>, vector<64x64xf32> -> vector<64x64xf32>
    %c0_5 = arith.constant 0 : index
    %c0_6 = arith.constant 0 : index
    %c1 = arith.constant 1 : index
    %7 = vector.load %arg1[%c0_5, %c0_6, %c1] : memref<1x64x66xf32, #tpu.memory_space<vmem>>, vector<1x64x64xf32>
    %8 = vector.shape_cast %7 : vector<1x64x64xf32> to vector<64x64xf32>
    %9 = arith.truncf %8 : vector<64x64xf32> to vector<64x64xbf16>
    %c1_7 = arith.constant 1 : index
    %c0_8 = arith.constant 0 : index
    %c0_9 = arith.constant 0 : index
    %10 = vector.load %arg2[%c1_7, %c0_8, %c0_9] : memref<3x64x64xf32, #tpu.memory_space<vmem>>, vector<1x64x64xf32>
    %11 = vector.shape_cast %10 : vector<1x64x64xf32> to vector<64x64xf32>
    %12 = arith.truncf %11 : vector<64x64xf32> to vector<64x64xbf16>
    %cst_10 = arith.constant dense<0.000000e+00> : vector<64x64xf32>
    %13 = tpu.matmul %12, %9, %cst_10 {dimension_numbers = #tpu.dot_dimension_numbers<[1], [0], [0], [1], [0, 0, 1, 1], [], []>} : vector<64x64xbf16>, vector<64x64xbf16>, vector<64x64xf32> -> vector<64x64xf32>
    %14 = arith.addf %6, %13 : vector<64x64xf32>
    %c0_11 = arith.constant 0 : index
    %c0_12 = arith.constant 0 : index
    %c2 = arith.constant 2 : index
    %15 = vector.load %arg1[%c0_11, %c0_12, %c2] : memref<1x64x66xf32, #tpu.memory_space<vmem>>, vector<1x64x64xf32>
    %16 = vector.shape_cast %15 : vector<1x64x64xf32> to vector<64x64xf32>
    %17 = arith.truncf %16 : vector<64x64xf32> to vector<64x64xbf16>
    %c2_13 = arith.constant 2 : index
    %c0_14 = arith.constant 0 : index
    %c0_15 = arith.constant 0 : index
    %18 = vector.load %arg2[%c2_13, %c0_14, %c0_15] : memref<3x64x64xf32, #tpu.memory_space<vmem>>, vector<1x64x64xf32>
    %19 = vector.shape_cast %18 : vector<1x64x64xf32> to vector<64x64xf32>
    %20 = arith.truncf %19 : vector<64x64xf32> to vector<64x64xbf16>
    %cst_16 = arith.constant dense<0.000000e+00> : vector<64x64xf32>
    %21 = tpu.matmul %20, %17, %cst_16 {dimension_numbers = #tpu.dot_dimension_numbers<[1], [0], [0], [1], [0, 0, 1, 1], [], []>} : vector<64x64xbf16>, vector<64x64xbf16>, vector<64x64xf32> -> vector<64x64xf32>
    %22 = arith.addf %14, %21 : vector<64x64xf32>
    %c0_17 = arith.constant 0 : index
    %c0_18 = arith.constant 0 : index
    %c0_19 = arith.constant 0 : index
    %23 = vector.load %arg3[%c0_17, %c0_18, %c0_19] : memref<1x64x64xf32, #tpu.memory_space<vmem>>, vector<1x64x64xf32>
    %24 = vector.shape_cast %23 : vector<1x64x64xf32> to vector<64x64xf32>
    %25 = vector.shape_cast %22 : vector<64x64xf32> to vector<1x64x64xf32>
    tpu.vector_store %arg3[%c0_17, %c0_18, %c0_19], %25 {strides = array<i32>} : memref<1x64x64xf32, #tpu.memory_space<vmem>>, vector<1x64x64xf32>,
    %cst_20 = arith.constant dense<0.000000e+00> : vector<64xf32>
    %26 = vector.multi_reduction <add>, %22, %cst_20 [1] : vector<64x64xf32> to vector<64xf32>
    %27 = vector.shape_cast %26 : vector<64xf32> to vector<64x1xf32>
    %c0_21 = arith.constant 0 : index
    %c0_22 = arith.constant 0 : index
    %c0_23 = arith.constant 0 : index
    %28 = vector.load %arg4[%c0_21, %c0_22, %c0_23] : memref<1x64x2xf32, #tpu.memory_space<vmem>>, vector<1x64x1xf32>
    %29 = vector.shape_cast %28 : vector<1x64x1xf32> to vector<64x1xf32>
    %30 = vector.shape_cast %27 : vector<64x1xf32> to vector<1x64x1xf32>
    tpu.vector_store %arg4[%c0_21, %c0_22, %c0_23], %30 {strides = array<i32>} : memref<1x64x2xf32, #tpu.memory_space<vmem>>, vector<1x64x1xf32>,
    %31 = arith.mulf %22, %22 : vector<64x64xf32>
    %cst_24 = arith.constant dense<0.000000e+00> : vector<64xf32>
    %32 = vector.multi_reduction <add>, %31, %cst_24 [1] : vector<64x64xf32> to vector<64xf32>
    %33 = vector.shape_cast %32 : vector<64xf32> to vector<64x1xf32>
    %c0_25 = arith.constant 0 : index
    %c0_26 = arith.constant 0 : index
    %c1_27 = arith.constant 1 : index
    %34 = vector.load %arg4[%c0_25, %c0_26, %c1_27] : memref<1x64x2xf32, #tpu.memory_space<vmem>>, vector<1x64x1xf32>
    %35 = vector.shape_cast %34 : vector<1x64x1xf32> to vector<64x1xf32>
    %36 = vector.shape_cast %33 : vector<64x1xf32> to vector<1x64x1xf32>
    tpu.vector_store %arg4[%c0_25, %c0_26, %c1_27], %36 {strides = array<i32>} : memref<1x64x2xf32, #tpu.memory_space<vmem>>, vector<1x64x1xf32>,
    return
  }
  func.func @transform_0(%arg0: i32) -> (i32, i32, i32) {
    %c0_i32 = arith.constant 0 : i32
    %c0_i32_0 = arith.constant 0 : i32
    %c0_i32_1 = arith.constant 0 : i32
    return %arg0, %c0_i32, %c0_i32_0 : i32, i32, i32
  }
  func.func @transform_1(%arg0: i32) -> (i32, i32, i32) {
    %c0_i32 = arith.constant 0 : i32
    %c0_i32_0 = arith.constant 0 : i32
    %c0_i32_1 = arith.constant 0 : i32
    %c0_i32_2 = arith.constant 0 : i32
    return %c0_i32, %c0_i32_0, %c0_i32_1 : i32, i32, i32
  }
  func.func @transform_2(%arg0: i32) -> (i32, i32, i32) {
    %c0_i32 = arith.constant 0 : i32
    %c0_i32_0 = arith.constant 0 : i32
    %c0_i32_1 = arith.constant 0 : i32
    return %arg0, %c0_i32, %c0_i32_0 : i32, i32, i32
  }
  func.func @transform_3(%arg0: i32) -> (i32, i32, i32) {
    %c0_i32 = arith.constant 0 : i32
    %c0_i32_0 = arith.constant 0 : i32
    %c0_i32_1 = arith.constant 0 : i32
    return %arg0, %c0_i32, %c0_i32_0 : i32, i32, i32
  }
}

module attributes {stable_mosaic.version = 11 : i64} {
  func.func @kernel(%arg0: i32, %arg1: memref<1x64x64xf32, #tpu.memory_space<vmem>>, %arg2: memref<1x64x1xf32, #tpu.memory_space<vmem>>, %arg3: memref<2x7xf32, #tpu.memory_space<vmem>>, %arg4: memref<1x64x64xf32, #tpu.memory_space<vmem>>, %arg5: memref<2x70xf32, #tpu.memory_space<vmem>>) attributes {dimension_semantics = [#tpu.dimension_semantics<parallel>], iteration_bounds = array<i64: 2>, scalar_prefetch = 0 : i64, scratch_operands = 1 : i64, tpu.core_type = #tpu.core_type<tc>, window_params = [{transform_indices = @transform_0, window_bounds = array<i64: 1, 64, 64>}, {transform_indices = @transform_1, window_bounds = array<i64: 1, 64, 1>}, {pipeline_mode = #tpu.pipeline_mode<synchronous>, transform_indices = @transform_2, window_bounds = array<i64: 2, 7>}, {transform_indices = @transform_3, window_bounds = array<i64: 1, 64, 64>}]} {
    %c0 = arith.constant 0 : index
    %c0_0 = arith.constant 0 : index
    %c0_1 = arith.constant 0 : index
    %0 = vector.load %arg1[%c0, %c0_0, %c0_1] : memref<1x64x64xf32, #tpu.memory_space<vmem>>, vector<1x64x64xf32>
    %1 = vector.shape_cast %0 : vector<1x64x64xf32> to vector<64x64xf32>
    %c0_2 = arith.constant 0 : index
    %c0_3 = arith.constant 0 : index
    %c0_4 = arith.constant 0 : index
    %2 = vector.load %arg2[%c0_2, %c0_3, %c0_4] : memref<1x64x1xf32, #tpu.memory_space<vmem>>, vector<1x64x1xf32>
    %3 = vector.shape_cast %2 : vector<1x64x1xf32> to vector<64x1xf32>
    %4 = vector.broadcast %3 : vector<64x1xf32> to vector<64x64xf32>
    %5 = arith.mulf %1, %4 : vector<64x64xf32>
    %cst = arith.constant 0.000000e+00 : f32
    %6 = vector.broadcast %cst : f32 to vector<2x70xf32>
    %c0_5 = arith.constant 0 : index
    %c0_6 = arith.constant 0 : index
    %7 = vector.load %arg5[%c0_5, %c0_6] : memref<2x70xf32, #tpu.memory_space<vmem>>, vector<2x70xf32>
    tpu.vector_store %arg5[%c0_5, %c0_6], %6 {strides = array<i32>} : memref<2x70xf32, #tpu.memory_space<vmem>>, vector<2x70xf32>,
    %cst_7 = arith.constant dense<0.000000e+00> : vector<64xf32>
    %8 = vector.multi_reduction <add>, %5, %cst_7 [0] : vector<64x64xf32> to vector<64xf32>
    %9 = vector.shape_cast %8 : vector<64xf32> to vector<1x64xf32>
    %cst_8 = arith.constant 6.400000e+01 : f32
    %10 = vector.broadcast %cst_8 : f32 to vector<1x64xf32>
    %11 = arith.divf %9, %10 : vector<1x64xf32>
    %c0_9 = arith.constant 0 : index
    %c3 = arith.constant 3 : index
    %12 = vector.load %arg5[%c0_9, %c3] : memref<2x70xf32, #tpu.memory_space<vmem>>, vector<1x64xf32>
    tpu.vector_store %arg5[%c0_9, %c3], %11 {strides = array<i32>} : memref<2x70xf32, #tpu.memory_space<vmem>>, vector<1x64xf32>,
    %cst_10 = arith.constant dense<0xFF800000> : vector<64xf32>
    %13 = vector.multi_reduction <maximumf>, %5, %cst_10 [0] : vector<64x64xf32> to vector<64xf32>
    %14 = vector.shape_cast %13 : vector<64xf32> to vector<1x64xf32>
    %c1 = arith.constant 1 : index
    %c3_11 = arith.constant 3 : index
    %15 = vector.load %arg5[%c1, %c3_11] : memref<2x70xf32, #tpu.memory_space<vmem>>, vector<1x64xf32>
    tpu.vector_store %arg5[%c1, %c3_11], %14 {strides = array<i32>} : memref<2x70xf32, #tpu.memory_space<vmem>>, vector<1x64xf32>,
    %cst_12 = arith.constant 0.000000e+00 : f32
    %16 = vector.broadcast %cst_12 : f32 to vector<1x64xf32>
    %c0_13 = arith.constant 0 : index
    %c0_14 = arith.constant 0 : index
    %17 = vector.load %arg3[%c0_13, %c0_14] : memref<2x7xf32, #tpu.memory_space<vmem>>, vector<1x1xf32>
    %c0_15 = arith.constant 0 : index
    %c0_16 = arith.constant 0 : index
    %18 = vector.load %arg5[%c0_15, %c0_16] : memref<2x70xf32, #tpu.memory_space<vmem>>, vector<1x64xf32>
    %19 = vector.broadcast %17 : vector<1x1xf32> to vector<1x64xf32>
    %20 = arith.mulf %19, %18 : vector<1x64xf32>
    %21 = arith.addf %16, %20 : vector<1x64xf32>
    %c1_17 = arith.constant 1 : index
    %c0_18 = arith.constant 0 : index
    %22 = vector.load %arg3[%c1_17, %c0_18] : memref<2x7xf32, #tpu.memory_space<vmem>>, vector<1x1xf32>
    %c1_19 = arith.constant 1 : index
    %c0_20 = arith.constant 0 : index
    %23 = vector.load %arg5[%c1_19, %c0_20] : memref<2x70xf32, #tpu.memory_space<vmem>>, vector<1x64xf32>
    %24 = vector.broadcast %22 : vector<1x1xf32> to vector<1x64xf32>
    %25 = arith.mulf %24, %23 : vector<1x64xf32>
    %26 = arith.addf %21, %25 : vector<1x64xf32>
    %c0_21 = arith.constant 0 : index
    %c1_22 = arith.constant 1 : index
    %27 = vector.load %arg3[%c0_21, %c1_22] : memref<2x7xf32, #tpu.memory_space<vmem>>, vector<1x1xf32>
    %c0_23 = arith.constant 0 : index
    %c1_24 = arith.constant 1 : index
    %28 = vector.load %arg5[%c0_23, %c1_24] : memref<2x70xf32, #tpu.memory_space<vmem>>, vector<1x64xf32>
    %29 = vector.broadcast %27 : vector<1x1xf32> to vector<1x64xf32>
    %30 = arith.mulf %29, %28 : vector<1x64xf32>
    %31 = arith.addf %26, %30 : vector<1x64xf32>
    %c1_25 = arith.constant 1 : index
    %c1_26 = arith.constant 1 : index
    %32 = vector.load %arg3[%c1_25, %c1_26] : memref<2x7xf32, #tpu.memory_space<vmem>>, vector<1x1xf32>
    %c1_27 = arith.constant 1 : index
    %c1_28 = arith.constant 1 : index
    %33 = vector.load %arg5[%c1_27, %c1_28] : memref<2x70xf32, #tpu.memory_space<vmem>>, vector<1x64xf32>
    %34 = vector.broadcast %32 : vector<1x1xf32> to vector<1x64xf32>
    %35 = arith.mulf %34, %33 : vector<1x64xf32>
    %36 = arith.addf %31, %35 : vector<1x64xf32>
    %c0_29 = arith.constant 0 : index
    %c2 = arith.constant 2 : index
    %37 = vector.load %arg3[%c0_29, %c2] : memref<2x7xf32, #tpu.memory_space<vmem>>, vector<1x1xf32>
    %c0_30 = arith.constant 0 : index
    %c2_31 = arith.constant 2 : index
    %38 = vector.load %arg5[%c0_30, %c2_31] : memref<2x70xf32, #tpu.memory_space<vmem>>, vector<1x64xf32>
    %39 = vector.broadcast %37 : vector<1x1xf32> to vector<1x64xf32>
    %40 = arith.mulf %39, %38 : vector<1x64xf32>
    %41 = arith.addf %36, %40 : vector<1x64xf32>
    %c1_32 = arith.constant 1 : index
    %c2_33 = arith.constant 2 : index
    %42 = vector.load %arg3[%c1_32, %c2_33] : memref<2x7xf32, #tpu.memory_space<vmem>>, vector<1x1xf32>
    %c1_34 = arith.constant 1 : index
    %c2_35 = arith.constant 2 : index
    %43 = vector.load %arg5[%c1_34, %c2_35] : memref<2x70xf32, #tpu.memory_space<vmem>>, vector<1x64xf32>
    %44 = vector.broadcast %42 : vector<1x1xf32> to vector<1x64xf32>
    %45 = arith.mulf %44, %43 : vector<1x64xf32>
    %46 = arith.addf %41, %45 : vector<1x64xf32>
    %c0_36 = arith.constant 0 : index
    %c3_37 = arith.constant 3 : index
    %47 = vector.load %arg3[%c0_36, %c3_37] : memref<2x7xf32, #tpu.memory_space<vmem>>, vector<1x1xf32>
    %c0_38 = arith.constant 0 : index
    %c3_39 = arith.constant 3 : index
    %48 = vector.load %arg5[%c0_38, %c3_39] : memref<2x70xf32, #tpu.memory_space<vmem>>, vector<1x64xf32>
    %49 = vector.broadcast %47 : vector<1x1xf32> to vector<1x64xf32>
    %50 = arith.mulf %49, %48 : vector<1x64xf32>
    %51 = arith.addf %46, %50 : vector<1x64xf32>
    %c1_40 = arith.constant 1 : index
    %c3_41 = arith.constant 3 : index
    %52 = vector.load %arg3[%c1_40, %c3_41] : memref<2x7xf32, #tpu.memory_space<vmem>>, vector<1x1xf32>
    %c1_42 = arith.constant 1 : index
    %c3_43 = arith.constant 3 : index
    %53 = vector.load %arg5[%c1_42, %c3_43] : memref<2x70xf32, #tpu.memory_space<vmem>>, vector<1x64xf32>
    %54 = vector.broadcast %52 : vector<1x1xf32> to vector<1x64xf32>
    %55 = arith.mulf %54, %53 : vector<1x64xf32>
    %56 = arith.addf %51, %55 : vector<1x64xf32>
    %c0_44 = arith.constant 0 : index
    %c4 = arith.constant 4 : index
    %57 = vector.load %arg3[%c0_44, %c4] : memref<2x7xf32, #tpu.memory_space<vmem>>, vector<1x1xf32>
    %c0_45 = arith.constant 0 : index
    %c4_46 = arith.constant 4 : index
    %58 = vector.load %arg5[%c0_45, %c4_46] : memref<2x70xf32, #tpu.memory_space<vmem>>, vector<1x64xf32>
    %59 = vector.broadcast %57 : vector<1x1xf32> to vector<1x64xf32>
    %60 = arith.mulf %59, %58 : vector<1x64xf32>
    %61 = arith.addf %56, %60 : vector<1x64xf32>
    %c1_47 = arith.constant 1 : index
    %c4_48 = arith.constant 4 : index
    %62 = vector.load %arg3[%c1_47, %c4_48] : memref<2x7xf32, #tpu.memory_space<vmem>>, vector<1x1xf32>
    %c1_49 = arith.constant 1 : index
    %c4_50 = arith.constant 4 : index
    %63 = vector.load %arg5[%c1_49, %c4_50] : memref<2x70xf32, #tpu.memory_space<vmem>>, vector<1x64xf32>
    %64 = vector.broadcast %62 : vector<1x1xf32> to vector<1x64xf32>
    %65 = arith.mulf %64, %63 : vector<1x64xf32>
    %66 = arith.addf %61, %65 : vector<1x64xf32>
    %c0_51 = arith.constant 0 : index
    %c5 = arith.constant 5 : index
    %67 = vector.load %arg3[%c0_51, %c5] : memref<2x7xf32, #tpu.memory_space<vmem>>, vector<1x1xf32>
    %c0_52 = arith.constant 0 : index
    %c5_53 = arith.constant 5 : index
    %68 = vector.load %arg5[%c0_52, %c5_53] : memref<2x70xf32, #tpu.memory_space<vmem>>, vector<1x64xf32>
    %69 = vector.broadcast %67 : vector<1x1xf32> to vector<1x64xf32>
    %70 = arith.mulf %69, %68 : vector<1x64xf32>
    %71 = arith.addf %66, %70 : vector<1x64xf32>
    %c1_54 = arith.constant 1 : index
    %c5_55 = arith.constant 5 : index
    %72 = vector.load %arg3[%c1_54, %c5_55] : memref<2x7xf32, #tpu.memory_space<vmem>>, vector<1x1xf32>
    %c1_56 = arith.constant 1 : index
    %c5_57 = arith.constant 5 : index
    %73 = vector.load %arg5[%c1_56, %c5_57] : memref<2x70xf32, #tpu.memory_space<vmem>>, vector<1x64xf32>
    %74 = vector.broadcast %72 : vector<1x1xf32> to vector<1x64xf32>
    %75 = arith.mulf %74, %73 : vector<1x64xf32>
    %76 = arith.addf %71, %75 : vector<1x64xf32>
    %c0_58 = arith.constant 0 : index
    %c6 = arith.constant 6 : index
    %77 = vector.load %arg3[%c0_58, %c6] : memref<2x7xf32, #tpu.memory_space<vmem>>, vector<1x1xf32>
    %c0_59 = arith.constant 0 : index
    %c6_60 = arith.constant 6 : index
    %78 = vector.load %arg5[%c0_59, %c6_60] : memref<2x70xf32, #tpu.memory_space<vmem>>, vector<1x64xf32>
    %79 = vector.broadcast %77 : vector<1x1xf32> to vector<1x64xf32>
    %80 = arith.mulf %79, %78 : vector<1x64xf32>
    %81 = arith.addf %76, %80 : vector<1x64xf32>
    %c1_61 = arith.constant 1 : index
    %c6_62 = arith.constant 6 : index
    %82 = vector.load %arg3[%c1_61, %c6_62] : memref<2x7xf32, #tpu.memory_space<vmem>>, vector<1x1xf32>
    %c1_63 = arith.constant 1 : index
    %c6_64 = arith.constant 6 : index
    %83 = vector.load %arg5[%c1_63, %c6_64] : memref<2x70xf32, #tpu.memory_space<vmem>>, vector<1x64xf32>
    %84 = vector.broadcast %82 : vector<1x1xf32> to vector<1x64xf32>
    %85 = arith.mulf %84, %83 : vector<1x64xf32>
    %86 = arith.addf %81, %85 : vector<1x64xf32>
    %87 = arith.negf %86 : vector<1x64xf32>
    %88 = math.exp %87 : vector<1x64xf32>
    %cst_65 = arith.constant 1.000000e+00 : f32
    %89 = vector.broadcast %cst_65 : f32 to vector<1x64xf32>
    %90 = arith.addf %89, %88 : vector<1x64xf32>
    %91 = arith.divf %89, %90 : vector<1x64xf32>
    %92 = vector.broadcast %91 : vector<1x64xf32> to vector<64x64xf32>
    %93 = arith.mulf %5, %92 : vector<64x64xf32>
    %c0_66 = arith.constant 0 : index
    %c0_67 = arith.constant 0 : index
    %c0_68 = arith.constant 0 : index
    %94 = vector.load %arg4[%c0_66, %c0_67, %c0_68] : memref<1x64x64xf32, #tpu.memory_space<vmem>>, vector<1x64x64xf32>
    %95 = vector.shape_cast %94 : vector<1x64x64xf32> to vector<64x64xf32>
    %96 = vector.shape_cast %93 : vector<64x64xf32> to vector<1x64x64xf32>
    tpu.vector_store %arg4[%c0_66, %c0_67, %c0_68], %96 {strides = array<i32>} : memref<1x64x64xf32, #tpu.memory_space<vmem>>, vector<1x64x64xf32>,
    return
  }
  func.func @transform_0(%arg0: i32) -> (i32, i32, i32) {
    %c0_i32 = arith.constant 0 : i32
    %c0_i32_0 = arith.constant 0 : i32
    %c0_i32_1 = arith.constant 0 : i32
    return %arg0, %c0_i32, %c0_i32_0 : i32, i32, i32
  }
  func.func @transform_1(%arg0: i32) -> (i32, i32, i32) {
    %c0_i32 = arith.constant 0 : i32
    %c0_i32_0 = arith.constant 0 : i32
    %c0_i32_1 = arith.constant 0 : i32
    return %arg0, %c0_i32, %c0_i32_0 : i32, i32, i32
  }
  func.func @transform_2(%arg0: i32) -> (i32, i32) {
    %c0_i32 = arith.constant 0 : i32
    %c0_i32_0 = arith.constant 0 : i32
    %c0_i32_1 = arith.constant 0 : i32
    return %c0_i32, %c0_i32_0 : i32, i32
  }
  func.func @transform_3(%arg0: i32) -> (i32, i32, i32) {
    %c0_i32 = arith.constant 0 : i32
    %c0_i32_0 = arith.constant 0 : i32
    %c0_i32_1 = arith.constant 0 : i32
    return %arg0, %c0_i32, %c0_i32_0 : i32, i32, i32
  }
}

module attributes {stable_mosaic.version = 11 : i64} {
  func.func @kernel(%arg0: i32, %arg1: memref<2048x2xf32, #tpu.memory_space<vmem>>, %arg2: memref<2048x128xf32, #tpu.memory_space<vmem>>, %arg3: memref<1x128xf32, #tpu.memory_space<vmem>>, %arg4: memref<2x128xf32, #tpu.memory_space<vmem>>, %arg5: memref<2x128xf32, #tpu.memory_space<vmem>>) attributes {dimension_semantics = [#tpu.dimension_semantics<arbitrary>], iteration_bounds = array<i64: 2>, scalar_prefetch = 0 : i64, scratch_operands = 1 : i64, tpu.core_type = #tpu.core_type<tc>, window_params = [{transform_indices = @transform_0, window_bounds = array<i64: 2048, 2>}, {transform_indices = @transform_1, window_bounds = array<i64: 2048, 128>}, {pipeline_mode = #tpu.pipeline_mode<synchronous>, transform_indices = @transform_2, window_bounds = array<i64: 1, 128>}, {pipeline_mode = #tpu.pipeline_mode<synchronous>, transform_indices = @transform_3, window_bounds = array<i64: 2, 128>}]} {
    %c0_i32 = arith.constant 0 : i32
    %0 = arith.cmpi eq, %arg0, %c0_i32 : i32
    %1 = arith.extui %0 : i1 to i32
    %c0_i32_0 = arith.constant 0 : i32
    %2 = arith.cmpi ne, %1, %c0_i32_0 : i32
    scf.if %2 {
      %cst_9 = arith.constant 0.000000e+00 : f32
      %14 = vector.broadcast %cst_9 : f32 to vector<2x128xf32>
      %c0_10 = arith.constant 0 : index
      %c0_11 = arith.constant 0 : index
      %15 = vector.load %arg5[%c0_10, %c0_11] : memref<2x128xf32, #tpu.memory_space<vmem>>, vector<2x128xf32>
      tpu.vector_store %arg5[%c0_10, %c0_11], %14 {strides = array<i32>} : memref<2x128xf32, #tpu.memory_space<vmem>>, vector<2x128xf32>,
    } else {
    }
    %c0 = arith.constant 0 : index
    %c0_1 = arith.constant 0 : index
    %3 = vector.load %arg5[%c0, %c0_1] : memref<2x128xf32, #tpu.memory_space<vmem>>, vector<2x128xf32>
    %c0_2 = arith.constant 0 : index
    %c0_3 = arith.constant 0 : index
    %4 = vector.load %arg1[%c0_2, %c0_3] : memref<2048x2xf32, #tpu.memory_space<vmem>>, vector<2048x2xf32>
    %5 = arith.truncf %4 : vector<2048x2xf32> to vector<2048x2xbf16>
    %c0_4 = arith.constant 0 : index
    %c0_5 = arith.constant 0 : index
    %6 = vector.load %arg2[%c0_4, %c0_5] : memref<2048x128xf32, #tpu.memory_space<vmem>>, vector<2048x128xf32>
    %7 = arith.truncf %6 : vector<2048x128xf32> to vector<2048x128xbf16>
    %cst = arith.constant dense<0.000000e+00> : vector<2x128xf32>
    %8 = tpu.matmul %5, %7, %cst {dimension_numbers = #tpu.dot_dimension_numbers<[0], [0], [1], [1], [0, 1, 1, 1], [], []>} : vector<2048x2xbf16>, vector<2048x128xbf16>, vector<2x128xf32> -> vector<2x128xf32>
    %9 = arith.addf %3, %8 : vector<2x128xf32>
    %c0_6 = arith.constant 0 : index
    %c0_7 = arith.constant 0 : index
    %10 = vector.load %arg5[%c0_6, %c0_7] : memref<2x128xf32, #tpu.memory_space<vmem>>, vector<2x128xf32>
    tpu.vector_store %arg5[%c0_6, %c0_7], %9 {strides = array<i32>} : memref<2x128xf32, #tpu.memory_space<vmem>>, vector<2x128xf32>,
    %c1_i32 = arith.constant 1 : i32
    %11 = arith.cmpi eq, %arg0, %c1_i32 : i32
    %12 = arith.extui %11 : i1 to i32
    %c0_i32_8 = arith.constant 0 : i32
    %13 = arith.cmpi ne, %12, %c0_i32_8 : i32
    scf.if %13 {
      %c0_9 = arith.constant 0 : index
      %c0_10 = arith.constant 0 : index
      %14 = vector.load %arg5[%c0_9, %c0_10] : memref<2x128xf32, #tpu.memory_space<vmem>>, vector<2x128xf32>
      %c0_11 = arith.constant 0 : index
      %c0_12 = arith.constant 0 : index
      %15 = vector.load %arg3[%c0_11, %c0_12] : memref<1x128xf32, #tpu.memory_space<vmem>>, vector<1x128xf32>
      %16 = vector.broadcast %15 : vector<1x128xf32> to vector<2x128xf32>
      %17 = arith.addf %14, %16 : vector<2x128xf32>
      %cst_13 = arith.constant 0.000000e+00 : f32
      %18 = vector.broadcast %cst_13 : f32 to vector<2x128xf32>
      %19 = arith.maximumf %17, %18 : vector<2x128xf32>
      %c0_14 = arith.constant 0 : index
      %c0_15 = arith.constant 0 : index
      %20 = vector.load %arg4[%c0_14, %c0_15] : memref<2x128xf32, #tpu.memory_space<vmem>>, vector<2x128xf32>
      tpu.vector_store %arg4[%c0_14, %c0_15], %19 {strides = array<i32>} : memref<2x128xf32, #tpu.memory_space<vmem>>, vector<2x128xf32>,
    } else {
    }
    return
  }
  func.func @transform_0(%arg0: i32) -> (i32, i32) {
    %c0_i32 = arith.constant 0 : i32
    %c0_i32_0 = arith.constant 0 : i32
    return %arg0, %c0_i32 : i32, i32
  }
  func.func @transform_1(%arg0: i32) -> (i32, i32) {
    %c0_i32 = arith.constant 0 : i32
    %c0_i32_0 = arith.constant 0 : i32
    return %arg0, %c0_i32 : i32, i32
  }
  func.func @transform_2(%arg0: i32) -> (i32, i32) {
    %c0_i32 = arith.constant 0 : i32
    %c0_i32_0 = arith.constant 0 : i32
    %c0_i32_1 = arith.constant 0 : i32
    return %c0_i32, %c0_i32_0 : i32, i32
  }
  func.func @transform_3(%arg0: i32) -> (i32, i32) {
    %c0_i32 = arith.constant 0 : i32
    %c0_i32_0 = arith.constant 0 : i32
    %c0_i32_1 = arith.constant 0 : i32
    return %c0_i32, %c0_i32_0 : i32, i32
  }
}

module attributes {stable_mosaic.version = 11 : i64} {
  func.func @small_kernel(%arg0: memref<2x6xf32, #tpu.memory_space<vmem>>, %arg1: memref<6x32xf32, #tpu.memory_space<vmem>>, %arg2: memref<1x32xf32, #tpu.memory_space<vmem>>, %arg3: memref<2x32xf32, #tpu.memory_space<vmem>>) attributes {dimension_semantics = [], scalar_prefetch = 0 : i64, scratch_operands = 0 : i64, tpu.core_type = #tpu.core_type<tc>} {
    %c0 = arith.constant 0 : index
    %c0_0 = arith.constant 0 : index
    %0 = vector.load %arg0[%c0, %c0_0] : memref<2x6xf32, #tpu.memory_space<vmem>>, vector<2x6xf32>
    %1 = arith.truncf %0 : vector<2x6xf32> to vector<2x6xbf16>
    %c0_1 = arith.constant 0 : index
    %c0_2 = arith.constant 0 : index
    %2 = vector.load %arg1[%c0_1, %c0_2] : memref<6x32xf32, #tpu.memory_space<vmem>>, vector<6x32xf32>
    %3 = arith.truncf %2 : vector<6x32xf32> to vector<6x32xbf16>
    %cst = arith.constant dense<0.000000e+00> : vector<2x32xf32>
    %4 = tpu.matmul %1, %3, %cst {dimension_numbers = #tpu.dot_dimension_numbers<[1], [0], [0], [1], [0, 0, 1, 1], [], []>} : vector<2x6xbf16>, vector<6x32xbf16>, vector<2x32xf32> -> vector<2x32xf32>
    %c0_3 = arith.constant 0 : index
    %c0_4 = arith.constant 0 : index
    %5 = vector.load %arg2[%c0_3, %c0_4] : memref<1x32xf32, #tpu.memory_space<vmem>>, vector<1x32xf32>
    %6 = vector.broadcast %5 : vector<1x32xf32> to vector<2x32xf32>
    %7 = arith.addf %4, %6 : vector<2x32xf32>
    %cst_5 = arith.constant 0.000000e+00 : f32
    %8 = vector.broadcast %cst_5 : f32 to vector<2x32xf32>
    %9 = arith.maximumf %7, %8 : vector<2x32xf32>
    %c0_6 = arith.constant 0 : index
    %c0_7 = arith.constant 0 : index
    %10 = vector.load %arg3[%c0_6, %c0_7] : memref<2x32xf32, #tpu.memory_space<vmem>>, vector<2x32xf32>
    tpu.vector_store %arg3[%c0_6, %c0_7], %9 {strides = array<i32>} : memref<2x32xf32, #tpu.memory_space<vmem>>, vector<2x32xf32>,
    return
  }
}

module attributes {stable_mosaic.version = 11 : i64} {
  func.func @small_kernel(%arg0: memref<2x64xf32, #tpu.memory_space<vmem>>, %arg1: memref<64x2xf32, #tpu.memory_space<vmem>>, %arg2: memref<1x2xf32, #tpu.memory_space<vmem>>, %arg3: memref<2x2xf32, #tpu.memory_space<vmem>>) attributes {dimension_semantics = [], scalar_prefetch = 0 : i64, scratch_operands = 0 : i64, tpu.core_type = #tpu.core_type<tc>} {
    %c0 = arith.constant 0 : index
    %c0_0 = arith.constant 0 : index
    %0 = vector.load %arg0[%c0, %c0_0] : memref<2x64xf32, #tpu.memory_space<vmem>>, vector<2x64xf32>
    %1 = arith.truncf %0 : vector<2x64xf32> to vector<2x64xbf16>
    %c0_1 = arith.constant 0 : index
    %c0_2 = arith.constant 0 : index
    %2 = vector.load %arg1[%c0_1, %c0_2] : memref<64x2xf32, #tpu.memory_space<vmem>>, vector<64x2xf32>
    %3 = arith.truncf %2 : vector<64x2xf32> to vector<64x2xbf16>
    %cst = arith.constant dense<0.000000e+00> : vector<2x2xf32>
    %4 = tpu.matmul %1, %3, %cst {dimension_numbers = #tpu.dot_dimension_numbers<[1], [0], [0], [1], [0, 0, 1, 1], [], []>} : vector<2x64xbf16>, vector<64x2xbf16>, vector<2x2xf32> -> vector<2x2xf32>
    %c0_3 = arith.constant 0 : index
    %c0_4 = arith.constant 0 : index
    %5 = vector.load %arg2[%c0_3, %c0_4] : memref<1x2xf32, #tpu.memory_space<vmem>>, vector<1x2xf32>
    %6 = vector.broadcast %5 : vector<1x2xf32> to vector<2x2xf32>
    %7 = arith.addf %4, %6 : vector<2x2xf32>
    %c0_5 = arith.constant 0 : index
    %c0_6 = arith.constant 0 : index
    %8 = vector.load %arg3[%c0_5, %c0_6] : memref<2x2xf32, #tpu.memory_space<vmem>>, vector<2x2xf32>
    tpu.vector_store %arg3[%c0_5, %c0_6], %7 {strides = array<i32>} : memref<2x2xf32, #tpu.memory_space<vmem>>, vector<2x2xf32>,
    return
  }
}

module attributes {stable_mosaic.version = 11 : i64} {
  func.func @small_kernel(%arg0: memref<2x160xf32, #tpu.memory_space<vmem>>, %arg1: memref<160x64xf32, #tpu.memory_space<vmem>>, %arg2: memref<1x64xf32, #tpu.memory_space<vmem>>, %arg3: memref<2x64xf32, #tpu.memory_space<vmem>>) attributes {dimension_semantics = [], scalar_prefetch = 0 : i64, scratch_operands = 0 : i64, tpu.core_type = #tpu.core_type<tc>} {
    %c0 = arith.constant 0 : index
    %c0_0 = arith.constant 0 : index
    %0 = vector.load %arg0[%c0, %c0_0] : memref<2x160xf32, #tpu.memory_space<vmem>>, vector<2x160xf32>
    %1 = arith.truncf %0 : vector<2x160xf32> to vector<2x160xbf16>
    %c0_1 = arith.constant 0 : index
    %c0_2 = arith.constant 0 : index
    %2 = vector.load %arg1[%c0_1, %c0_2] : memref<160x64xf32, #tpu.memory_space<vmem>>, vector<160x64xf32>
    %3 = arith.truncf %2 : vector<160x64xf32> to vector<160x64xbf16>
    %cst = arith.constant dense<0.000000e+00> : vector<2x64xf32>
    %4 = tpu.matmul %1, %3, %cst {dimension_numbers = #tpu.dot_dimension_numbers<[1], [0], [0], [1], [0, 0, 1, 1], [], []>} : vector<2x160xbf16>, vector<160x64xbf16>, vector<2x64xf32> -> vector<2x64xf32>
    %c0_3 = arith.constant 0 : index
    %c0_4 = arith.constant 0 : index
    %5 = vector.load %arg2[%c0_3, %c0_4] : memref<1x64xf32, #tpu.memory_space<vmem>>, vector<1x64xf32>
    %6 = vector.broadcast %5 : vector<1x64xf32> to vector<2x64xf32>
    %7 = arith.addf %4, %6 : vector<2x64xf32>
    %cst_5 = arith.constant 0.000000e+00 : f32
    %8 = vector.broadcast %cst_5 : f32 to vector<2x64xf32>
    %9 = arith.maximumf %7, %8 : vector<2x64xf32>
    %c0_6 = arith.constant 0 : index
    %c0_7 = arith.constant 0 : index
    %10 = vector.load %arg3[%c0_6, %c0_7] : memref<2x64xf32, #tpu.memory_space<vmem>>, vector<2x64xf32>
    tpu.vector_store %arg3[%c0_6, %c0_7], %9 {strides = array<i32>} : memref<2x64xf32, #tpu.memory_space<vmem>>, vector<2x64xf32>,
    return
  }
}

</mosaic_0001>

<llo_original>
// kernel: forward.21
$region0: #{forward.21}
  #allocation0 [shape = 'u32[]', space=smem, size = 0x4, offset = 0x4, fixed_abs, tag = 'smem constant byte address 0x4 - core index']
  #allocation1 [shape = 'u32[72,128]{1,0:T(1,128)}', space=vmem, size = 0x9000, scoped, tag = 'internal scratch']
  %s0 = inlined_call_operand.vmem [shape: f32[2,32,128], index: 0, kind: input, shape index: {}]
  %s1 = inlined_call_operand.vmem [shape: f32[32,1], index: 1, kind: input, shape index: {}]
  %s2 = inlined_call_operand.vmem [shape: f32[32,1], index: 2, kind: input, shape index: {}]
  %s3 = inlined_call_operand.vmem [shape: f32[2,32,128], index: 3, kind: output, shape index: {}]
  %s4 = sld [smem:[#allocation0]]
  $region45: #{forward.21} parent=0
    _
  %s6 = ssub.s32 1, %s4
  %s7 = scalar_select 0, %s6, %s4
  loop: start=0, step=1, limit=4
  $region2: #{forward.21} parent=0 // loop_pre_header
    _
  $region3: #{forward.21} parent=0 // loop_header
    %s9 = sphi 0, %s13
    %p10 = scmp.ge.s32.totalorder %s9, 4
    %s19 = sphi 0, %s21
    %s22 = sphi 0, %s19
    %s23 = sphi 0, %s22
    %s39 = sphi 0, %s23
    %s43 = sphi 0, %s43
    %s45 = sphi 0, %s43
    %s46 = sphi 0, %s45
    %s60 = sphi 0, %s46
    %s64 = sphi 0, %s64
    %s66 = sphi 0, %s64
    %s67 = sphi 0, %s66
    %s81 = sphi 0, %s67
    %s87 = sphi 0, %s89
    %s90 = sphi 0, %s87
    %s91 = sphi 0, %s90
    %s107 = sphi 0, %s91
  $region4: #{forward.21} parent=0 // loop_header_branch
    %12 = sbr.rel (%p10) target = $region8
  $region5: #{forward.21} parent=0 // loop_body
    %s14 = ssub.s32 %s9, 1
    %s15 = ssub.s32 %s9, 2
    %s16 = sadd.s32 %s9, 1
    %s17 = ssub.s32 %s9, %s16
    %p18 = scmp.eq.s32.totalorder %s17, 0
    %s20 = sadd.s32 %s19, 1
    %s21 = scalar_select %p18, %s19, %s20
    %p24 = pneg %p18
    %p25 = scmp.eq.s32.totalorder %s9, 1
    %p26 = por %p24, %p25
    %p27 = scmp.ne.s32.totalorder %s19, %s22
    %p28 = scmp.eq.s32.totalorder %s9, 0
    %p29 = por %p27, %p28
    %p30 = scmp.ne.s32.totalorder %s19, %s22
    %p31 = scmp.eq.s32.totalorder %s14, 1
    %p32 = por %p30, %p31
    %p33 = scmp.ne.s32.totalorder %s22, %s23
    %p34 = scmp.eq.s32.totalorder %s14, 0
    %p35 = por %p33, %p34
    %p36 = scmp.ne.s32.totalorder %s22, %s23
    %p37 = scmp.eq.s32.totalorder %s15, 1
    %p38 = por %p36, %p37
    %p40 = scmp.ne.s32.totalorder %s23, %s39
    %p41 = scmp.eq.s32.totalorder %s15, 0
    %p42 = por %p40, %p41
    %s44 = sadd.s32 %s43, 1
    %p47 = scmp.eq.s32.totalorder %s9, 1
    %p48 = scmp.ne.s32.totalorder %s43, %s45
    %p49 = scmp.eq.s32.totalorder %s9, 0
    %p50 = por %p48, %p49
    %p51 = scmp.ne.s32.totalorder %s43, %s45
    %p52 = scmp.eq.s32.totalorder %s14, 1
    %p53 = por %p51, %p52
    %p54 = scmp.ne.s32.totalorder %s45, %s46
    %p55 = scmp.eq.s32.totalorder %s14, 0
    %p56 = por %p54, %p55
    %p57 = scmp.ne.s32.totalorder %s45, %s46
    %p58 = scmp.eq.s32.totalorder %s15, 1
    %p59 = por %p57, %p58
    %p61 = scmp.ne.s32.totalorder %s46, %s60
    %p62 = scmp.eq.s32.totalorder %s15, 0
    %p63 = por %p61, %p62
    %s65 = sadd.s32 %s64, 1
    %p68 = scmp.eq.s32.totalorder %s9, 1
    %p69 = scmp.ne.s32.totalorder %s64, %s66
    %p70 = scmp.eq.s32.totalorder %s9, 0
    %p71 = por %p69, %p70
    %p72 = scmp.ne.s32.totalorder %s64, %s66
    %p73 = scmp.eq.s32.totalorder %s14, 1
    %p74 = por %p72, %p73
    %p75 = scmp.ne.s32.totalorder %s66, %s67
    %p76 = scmp.eq.s32.totalorder %s14, 0
    %p77 = por %p75, %p76
    %p78 = scmp.ne.s32.totalorder %s66, %s67
    %p79 = scmp.eq.s32.totalorder %s15, 1
    %p80 = por %p78, %p79
    %p82 = scmp.ne.s32.totalorder %s67, %s81
    %p83 = scmp.eq.s32.totalorder %s15, 0
    %p84 = por %p82, %p83
    %s85 = ssub.s32 %s9, %s16
    %p86 = scmp.eq.s32.totalorder %s85, 0
    %s88 = sadd.s32 %s87, 1
    %s89 = scalar_select %p86, %s87, %s88
    %p92 = pneg %p86
    %p93 = scmp.eq.s32.totalorder %s9, 1
    %p94 = por %p92, %p93
    %p95 = scmp.ne.s32.totalorder %s87, %s90
    %p96 = scmp.eq.s32.totalorder %s9, 0
    %p97 = por %p95, %p96
    %p98 = scmp.ne.s32.totalorder %s87, %s90
    %p99 = scmp.eq.s32.totalorder %s14, 1
    %p100 = por %p98, %p99
    %p101 = scmp.ne.s32.totalorder %s90, %s91
    %p102 = scmp.eq.s32.totalorder %s14, 0
    %p103 = por %p101, %p102
    %p104 = scmp.ne.s32.totalorder %s90, %s91
    %p105 = scmp.eq.s32.totalorder %s15, 1
    %p106 = por %p104, %p105
    %p108 = scmp.ne.s32.totalorder %s91, %s107
    %p109 = scmp.eq.s32.totalorder %s15, 0
    %p110 = por %p108, %p109
    %p111 = scmp.le.s32.totalorder 1, %s9
    %p112 = scmp.lt.s32.totalorder %s9, 3
    %p113 = pnand %p111, %p112
    %p114 = pneg %p113
    // Predicated region
    $region9: #{forward.21} parent=5 // pred_check
      _
    $region10: #{forward.21} parent=5 // pred_check_branch
      %116 = sbr.rel (%p113) target = $region12
    $region11: #{forward.21} parent=5 // pred_region
      %s117 = ssub.s32 %s9, 1
      // Predicated region
      $region13: #{forward.21} parent=11 // pred_check
        %p118 = pneg %p56
      $region14: #{forward.21} parent=11 // pred_check_branch
        %120 = sbr.rel (%p118) target = $region16
      $region15: #{forward.21} parent=11 // pred_region
        _
      $region16: #{forward.21} parent=11 // pred_fallthru
        _
      // Predicated region
      $region17: #{forward.21} parent=11 // pred_check
        %p121 = pneg %p77
      $region18: #{forward.21} parent=11 // pred_check_branch
        %123 = sbr.rel (%p121) target = $region20
      $region19: #{forward.21} parent=11 // pred_region
        _
      $region20: #{forward.21} parent=11 // pred_fallthru
        _
    $region12: #{forward.21} parent=5 // pred_fallthru
      _
    %p124 = scmp.lt.s32.totalorder %s9, 2
    // Predicated region
    $region21: #{forward.21} parent=5 // pred_check
      %p125 = pneg %p124
    $region22: #{forward.21} parent=5 // pred_check_branch
      %127 = sbr.rel (%p125) target = $region24
    $region23: #{forward.21} parent=5 // pred_region
      // Predicated region
      $region25: #{forward.21} parent=23 // pred_check
        %p128 = pneg %p29
      $region26: #{forward.21} parent=23 // pred_check_branch
        %130 = sbr.rel (%p128) target = $region28
      $region27: #{forward.21} parent=23 // pred_region
        %p131 = scmp.lt.s32.totalorder %s9, 1
        %s132 = scalar_select %p131, %s9, 1
        %s133 = smul.addr %s132, 4
        %s134 = smul.addr %s133, 8
        %s135 = scalar_lea.vmem %s0, %s134
      $region28: #{forward.21} parent=23 // pred_fallthru
        _
    $region24: #{forward.21} parent=5 // pred_fallthru
      _
    %p136 = scmp.le.s32.totalorder 1, %s9
    %p137 = scmp.lt.s32.totalorder %s9, 3
    %p138 = pnand %p136, %p137
    %p139 = pneg %p138
    // Predicated region
    $region29: #{forward.21} parent=5 // pred_check
      _
    $region30: #{forward.21} parent=5 // pred_check_branch
      %141 = sbr.rel (%p138) target = $region32
    $region31: #{forward.21} parent=5 // pred_region
      %s142 = ssub.s32 %s9, 1
      %p143 = scmp.lt.s32.totalorder %s14, 1
      %s144 = scalar_select %p143, %s14, 1
      %s145 = smul.addr %s144, 4
      %s146 = smul.addr %s145, 8
      %s147 = scalar_lea.vmem %s0, %s146
      %p148 = pneg %p35
      %p149 = pneg %p32
      %p150 = pneg %p56
      %p151 = pneg %p53
      %p152 = pneg %p77
      %p153 = pneg %p74
      %p154 = pneg %p103
      %p155 = pneg %p100
      %p156 = scmp.lt.s32.totalorder %s14, 1
      %s157 = scalar_select %p156, %s14, 1
      %s158 = smul.addr %s157, 4
      %s159 = smul.addr %s158, 8
      %s160 = scalar_lea.vmem %s3, %s159
      %p161 = scmp.lt.s32.totalorder %s14, 1
      %s162 = scalar_select %p161, %s14, 1
      %s163 = smul.addr %s162, 4
      %s164 = smul.addr %s163, 8
      %s165 = scalar_lea.vmem %s0, %s164
      %p166 = scmp.lt.s32.totalorder %s14, 1
      %s167 = scalar_select %p166, %s14, 1
      %s168 = smul.addr %s167, 4
      %s169 = smul.addr %s168, 8
      %s170 = scalar_lea.vmem %s3, %s169
      %v171 = vld [vmem:[%s165] sm:$0xff]
      %v172 = vld [vmem:[%s165 + $0x8] sm:$0xff]
      %v173 = vld [vmem:[%s165 + $0x10] sm:$0xff]
      %v174 = vld [vmem:[%s165 + $0x18] sm:$0xff]
      %v175 = vld [vmem:[%s1] sm:$0xff]
      %v176 = vld [vmem:[%s1 + $0x8] sm:$0xff]
      %v177 = vld [vmem:[%s1 + $0x10] sm:$0xff]
      %v178 = vld [vmem:[%s1 + $0x18] sm:$0xff]
      %180 = vset.pattern.permute.xlu0 0
      %181 = vperm.xlu0 %180, %v175
      %v182 = vpop.permute.xlu0 %181
      %185 = vset.pattern.permute.xlu0 0
      %186 = vperm.xlu0 %185, %v176
      %v187 = vpop.permute.xlu0 %186
      %190 = vset.pattern.permute.xlu0 0
      %191 = vperm.xlu0 %190, %v177
      %v192 = vpop.permute.xlu0 %191
      %195 = vset.pattern.permute.xlu0 0
      %196 = vperm.xlu0 %195, %v178
      %v197 = vpop.permute.xlu0 %196
      %v199 = vmul.f32 %v171, %v182
      %v200 = vmul.f32 %v172, %v187
      %v201 = vmul.f32 %v173, %v192
      %v202 = vmul.f32 %v174, %v197
      %v203 = vld [vmem:[%s2] sm:$0xff]
      %v204 = vld [vmem:[%s2 + $0x8] sm:$0xff]
      %v205 = vld [vmem:[%s2 + $0x10] sm:$0xff]
      %v206 = vld [vmem:[%s2 + $0x18] sm:$0xff]
      %208 = vset.pattern.permute.xlu0 0
      %209 = vperm.xlu0 %208, %v203
      %v210 = vpop.permute.xlu0 %209
      %213 = vset.pattern.permute.xlu0 0
      %214 = vperm.xlu0 %213, %v204
      %v215 = vpop.permute.xlu0 %214
      %218 = vset.pattern.permute.xlu0 0
      %219 = vperm.xlu0 %218, %v205
      %v220 = vpop.permute.xlu0 %219
      %223 = vset.pattern.permute.xlu0 0
      %224 = vperm.xlu0 %223, %v206
      %v225 = vpop.permute.xlu0 %224
      %v227 = vadd.f32 %v199, %v210
      %v228 = vadd.f32 %v200, %v215
      %v229 = vadd.f32 %v201, %v220
      %v230 = vadd.f32 %v202, %v225
      %v231 = vmax.f32 %v227, 0.0
      %v232 = vmax.f32 %v228, 0.0
      %v233 = vmax.f32 %v229, 0.0
      %v234 = vmax.f32 %v230, 0.0
      %235 = vst [vmem:[%s170] sm:$0xff] %v231
      %236 = vst [vmem:[%s170 + $0x8] sm:$0xff] %v232
      %237 = vst [vmem:[%s170 + $0x10] sm:$0xff] %v233
      %238 = vst [vmem:[%s170 + $0x18] sm:$0xff] %v234
      %p239 = scmp.lt.s32.totalorder %s14, 1
      %s240 = scalar_select %p239, %s14, 1
      %s241 = smul.addr %s240, 4
      %s242 = smul.addr %s241, 8
      %s243 = scalar_lea.vmem %s3, %s242
      // Predicated region
      $region33: #{forward.21} parent=31 // pred_check
        %p244 = pneg %p100
      $region34: #{forward.21} parent=31 // pred_check_branch
        %246 = sbr.rel (%p244) target = $region36
      $region35: #{forward.21} parent=31 // pred_region
        _
      $region36: #{forward.21} parent=31 // pred_fallthru
        _
    $region32: #{forward.21} parent=5 // pred_fallthru
      _
    %p247 = scmp.le.s32.totalorder 2, %s9
    // Predicated region
    $region37: #{forward.21} parent=5 // pred_check
      %p248 = pneg %p247
    $region38: #{forward.21} parent=5 // pred_check_branch
      %250 = sbr.rel (%p248) target = $region40
    $region39: #{forward.21} parent=5 // pred_region
      %s251 = ssub.s32 %s9, 2
      // Predicated region
      $region41: #{forward.21} parent=39 // pred_check
        %p252 = pneg %p106
      $region42: #{forward.21} parent=39 // pred_check_branch
        %254 = sbr.rel (%p252) target = $region44
      $region43: #{forward.21} parent=39 // pred_region
        %p255 = scmp.lt.s32.totalorder %s15, 1
        %s256 = scalar_select %p255, %s15, 1
        %s257 = smul.addr %s256, 4
        %s258 = smul.addr %s257, 8
        %s259 = scalar_lea.vmem %s3, %s258
      $region44: #{forward.21} parent=39 // pred_fallthru
        _
    $region40: #{forward.21} parent=5 // pred_fallthru
      _
  $region6: #{forward.21} parent=0 // loop_footer
    %s13 = sadd.s32 1, %s9
  $region7: #{forward.21} parent=0 // loop_footer_branch
    %8 = sbr.rel target = $region3
  $region8: #{forward.21} parent=0 // loop_exit
    _

// kernel: forward.20
$region0: #{forward.20}
  #allocation0 [shape = 'u32[]', space=smem, size = 0x4, offset = 0x4, fixed_abs, tag = 'smem constant byte address 0x4 - core index']
  #allocation1 [shape = 'u32[72,128]{1,0:T(1,128)}', space=vmem, size = 0x9000, scoped, tag = 'internal scratch']
  %s0 = inlined_call_operand.vmem [shape: f32[2,2,130], index: 0, kind: input, shape index: {}]
  %s1 = inlined_call_operand.vmem [shape: f32[3,32,2], index: 1, kind: input, shape index: {}]
  %s2 = inlined_call_operand.vmem [shape: f32[2,32,128], index: 2, kind: output, shape index: {0}]
  %s3 = inlined_call_operand.vmem [shape: f32[2,32,2], index: 3, kind: output, shape index: {1}]
  %4 = xla_tuple %s2, %s3
  %s5 = sld [smem:[#allocation0]]
  $region49: #{forward.20} parent=0
    _
  %s7 = ssub.s32 1, %s5
  %s8 = scalar_select 0, %s7, %s5
  loop: start=0, step=1, limit=4
  $region2: #{forward.20} parent=0 // loop_pre_header
    _
  $region3: #{forward.20} parent=0 // loop_header
    %s10 = sphi 0, %s14
    %p11 = scmp.ge.s32.totalorder %s10, 4
    %s20 = sphi 0, %s22
    %s23 = sphi 0, %s20
    %s24 = sphi 0, %s23
    %s40 = sphi 0, %s24
    %s44 = sphi 0, %s44
    %s46 = sphi 0, %s44
    %s47 = sphi 0, %s46
    %s61 = sphi 0, %s47
    %s67 = sphi 0, %s69
    %s70 = sphi 0, %s67
    %s71 = sphi 0, %s70
    %s87 = sphi 0, %s71
    %s93 = sphi 0, %s95
    %s96 = sphi 0, %s93
    %s97 = sphi 0, %s96
    %s113 = sphi 0, %s97
  $region4: #{forward.20} parent=0 // loop_header_branch
    %13 = sbr.rel (%p11) target = $region8
  $region5: #{forward.20} parent=0 // loop_body
    %s15 = ssub.s32 %s10, 1
    %s16 = ssub.s32 %s10, 2
    %s17 = sadd.s32 %s10, 1
    %s18 = ssub.s32 %s10, %s17
    %p19 = scmp.eq.s32.totalorder %s18, 0
    %s21 = sadd.s32 %s20, 1
    %s22 = scalar_select %p19, %s20, %s21
    %p25 = pneg %p19
    %p26 = scmp.eq.s32.totalorder %s10, 1
    %p27 = por %p25, %p26
    %p28 = scmp.ne.s32.totalorder %s20, %s23
    %p29 = scmp.eq.s32.totalorder %s10, 0
    %p30 = por %p28, %p29
    %p31 = scmp.ne.s32.totalorder %s20, %s23
    %p32 = scmp.eq.s32.totalorder %s15, 1
    %p33 = por %p31, %p32
    %p34 = scmp.ne.s32.totalorder %s23, %s24
    %p35 = scmp.eq.s32.totalorder %s15, 0
    %p36 = por %p34, %p35
    %p37 = scmp.ne.s32.totalorder %s23, %s24
    %p38 = scmp.eq.s32.totalorder %s16, 1
    %p39 = por %p37, %p38
    %p41 = scmp.ne.s32.totalorder %s24, %s40
    %p42 = scmp.eq.s32.totalorder %s16, 0
    %p43 = por %p41, %p42
    %s45 = sadd.s32 %s44, 1
    %p48 = scmp.eq.s32.totalorder %s10, 1
    %p49 = scmp.ne.s32.totalorder %s44, %s46
    %p50 = scmp.eq.s32.totalorder %s10, 0
    %p51 = por %p49, %p50
    %p52 = scmp.ne.s32.totalorder %s44, %s46
    %p53 = scmp.eq.s32.totalorder %s15, 1
    %p54 = por %p52, %p53
    %p55 = scmp.ne.s32.totalorder %s46, %s47
    %p56 = scmp.eq.s32.totalorder %s15, 0
    %p57 = por %p55, %p56
    %p58 = scmp.ne.s32.totalorder %s46, %s47
    %p59 = scmp.eq.s32.totalorder %s16, 1
    %p60 = por %p58, %p59
    %p62 = scmp.ne.s32.totalorder %s47, %s61
    %p63 = scmp.eq.s32.totalorder %s16, 0
    %p64 = por %p62, %p63
    %s65 = ssub.s32 %s10, %s17
    %p66 = scmp.eq.s32.totalorder %s65, 0
    %s68 = sadd.s32 %s67, 1
    %s69 = scalar_select %p66, %s67, %s68
    %p72 = pneg %p66
    %p73 = scmp.eq.s32.totalorder %s10, 1
    %p74 = por %p72, %p73
    %p75 = scmp.ne.s32.totalorder %s67, %s70
    %p76 = scmp.eq.s32.totalorder %s10, 0
    %p77 = por %p75, %p76
    %p78 = scmp.ne.s32.totalorder %s67, %s70
    %p79 = scmp.eq.s32.totalorder %s15, 1
    %p80 = por %p78, %p79
    %p81 = scmp.ne.s32.totalorder %s70, %s71
    %p82 = scmp.eq.s32.totalorder %s15, 0
    %p83 = por %p81, %p82
    %p84 = scmp.ne.s32.totalorder %s70, %s71
    %p85 = scmp.eq.s32.totalorder %s16, 1
    %p86 = por %p84, %p85
    %p88 = scmp.ne.s32.totalorder %s71, %s87
    %p89 = scmp.eq.s32.totalorder %s16, 0
    %p90 = por %p88, %p89
    %s91 = ssub.s32 %s10, %s17
    %p92 = scmp.eq.s32.totalorder %s91, 0
    %s94 = sadd.s32 %s93, 1
    %s95 = scalar_select %p92, %s93, %s94
    %p98 = pneg %p92
    %p99 = scmp.eq.s32.totalorder %s10, 1
    %p100 = por %p98, %p99
    %p101 = scmp.ne.s32.totalorder %s93, %s96
    %p102 = scmp.eq.s32.totalorder %s10, 0
    %p103 = por %p101, %p102
    %p104 = scmp.ne.s32.totalorder %s93, %s96
    %p105 = scmp.eq.s32.totalorder %s15, 1
    %p106 = por %p104, %p105
    %p107 = scmp.ne.s32.totalorder %s96, %s97
    %p108 = scmp.eq.s32.totalorder %s15, 0
    %p109 = por %p107, %p108
    %p110 = scmp.ne.s32.totalorder %s96, %s97
    %p111 = scmp.eq.s32.totalorder %s16, 1
    %p112 = por %p110, %p111
    %p114 = scmp.ne.s32.totalorder %s97, %s113
    %p115 = scmp.eq.s32.totalorder %s16, 0
    %p116 = por %p114, %p115
    %p117 = scmp.le.s32.totalorder 1, %s10
    %p118 = scmp.lt.s32.totalorder %s10, 3
    %p119 = pnand %p117, %p118
    %p120 = pneg %p119
    // Predicated region
    $region9: #{forward.20} parent=5 // pred_check
      _
    $region10: #{forward.20} parent=5 // pred_check_branch
      %122 = sbr.rel (%p119) target = $region12
    $region11: #{forward.20} parent=5 // pred_region
      %s123 = ssub.s32 %s10, 1
      // Predicated region
      $region13: #{forward.20} parent=11 // pred_check
        %p124 = pneg %p57
      $region14: #{forward.20} parent=11 // pred_check_branch
        %126 = sbr.rel (%p124) target = $region16
      $region15: #{forward.20} parent=11 // pred_region
        _
      $region16: #{forward.20} parent=11 // pred_fallthru
        _
    $region12: #{forward.20} parent=5 // pred_fallthru
      _
    %p127 = scmp.lt.s32.totalorder %s10, 2
    // Predicated region
    $region17: #{forward.20} parent=5 // pred_check
      %p128 = pneg %p127
    $region18: #{forward.20} parent=5 // pred_check_branch
      %130 = sbr.rel (%p128) target = $region20
    $region19: #{forward.20} parent=5 // pred_region
      // Predicated region
      $region21: #{forward.20} parent=19 // pred_check
        %p131 = pneg %p30
      $region22: #{forward.20} parent=19 // pred_check_branch
        %133 = sbr.rel (%p131) target = $region24
      $region23: #{forward.20} parent=19 // pred_region
        %p134 = scmp.lt.s32.totalorder %s10, 1
        %s135 = scalar_select %p134, %s10, 1
        %s136 = smul.addr %s135, 2
        %s137 = smul.addr %s136, 2
        %s138 = scalar_lea.vmem %s0, %s137
      $region24: #{forward.20} parent=19 // pred_fallthru
        _
    $region20: #{forward.20} parent=5 // pred_fallthru
      _
    %p139 = scmp.le.s32.totalorder 1, %s10
    %p140 = scmp.lt.s32.totalorder %s10, 3
    %p141 = pnand %p139, %p140
    %p142 = pneg %p141
    // Predicated region
    $region25: #{forward.20} parent=5 // pred_check
      _
    $region26: #{forward.20} parent=5 // pred_check_branch
      %144 = sbr.rel (%p141) target = $region28
    $region27: #{forward.20} parent=5 // pred_region
      %s145 = ssub.s32 %s10, 1
      %p146 = scmp.lt.s32.totalorder %s15, 1
      %s147 = scalar_select %p146, %s15, 1
      %s148 = smul.addr %s147, 2
      %s149 = smul.addr %s148, 2
      %s150 = scalar_lea.vmem %s0, %s149
      %p151 = pneg %p36
      %p152 = pneg %p33
      %p153 = pneg %p57
      %p154 = pneg %p54
      %p155 = pneg %p83
      %p156 = pneg %p80
      %p157 = scmp.lt.s32.totalorder %s15, 1
      %s158 = scalar_select %p157, %s15, 1
      %s159 = smul.addr %s158, 4
      %s160 = smul.addr %s159, 8
      %s161 = scalar_lea.vmem %s2, %s160
      %p162 = pneg %p109
      %p163 = pneg %p106
      %p164 = scmp.lt.s32.totalorder %s15, 1
      %s165 = scalar_select %p164, %s15, 1
      %s166 = smul.addr %s165, 4
      %s167 = smul.addr %s166, 8
      %s168 = scalar_lea.vmem %s3, %s167
      %p169 = scmp.lt.s32.totalorder %s15, 1
      %s170 = scalar_select %p169, %s15, 1
      %s171 = smul.addr %s170, 2
      %s172 = smul.addr %s171, 2
      %s173 = scalar_lea.vmem %s0, %s172
      %p174 = scmp.lt.s32.totalorder %s15, 1
      %s175 = scalar_select %p174, %s15, 1
      %s176 = smul.addr %s175, 4
      %s177 = smul.addr %s176, 8
      %s178 = scalar_lea.vmem %s2, %s177
      %p179 = scmp.lt.s32.totalorder %s15, 1
      %s180 = scalar_select %p179, %s15, 1
      %s181 = smul.addr %s180, 4
      %s182 = smul.addr %s181, 8
      %s183 = scalar_lea.vmem %s3, %s182
      %v185 = vld [vmem:[%s173] sm:$0x3]
      %v186 = vpack.c.bf16 %v185, %v185
      %v187 = vld [vmem:[%s1] sm:$0xff]
      %v188 = vld [vmem:[%s1 + $0x8] sm:$0xff]
      %v189 = vld [vmem:[%s1 + $0x10] sm:$0xff]
      %v190 = vld [vmem:[%s1 + $0x18] sm:$0xff]
      %v191 = vpack.c.bf16 %v188, %v187
      %v192 = vpack.c.bf16 %v190, %v189
      %v193 = vld [vmem:[%s173] sm:$0xf]
      %195 = vst [vmem:[#allocation1] ss:$4 sm:$0xff] %v193
      %v196 = vld.sshfl [vmem:[#allocation1] sm:$0xff pattern:$0x73625140]
      %v197 = vld.sshfl [vmem:[#allocation1 + $0x8] sm:$0xff pattern:$0x73625140]
      %v200 = vpack.c.bf16 %v196, %v196
      %v201 = vpack.c.bf16 %v197, %v197
      %s202 = scalar_lea.vmem %s1, 32
      %v203 = vld [vmem:[%s202] sm:$0xff]
      %v204 = vld [vmem:[%s202 + $0x8] sm:$0xff]
      %v205 = vld [vmem:[%s202 + $0x10] sm:$0xff]
      %v206 = vld [vmem:[%s202 + $0x18] sm:$0xff]
      %v207 = vpack.c.bf16 %v204, %v203
      %v208 = vpack.c.bf16 %v206, %v205
      %211 = vrot.lane.b32.xlu0 %v200, 127
      %v212 = vpop.permute.xlu0 %211
      %213 = vrot.lane.b32.xlu0 %v201, 127
      %v214 = vpop.permute.xlu0 %213
      %vm215 = vcmask 1039360
      %v216 = vsel %vm215, %v212, %v214
      %vm217 = vcmask 15360
      %v219 = vsel %vm217, %v207, 0
      %v222 = vsel %vm217, %v208, 0
      %vm224 = vcmask 1040384
      %v226 = vsel %vm224, %v216, 0
      %228 = vmatpush.bf16.msra.mxu0 0
      %229 = vmatpush.bf16.msra.mxu0 0
      %230 = vmatpush.bf16.msra.mxu0 0
      %231 = vmatpush.bf16.msra.mxu0 0
      %232 = vmatpush.bf16.msra.mxu0 0
      %233 = vmatpush.bf16.msra.mxu0 0
      %234 = vmatpush.bf16.msra.mxu0 0
      %235 = vmatpush.bf16.msra.mxu0 %v226
      %236 = vmatmul.bf16.gmra.mxu0 %v219
      %v237 = vpop.f32.mrf.mxu0
      %v238 = vadd.f32 0.0, %v237
      %v239 = vpop.f32.mrf.mxu0
      %v240 = vadd.f32 0.0, %v239
      %241 = vmatmul.bf16.gmra.mxu0 %v222
      %v242 = vpop.f32.mrf.mxu0
      %v243 = vadd.f32 0.0, %v242
      %v244 = vpop.f32.mrf.mxu0
      %v245 = vadd.f32 0.0, %v244
      %246 = vdwg.mxu0
      %v248 = vsel %vm217, %v191, 0
      %v251 = vsel %vm217, %v192, 0
      %v254 = vsel %vm224, %v186, 0
      %256 = vmatpush.bf16.msra.mxu0 0
      %257 = vmatpush.bf16.msra.mxu0 0
      %258 = vmatpush.bf16.msra.mxu0 0
      %259 = vmatpush.bf16.msra.mxu0 0
      %260 = vmatpush.bf16.msra.mxu0 0
      %261 = vmatpush.bf16.msra.mxu0 0
      %262 = vmatpush.bf16.msra.mxu0 0
      %263 = vmatpush.bf16.msra.mxu0 %v254
      %264 = vmatmul.bf16.gmra.mxu0 %v248
      %v265 = vpop.f32.mrf.mxu0
      %v266 = vadd.f32 %v238, %v265
      %v267 = vpop.f32.mrf.mxu0
      %v268 = vadd.f32 %v240, %v267
      %269 = vmatmul.bf16.gmra.mxu0 %v251
      %v270 = vpop.f32.mrf.mxu0
      %v271 = vadd.f32 %v243, %v270
      %v272 = vpop.f32.mrf.mxu0
      %v273 = vadd.f32 %v245, %v272
      %274 = vdwg.mxu0
      %v275 = vld [vmem:[%s173] sm:$0xf]
      %277 = vst [vmem:[#allocation1] ss:$4 sm:$0xff] %v275
      %v278 = vld.sshfl [vmem:[#allocation1] sm:$0xff pattern:$0x73625140]
      %v279 = vld.sshfl [vmem:[#allocation1 + $0x8] sm:$0xff pattern:$0x73625140]
      %v282 = vpack.c.bf16 %v278, %v278
      %v283 = vpack.c.bf16 %v279, %v279
      %s284 = scalar_lea.vmem %s1, 64
      %v285 = vld [vmem:[%s284] sm:$0xff]
      %v286 = vld [vmem:[%s284 + $0x8] sm:$0xff]
      %v287 = vld [vmem:[%s284 + $0x10] sm:$0xff]
      %v288 = vld [vmem:[%s284 + $0x18] sm:$0xff]
      %v289 = vpack.c.bf16 %v286, %v285
      %v290 = vpack.c.bf16 %v288, %v287
      %293 = vrot.lane.b32.xlu0 %v282, 126
      %v294 = vpop.permute.xlu0 %293
      %295 = vrot.lane.b32.xlu0 %v283, 126
      %v296 = vpop.permute.xlu0 %295
      %vm297 = vcmask 1031168
      %v298 = vsel %vm297, %v294, %v296
      %v300 = vsel %vm217, %v289, 0
      %v303 = vsel %vm217, %v290, 0
      %v306 = vsel %vm224, %v298, 0
      %308 = vmatpush.bf16.msra.mxu0 0
      %309 = vmatpush.bf16.msra.mxu0 0
      %310 = vmatpush.bf16.msra.mxu0 0
      %311 = vmatpush.bf16.msra.mxu0 0
      %312 = vmatpush.bf16.msra.mxu0 0
      %313 = vmatpush.bf16.msra.mxu0 0
      %314 = vmatpush.bf16.msra.mxu0 0
      %315 = vmatpush.bf16.msra.mxu0 %v306
      %316 = vmatmul.bf16.gmra.mxu0 %v300
      %v317 = vpop.f32.mrf.mxu0
      %v318 = vadd.f32 0.0, %v317
      %v319 = vpop.f32.mrf.mxu0
      %v320 = vadd.f32 0.0, %v319
      %321 = vmatmul.bf16.gmra.mxu0 %v303
      %v322 = vpop.f32.mrf.mxu0
      %v323 = vadd.f32 0.0, %v322
      %v324 = vpop.f32.mrf.mxu0
      %v325 = vadd.f32 0.0, %v324
      %326 = vdwg.mxu0
      %v327 = vadd.f32 %v266, %v318
      %v328 = vadd.f32 %v268, %v320
      %v329 = vadd.f32 %v271, %v323
      %v330 = vadd.f32 %v273, %v325
      %331 = vst [vmem:[%s178] sm:$0xff] %v327
      %332 = vst [vmem:[%s178 + $0x8] sm:$0xff] %v328
      %333 = vst [vmem:[%s178 + $0x10] sm:$0xff] %v329
      %334 = vst [vmem:[%s178 + $0x18] sm:$0xff] %v330
      %335 = vadd.xlane.f32.xlu0 %v327
      %v336 = vpop.xlane.xlu0 %335
      %337 = vadd.xlane.f32.xlu0 %v328
      %v338 = vpop.xlane.xlu0 %337
      %339 = vadd.xlane.f32.xlu0 %v329
      %v340 = vpop.xlane.xlu0 %339
      %341 = vadd.xlane.f32.xlu0 %v330
      %v342 = vpop.xlane.xlu0 %341
      %vm343 = vcmask 7168
      %344 = vst.msk [vmem:[%s183] sm:$0xff] %vm343, %v336
      %345 = vst.msk [vmem:[%s183 + $0x8] sm:$0xff] %vm343, %v338
      %346 = vst.msk [vmem:[%s183 + $0x10] sm:$0xff] %vm343, %v340
      %347 = vst.msk [vmem:[%s183 + $0x18] sm:$0xff] %vm343, %v342
      %v348 = vmul.f32 %v327, %v327
      %v349 = vmul.f32 %v328, %v328
      %v350 = vmul.f32 %v329, %v329
      %v351 = vmul.f32 %v330, %v330
      %352 = vadd.xlane.f32.xlu0 %v348
      %v353 = vpop.xlane.xlu0 %352
      %354 = vadd.xlane.f32.xlu0 %v349
      %v355 = vpop.xlane.xlu0 %354
      %356 = vadd.xlane.f32.xlu0 %v350
      %v357 = vpop.xlane.xlu0 %356
      %358 = vadd.xlane.f32.xlu0 %v351
      %v359 = vpop.xlane.xlu0 %358
      %vm360 = vcmask 15368
      %361 = vst.msk [vmem:[%s183] sm:$0xff] %vm360, %v353
      %362 = vst.msk [vmem:[%s183 + $0x8] sm:$0xff] %vm360, %v355
      %363 = vst.msk [vmem:[%s183 + $0x10] sm:$0xff] %vm360, %v357
      %364 = vst.msk [vmem:[%s183 + $0x18] sm:$0xff] %vm360, %v359
      %p365 = scmp.lt.s32.totalorder %s15, 1
      %s366 = scalar_select %p365, %s15, 1
      %s367 = smul.addr %s366, 4
      %s368 = smul.addr %s367, 8
      %s369 = scalar_lea.vmem %s2, %s368
      %p370 = scmp.lt.s32.totalorder %s15, 1
      %s371 = scalar_select %p370, %s15, 1
      %s372 = smul.addr %s371, 4
      %s373 = smul.addr %s372, 8
      %s374 = scalar_lea.vmem %s3, %s373
      // Predicated region
      $region29: #{forward.20} parent=27 // pred_check
        %p375 = pneg %p80
      $region30: #{forward.20} parent=27 // pred_check_branch
        %377 = sbr.rel (%p375) target = $region32
      $region31: #{forward.20} parent=27 // pred_region
        _
      $region32: #{forward.20} parent=27 // pred_fallthru
        _
      // Predicated region
      $region33: #{forward.20} parent=27 // pred_check
        %p378 = pneg %p106
      $region34: #{forward.20} parent=27 // pred_check_branch
        %380 = sbr.rel (%p378) target = $region36
      $region35: #{forward.20} parent=27 // pred_region
        _
      $region36: #{forward.20} parent=27 // pred_fallthru
        _
    $region28: #{forward.20} parent=5 // pred_fallthru
      _
    %p381 = scmp.le.s32.totalorder 2, %s10
    // Predicated region
    $region37: #{forward.20} parent=5 // pred_check
      %p382 = pneg %p381
    $region38: #{forward.20} parent=5 // pred_check_branch
      %384 = sbr.rel (%p382) target = $region40
    $region39: #{forward.20} parent=5 // pred_region
      %s385 = ssub.s32 %s10, 2
      // Predicated region
      $region41: #{forward.20} parent=39 // pred_check
        %p386 = pneg %p86
      $region42: #{forward.20} parent=39 // pred_check_branch
        %388 = sbr.rel (%p386) target = $region44
      $region43: #{forward.20} parent=39 // pred_region
        %p389 = scmp.lt.s32.totalorder %s16, 1
        %s390 = scalar_select %p389, %s16, 1
        %s391 = smul.addr %s390, 4
        %s392 = smul.addr %s391, 8
        %s393 = scalar_lea.vmem %s2, %s392
      $region44: #{forward.20} parent=39 // pred_fallthru
        _
      // Predicated region
      $region45: #{forward.20} parent=39 // pred_check
        %p394 = pneg %p112
      $region46: #{forward.20} parent=39 // pred_check_branch
        %396 = sbr.rel (%p394) target = $region48
      $region47: #{forward.20} parent=39 // pred_region
        %p397 = scmp.lt.s32.totalorder %s16, 1
        %s398 = scalar_select %p397, %s16, 1
        %s399 = smul.addr %s398, 4
        %s400 = smul.addr %s399, 8
        %s401 = scalar_lea.vmem %s3, %s400
      $region48: #{forward.20} parent=39 // pred_fallthru
        _
    $region40: #{forward.20} parent=5 // pred_fallthru
      _
  $region6: #{forward.20} parent=0 // loop_footer
    %s14 = sadd.s32 1, %s10
  $region7: #{forward.20} parent=0 // loop_footer_branch
    %9 = sbr.rel target = $region3
  $region8: #{forward.20} parent=0 // loop_exit
    _

// kernel: forward.22
$region0: #{forward.22}
  #allocation0 [shape = 'u32[]', space=smem, size = 0x4, offset = 0x4, fixed_abs, tag = 'smem constant byte address 0x4 - core index']
  #allocation1 [shape = 'u32[72,128]{1,0:T(1,128)}', space=vmem, size = 0x9000, scoped, tag = 'internal scratch']
  %s0 = inlined_call_operand.vmem [shape: f32[2,32,130], index: 0, kind: input, shape index: {}]
  %s1 = inlined_call_operand.hbm [shape: f32[3,32,32], index: 1, kind: input, shape index: {}]
  %s2 = inlined_call_operand.vmem [shape: f32[2,32,128], index: 2, kind: output, shape index: {0}]
  %s3 = inlined_call_operand.vmem [shape: f32[2,32,2], index: 3, kind: output, shape index: {1}]
  %4 = xla_tuple %s2, %s3
  %s5 = sld [smem:[#allocation0]]
  $region53: #{forward.22} parent=0
    _
  %s7 = ssub.s32 1, %s5
  %s8 = scalar_select 0, %s7, %s5
  $region1: #{forward.22} parent=0
    #allocation2 [shape = 'u8[49152]{0}', space=vmem, size = 0xc000, scoped, tag = 'input window, operand 1, single buffered']
    #allocation3 [shape = 's32[2]{0}', space=sflag, size = 0x8, scoped, tag = 'scoped memory for forward.22']
    %9 = vsyncpa [#allocation3], 0
    loop: start=0, step=1, limit=4
    $region2: #{forward.22} parent=1 // loop_pre_header
      _
    $region3: #{forward.22} parent=1 // loop_header
      %s11 = sphi 0, %s15
      %p12 = scmp.ge.s32.totalorder %s11, 4
      %s21 = sphi 0, %s23
      %s24 = sphi 0, %s21
      %s25 = sphi 0, %s24
      %s41 = sphi 0, %s25
      %s45 = sphi 0, %s45
      %s47 = sphi 0, %s45
      %s48 = sphi 0, %s47
      %s62 = sphi 0, %s48
      %s68 = sphi 0, %s70
      %s71 = sphi 0, %s68
      %s72 = sphi 0, %s71
      %s88 = sphi 0, %s72
      %s94 = sphi 0, %s96
      %s97 = sphi 0, %s94
      %s98 = sphi 0, %s97
      %s114 = sphi 0, %s98
    $region4: #{forward.22} parent=1 // loop_header_branch
      %14 = sbr.rel (%p12) target = $region8
    $region5: #{forward.22} parent=1 // loop_body
      %s16 = ssub.s32 %s11, 1
      %s17 = ssub.s32 %s11, 2
      %s18 = sadd.s32 %s11, 1
      %s19 = ssub.s32 %s11, %s18
      %p20 = scmp.eq.s32.totalorder %s19, 0
      %s22 = sadd.s32 %s21, 1
      %s23 = scalar_select %p20, %s21, %s22
      %p26 = pneg %p20
      %p27 = scmp.eq.s32.totalorder %s11, 1
      %p28 = por %p26, %p27
      %p29 = scmp.ne.s32.totalorder %s21, %s24
      %p30 = scmp.eq.s32.totalorder %s11, 0
      %p31 = por %p29, %p30
      %p32 = scmp.ne.s32.totalorder %s21, %s24
      %p33 = scmp.eq.s32.totalorder %s16, 1
      %p34 = por %p32, %p33
      %p35 = scmp.ne.s32.totalorder %s24, %s25
      %p36 = scmp.eq.s32.totalorder %s16, 0
      %p37 = por %p35, %p36
      %p38 = scmp.ne.s32.totalorder %s24, %s25
      %p39 = scmp.eq.s32.totalorder %s17, 1
      %p40 = por %p38, %p39
      %p42 = scmp.ne.s32.totalorder %s25, %s41
      %p43 = scmp.eq.s32.totalorder %s17, 0
      %p44 = por %p42, %p43
      %s46 = sadd.s32 %s45, 1
      %p49 = scmp.eq.s32.totalorder %s11, 1
      %p50 = scmp.ne.s32.totalorder %s45, %s47
      %p51 = scmp.eq.s32.totalorder %s11, 0
      %p52 = por %p50, %p51
      %p53 = scmp.ne.s32.totalorder %s45, %s47
      %p54 = scmp.eq.s32.totalorder %s16, 1
      %p55 = por %p53, %p54
      %p56 = scmp.ne.s32.totalorder %s47, %s48
      %p57 = scmp.eq.s32.totalorder %s16, 0
      %p58 = por %p56, %p57
      %p59 = scmp.ne.s32.totalorder %s47, %s48
      %p60 = scmp.eq.s32.totalorder %s17, 1
      %p61 = por %p59, %p60
      %p63 = scmp.ne.s32.totalorder %s48, %s62
      %p64 = scmp.eq.s32.totalorder %s17, 0
      %p65 = por %p63, %p64
      %s66 = ssub.s32 %s11, %s18
      %p67 = scmp.eq.s32.totalorder %s66, 0
      %s69 = sadd.s32 %s68, 1
      %s70 = scalar_select %p67, %s68, %s69
      %p73 = pneg %p67
      %p74 = scmp.eq.s32.totalorder %s11, 1
      %p75 = por %p73, %p74
      %p76 = scmp.ne.s32.totalorder %s68, %s71
      %p77 = scmp.eq.s32.totalorder %s11, 0
      %p78 = por %p76, %p77
      %p79 = scmp.ne.s32.totalorder %s68, %s71
      %p80 = scmp.eq.s32.totalorder %s16, 1
      %p81 = por %p79, %p80
      %p82 = scmp.ne.s32.totalorder %s71, %s72
      %p83 = scmp.eq.s32.totalorder %s16, 0
      %p84 = por %p82, %p83
      %p85 = scmp.ne.s32.totalorder %s71, %s72
      %p86 = scmp.eq.s32.totalorder %s17, 1
      %p87 = por %p85, %p86
      %p89 = scmp.ne.s32.totalorder %s72, %s88
      %p90 = scmp.eq.s32.totalorder %s17, 0
      %p91 = por %p89, %p90
      %s92 = ssub.s32 %s11, %s18
      %p93 = scmp.eq.s32.totalorder %s92, 0
      %s95 = sadd.s32 %s94, 1
      %s96 = scalar_select %p93, %s94, %s95
      %p99 = pneg %p93
      %p100 = scmp.eq.s32.totalorder %s11, 1
      %p101 = por %p99, %p100
      %p102 = scmp.ne.s32.totalorder %s94, %s97
      %p103 = scmp.eq.s32.totalorder %s11, 0
      %p104 = por %p102, %p103
      %p105 = scmp.ne.s32.totalorder %s94, %s97
      %p106 = scmp.eq.s32.totalorder %s16, 1
      %p107 = por %p105, %p106
      %p108 = scmp.ne.s32.totalorder %s97, %s98
      %p109 = scmp.eq.s32.totalorder %s16, 0
      %p110 = por %p108, %p109
      %p111 = scmp.ne.s32.totalorder %s97, %s98
      %p112 = scmp.eq.s32.totalorder %s17, 1
      %p113 = por %p111, %p112
      %p115 = scmp.ne.s32.totalorder %s98, %s114
      %p116 = scmp.eq.s32.totalorder %s17, 0
      %p117 = por %p115, %p116
      %p118 = scmp.le.s32.totalorder 1, %s11
      %p119 = scmp.lt.s32.totalorder %s11, 3
      %p120 = pnand %p118, %p119
      %p121 = pneg %p120
      // Predicated region
      $region9: #{forward.22} parent=5 // pred_check
        _
      $region10: #{forward.22} parent=5 // pred_check_branch
        %123 = sbr.rel (%p120) target = $region12
      $region11: #{forward.22} parent=5 // pred_region
        %s124 = ssub.s32 %s11, 1
        // Predicated region
        $region13: #{forward.22} parent=11 // pred_check
          %p125 = pneg %p58
        $region14: #{forward.22} parent=11 // pred_check_branch
          %127 = sbr.rel (%p125) target = $region16
        $region15: #{forward.22} parent=11 // pred_region
          %129 = vsyncadd [#allocation3], 0
          %s130 = sshll.u32 %s1, 4
          %s131 = int_to_ptr.hbm [resolvable:$true] %s130
          %s132 = sshll.u32 [#allocation2], 4
          %s133 = int_to_ptr.vmem [resolvable:$true] %s132
          %138 = dma.hbm_to_vmem [thread:$0]  %s131, 1536, %s133, [#allocation3], 128, 128, 8
        $region16: #{forward.22} parent=11 // pred_fallthru
          _
      $region12: #{forward.22} parent=5 // pred_fallthru
        _
      %p139 = scmp.lt.s32.totalorder %s11, 2
      // Predicated region
      $region17: #{forward.22} parent=5 // pred_check
        %p140 = pneg %p139
      $region18: #{forward.22} parent=5 // pred_check_branch
        %142 = sbr.rel (%p140) target = $region20
      $region19: #{forward.22} parent=5 // pred_region
        // Predicated region
        $region21: #{forward.22} parent=19 // pred_check
          %p143 = pneg %p31
        $region22: #{forward.22} parent=19 // pred_check_branch
          %145 = sbr.rel (%p143) target = $region24
        $region23: #{forward.22} parent=19 // pred_region
          %p146 = scmp.lt.s32.totalorder %s11, 1
          %s147 = scalar_select %p146, %s11, 1
          %s148 = smul.addr %s147, 8
          %s149 = smul.addr %s148, 8
          %s150 = scalar_lea.vmem %s0, %s149
        $region24: #{forward.22} parent=19 // pred_fallthru
          _
      $region20: #{forward.22} parent=5 // pred_fallthru
        _
      %p151 = scmp.le.s32.totalorder 1, %s11
      %p152 = scmp.lt.s32.totalorder %s11, 3
      %p153 = pnand %p151, %p152
      %p154 = pneg %p153
      // Predicated region
      $region25: #{forward.22} parent=5 // pred_check
        _
      $region26: #{forward.22} parent=5 // pred_check_branch
        %156 = sbr.rel (%p153) target = $region28
      $region27: #{forward.22} parent=5 // pred_region
        %s157 = ssub.s32 %s11, 1
        // Predicated region
        $region29: #{forward.22} parent=27 // pred_check
          %p158 = pneg %p58
        $region30: #{forward.22} parent=27 // pred_check_branch
          %160 = sbr.rel (%p158) target = $region32
        $region31: #{forward.22} parent=27 // pred_region
          %162 = dma.done [#allocation3], 1536
        $region32: #{forward.22} parent=27 // pred_fallthru
          _
        %p163 = scmp.lt.s32.totalorder %s16, 1
        %s164 = scalar_select %p163, %s16, 1
        %s165 = smul.addr %s164, 8
        %s166 = smul.addr %s165, 8
        %s167 = scalar_lea.vmem %s0, %s166
        %p168 = pneg %p37
        %p169 = pneg %p34
        %p170 = pneg %p58
        %p171 = pneg %p55
        %p172 = pneg %p84
        %p173 = pneg %p81
        %p174 = scmp.lt.s32.totalorder %s16, 1
        %s175 = scalar_select %p174, %s16, 1
        %s176 = smul.addr %s175, 4
        %s177 = smul.addr %s176, 8
        %s178 = scalar_lea.vmem %s2, %s177
        %p179 = pneg %p110
        %p180 = pneg %p107
        %p181 = scmp.lt.s32.totalorder %s16, 1
        %s182 = scalar_select %p181, %s16, 1
        %s183 = smul.addr %s182, 4
        %s184 = smul.addr %s183, 8
        %s185 = scalar_lea.vmem %s3, %s184
        %p186 = scmp.lt.s32.totalorder %s16, 1
        %s187 = scalar_select %p186, %s16, 1
        %s188 = smul.addr %s187, 8
        %s189 = smul.addr %s188, 8
        %s190 = scalar_lea.vmem %s0, %s189
        %p191 = scmp.lt.s32.totalorder %s16, 1
        %s192 = scalar_select %p191, %s16, 1
        %s193 = smul.addr %s192, 4
        %s194 = smul.addr %s193, 8
        %s195 = scalar_lea.vmem %s2, %s194
        %p196 = scmp.lt.s32.totalorder %s16, 1
        %s197 = scalar_select %p196, %s16, 1
        %s198 = smul.addr %s197, 4
        %s199 = smul.addr %s198, 8
        %s200 = scalar_lea.vmem %s3, %s199
        %v202 = vld [vmem:[%s190] sm:$0xff]
        %v203 = vld [vmem:[%s190 + $0x10] sm:$0xff]
        %v204 = vld [vmem:[%s190 + $0x20] sm:$0xff]
        %v205 = vld [vmem:[%s190 + $0x30] sm:$0xff]
        %v206 = vpack.c.bf16 %v203, %v202
        %v207 = vpack.c.bf16 %v205, %v204
        %v208 = vld [vmem:[#allocation2] sm:$0xff]
        %v209 = vld [vmem:[#allocation2 + $0x8] sm:$0xff]
        %v210 = vld [vmem:[#allocation2 + $0x10] sm:$0xff]
        %v211 = vld [vmem:[#allocation2 + $0x18] sm:$0xff]
        %v212 = vpack.c.bf16 %v209, %v208
        %v213 = vpack.c.bf16 %v211, %v210
        %v214 = vld [vmem:[%s190 + $0x8] sm:$0xff]
        %v215 = vld [vmem:[%s190 + $0x18] sm:$0xff]
        %v216 = vld [vmem:[%s190 + $0x28] sm:$0xff]
        %v217 = vld [vmem:[%s190 + $0x38] sm:$0xff]
        %v218 = vpack.c.bf16 %v215, %v214
        %v219 = vpack.c.bf16 %v217, %v216
        %s220 = scalar_lea.vmem [#allocation2], 32
        %v221 = vld [vmem:[%s220] sm:$0xff]
        %v222 = vld [vmem:[%s220 + $0x8] sm:$0xff]
        %v223 = vld [vmem:[%s220 + $0x10] sm:$0xff]
        %v224 = vld [vmem:[%s220 + $0x18] sm:$0xff]
        %v225 = vpack.c.bf16 %v222, %v221
        %v226 = vpack.c.bf16 %v224, %v223
        %231 = vrot.lane.b32.xlu0 %v206, 127
        %v232 = vpop.permute.xlu0 %231
        %233 = vrot.lane.b32.xlu0 %v218, 127
        %v234 = vpop.permute.xlu0 %233
        %235 = vrot.lane.b32.xlu0 %v207, 127
        %v236 = vpop.permute.xlu0 %235
        %237 = vrot.lane.b32.xlu0 %v219, 127
        %v238 = vpop.permute.xlu0 %237
        %vm239 = vcmask 1039360
        %v240 = vsel %vm239, %v232, %v234
        %v241 = vsel %vm239, %v236, %v238
        %vm244 = vcmask 261120
        %v246 = vsel %vm244, %v225, 0
        %v249 = vsel %vm244, %v226, 0
        %251 = vmatpush.bf16.msra.mxu0 0
        %252 = vmatpush.bf16.msra.mxu0 0
        %253 = vmatpush.bf16.msra.mxu0 0
        %254 = vmatpush.bf16.msra.mxu0 0
        %255 = vmatpush.bf16.msra.mxu0 0
        %256 = vmatpush.bf16.msra.mxu0 0
        %257 = vmatpush.bf16.msra.mxu0 %v241
        %258 = vmatpush.bf16.msra.mxu0 %v240
        %259 = vmatmul.bf16.gmra.mxu0 %v246
        %v260 = vpop.f32.mrf.mxu0
        %v261 = vadd.f32 0.0, %v260
        %v262 = vpop.f32.mrf.mxu0
        %v263 = vadd.f32 0.0, %v262
        %264 = vmatmul.bf16.gmra.mxu0 %v249
        %v265 = vpop.f32.mrf.mxu0
        %v266 = vadd.f32 0.0, %v265
        %v267 = vpop.f32.mrf.mxu0
        %v268 = vadd.f32 0.0, %v267
        %269 = vdwg.mxu0
        %v271 = vsel %vm244, %v212, 0
        %v274 = vsel %vm244, %v213, 0
        %276 = vmatpush.bf16.msra.mxu0 0
        %277 = vmatpush.bf16.msra.mxu0 0
        %278 = vmatpush.bf16.msra.mxu0 0
        %279 = vmatpush.bf16.msra.mxu0 0
        %280 = vmatpush.bf16.msra.mxu0 0
        %281 = vmatpush.bf16.msra.mxu0 0
        %282 = vmatpush.bf16.msra.mxu0 %v207
        %283 = vmatpush.bf16.msra.mxu0 %v206
        %284 = vmatmul.bf16.gmra.mxu0 %v271
        %v285 = vpop.f32.mrf.mxu0
        %v286 = vadd.f32 %v261, %v285
        %v287 = vpop.f32.mrf.mxu0
        %v288 = vadd.f32 %v263, %v287
        %289 = vmatmul.bf16.gmra.mxu0 %v274
        %v290 = vpop.f32.mrf.mxu0
        %v291 = vadd.f32 %v266, %v290
        %v292 = vpop.f32.mrf.mxu0
        %v293 = vadd.f32 %v268, %v292
        %294 = vdwg.mxu0
        %s295 = scalar_lea.vmem [#allocation2], 64
        %v296 = vld [vmem:[%s295] sm:$0xff]
        %v297 = vld [vmem:[%s295 + $0x8] sm:$0xff]
        %v298 = vld [vmem:[%s295 + $0x10] sm:$0xff]
        %v299 = vld [vmem:[%s295 + $0x18] sm:$0xff]
        %v300 = vpack.c.bf16 %v297, %v296
        %v301 = vpack.c.bf16 %v299, %v298
        %302 = vrot.lane.b32.xlu0 %v206, 126
        %v303 = vpop.permute.xlu0 %302
        %304 = vrot.lane.b32.xlu0 %v218, 126
        %v305 = vpop.permute.xlu0 %304
        %306 = vrot.lane.b32.xlu0 %v207, 126
        %v307 = vpop.permute.xlu0 %306
        %308 = vrot.lane.b32.xlu0 %v219, 126
        %v309 = vpop.permute.xlu0 %308
        %vm310 = vcmask 1031168
        %v311 = vsel %vm310, %v303, %v305
        %v312 = vsel %vm310, %v307, %v309
        %v316 = vsel %vm244, %v300, 0
        %v319 = vsel %vm244, %v301, 0
        %321 = vmatpush.bf16.msra.mxu0 0
        %322 = vmatpush.bf16.msra.mxu0 0
        %323 = vmatpush.bf16.msra.mxu0 0
        %324 = vmatpush.bf16.msra.mxu0 0
        %325 = vmatpush.bf16.msra.mxu0 0
        %326 = vmatpush.bf16.msra.mxu0 0
        %327 = vmatpush.bf16.msra.mxu0 %v312
        %328 = vmatpush.bf16.msra.mxu0 %v311
        %329 = vmatmul.bf16.gmra.mxu0 %v316
        %v330 = vpop.f32.mrf.mxu0
        %v331 = vadd.f32 0.0, %v330
        %v332 = vpop.f32.mrf.mxu0
        %v333 = vadd.f32 0.0, %v332
        %334 = vmatmul.bf16.gmra.mxu0 %v319
        %v335 = vpop.f32.mrf.mxu0
        %v336 = vadd.f32 0.0, %v335
        %v337 = vpop.f32.mrf.mxu0
        %v338 = vadd.f32 0.0, %v337
        %339 = vdwg.mxu0
        %v340 = vadd.f32 %v286, %v331
        %v341 = vadd.f32 %v288, %v333
        %v342 = vadd.f32 %v291, %v336
        %v343 = vadd.f32 %v293, %v338
        %344 = vst [vmem:[%s195] sm:$0xff] %v340
        %345 = vst [vmem:[%s195 + $0x8] sm:$0xff] %v341
        %346 = vst [vmem:[%s195 + $0x10] sm:$0xff] %v342
        %347 = vst [vmem:[%s195 + $0x18] sm:$0xff] %v343
        %348 = vadd.xlane.f32.xlu0 %v340
        %v349 = vpop.xlane.xlu0 %348
        %350 = vadd.xlane.f32.xlu0 %v341
        %v351 = vpop.xlane.xlu0 %350
        %352 = vadd.xlane.f32.xlu0 %v342
        %v353 = vpop.xlane.xlu0 %352
        %354 = vadd.xlane.f32.xlu0 %v343
        %v355 = vpop.xlane.xlu0 %354
        %vm356 = vcmask 7168
        %357 = vst.msk [vmem:[%s200] sm:$0xff] %vm356, %v349
        %358 = vst.msk [vmem:[%s200 + $0x8] sm:$0xff] %vm356, %v351
        %359 = vst.msk [vmem:[%s200 + $0x10] sm:$0xff] %vm356, %v353
        %360 = vst.msk [vmem:[%s200 + $0x18] sm:$0xff] %vm356, %v355
        %v361 = vmul.f32 %v340, %v340
        %v362 = vmul.f32 %v341, %v341
        %v363 = vmul.f32 %v342, %v342
        %v364 = vmul.f32 %v343, %v343
        %365 = vadd.xlane.f32.xlu0 %v361
        %v366 = vpop.xlane.xlu0 %365
        %367 = vadd.xlane.f32.xlu0 %v362
        %v368 = vpop.xlane.xlu0 %367
        %369 = vadd.xlane.f32.xlu0 %v363
        %v370 = vpop.xlane.xlu0 %369
        %371 = vadd.xlane.f32.xlu0 %v364
        %v372 = vpop.xlane.xlu0 %371
        %vm373 = vcmask 15368
        %374 = vst.msk [vmem:[%s200] sm:$0xff] %vm373, %v366
        %375 = vst.msk [vmem:[%s200 + $0x8] sm:$0xff] %vm373, %v368
        %376 = vst.msk [vmem:[%s200 + $0x10] sm:$0xff] %vm373, %v370
        %377 = vst.msk [vmem:[%s200 + $0x18] sm:$0xff] %vm373, %v372
        %p378 = scmp.lt.s32.totalorder %s16, 1
        %s379 = scalar_select %p378, %s16, 1
        %s380 = smul.addr %s379, 4
        %s381 = smul.addr %s380, 8
        %s382 = scalar_lea.vmem %s2, %s381
        %p383 = scmp.lt.s32.totalorder %s16, 1
        %s384 = scalar_select %p383, %s16, 1
        %s385 = smul.addr %s384, 4
        %s386 = smul.addr %s385, 8
        %s387 = scalar_lea.vmem %s3, %s386
        // Predicated region
        $region33: #{forward.22} parent=27 // pred_check
          %p388 = pneg %p81
        $region34: #{forward.22} parent=27 // pred_check_branch
          %390 = sbr.rel (%p388) target = $region36
        $region35: #{forward.22} parent=27 // pred_region
          _
        $region36: #{forward.22} parent=27 // pred_fallthru
          _
        // Predicated region
        $region37: #{forward.22} parent=27 // pred_check
          %p391 = pneg %p107
        $region38: #{forward.22} parent=27 // pred_check_branch
          %393 = sbr.rel (%p391) target = $region40
        $region39: #{forward.22} parent=27 // pred_region
          _
        $region40: #{forward.22} parent=27 // pred_fallthru
          _
      $region28: #{forward.22} parent=5 // pred_fallthru
        _
      %p394 = scmp.le.s32.totalorder 2, %s11
      // Predicated region
      $region41: #{forward.22} parent=5 // pred_check
        %p395 = pneg %p394
      $region42: #{forward.22} parent=5 // pred_check_branch
        %397 = sbr.rel (%p395) target = $region44
      $region43: #{forward.22} parent=5 // pred_region
        %s398 = ssub.s32 %s11, 2
        // Predicated region
        $region45: #{forward.22} parent=43 // pred_check
          %p399 = pneg %p87
        $region46: #{forward.22} parent=43 // pred_check_branch
          %401 = sbr.rel (%p399) target = $region48
        $region47: #{forward.22} parent=43 // pred_region
          %p402 = scmp.lt.s32.totalorder %s17, 1
          %s403 = scalar_select %p402, %s17, 1
          %s404 = smul.addr %s403, 4
          %s405 = smul.addr %s404, 8
          %s406 = scalar_lea.vmem %s2, %s405
        $region48: #{forward.22} parent=43 // pred_fallthru
          _
        // Predicated region
        $region49: #{forward.22} parent=43 // pred_check
          %p407 = pneg %p113
        $region50: #{forward.22} parent=43 // pred_check_branch
          %409 = sbr.rel (%p407) target = $region52
        $region51: #{forward.22} parent=43 // pred_region
          %p410 = scmp.lt.s32.totalorder %s17, 1
          %s411 = scalar_select %p410, %s17, 1
          %s412 = smul.addr %s411, 4
          %s413 = smul.addr %s412, 8
          %s414 = scalar_lea.vmem %s3, %s413
        $region52: #{forward.22} parent=43 // pred_fallthru
          _
      $region44: #{forward.22} parent=5 // pred_fallthru
        _
    $region6: #{forward.22} parent=1 // loop_footer
      %s15 = sadd.s32 1, %s11
    $region7: #{forward.22} parent=1 // loop_footer_branch
      %10 = sbr.rel target = $region3
    $region8: #{forward.22} parent=1 // loop_exit
      _
    %415 = vsyncpa [#allocation3], 1
    %s416 = scalar_lea.sflag [#allocation3], 1
    %417 = vsyncpa %s416, 1

// kernel: forward.25
$region0: #{forward.25}
  #allocation0 [shape = 'u32[]', space=smem, size = 0x4, offset = 0x4, fixed_abs, tag = 'smem constant byte address 0x4 - core index']
  #allocation1 [shape = 'u32[72,128]{1,0:T(1,128)}', space=vmem, size = 0x9000, scoped, tag = 'internal scratch']
  %s0 = inlined_call_operand.vmem [shape: f32[2,32,128], index: 0, kind: input, shape index: {}]
  %s1 = inlined_call_operand.vmem [shape: f32[32,1], index: 1, kind: input, shape index: {}]
  %s2 = inlined_call_operand.vmem [shape: f32[32,1], index: 2, kind: input, shape index: {}]
  %s3 = inlined_call_operand.vmem [shape: f32[2,32,128], index: 3, kind: input, shape index: {}]
  %s4 = inlined_call_operand.vmem [shape: f32[2,32,128], index: 4, kind: output, shape index: {}]
  %s5 = sld [smem:[#allocation0]]
  $region49: #{forward.25} parent=0
    _
  %s7 = ssub.s32 1, %s5
  %s8 = scalar_select 0, %s7, %s5
  loop: start=0, step=1, limit=4
  $region2: #{forward.25} parent=0 // loop_pre_header
    _
  $region3: #{forward.25} parent=0 // loop_header
    %s10 = sphi 0, %s14
    %p11 = scmp.ge.s32.totalorder %s10, 4
    %s20 = sphi 0, %s22
    %s23 = sphi 0, %s20
    %s24 = sphi 0, %s23
    %s40 = sphi 0, %s24
    %s44 = sphi 0, %s44
    %s46 = sphi 0, %s44
    %s47 = sphi 0, %s46
    %s61 = sphi 0, %s47
    %s65 = sphi 0, %s65
    %s67 = sphi 0, %s65
    %s68 = sphi 0, %s67
    %s82 = sphi 0, %s68
    %s88 = sphi 0, %s90
    %s91 = sphi 0, %s88
    %s92 = sphi 0, %s91
    %s108 = sphi 0, %s92
    %s114 = sphi 0, %s116
    %s117 = sphi 0, %s114
    %s118 = sphi 0, %s117
    %s134 = sphi 0, %s118
  $region4: #{forward.25} parent=0 // loop_header_branch
    %13 = sbr.rel (%p11) target = $region8
  $region5: #{forward.25} parent=0 // loop_body
    %s15 = ssub.s32 %s10, 1
    %s16 = ssub.s32 %s10, 2
    %s17 = sadd.s32 %s10, 1
    %s18 = ssub.s32 %s10, %s17
    %p19 = scmp.eq.s32.totalorder %s18, 0
    %s21 = sadd.s32 %s20, 1
    %s22 = scalar_select %p19, %s20, %s21
    %p25 = pneg %p19
    %p26 = scmp.eq.s32.totalorder %s10, 1
    %p27 = por %p25, %p26
    %p28 = scmp.ne.s32.totalorder %s20, %s23
    %p29 = scmp.eq.s32.totalorder %s10, 0
    %p30 = por %p28, %p29
    %p31 = scmp.ne.s32.totalorder %s20, %s23
    %p32 = scmp.eq.s32.totalorder %s15, 1
    %p33 = por %p31, %p32
    %p34 = scmp.ne.s32.totalorder %s23, %s24
    %p35 = scmp.eq.s32.totalorder %s15, 0
    %p36 = por %p34, %p35
    %p37 = scmp.ne.s32.totalorder %s23, %s24
    %p38 = scmp.eq.s32.totalorder %s16, 1
    %p39 = por %p37, %p38
    %p41 = scmp.ne.s32.totalorder %s24, %s40
    %p42 = scmp.eq.s32.totalorder %s16, 0
    %p43 = por %p41, %p42
    %s45 = sadd.s32 %s44, 1
    %p48 = scmp.eq.s32.totalorder %s10, 1
    %p49 = scmp.ne.s32.totalorder %s44, %s46
    %p50 = scmp.eq.s32.totalorder %s10, 0
    %p51 = por %p49, %p50
    %p52 = scmp.ne.s32.totalorder %s44, %s46
    %p53 = scmp.eq.s32.totalorder %s15, 1
    %p54 = por %p52, %p53
    %p55 = scmp.ne.s32.totalorder %s46, %s47
    %p56 = scmp.eq.s32.totalorder %s15, 0
    %p57 = por %p55, %p56
    %p58 = scmp.ne.s32.totalorder %s46, %s47
    %p59 = scmp.eq.s32.totalorder %s16, 1
    %p60 = por %p58, %p59
    %p62 = scmp.ne.s32.totalorder %s47, %s61
    %p63 = scmp.eq.s32.totalorder %s16, 0
    %p64 = por %p62, %p63
    %s66 = sadd.s32 %s65, 1
    %p69 = scmp.eq.s32.totalorder %s10, 1
    %p70 = scmp.ne.s32.totalorder %s65, %s67
    %p71 = scmp.eq.s32.totalorder %s10, 0
    %p72 = por %p70, %p71
    %p73 = scmp.ne.s32.totalorder %s65, %s67
    %p74 = scmp.eq.s32.totalorder %s15, 1
    %p75 = por %p73, %p74
    %p76 = scmp.ne.s32.totalorder %s67, %s68
    %p77 = scmp.eq.s32.totalorder %s15, 0
    %p78 = por %p76, %p77
    %p79 = scmp.ne.s32.totalorder %s67, %s68
    %p80 = scmp.eq.s32.totalorder %s16, 1
    %p81 = por %p79, %p80
    %p83 = scmp.ne.s32.totalorder %s68, %s82
    %p84 = scmp.eq.s32.totalorder %s16, 0
    %p85 = por %p83, %p84
    %s86 = ssub.s32 %s10, %s17
    %p87 = scmp.eq.s32.totalorder %s86, 0
    %s89 = sadd.s32 %s88, 1
    %s90 = scalar_select %p87, %s88, %s89
    %p93 = pneg %p87
    %p94 = scmp.eq.s32.totalorder %s10, 1
    %p95 = por %p93, %p94
    %p96 = scmp.ne.s32.totalorder %s88, %s91
    %p97 = scmp.eq.s32.totalorder %s10, 0
    %p98 = por %p96, %p97
    %p99 = scmp.ne.s32.totalorder %s88, %s91
    %p100 = scmp.eq.s32.totalorder %s15, 1
    %p101 = por %p99, %p100
    %p102 = scmp.ne.s32.totalorder %s91, %s92
    %p103 = scmp.eq.s32.totalorder %s15, 0
    %p104 = por %p102, %p103
    %p105 = scmp.ne.s32.totalorder %s91, %s92
    %p106 = scmp.eq.s32.totalorder %s16, 1
    %p107 = por %p105, %p106
    %p109 = scmp.ne.s32.totalorder %s92, %s108
    %p110 = scmp.eq.s32.totalorder %s16, 0
    %p111 = por %p109, %p110
    %s112 = ssub.s32 %s10, %s17
    %p113 = scmp.eq.s32.totalorder %s112, 0
    %s115 = sadd.s32 %s114, 1
    %s116 = scalar_select %p113, %s114, %s115
    %p119 = pneg %p113
    %p120 = scmp.eq.s32.totalorder %s10, 1
    %p121 = por %p119, %p120
    %p122 = scmp.ne.s32.totalorder %s114, %s117
    %p123 = scmp.eq.s32.totalorder %s10, 0
    %p124 = por %p122, %p123
    %p125 = scmp.ne.s32.totalorder %s114, %s117
    %p126 = scmp.eq.s32.totalorder %s15, 1
    %p127 = por %p125, %p126
    %p128 = scmp.ne.s32.totalorder %s117, %s118
    %p129 = scmp.eq.s32.totalorder %s15, 0
    %p130 = por %p128, %p129
    %p131 = scmp.ne.s32.totalorder %s117, %s118
    %p132 = scmp.eq.s32.totalorder %s16, 1
    %p133 = por %p131, %p132
    %p135 = scmp.ne.s32.totalorder %s118, %s134
    %p136 = scmp.eq.s32.totalorder %s16, 0
    %p137 = por %p135, %p136
    %p138 = scmp.le.s32.totalorder 1, %s10
    %p139 = scmp.lt.s32.totalorder %s10, 3
    %p140 = pnand %p138, %p139
    %p141 = pneg %p140
    // Predicated region
    $region9: #{forward.25} parent=5 // pred_check
      _
    $region10: #{forward.25} parent=5 // pred_check_branch
      %143 = sbr.rel (%p140) target = $region12
    $region11: #{forward.25} parent=5 // pred_region
      %s144 = ssub.s32 %s10, 1
      // Predicated region
      $region13: #{forward.25} parent=11 // pred_check
        %p145 = pneg %p57
      $region14: #{forward.25} parent=11 // pred_check_branch
        %147 = sbr.rel (%p145) target = $region16
      $region15: #{forward.25} parent=11 // pred_region
        _
      $region16: #{forward.25} parent=11 // pred_fallthru
        _
      // Predicated region
      $region17: #{forward.25} parent=11 // pred_check
        %p148 = pneg %p78
      $region18: #{forward.25} parent=11 // pred_check_branch
        %150 = sbr.rel (%p148) target = $region20
      $region19: #{forward.25} parent=11 // pred_region
        _
      $region20: #{forward.25} parent=11 // pred_fallthru
        _
    $region12: #{forward.25} parent=5 // pred_fallthru
      _
    %p151 = scmp.lt.s32.totalorder %s10, 2
    // Predicated region
    $region21: #{forward.25} parent=5 // pred_check
      %p152 = pneg %p151
    $region22: #{forward.25} parent=5 // pred_check_branch
      %154 = sbr.rel (%p152) target = $region24
    $region23: #{forward.25} parent=5 // pred_region
      // Predicated region
      $region25: #{forward.25} parent=23 // pred_check
        %p155 = pneg %p30
      $region26: #{forward.25} parent=23 // pred_check_branch
        %157 = sbr.rel (%p155) target = $region28
      $region27: #{forward.25} parent=23 // pred_region
        %p158 = scmp.lt.s32.totalorder %s10, 1
        %s159 = scalar_select %p158, %s10, 1
        %s160 = smul.addr %s159, 4
        %s161 = smul.addr %s160, 8
        %s162 = scalar_lea.vmem %s0, %s161
      $region28: #{forward.25} parent=23 // pred_fallthru
        _
      // Predicated region
      $region29: #{forward.25} parent=23 // pred_check
        %p163 = pneg %p98
      $region30: #{forward.25} parent=23 // pred_check_branch
        %165 = sbr.rel (%p163) target = $region32
      $region31: #{forward.25} parent=23 // pred_region
        %p166 = scmp.lt.s32.totalorder %s10, 1
        %s167 = scalar_select %p166, %s10, 1
        %s168 = smul.addr %s167, 4
        %s169 = smul.addr %s168, 8
        %s170 = scalar_lea.vmem %s3, %s169
      $region32: #{forward.25} parent=23 // pred_fallthru
        _
    $region24: #{forward.25} parent=5 // pred_fallthru
      _
    %p171 = scmp.le.s32.totalorder 1, %s10
    %p172 = scmp.lt.s32.totalorder %s10, 3
    %p173 = pnand %p171, %p172
    %p174 = pneg %p173
    // Predicated region
    $region33: #{forward.25} parent=5 // pred_check
      _
    $region34: #{forward.25} parent=5 // pred_check_branch
      %176 = sbr.rel (%p173) target = $region36
    $region35: #{forward.25} parent=5 // pred_region
      %s177 = ssub.s32 %s10, 1
      %p178 = scmp.lt.s32.totalorder %s15, 1
      %s179 = scalar_select %p178, %s15, 1
      %s180 = smul.addr %s179, 4
      %s181 = smul.addr %s180, 8
      %s182 = scalar_lea.vmem %s0, %s181
      %p183 = pneg %p36
      %p184 = pneg %p33
      %p185 = pneg %p57
      %p186 = pneg %p54
      %p187 = pneg %p78
      %p188 = pneg %p75
      %p189 = scmp.lt.s32.totalorder %s15, 1
      %s190 = scalar_select %p189, %s15, 1
      %s191 = smul.addr %s190, 4
      %s192 = smul.addr %s191, 8
      %s193 = scalar_lea.vmem %s3, %s192
      %p194 = pneg %p104
      %p195 = pneg %p101
      %p196 = pneg %p130
      %p197 = pneg %p127
      %p198 = scmp.lt.s32.totalorder %s15, 1
      %s199 = scalar_select %p198, %s15, 1
      %s200 = smul.addr %s199, 4
      %s201 = smul.addr %s200, 8
      %s202 = scalar_lea.vmem %s4, %s201
      %p203 = scmp.lt.s32.totalorder %s15, 1
      %s204 = scalar_select %p203, %s15, 1
      %s205 = smul.addr %s204, 4
      %s206 = smul.addr %s205, 8
      %s207 = scalar_lea.vmem %s0, %s206
      %p208 = scmp.lt.s32.totalorder %s15, 1
      %s209 = scalar_select %p208, %s15, 1
      %s210 = smul.addr %s209, 4
      %s211 = smul.addr %s210, 8
      %s212 = scalar_lea.vmem %s3, %s211
      %p213 = scmp.lt.s32.totalorder %s15, 1
      %s214 = scalar_select %p213, %s15, 1
      %s215 = smul.addr %s214, 4
      %s216 = smul.addr %s215, 8
      %s217 = scalar_lea.vmem %s4, %s216
      %v218 = vld [vmem:[%s207] sm:$0xff]
      %v219 = vld [vmem:[%s207 + $0x8] sm:$0xff]
      %v220 = vld [vmem:[%s207 + $0x10] sm:$0xff]
      %v221 = vld [vmem:[%s207 + $0x18] sm:$0xff]
      %v222 = vld [vmem:[%s1] sm:$0xff]
      %v223 = vld [vmem:[%s1 + $0x8] sm:$0xff]
      %v224 = vld [vmem:[%s1 + $0x10] sm:$0xff]
      %v225 = vld [vmem:[%s1 + $0x18] sm:$0xff]
      %227 = vset.pattern.permute.xlu0 0
      %228 = vperm.xlu0 %227, %v222
      %v229 = vpop.permute.xlu0 %228
      %232 = vset.pattern.permute.xlu0 0
      %233 = vperm.xlu0 %232, %v223
      %v234 = vpop.permute.xlu0 %233
      %237 = vset.pattern.permute.xlu0 0
      %238 = vperm.xlu0 %237, %v224
      %v239 = vpop.permute.xlu0 %238
      %242 = vset.pattern.permute.xlu0 0
      %243 = vperm.xlu0 %242, %v225
      %v244 = vpop.permute.xlu0 %243
      %v246 = vmul.f32 %v218, %v229
      %v247 = vmul.f32 %v219, %v234
      %v248 = vmul.f32 %v220, %v239
      %v249 = vmul.f32 %v221, %v244
      %v250 = vld [vmem:[%s2] sm:$0xff]
      %v251 = vld [vmem:[%s2 + $0x8] sm:$0xff]
      %v252 = vld [vmem:[%s2 + $0x10] sm:$0xff]
      %v253 = vld [vmem:[%s2 + $0x18] sm:$0xff]
      %255 = vset.pattern.permute.xlu0 0
      %256 = vperm.xlu0 %255, %v250
      %v257 = vpop.permute.xlu0 %256
      %260 = vset.pattern.permute.xlu0 0
      %261 = vperm.xlu0 %260, %v251
      %v262 = vpop.permute.xlu0 %261
      %265 = vset.pattern.permute.xlu0 0
      %266 = vperm.xlu0 %265, %v252
      %v267 = vpop.permute.xlu0 %266
      %270 = vset.pattern.permute.xlu0 0
      %271 = vperm.xlu0 %270, %v253
      %v272 = vpop.permute.xlu0 %271
      %v274 = vadd.f32 %v246, %v257
      %v275 = vadd.f32 %v247, %v262
      %v276 = vadd.f32 %v248, %v267
      %v277 = vadd.f32 %v249, %v272
      %v278 = vld [vmem:[%s212] sm:$0xff]
      %v279 = vld [vmem:[%s212 + $0x8] sm:$0xff]
      %v280 = vld [vmem:[%s212 + $0x10] sm:$0xff]
      %v281 = vld [vmem:[%s212 + $0x18] sm:$0xff]
      %v282 = vadd.f32 %v274, %v278
      %v283 = vadd.f32 %v275, %v279
      %v284 = vadd.f32 %v276, %v280
      %v285 = vadd.f32 %v277, %v281
      %v286 = vmax.f32 %v282, 0.0
      %v287 = vmax.f32 %v283, 0.0
      %v288 = vmax.f32 %v284, 0.0
      %v289 = vmax.f32 %v285, 0.0
      %290 = vst [vmem:[%s217] sm:$0xff] %v286
      %291 = vst [vmem:[%s217 + $0x8] sm:$0xff] %v287
      %292 = vst [vmem:[%s217 + $0x10] sm:$0xff] %v288
      %293 = vst [vmem:[%s217 + $0x18] sm:$0xff] %v289
      %p294 = scmp.lt.s32.totalorder %s15, 1
      %s295 = scalar_select %p294, %s15, 1
      %s296 = smul.addr %s295, 4
      %s297 = smul.addr %s296, 8
      %s298 = scalar_lea.vmem %s4, %s297
      // Predicated region
      $region37: #{forward.25} parent=35 // pred_check
        %p299 = pneg %p127
      $region38: #{forward.25} parent=35 // pred_check_branch
        %301 = sbr.rel (%p299) target = $region40
      $region39: #{forward.25} parent=35 // pred_region
        _
      $region40: #{forward.25} parent=35 // pred_fallthru
        _
    $region36: #{forward.25} parent=5 // pred_fallthru
      _
    %p302 = scmp.le.s32.totalorder 2, %s10
    // Predicated region
    $region41: #{forward.25} parent=5 // pred_check
      %p303 = pneg %p302
    $region42: #{forward.25} parent=5 // pred_check_branch
      %305 = sbr.rel (%p303) target = $region44
    $region43: #{forward.25} parent=5 // pred_region
      %s306 = ssub.s32 %s10, 2
      // Predicated region
      $region45: #{forward.25} parent=43 // pred_check
        %p307 = pneg %p133
      $region46: #{forward.25} parent=43 // pred_check_branch
        %309 = sbr.rel (%p307) target = $region48
      $region47: #{forward.25} parent=43 // pred_region
        %p310 = scmp.lt.s32.totalorder %s16, 1
        %s311 = scalar_select %p310, %s16, 1
        %s312 = smul.addr %s311, 4
        %s313 = smul.addr %s312, 8
        %s314 = scalar_lea.vmem %s4, %s313
      $region48: #{forward.25} parent=43 // pred_fallthru
        _
    $region44: #{forward.25} parent=5 // pred_fallthru
      _
  $region6: #{forward.25} parent=0 // loop_footer
    %s14 = sadd.s32 1, %s10
  $region7: #{forward.25} parent=0 // loop_footer_branch
    %9 = sbr.rel target = $region3
  $region8: #{forward.25} parent=0 // loop_exit
    _

// kernel: forward.29
$region0: #{forward.29}
  #allocation0 [shape = 'u32[]', space=smem, size = 0x4, offset = 0x4, fixed_abs, tag = 'smem constant byte address 0x4 - core index']
  #allocation1 [shape = 'u32[72,128]{1,0:T(1,128)}', space=vmem, size = 0x9000, scoped, tag = 'internal scratch']
  %s0 = inlined_call_operand.vmem [shape: f32[2,32,65], index: 0, kind: input, shape index: {}]
  %s1 = inlined_call_operand.vmem [shape: f32[1,64,32], index: 1, kind: input, shape index: {}]
  %s2 = inlined_call_operand.vmem [shape: f32[2,64,64], index: 2, kind: output, shape index: {0}]
  %s3 = inlined_call_operand.vmem [shape: f32[2,64,2], index: 3, kind: output, shape index: {1}]
  %4 = xla_tuple %s2, %s3
  %s5 = sld [smem:[#allocation0]]
  $region49: #{forward.29} parent=0
    _
  %s7 = ssub.s32 1, %s5
  %s8 = scalar_select 0, %s7, %s5
  loop: start=0, step=1, limit=4
  $region2: #{forward.29} parent=0 // loop_pre_header
    _
  $region3: #{forward.29} parent=0 // loop_header
    %s10 = sphi 0, %s14
    %p11 = scmp.ge.s32.totalorder %s10, 4
    %s20 = sphi 0, %s22
    %s23 = sphi 0, %s20
    %s24 = sphi 0, %s23
    %s40 = sphi 0, %s24
    %s44 = sphi 0, %s44
    %s46 = sphi 0, %s44
    %s47 = sphi 0, %s46
    %s61 = sphi 0, %s47
    %s67 = sphi 0, %s69
    %s70 = sphi 0, %s67
    %s71 = sphi 0, %s70
    %s87 = sphi 0, %s71
    %s93 = sphi 0, %s95
    %s96 = sphi 0, %s93
    %s97 = sphi 0, %s96
    %s113 = sphi 0, %s97
  $region4: #{forward.29} parent=0 // loop_header_branch
    %13 = sbr.rel (%p11) target = $region8
  $region5: #{forward.29} parent=0 // loop_body
    %s15 = ssub.s32 %s10, 1
    %s16 = ssub.s32 %s10, 2
    %s17 = sadd.s32 %s10, 1
    %s18 = ssub.s32 %s10, %s17
    %p19 = scmp.eq.s32.totalorder %s18, 0
    %s21 = sadd.s32 %s20, 1
    %s22 = scalar_select %p19, %s20, %s21
    %p25 = pneg %p19
    %p26 = scmp.eq.s32.totalorder %s10, 1
    %p27 = por %p25, %p26
    %p28 = scmp.ne.s32.totalorder %s20, %s23
    %p29 = scmp.eq.s32.totalorder %s10, 0
    %p30 = por %p28, %p29
    %p31 = scmp.ne.s32.totalorder %s20, %s23
    %p32 = scmp.eq.s32.totalorder %s15, 1
    %p33 = por %p31, %p32
    %p34 = scmp.ne.s32.totalorder %s23, %s24
    %p35 = scmp.eq.s32.totalorder %s15, 0
    %p36 = por %p34, %p35
    %p37 = scmp.ne.s32.totalorder %s23, %s24
    %p38 = scmp.eq.s32.totalorder %s16, 1
    %p39 = por %p37, %p38
    %p41 = scmp.ne.s32.totalorder %s24, %s40
    %p42 = scmp.eq.s32.totalorder %s16, 0
    %p43 = por %p41, %p42
    %s45 = sadd.s32 %s44, 1
    %p48 = scmp.eq.s32.totalorder %s10, 1
    %p49 = scmp.ne.s32.totalorder %s44, %s46
    %p50 = scmp.eq.s32.totalorder %s10, 0
    %p51 = por %p49, %p50
    %p52 = scmp.ne.s32.totalorder %s44, %s46
    %p53 = scmp.eq.s32.totalorder %s15, 1
    %p54 = por %p52, %p53
    %p55 = scmp.ne.s32.totalorder %s46, %s47
    %p56 = scmp.eq.s32.totalorder %s15, 0
    %p57 = por %p55, %p56
    %p58 = scmp.ne.s32.totalorder %s46, %s47
    %p59 = scmp.eq.s32.totalorder %s16, 1
    %p60 = por %p58, %p59
    %p62 = scmp.ne.s32.totalorder %s47, %s61
    %p63 = scmp.eq.s32.totalorder %s16, 0
    %p64 = por %p62, %p63
    %s65 = ssub.s32 %s10, %s17
    %p66 = scmp.eq.s32.totalorder %s65, 0
    %s68 = sadd.s32 %s67, 1
    %s69 = scalar_select %p66, %s67, %s68
    %p72 = pneg %p66
    %p73 = scmp.eq.s32.totalorder %s10, 1
    %p74 = por %p72, %p73
    %p75 = scmp.ne.s32.totalorder %s67, %s70
    %p76 = scmp.eq.s32.totalorder %s10, 0
    %p77 = por %p75, %p76
    %p78 = scmp.ne.s32.totalorder %s67, %s70
    %p79 = scmp.eq.s32.totalorder %s15, 1
    %p80 = por %p78, %p79
    %p81 = scmp.ne.s32.totalorder %s70, %s71
    %p82 = scmp.eq.s32.totalorder %s15, 0
    %p83 = por %p81, %p82
    %p84 = scmp.ne.s32.totalorder %s70, %s71
    %p85 = scmp.eq.s32.totalorder %s16, 1
    %p86 = por %p84, %p85
    %p88 = scmp.ne.s32.totalorder %s71, %s87
    %p89 = scmp.eq.s32.totalorder %s16, 0
    %p90 = por %p88, %p89
    %s91 = ssub.s32 %s10, %s17
    %p92 = scmp.eq.s32.totalorder %s91, 0
    %s94 = sadd.s32 %s93, 1
    %s95 = scalar_select %p92, %s93, %s94
    %p98 = pneg %p92
    %p99 = scmp.eq.s32.totalorder %s10, 1
    %p100 = por %p98, %p99
    %p101 = scmp.ne.s32.totalorder %s93, %s96
    %p102 = scmp.eq.s32.totalorder %s10, 0
    %p103 = por %p101, %p102
    %p104 = scmp.ne.s32.totalorder %s93, %s96
    %p105 = scmp.eq.s32.totalorder %s15, 1
    %p106 = por %p104, %p105
    %p107 = scmp.ne.s32.totalorder %s96, %s97
    %p108 = scmp.eq.s32.totalorder %s15, 0
    %p109 = por %p107, %p108
    %p110 = scmp.ne.s32.totalorder %s96, %s97
    %p111 = scmp.eq.s32.totalorder %s16, 1
    %p112 = por %p110, %p111
    %p114 = scmp.ne.s32.totalorder %s97, %s113
    %p115 = scmp.eq.s32.totalorder %s16, 0
    %p116 = por %p114, %p115
    %p117 = scmp.le.s32.totalorder 1, %s10
    %p118 = scmp.lt.s32.totalorder %s10, 3
    %p119 = pnand %p117, %p118
    %p120 = pneg %p119
    // Predicated region
    $region9: #{forward.29} parent=5 // pred_check
      _
    $region10: #{forward.29} parent=5 // pred_check_branch
      %122 = sbr.rel (%p119) target = $region12
    $region11: #{forward.29} parent=5 // pred_region
      %s123 = ssub.s32 %s10, 1
      // Predicated region
      $region13: #{forward.29} parent=11 // pred_check
        %p124 = pneg %p57
      $region14: #{forward.29} parent=11 // pred_check_branch
        %126 = sbr.rel (%p124) target = $region16
      $region15: #{forward.29} parent=11 // pred_region
        _
      $region16: #{forward.29} parent=11 // pred_fallthru
        _
    $region12: #{forward.29} parent=5 // pred_fallthru
      _
    %p127 = scmp.lt.s32.totalorder %s10, 2
    // Predicated region
    $region17: #{forward.29} parent=5 // pred_check
      %p128 = pneg %p127
    $region18: #{forward.29} parent=5 // pred_check_branch
      %130 = sbr.rel (%p128) target = $region20
    $region19: #{forward.29} parent=5 // pred_region
      // Predicated region
      $region21: #{forward.29} parent=19 // pred_check
        %p131 = pneg %p30
      $region22: #{forward.29} parent=19 // pred_check_branch
        %133 = sbr.rel (%p131) target = $region24
      $region23: #{forward.29} parent=19 // pred_region
        %p134 = scmp.lt.s32.totalorder %s10, 1
        %s135 = scalar_select %p134, %s10, 1
        %s136 = smul.addr %s135, 4
        %s137 = smul.addr %s136, 8
        %s138 = scalar_lea.vmem %s0, %s137
      $region24: #{forward.29} parent=19 // pred_fallthru
        _
    $region20: #{forward.29} parent=5 // pred_fallthru
      _
    %p139 = scmp.le.s32.totalorder 1, %s10
    %p140 = scmp.lt.s32.totalorder %s10, 3
    %p141 = pnand %p139, %p140
    %p142 = pneg %p141
    // Predicated region
    $region25: #{forward.29} parent=5 // pred_check
      _
    $region26: #{forward.29} parent=5 // pred_check_branch
      %144 = sbr.rel (%p141) target = $region28
    $region27: #{forward.29} parent=5 // pred_region
      %s145 = ssub.s32 %s10, 1
      %p146 = scmp.lt.s32.totalorder %s15, 1
      %s147 = scalar_select %p146, %s15, 1
      %s148 = smul.addr %s147, 4
      %s149 = smul.addr %s148, 8
      %s150 = scalar_lea.vmem %s0, %s149
      %p151 = pneg %p36
      %p152 = pneg %p33
      %p153 = pneg %p57
      %p154 = pneg %p54
      %p155 = pneg %p83
      %p156 = pneg %p80
      %p157 = scmp.lt.s32.totalorder %s15, 1
      %s158 = scalar_select %p157, %s15, 1
      %s159 = smul.addr %s158, 8
      %s160 = smul.addr %s159, 8
      %s161 = scalar_lea.vmem %s2, %s160
      %p162 = pneg %p109
      %p163 = pneg %p106
      %p164 = scmp.lt.s32.totalorder %s15, 1
      %s165 = scalar_select %p164, %s15, 1
      %s166 = smul.addr %s165, 8
      %s167 = smul.addr %s166, 8
      %s168 = scalar_lea.vmem %s3, %s167
      %p169 = scmp.lt.s32.totalorder %s15, 1
      %s170 = scalar_select %p169, %s15, 1
      %s171 = smul.addr %s170, 4
      %s172 = smul.addr %s171, 8
      %s173 = scalar_lea.vmem %s0, %s172
      %p174 = scmp.lt.s32.totalorder %s15, 1
      %s175 = scalar_select %p174, %s15, 1
      %s176 = smul.addr %s175, 8
      %s177 = smul.addr %s176, 8
      %s178 = scalar_lea.vmem %s2, %s177
      %p179 = scmp.lt.s32.totalorder %s15, 1
      %s180 = scalar_select %p179, %s15, 1
      %s181 = smul.addr %s180, 8
      %s182 = smul.addr %s181, 8
      %s183 = scalar_lea.vmem %s3, %s182
      %v185 = vld [vmem:[%s173] sm:$0xff]
      %v186 = vld [vmem:[%s173 + $0x8] sm:$0xff]
      %v187 = vld [vmem:[%s173 + $0x10] sm:$0xff]
      %v188 = vld [vmem:[%s173 + $0x18] sm:$0xff]
      %v189 = vpack.c.bf16 %v186, %v185
      %v190 = vpack.c.bf16 %v188, %v187
      %v191 = vld [vmem:[%s1] sm:$0xff]
      %v192 = vld [vmem:[%s1 + $0x8] sm:$0xff]
      %v193 = vld [vmem:[%s1 + $0x10] sm:$0xff]
      %v194 = vld [vmem:[%s1 + $0x18] sm:$0xff]
      %v195 = vld [vmem:[%s1 + $0x20] sm:$0xff]
      %v196 = vld [vmem:[%s1 + $0x28] sm:$0xff]
      %v197 = vld [vmem:[%s1 + $0x30] sm:$0xff]
      %v198 = vld [vmem:[%s1 + $0x38] sm:$0xff]
      %v199 = vpack.c.bf16 %v192, %v191
      %v200 = vpack.c.bf16 %v194, %v193
      %v201 = vpack.c.bf16 %v196, %v195
      %v202 = vpack.c.bf16 %v198, %v197
      %vm203 = vcmask 261120
      %v205 = vsel %vm203, %v199, 0
      %v208 = vsel %vm203, %v200, 0
      %v211 = vsel %vm203, %v201, 0
      %v214 = vsel %vm203, %v202, 0
      %216 = vmatpush.bf16.msra.mxu0 0
      %217 = vmatpush.bf16.msra.mxu0 0
      %218 = vmatpush.bf16.msra.mxu0 0
      %219 = vmatpush.bf16.msra.mxu0 0
      %220 = vmatpush.bf16.msra.mxu0 0
      %221 = vmatpush.bf16.msra.mxu0 0
      %222 = vmatpush.bf16.msra.mxu0 %v190
      %223 = vmatpush.bf16.msra.mxu0 %v189
      %224 = vmatmul.bf16.gmra.mxu0 %v205
      %v225 = vpop.f32.mrf.mxu0
      %v226 = vadd.f32 0.0, %v225
      %v227 = vpop.f32.mrf.mxu0
      %v228 = vadd.f32 0.0, %v227
      %229 = vmatmul.bf16.gmra.mxu0 %v208
      %v230 = vpop.f32.mrf.mxu0
      %v231 = vadd.f32 0.0, %v230
      %v232 = vpop.f32.mrf.mxu0
      %v233 = vadd.f32 0.0, %v232
      %234 = vmatmul.bf16.gmra.mxu0 %v211
      %v235 = vpop.f32.mrf.mxu0
      %v236 = vadd.f32 0.0, %v235
      %v237 = vpop.f32.mrf.mxu0
      %v238 = vadd.f32 0.0, %v237
      %239 = vmatmul.bf16.gmra.mxu0 %v214
      %v240 = vpop.f32.mrf.mxu0
      %v241 = vadd.f32 0.0, %v240
      %v242 = vpop.f32.mrf.mxu0
      %v243 = vadd.f32 0.0, %v242
      %244 = vdwg.mxu0
      %vm245 = vcmask 523264
      %246 = vst.msk [vmem:[%s178] sm:$0xff] %vm245, %v226
      %247 = vst.msk [vmem:[%s178 + $0x8] sm:$0xff] %vm245, %v228
      %248 = vst.msk [vmem:[%s178 + $0x10] sm:$0xff] %vm245, %v231
      %249 = vst.msk [vmem:[%s178 + $0x18] sm:$0xff] %vm245, %v233
      %250 = vst.msk [vmem:[%s178 + $0x20] sm:$0xff] %vm245, %v236
      %251 = vst.msk [vmem:[%s178 + $0x28] sm:$0xff] %vm245, %v238
      %252 = vst.msk [vmem:[%s178 + $0x30] sm:$0xff] %vm245, %v241
      %253 = vst.msk [vmem:[%s178 + $0x38] sm:$0xff] %vm245, %v243
      %v254 = vsel %vm245, %v226, 0.0
      %255 = vadd.xlane.f32.xlu0 %v254
      %v256 = vpop.xlane.xlu0 %255
      %v257 = vsel %vm245, %v228, 0.0
      %258 = vadd.xlane.f32.xlu0 %v257
      %v259 = vpop.xlane.xlu0 %258
      %v260 = vsel %vm245, %v231, 0.0
      %261 = vadd.xlane.f32.xlu0 %v260
      %v262 = vpop.xlane.xlu0 %261
      %v263 = vsel %vm245, %v233, 0.0
      %264 = vadd.xlane.f32.xlu0 %v263
      %v265 = vpop.xlane.xlu0 %264
      %v266 = vsel %vm245, %v236, 0.0
      %267 = vadd.xlane.f32.xlu0 %v266
      %v268 = vpop.xlane.xlu0 %267
      %v269 = vsel %vm245, %v238, 0.0
      %270 = vadd.xlane.f32.xlu0 %v269
      %v271 = vpop.xlane.xlu0 %270
      %v272 = vsel %vm245, %v241, 0.0
      %273 = vadd.xlane.f32.xlu0 %v272
      %v274 = vpop.xlane.xlu0 %273
      %v275 = vsel %vm245, %v243, 0.0
      %276 = vadd.xlane.f32.xlu0 %v275
      %v277 = vpop.xlane.xlu0 %276
      %vm278 = vcmask 7168
      %279 = vst.msk [vmem:[%s183] sm:$0xff] %vm278, %v256
      %280 = vst.msk [vmem:[%s183 + $0x8] sm:$0xff] %vm278, %v259
      %281 = vst.msk [vmem:[%s183 + $0x10] sm:$0xff] %vm278, %v262
      %282 = vst.msk [vmem:[%s183 + $0x18] sm:$0xff] %vm278, %v265
      %283 = vst.msk [vmem:[%s183 + $0x20] sm:$0xff] %vm278, %v268
      %284 = vst.msk [vmem:[%s183 + $0x28] sm:$0xff] %vm278, %v271
      %285 = vst.msk [vmem:[%s183 + $0x30] sm:$0xff] %vm278, %v274
      %286 = vst.msk [vmem:[%s183 + $0x38] sm:$0xff] %vm278, %v277
      %v287 = vmul.f32 %v226, %v226
      %v288 = vmul.f32 %v228, %v228
      %v289 = vmul.f32 %v231, %v231
      %v290 = vmul.f32 %v233, %v233
      %v291 = vmul.f32 %v236, %v236
      %v292 = vmul.f32 %v238, %v238
      %v293 = vmul.f32 %v241, %v241
      %v294 = vmul.f32 %v243, %v243
      %v295 = vsel %vm245, %v287, 0.0
      %296 = vadd.xlane.f32.xlu0 %v295
      %v297 = vpop.xlane.xlu0 %296
      %v298 = vsel %vm245, %v288, 0.0
      %299 = vadd.xlane.f32.xlu0 %v298
      %v300 = vpop.xlane.xlu0 %299
      %v301 = vsel %vm245, %v289, 0.0
      %302 = vadd.xlane.f32.xlu0 %v301
      %v303 = vpop.xlane.xlu0 %302
      %v304 = vsel %vm245, %v290, 0.0
      %305 = vadd.xlane.f32.xlu0 %v304
      %v306 = vpop.xlane.xlu0 %305
      %v307 = vsel %vm245, %v291, 0.0
      %308 = vadd.xlane.f32.xlu0 %v307
      %v309 = vpop.xlane.xlu0 %308
      %v310 = vsel %vm245, %v292, 0.0
      %311 = vadd.xlane.f32.xlu0 %v310
      %v312 = vpop.xlane.xlu0 %311
      %v313 = vsel %vm245, %v293, 0.0
      %314 = vadd.xlane.f32.xlu0 %v313
      %v315 = vpop.xlane.xlu0 %314
      %v316 = vsel %vm245, %v294, 0.0
      %317 = vadd.xlane.f32.xlu0 %v316
      %v318 = vpop.xlane.xlu0 %317
      %vm319 = vcmask 15368
      %320 = vst.msk [vmem:[%s183] sm:$0xff] %vm319, %v297
      %321 = vst.msk [vmem:[%s183 + $0x8] sm:$0xff] %vm319, %v300
      %322 = vst.msk [vmem:[%s183 + $0x10] sm:$0xff] %vm319, %v303
      %323 = vst.msk [vmem:[%s183 + $0x18] sm:$0xff] %vm319, %v306
      %324 = vst.msk [vmem:[%s183 + $0x20] sm:$0xff] %vm319, %v309
      %325 = vst.msk [vmem:[%s183 + $0x28] sm:$0xff] %vm319, %v312
      %326 = vst.msk [vmem:[%s183 + $0x30] sm:$0xff] %vm319, %v315
      %327 = vst.msk [vmem:[%s183 + $0x38] sm:$0xff] %vm319, %v318
      %p328 = scmp.lt.s32.totalorder %s15, 1
      %s329 = scalar_select %p328, %s15, 1
      %s330 = smul.addr %s329, 8
      %s331 = smul.addr %s330, 8
      %s332 = scalar_lea.vmem %s2, %s331
      %p333 = scmp.lt.s32.totalorder %s15, 1
      %s334 = scalar_select %p333, %s15, 1
      %s335 = smul.addr %s334, 8
      %s336 = smul.addr %s335, 8
      %s337 = scalar_lea.vmem %s3, %s336
      // Predicated region
      $region29: #{forward.29} parent=27 // pred_check
        %p338 = pneg %p80
      $region30: #{forward.29} parent=27 // pred_check_branch
        %340 = sbr.rel (%p338) target = $region32
      $region31: #{forward.29} parent=27 // pred_region
        _
      $region32: #{forward.29} parent=27 // pred_fallthru
        _
      // Predicated region
      $region33: #{forward.29} parent=27 // pred_check
        %p341 = pneg %p106
      $region34: #{forward.29} parent=27 // pred_check_branch
        %343 = sbr.rel (%p341) target = $region36
      $region35: #{forward.29} parent=27 // pred_region
        _
      $region36: #{forward.29} parent=27 // pred_fallthru
        _
    $region28: #{forward.29} parent=5 // pred_fallthru
      _
    %p344 = scmp.le.s32.totalorder 2, %s10
    // Predicated region
    $region37: #{forward.29} parent=5 // pred_check
      %p345 = pneg %p344
    $region38: #{forward.29} parent=5 // pred_check_branch
      %347 = sbr.rel (%p345) target = $region40
    $region39: #{forward.29} parent=5 // pred_region
      %s348 = ssub.s32 %s10, 2
      // Predicated region
      $region41: #{forward.29} parent=39 // pred_check
        %p349 = pneg %p86
      $region42: #{forward.29} parent=39 // pred_check_branch
        %351 = sbr.rel (%p349) target = $region44
      $region43: #{forward.29} parent=39 // pred_region
        %p352 = scmp.lt.s32.totalorder %s16, 1
        %s353 = scalar_select %p352, %s16, 1
        %s354 = smul.addr %s353, 8
        %s355 = smul.addr %s354, 8
        %s356 = scalar_lea.vmem %s2, %s355
      $region44: #{forward.29} parent=39 // pred_fallthru
        _
      // Predicated region
      $region45: #{forward.29} parent=39 // pred_check
        %p357 = pneg %p112
      $region46: #{forward.29} parent=39 // pred_check_branch
        %359 = sbr.rel (%p357) target = $region48
      $region47: #{forward.29} parent=39 // pred_region
        %p360 = scmp.lt.s32.totalorder %s16, 1
        %s361 = scalar_select %p360, %s16, 1
        %s362 = smul.addr %s361, 8
        %s363 = smul.addr %s362, 8
        %s364 = scalar_lea.vmem %s3, %s363
      $region48: #{forward.29} parent=39 // pred_fallthru
        _
    $region40: #{forward.29} parent=5 // pred_fallthru
      _
  $region6: #{forward.29} parent=0 // loop_footer
    %s14 = sadd.s32 1, %s10
  $region7: #{forward.29} parent=0 // loop_footer_branch
    %9 = sbr.rel target = $region3
  $region8: #{forward.29} parent=0 // loop_exit
    _

// kernel: forward.27
$region0: #{forward.27}
  #allocation0 [shape = 'u32[]', space=smem, size = 0x4, offset = 0x4, fixed_abs, tag = 'smem constant byte address 0x4 - core index']
  #allocation1 [shape = 'u32[72,128]{1,0:T(1,128)}', space=vmem, size = 0x9000, scoped, tag = 'internal scratch']
  %s0 = inlined_call_operand.vmem [shape: f32[2,64,64], index: 0, kind: input, shape index: {}]
  %s1 = inlined_call_operand.vmem [shape: f32[64,1], index: 1, kind: input, shape index: {}]
  %s2 = inlined_call_operand.vmem [shape: f32[64,1], index: 2, kind: input, shape index: {}]
  %s3 = inlined_call_operand.vmem [shape: f32[2,64,64], index: 3, kind: output, shape index: {}]
  %s4 = sld [smem:[#allocation0]]
  $region45: #{forward.27} parent=0
    _
  %s6 = ssub.s32 1, %s4
  %s7 = scalar_select 0, %s6, %s4
  loop: start=0, step=1, limit=4
  $region2: #{forward.27} parent=0 // loop_pre_header
    _
  $region3: #{forward.27} parent=0 // loop_header
    %s9 = sphi 0, %s13
    %p10 = scmp.ge.s32.totalorder %s9, 4
    %s19 = sphi 0, %s21
    %s22 = sphi 0, %s19
    %s23 = sphi 0, %s22
    %s39 = sphi 0, %s23
    %s43 = sphi 0, %s43
    %s45 = sphi 0, %s43
    %s46 = sphi 0, %s45
    %s60 = sphi 0, %s46
    %s64 = sphi 0, %s64
    %s66 = sphi 0, %s64
    %s67 = sphi 0, %s66
    %s81 = sphi 0, %s67
    %s87 = sphi 0, %s89
    %s90 = sphi 0, %s87
    %s91 = sphi 0, %s90
    %s107 = sphi 0, %s91
  $region4: #{forward.27} parent=0 // loop_header_branch
    %12 = sbr.rel (%p10) target = $region8
  $region5: #{forward.27} parent=0 // loop_body
    %s14 = ssub.s32 %s9, 1
    %s15 = ssub.s32 %s9, 2
    %s16 = sadd.s32 %s9, 1
    %s17 = ssub.s32 %s9, %s16
    %p18 = scmp.eq.s32.totalorder %s17, 0
    %s20 = sadd.s32 %s19, 1
    %s21 = scalar_select %p18, %s19, %s20
    %p24 = pneg %p18
    %p25 = scmp.eq.s32.totalorder %s9, 1
    %p26 = por %p24, %p25
    %p27 = scmp.ne.s32.totalorder %s19, %s22
    %p28 = scmp.eq.s32.totalorder %s9, 0
    %p29 = por %p27, %p28
    %p30 = scmp.ne.s32.totalorder %s19, %s22
    %p31 = scmp.eq.s32.totalorder %s14, 1
    %p32 = por %p30, %p31
    %p33 = scmp.ne.s32.totalorder %s22, %s23
    %p34 = scmp.eq.s32.totalorder %s14, 0
    %p35 = por %p33, %p34
    %p36 = scmp.ne.s32.totalorder %s22, %s23
    %p37 = scmp.eq.s32.totalorder %s15, 1
    %p38 = por %p36, %p37
    %p40 = scmp.ne.s32.totalorder %s23, %s39
    %p41 = scmp.eq.s32.totalorder %s15, 0
    %p42 = por %p40, %p41
    %s44 = sadd.s32 %s43, 1
    %p47 = scmp.eq.s32.totalorder %s9, 1
    %p48 = scmp.ne.s32.totalorder %s43, %s45
    %p49 = scmp.eq.s32.totalorder %s9, 0
    %p50 = por %p48, %p49
    %p51 = scmp.ne.s32.totalorder %s43, %s45
    %p52 = scmp.eq.s32.totalorder %s14, 1
    %p53 = por %p51, %p52
    %p54 = scmp.ne.s32.totalorder %s45, %s46
    %p55 = scmp.eq.s32.totalorder %s14, 0
    %p56 = por %p54, %p55
    %p57 = scmp.ne.s32.totalorder %s45, %s46
    %p58 = scmp.eq.s32.totalorder %s15, 1
    %p59 = por %p57, %p58
    %p61 = scmp.ne.s32.totalorder %s46, %s60
    %p62 = scmp.eq.s32.totalorder %s15, 0
    %p63 = por %p61, %p62
    %s65 = sadd.s32 %s64, 1
    %p68 = scmp.eq.s32.totalorder %s9, 1
    %p69 = scmp.ne.s32.totalorder %s64, %s66
    %p70 = scmp.eq.s32.totalorder %s9, 0
    %p71 = por %p69, %p70
    %p72 = scmp.ne.s32.totalorder %s64, %s66
    %p73 = scmp.eq.s32.totalorder %s14, 1
    %p74 = por %p72, %p73
    %p75 = scmp.ne.s32.totalorder %s66, %s67
    %p76 = scmp.eq.s32.totalorder %s14, 0
    %p77 = por %p75, %p76
    %p78 = scmp.ne.s32.totalorder %s66, %s67
    %p79 = scmp.eq.s32.totalorder %s15, 1
    %p80 = por %p78, %p79
    %p82 = scmp.ne.s32.totalorder %s67, %s81
    %p83 = scmp.eq.s32.totalorder %s15, 0
    %p84 = por %p82, %p83
    %s85 = ssub.s32 %s9, %s16
    %p86 = scmp.eq.s32.totalorder %s85, 0
    %s88 = sadd.s32 %s87, 1
    %s89 = scalar_select %p86, %s87, %s88
    %p92 = pneg %p86
    %p93 = scmp.eq.s32.totalorder %s9, 1
    %p94 = por %p92, %p93
    %p95 = scmp.ne.s32.totalorder %s87, %s90
    %p96 = scmp.eq.s32.totalorder %s9, 0
    %p97 = por %p95, %p96
    %p98 = scmp.ne.s32.totalorder %s87, %s90
    %p99 = scmp.eq.s32.totalorder %s14, 1
    %p100 = por %p98, %p99
    %p101 = scmp.ne.s32.totalorder %s90, %s91
    %p102 = scmp.eq.s32.totalorder %s14, 0
    %p103 = por %p101, %p102
    %p104 = scmp.ne.s32.totalorder %s90, %s91
    %p105 = scmp.eq.s32.totalorder %s15, 1
    %p106 = por %p104, %p105
    %p108 = scmp.ne.s32.totalorder %s91, %s107
    %p109 = scmp.eq.s32.totalorder %s15, 0
    %p110 = por %p108, %p109
    %p111 = scmp.le.s32.totalorder 1, %s9
    %p112 = scmp.lt.s32.totalorder %s9, 3
    %p113 = pnand %p111, %p112
    %p114 = pneg %p113
    // Predicated region
    $region9: #{forward.27} parent=5 // pred_check
      _
    $region10: #{forward.27} parent=5 // pred_check_branch
      %116 = sbr.rel (%p113) target = $region12
    $region11: #{forward.27} parent=5 // pred_region
      %s117 = ssub.s32 %s9, 1
      // Predicated region
      $region13: #{forward.27} parent=11 // pred_check
        %p118 = pneg %p56
      $region14: #{forward.27} parent=11 // pred_check_branch
        %120 = sbr.rel (%p118) target = $region16
      $region15: #{forward.27} parent=11 // pred_region
        _
      $region16: #{forward.27} parent=11 // pred_fallthru
        _
      // Predicated region
      $region17: #{forward.27} parent=11 // pred_check
        %p121 = pneg %p77
      $region18: #{forward.27} parent=11 // pred_check_branch
        %123 = sbr.rel (%p121) target = $region20
      $region19: #{forward.27} parent=11 // pred_region
        _
      $region20: #{forward.27} parent=11 // pred_fallthru
        _
    $region12: #{forward.27} parent=5 // pred_fallthru
      _
    %p124 = scmp.lt.s32.totalorder %s9, 2
    // Predicated region
    $region21: #{forward.27} parent=5 // pred_check
      %p125 = pneg %p124
    $region22: #{forward.27} parent=5 // pred_check_branch
      %127 = sbr.rel (%p125) target = $region24
    $region23: #{forward.27} parent=5 // pred_region
      // Predicated region
      $region25: #{forward.27} parent=23 // pred_check
        %p128 = pneg %p29
      $region26: #{forward.27} parent=23 // pred_check_branch
        %130 = sbr.rel (%p128) target = $region28
      $region27: #{forward.27} parent=23 // pred_region
        %p131 = scmp.lt.s32.totalorder %s9, 1
        %s132 = scalar_select %p131, %s9, 1
        %s133 = smul.addr %s132, 8
        %s134 = smul.addr %s133, 8
        %s135 = scalar_lea.vmem %s0, %s134
      $region28: #{forward.27} parent=23 // pred_fallthru
        _
    $region24: #{forward.27} parent=5 // pred_fallthru
      _
    %p136 = scmp.le.s32.totalorder 1, %s9
    %p137 = scmp.lt.s32.totalorder %s9, 3
    %p138 = pnand %p136, %p137
    %p139 = pneg %p138
    // Predicated region
    $region29: #{forward.27} parent=5 // pred_check
      _
    $region30: #{forward.27} parent=5 // pred_check_branch
      %141 = sbr.rel (%p138) target = $region32
    $region31: #{forward.27} parent=5 // pred_region
      %s142 = ssub.s32 %s9, 1
      %p143 = scmp.lt.s32.totalorder %s14, 1
      %s144 = scalar_select %p143, %s14, 1
      %s145 = smul.addr %s144, 8
      %s146 = smul.addr %s145, 8
      %s147 = scalar_lea.vmem %s0, %s146
      %p148 = pneg %p35
      %p149 = pneg %p32
      %p150 = pneg %p56
      %p151 = pneg %p53
      %p152 = pneg %p77
      %p153 = pneg %p74
      %p154 = pneg %p103
      %p155 = pneg %p100
      %p156 = scmp.lt.s32.totalorder %s14, 1
      %s157 = scalar_select %p156, %s14, 1
      %s158 = smul.addr %s157, 8
      %s159 = smul.addr %s158, 8
      %s160 = scalar_lea.vmem %s3, %s159
      %p161 = scmp.lt.s32.totalorder %s14, 1
      %s162 = scalar_select %p161, %s14, 1
      %s163 = smul.addr %s162, 8
      %s164 = smul.addr %s163, 8
      %s165 = scalar_lea.vmem %s0, %s164
      %p166 = scmp.lt.s32.totalorder %s14, 1
      %s167 = scalar_select %p166, %s14, 1
      %s168 = smul.addr %s167, 8
      %s169 = smul.addr %s168, 8
      %s170 = scalar_lea.vmem %s3, %s169
      %v171 = vld [vmem:[%s165] sm:$0xff]
      %v172 = vld [vmem:[%s165 + $0x8] sm:$0xff]
      %v173 = vld [vmem:[%s165 + $0x10] sm:$0xff]
      %v174 = vld [vmem:[%s165 + $0x18] sm:$0xff]
      %v175 = vld [vmem:[%s165 + $0x20] sm:$0xff]
      %v176 = vld [vmem:[%s165 + $0x28] sm:$0xff]
      %v177 = vld [vmem:[%s165 + $0x30] sm:$0xff]
      %v178 = vld [vmem:[%s165 + $0x38] sm:$0xff]
      %v179 = vld [vmem:[%s1] sm:$0xff]
      %v180 = vld [vmem:[%s1 + $0x8] sm:$0xff]
      %v181 = vld [vmem:[%s1 + $0x10] sm:$0xff]
      %v182 = vld [vmem:[%s1 + $0x18] sm:$0xff]
      %v183 = vld [vmem:[%s1 + $0x20] sm:$0xff]
      %v184 = vld [vmem:[%s1 + $0x28] sm:$0xff]
      %v185 = vld [vmem:[%s1 + $0x30] sm:$0xff]
      %v186 = vld [vmem:[%s1 + $0x38] sm:$0xff]
      %188 = vset.pattern.permute.xlu0 0
      %189 = vperm.xlu0 %188, %v179
      %v190 = vpop.permute.xlu0 %189
      %193 = vset.pattern.permute.xlu0 0
      %194 = vperm.xlu0 %193, %v180
      %v195 = vpop.permute.xlu0 %194
      %198 = vset.pattern.permute.xlu0 0
      %199 = vperm.xlu0 %198, %v181
      %v200 = vpop.permute.xlu0 %199
      %203 = vset.pattern.permute.xlu0 0
      %204 = vperm.xlu0 %203, %v182
      %v205 = vpop.permute.xlu0 %204
      %208 = vset.pattern.permute.xlu0 0
      %209 = vperm.xlu0 %208, %v183
      %v210 = vpop.permute.xlu0 %209
      %213 = vset.pattern.permute.xlu0 0
      %214 = vperm.xlu0 %213, %v184
      %v215 = vpop.permute.xlu0 %214
      %218 = vset.pattern.permute.xlu0 0
      %219 = vperm.xlu0 %218, %v185
      %v220 = vpop.permute.xlu0 %219
      %223 = vset.pattern.permute.xlu0 0
      %224 = vperm.xlu0 %223, %v186
      %v225 = vpop.permute.xlu0 %224
      %v227 = vmul.f32 %v171, %v190
      %v228 = vmul.f32 %v172, %v195
      %v229 = vmul.f32 %v173, %v200
      %v230 = vmul.f32 %v174, %v205
      %v231 = vmul.f32 %v175, %v210
      %v232 = vmul.f32 %v176, %v215
      %v233 = vmul.f32 %v177, %v220
      %v234 = vmul.f32 %v178, %v225
      %v235 = vld [vmem:[%s2] sm:$0xff]
      %v236 = vld [vmem:[%s2 + $0x8] sm:$0xff]
      %v237 = vld [vmem:[%s2 + $0x10] sm:$0xff]
      %v238 = vld [vmem:[%s2 + $0x18] sm:$0xff]
      %v239 = vld [vmem:[%s2 + $0x20] sm:$0xff]
      %v240 = vld [vmem:[%s2 + $0x28] sm:$0xff]
      %v241 = vld [vmem:[%s2 + $0x30] sm:$0xff]
      %v242 = vld [vmem:[%s2 + $0x38] sm:$0xff]
      %244 = vset.pattern.permute.xlu0 0
      %245 = vperm.xlu0 %244, %v235
      %v246 = vpop.permute.xlu0 %245
      %249 = vset.pattern.permute.xlu0 0
      %250 = vperm.xlu0 %249, %v236
      %v251 = vpop.permute.xlu0 %250
      %254 = vset.pattern.permute.xlu0 0
      %255 = vperm.xlu0 %254, %v237
      %v256 = vpop.permute.xlu0 %255
      %259 = vset.pattern.permute.xlu0 0
      %260 = vperm.xlu0 %259, %v238
      %v261 = vpop.permute.xlu0 %260
      %264 = vset.pattern.permute.xlu0 0
      %265 = vperm.xlu0 %264, %v239
      %v266 = vpop.permute.xlu0 %265
      %269 = vset.pattern.permute.xlu0 0
      %270 = vperm.xlu0 %269, %v240
      %v271 = vpop.permute.xlu0 %270
      %274 = vset.pattern.permute.xlu0 0
      %275 = vperm.xlu0 %274, %v241
      %v276 = vpop.permute.xlu0 %275
      %279 = vset.pattern.permute.xlu0 0
      %280 = vperm.xlu0 %279, %v242
      %v281 = vpop.permute.xlu0 %280
      %v283 = vadd.f32 %v227, %v246
      %v284 = vadd.f32 %v228, %v251
      %v285 = vadd.f32 %v229, %v256
      %v286 = vadd.f32 %v230, %v261
      %v287 = vadd.f32 %v231, %v266
      %v288 = vadd.f32 %v232, %v271
      %v289 = vadd.f32 %v233, %v276
      %v290 = vadd.f32 %v234, %v281
      %v291 = vmax.f32 %v283, 0.0
      %v292 = vmax.f32 %v284, 0.0
      %v293 = vmax.f32 %v285, 0.0
      %v294 = vmax.f32 %v286, 0.0
      %v295 = vmax.f32 %v287, 0.0
      %v296 = vmax.f32 %v288, 0.0
      %v297 = vmax.f32 %v289, 0.0
      %v298 = vmax.f32 %v290, 0.0
      %vm299 = vcmask 523264
      %300 = vst.msk [vmem:[%s170] sm:$0xff] %vm299, %v291
      %301 = vst.msk [vmem:[%s170 + $0x8] sm:$0xff] %vm299, %v292
      %302 = vst.msk [vmem:[%s170 + $0x10] sm:$0xff] %vm299, %v293
      %303 = vst.msk [vmem:[%s170 + $0x18] sm:$0xff] %vm299, %v294
      %304 = vst.msk [vmem:[%s170 + $0x20] sm:$0xff] %vm299, %v295
      %305 = vst.msk [vmem:[%s170 + $0x28] sm:$0xff] %vm299, %v296
      %306 = vst.msk [vmem:[%s170 + $0x30] sm:$0xff] %vm299, %v297
      %307 = vst.msk [vmem:[%s170 + $0x38] sm:$0xff] %vm299, %v298
      %p308 = scmp.lt.s32.totalorder %s14, 1
      %s309 = scalar_select %p308, %s14, 1
      %s310 = smul.addr %s309, 8
      %s311 = smul.addr %s310, 8
      %s312 = scalar_lea.vmem %s3, %s311
      // Predicated region
      $region33: #{forward.27} parent=31 // pred_check
        %p313 = pneg %p100
      $region34: #{forward.27} parent=31 // pred_check_branch
        %315 = sbr.rel (%p313) target = $region36
      $region35: #{forward.27} parent=31 // pred_region
        _
      $region36: #{forward.27} parent=31 // pred_fallthru
        _
    $region32: #{forward.27} parent=5 // pred_fallthru
      _
    %p316 = scmp.le.s32.totalorder 2, %s9
    // Predicated region
    $region37: #{forward.27} parent=5 // pred_check
      %p317 = pneg %p316
    $region38: #{forward.27} parent=5 // pred_check_branch
      %319 = sbr.rel (%p317) target = $region40
    $region39: #{forward.27} parent=5 // pred_region
      %s320 = ssub.s32 %s9, 2
      // Predicated region
      $region41: #{forward.27} parent=39 // pred_check
        %p321 = pneg %p106
      $region42: #{forward.27} parent=39 // pred_check_branch
        %323 = sbr.rel (%p321) target = $region44
      $region43: #{forward.27} parent=39 // pred_region
        %p324 = scmp.lt.s32.totalorder %s15, 1
        %s325 = scalar_select %p324, %s15, 1
        %s326 = smul.addr %s325, 8
        %s327 = smul.addr %s326, 8
        %s328 = scalar_lea.vmem %s3, %s327
      $region44: #{forward.27} parent=39 // pred_fallthru
        _
    $region40: #{forward.27} parent=5 // pred_fallthru
      _
  $region6: #{forward.27} parent=0 // loop_footer
    %s13 = sadd.s32 1, %s9
  $region7: #{forward.27} parent=0 // loop_footer_branch
    %8 = sbr.rel target = $region3
  $region8: #{forward.27} parent=0 // loop_exit
    _

// kernel: forward.26
$region0: #{forward.26}
  #allocation0 [shape = 'u32[]', space=smem, size = 0x4, offset = 0x4, fixed_abs, tag = 'smem constant byte address 0x4 - core index']
  #allocation1 [shape = 'u32[72,128]{1,0:T(1,128)}', space=vmem, size = 0x9000, scoped, tag = 'internal scratch']
  %s0 = inlined_call_operand.vmem [shape: f32[2,32,65], index: 0, kind: input, shape index: {}]
  %s1 = inlined_call_operand.vmem [shape: f32[2,32,65], index: 1, kind: input, shape index: {}]
  %s2 = inlined_call_operand.vmem [shape: f32[3,64,32], index: 2, kind: input, shape index: {}]
  %s3 = inlined_call_operand.vmem [shape: f32[2,64,64], index: 3, kind: output, shape index: {0}]
  %s4 = inlined_call_operand.vmem [shape: f32[2,64,2], index: 4, kind: output, shape index: {1}]
  %5 = xla_tuple %s3, %s4
  %s6 = sld [smem:[#allocation0]]
  $region53: #{forward.26} parent=0
    _
  %s8 = ssub.s32 1, %s6
  %s9 = scalar_select 0, %s8, %s6
  loop: start=0, step=1, limit=4
  $region2: #{forward.26} parent=0 // loop_pre_header
    _
  $region3: #{forward.26} parent=0 // loop_header
    %s11 = sphi 0, %s15
    %p12 = scmp.ge.s32.totalorder %s11, 4
    %s21 = sphi 0, %s23
    %s24 = sphi 0, %s21
    %s25 = sphi 0, %s24
    %s41 = sphi 0, %s25
    %s47 = sphi 0, %s49
    %s50 = sphi 0, %s47
    %s51 = sphi 0, %s50
    %s67 = sphi 0, %s51
    %s71 = sphi 0, %s71
    %s73 = sphi 0, %s71
    %s74 = sphi 0, %s73
    %s88 = sphi 0, %s74
    %s94 = sphi 0, %s96
    %s97 = sphi 0, %s94
    %s98 = sphi 0, %s97
    %s114 = sphi 0, %s98
    %s120 = sphi 0, %s122
    %s123 = sphi 0, %s120
    %s124 = sphi 0, %s123
    %s140 = sphi 0, %s124
  $region4: #{forward.26} parent=0 // loop_header_branch
    %14 = sbr.rel (%p12) target = $region8
  $region5: #{forward.26} parent=0 // loop_body
    %s16 = ssub.s32 %s11, 1
    %s17 = ssub.s32 %s11, 2
    %s18 = sadd.s32 %s11, 1
    %s19 = ssub.s32 %s11, %s18
    %p20 = scmp.eq.s32.totalorder %s19, 0
    %s22 = sadd.s32 %s21, 1
    %s23 = scalar_select %p20, %s21, %s22
    %p26 = pneg %p20
    %p27 = scmp.eq.s32.totalorder %s11, 1
    %p28 = por %p26, %p27
    %p29 = scmp.ne.s32.totalorder %s21, %s24
    %p30 = scmp.eq.s32.totalorder %s11, 0
    %p31 = por %p29, %p30
    %p32 = scmp.ne.s32.totalorder %s21, %s24
    %p33 = scmp.eq.s32.totalorder %s16, 1
    %p34 = por %p32, %p33
    %p35 = scmp.ne.s32.totalorder %s24, %s25
    %p36 = scmp.eq.s32.totalorder %s16, 0
    %p37 = por %p35, %p36
    %p38 = scmp.ne.s32.totalorder %s24, %s25
    %p39 = scmp.eq.s32.totalorder %s17, 1
    %p40 = por %p38, %p39
    %p42 = scmp.ne.s32.totalorder %s25, %s41
    %p43 = scmp.eq.s32.totalorder %s17, 0
    %p44 = por %p42, %p43
    %s45 = ssub.s32 %s11, %s18
    %p46 = scmp.eq.s32.totalorder %s45, 0
    %s48 = sadd.s32 %s47, 1
    %s49 = scalar_select %p46, %s47, %s48
    %p52 = pneg %p46
    %p53 = scmp.eq.s32.totalorder %s11, 1
    %p54 = por %p52, %p53
    %p55 = scmp.ne.s32.totalorder %s47, %s50
    %p56 = scmp.eq.s32.totalorder %s11, 0
    %p57 = por %p55, %p56
    %p58 = scmp.ne.s32.totalorder %s47, %s50
    %p59 = scmp.eq.s32.totalorder %s16, 1
    %p60 = por %p58, %p59
    %p61 = scmp.ne.s32.totalorder %s50, %s51
    %p62 = scmp.eq.s32.totalorder %s16, 0
    %p63 = por %p61, %p62
    %p64 = scmp.ne.s32.totalorder %s50, %s51
    %p65 = scmp.eq.s32.totalorder %s17, 1
    %p66 = por %p64, %p65
    %p68 = scmp.ne.s32.totalorder %s51, %s67
    %p69 = scmp.eq.s32.totalorder %s17, 0
    %p70 = por %p68, %p69
    %s72 = sadd.s32 %s71, 1
    %p75 = scmp.eq.s32.totalorder %s11, 1
    %p76 = scmp.ne.s32.totalorder %s71, %s73
    %p77 = scmp.eq.s32.totalorder %s11, 0
    %p78 = por %p76, %p77
    %p79 = scmp.ne.s32.totalorder %s71, %s73
    %p80 = scmp.eq.s32.totalorder %s16, 1
    %p81 = por %p79, %p80
    %p82 = scmp.ne.s32.totalorder %s73, %s74
    %p83 = scmp.eq.s32.totalorder %s16, 0
    %p84 = por %p82, %p83
    %p85 = scmp.ne.s32.totalorder %s73, %s74
    %p86 = scmp.eq.s32.totalorder %s17, 1
    %p87 = por %p85, %p86
    %p89 = scmp.ne.s32.totalorder %s74, %s88
    %p90 = scmp.eq.s32.totalorder %s17, 0
    %p91 = por %p89, %p90
    %s92 = ssub.s32 %s11, %s18
    %p93 = scmp.eq.s32.totalorder %s92, 0
    %s95 = sadd.s32 %s94, 1
    %s96 = scalar_select %p93, %s94, %s95
    %p99 = pneg %p93
    %p100 = scmp.eq.s32.totalorder %s11, 1
    %p101 = por %p99, %p100
    %p102 = scmp.ne.s32.totalorder %s94, %s97
    %p103 = scmp.eq.s32.totalorder %s11, 0
    %p104 = por %p102, %p103
    %p105 = scmp.ne.s32.totalorder %s94, %s97
    %p106 = scmp.eq.s32.totalorder %s16, 1
    %p107 = por %p105, %p106
    %p108 = scmp.ne.s32.totalorder %s97, %s98
    %p109 = scmp.eq.s32.totalorder %s16, 0
    %p110 = por %p108, %p109
    %p111 = scmp.ne.s32.totalorder %s97, %s98
    %p112 = scmp.eq.s32.totalorder %s17, 1
    %p113 = por %p111, %p112
    %p115 = scmp.ne.s32.totalorder %s98, %s114
    %p116 = scmp.eq.s32.totalorder %s17, 0
    %p117 = por %p115, %p116
    %s118 = ssub.s32 %s11, %s18
    %p119 = scmp.eq.s32.totalorder %s118, 0
    %s121 = sadd.s32 %s120, 1
    %s122 = scalar_select %p119, %s120, %s121
    %p125 = pneg %p119
    %p126 = scmp.eq.s32.totalorder %s11, 1
    %p127 = por %p125, %p126
    %p128 = scmp.ne.s32.totalorder %s120, %s123
    %p129 = scmp.eq.s32.totalorder %s11, 0
    %p130 = por %p128, %p129
    %p131 = scmp.ne.s32.totalorder %s120, %s123
    %p132 = scmp.eq.s32.totalorder %s16, 1
    %p133 = por %p131, %p132
    %p134 = scmp.ne.s32.totalorder %s123, %s124
    %p135 = scmp.eq.s32.totalorder %s16, 0
    %p136 = por %p134, %p135
    %p137 = scmp.ne.s32.totalorder %s123, %s124
    %p138 = scmp.eq.s32.totalorder %s17, 1
    %p139 = por %p137, %p138
    %p141 = scmp.ne.s32.totalorder %s124, %s140
    %p142 = scmp.eq.s32.totalorder %s17, 0
    %p143 = por %p141, %p142
    %p144 = scmp.le.s32.totalorder 1, %s11
    %p145 = scmp.lt.s32.totalorder %s11, 3
    %p146 = pnand %p144, %p145
    %p147 = pneg %p146
    // Predicated region
    $region9: #{forward.26} parent=5 // pred_check
      _
    $region10: #{forward.26} parent=5 // pred_check_branch
      %149 = sbr.rel (%p146) target = $region12
    $region11: #{forward.26} parent=5 // pred_region
      %s150 = ssub.s32 %s11, 1
      // Predicated region
      $region13: #{forward.26} parent=11 // pred_check
        %p151 = pneg %p84
      $region14: #{forward.26} parent=11 // pred_check_branch
        %153 = sbr.rel (%p151) target = $region16
      $region15: #{forward.26} parent=11 // pred_region
        _
      $region16: #{forward.26} parent=11 // pred_fallthru
        _
    $region12: #{forward.26} parent=5 // pred_fallthru
      _
    %p154 = scmp.lt.s32.totalorder %s11, 2
    // Predicated region
    $region17: #{forward.26} parent=5 // pred_check
      %p155 = pneg %p154
    $region18: #{forward.26} parent=5 // pred_check_branch
      %157 = sbr.rel (%p155) target = $region20
    $region19: #{forward.26} parent=5 // pred_region
      // Predicated region
      $region21: #{forward.26} parent=19 // pred_check
        %p158 = pneg %p31
      $region22: #{forward.26} parent=19 // pred_check_branch
        %160 = sbr.rel (%p158) target = $region24
      $region23: #{forward.26} parent=19 // pred_region
        %p161 = scmp.lt.s32.totalorder %s11, 1
        %s162 = scalar_select %p161, %s11, 1
        %s163 = smul.addr %s162, 4
        %s164 = smul.addr %s163, 8
        %s165 = scalar_lea.vmem %s0, %s164
      $region24: #{forward.26} parent=19 // pred_fallthru
        _
      // Predicated region
      $region25: #{forward.26} parent=19 // pred_check
        %p166 = pneg %p57
      $region26: #{forward.26} parent=19 // pred_check_branch
        %168 = sbr.rel (%p166) target = $region28
      $region27: #{forward.26} parent=19 // pred_region
        %p169 = scmp.lt.s32.totalorder %s11, 1
        %s170 = scalar_select %p169, %s11, 1
        %s171 = smul.addr %s170, 4
        %s172 = smul.addr %s171, 8
        %s173 = scalar_lea.vmem %s1, %s172
      $region28: #{forward.26} parent=19 // pred_fallthru
        _
    $region20: #{forward.26} parent=5 // pred_fallthru
      _
    %p174 = scmp.le.s32.totalorder 1, %s11
    %p175 = scmp.lt.s32.totalorder %s11, 3
    %p176 = pnand %p174, %p175
    %p177 = pneg %p176
    // Predicated region
    $region29: #{forward.26} parent=5 // pred_check
      _
    $region30: #{forward.26} parent=5 // pred_check_branch
      %179 = sbr.rel (%p176) target = $region32
    $region31: #{forward.26} parent=5 // pred_region
      %s180 = ssub.s32 %s11, 1
      %p181 = scmp.lt.s32.totalorder %s16, 1
      %s182 = scalar_select %p181, %s16, 1
      %s183 = smul.addr %s182, 4
      %s184 = smul.addr %s183, 8
      %s185 = scalar_lea.vmem %s0, %s184
      %p186 = pneg %p37
      %p187 = pneg %p34
      %p188 = scmp.lt.s32.totalorder %s16, 1
      %s189 = scalar_select %p188, %s16, 1
      %s190 = smul.addr %s189, 4
      %s191 = smul.addr %s190, 8
      %s192 = scalar_lea.vmem %s1, %s191
      %p193 = pneg %p63
      %p194 = pneg %p60
      %p195 = pneg %p84
      %p196 = pneg %p81
      %p197 = pneg %p110
      %p198 = pneg %p107
      %p199 = scmp.lt.s32.totalorder %s16, 1
      %s200 = scalar_select %p199, %s16, 1
      %s201 = smul.addr %s200, 8
      %s202 = smul.addr %s201, 8
      %s203 = scalar_lea.vmem %s3, %s202
      %p204 = pneg %p136
      %p205 = pneg %p133
      %p206 = scmp.lt.s32.totalorder %s16, 1
      %s207 = scalar_select %p206, %s16, 1
      %s208 = smul.addr %s207, 8
      %s209 = smul.addr %s208, 8
      %s210 = scalar_lea.vmem %s4, %s209
      %p211 = scmp.lt.s32.totalorder %s16, 1
      %s212 = scalar_select %p211, %s16, 1
      %s213 = smul.addr %s212, 4
      %s214 = smul.addr %s213, 8
      %s215 = scalar_lea.vmem %s0, %s214
      %p216 = scmp.lt.s32.totalorder %s16, 1
      %s217 = scalar_select %p216, %s16, 1
      %s218 = smul.addr %s217, 4
      %s219 = smul.addr %s218, 8
      %s220 = scalar_lea.vmem %s1, %s219
      %p221 = scmp.lt.s32.totalorder %s16, 1
      %s222 = scalar_select %p221, %s16, 1
      %s223 = smul.addr %s222, 8
      %s224 = smul.addr %s223, 8
      %s225 = scalar_lea.vmem %s3, %s224
      %p226 = scmp.lt.s32.totalorder %s16, 1
      %s227 = scalar_select %p226, %s16, 1
      %s228 = smul.addr %s227, 8
      %s229 = smul.addr %s228, 8
      %s230 = scalar_lea.vmem %s4, %s229
      %v232 = vld [vmem:[%s215] sm:$0xff]
      %v233 = vld [vmem:[%s215 + $0x8] sm:$0xff]
      %v234 = vld [vmem:[%s215 + $0x10] sm:$0xff]
      %v235 = vld [vmem:[%s215 + $0x18] sm:$0xff]
      %v236 = vpack.c.bf16 %v233, %v232
      %v237 = vpack.c.bf16 %v235, %v234
      %v238 = vld [vmem:[%s2] sm:$0xff]
      %v239 = vld [vmem:[%s2 + $0x8] sm:$0xff]
      %v240 = vld [vmem:[%s2 + $0x10] sm:$0xff]
      %v241 = vld [vmem:[%s2 + $0x18] sm:$0xff]
      %v242 = vld [vmem:[%s2 + $0x20] sm:$0xff]
      %v243 = vld [vmem:[%s2 + $0x28] sm:$0xff]
      %v244 = vld [vmem:[%s2 + $0x30] sm:$0xff]
      %v245 = vld [vmem:[%s2 + $0x38] sm:$0xff]
      %v246 = vpack.c.bf16 %v239, %v238
      %v247 = vpack.c.bf16 %v241, %v240
      %v248 = vpack.c.bf16 %v243, %v242
      %v249 = vpack.c.bf16 %v245, %v244
      %v250 = vld [vmem:[%s220] sm:$0xff]
      %v251 = vld [vmem:[%s220 + $0x8] sm:$0xff]
      %v252 = vld [vmem:[%s220 + $0x10] sm:$0xff]
      %v253 = vld [vmem:[%s220 + $0x18] sm:$0xff]
      %v254 = vpack.c.bf16 %v251, %v250
      %v255 = vpack.c.bf16 %v253, %v252
      %s256 = scalar_lea.vmem %s2, 64
      %v257 = vld [vmem:[%s256] sm:$0xff]
      %v258 = vld [vmem:[%s256 + $0x8] sm:$0xff]
      %v259 = vld [vmem:[%s256 + $0x10] sm:$0xff]
      %v260 = vld [vmem:[%s256 + $0x18] sm:$0xff]
      %v261 = vld [vmem:[%s256 + $0x20] sm:$0xff]
      %v262 = vld [vmem:[%s256 + $0x28] sm:$0xff]
      %v263 = vld [vmem:[%s256 + $0x30] sm:$0xff]
      %v264 = vld [vmem:[%s256 + $0x38] sm:$0xff]
      %v265 = vpack.c.bf16 %v258, %v257
      %v266 = vpack.c.bf16 %v260, %v259
      %v267 = vpack.c.bf16 %v262, %v261
      %v268 = vpack.c.bf16 %v264, %v263
      %vm269 = vcmask 261120
      %v271 = vsel %vm269, %v265, 0
      %v274 = vsel %vm269, %v266, 0
      %v277 = vsel %vm269, %v267, 0
      %v280 = vsel %vm269, %v268, 0
      %282 = vmatpush.bf16.msra.mxu0 0
      %283 = vmatpush.bf16.msra.mxu0 0
      %284 = vmatpush.bf16.msra.mxu0 0
      %285 = vmatpush.bf16.msra.mxu0 0
      %286 = vmatpush.bf16.msra.mxu0 0
      %287 = vmatpush.bf16.msra.mxu0 0
      %288 = vmatpush.bf16.msra.mxu0 %v255
      %289 = vmatpush.bf16.msra.mxu0 %v254
      %290 = vmatmul.bf16.gmra.mxu0 %v271
      %v291 = vpop.f32.mrf.mxu0
      %v292 = vadd.f32 0.0, %v291
      %v293 = vpop.f32.mrf.mxu0
      %v294 = vadd.f32 0.0, %v293
      %295 = vmatmul.bf16.gmra.mxu0 %v274
      %v296 = vpop.f32.mrf.mxu0
      %v297 = vadd.f32 0.0, %v296
      %v298 = vpop.f32.mrf.mxu0
      %v299 = vadd.f32 0.0, %v298
      %300 = vmatmul.bf16.gmra.mxu0 %v277
      %v301 = vpop.f32.mrf.mxu0
      %v302 = vadd.f32 0.0, %v301
      %v303 = vpop.f32.mrf.mxu0
      %v304 = vadd.f32 0.0, %v303
      %305 = vmatmul.bf16.gmra.mxu0 %v280
      %v306 = vpop.f32.mrf.mxu0
      %v307 = vadd.f32 0.0, %v306
      %v308 = vpop.f32.mrf.mxu0
      %v309 = vadd.f32 0.0, %v308
      %310 = vdwg.mxu0
      %v312 = vsel %vm269, %v246, 0
      %v315 = vsel %vm269, %v247, 0
      %v318 = vsel %vm269, %v248, 0
      %v321 = vsel %vm269, %v249, 0
      %323 = vmatpush.bf16.msra.mxu0 0
      %324 = vmatpush.bf16.msra.mxu0 0
      %325 = vmatpush.bf16.msra.mxu0 0
      %326 = vmatpush.bf16.msra.mxu0 0
      %327 = vmatpush.bf16.msra.mxu0 0
      %328 = vmatpush.bf16.msra.mxu0 0
      %329 = vmatpush.bf16.msra.mxu0 %v237
      %330 = vmatpush.bf16.msra.mxu0 %v236
      %331 = vmatmul.bf16.gmra.mxu0 %v312
      %v332 = vpop.f32.mrf.mxu0
      %v333 = vadd.f32 %v292, %v332
      %v334 = vpop.f32.mrf.mxu0
      %v335 = vadd.f32 %v294, %v334
      %336 = vmatmul.bf16.gmra.mxu0 %v315
      %v337 = vpop.f32.mrf.mxu0
      %v338 = vadd.f32 %v297, %v337
      %v339 = vpop.f32.mrf.mxu0
      %v340 = vadd.f32 %v299, %v339
      %341 = vmatmul.bf16.gmra.mxu0 %v318
      %v342 = vpop.f32.mrf.mxu0
      %v343 = vadd.f32 %v302, %v342
      %v344 = vpop.f32.mrf.mxu0
      %v345 = vadd.f32 %v304, %v344
      %346 = vmatmul.bf16.gmra.mxu0 %v321
      %v347 = vpop.f32.mrf.mxu0
      %v348 = vadd.f32 %v307, %v347
      %v349 = vpop.f32.mrf.mxu0
      %v350 = vadd.f32 %v309, %v349
      %351 = vdwg.mxu0
      %s352 = scalar_lea.vmem %s2, 128
      %v353 = vld [vmem:[%s352] sm:$0xff]
      %v354 = vld [vmem:[%s352 + $0x8] sm:$0xff]
      %v355 = vld [vmem:[%s352 + $0x10] sm:$0xff]
      %v356 = vld [vmem:[%s352 + $0x18] sm:$0xff]
      %v357 = vld [vmem:[%s352 + $0x20] sm:$0xff]
      %v358 = vld [vmem:[%s352 + $0x28] sm:$0xff]
      %v359 = vld [vmem:[%s352 + $0x30] sm:$0xff]
      %v360 = vld [vmem:[%s352 + $0x38] sm:$0xff]
      %v361 = vpack.c.bf16 %v354, %v353
      %v362 = vpack.c.bf16 %v356, %v355
      %v363 = vpack.c.bf16 %v358, %v357
      %v364 = vpack.c.bf16 %v360, %v359
      %367 = vrot.lane.b32.xlu0 %v236, 127
      %v368 = vpop.permute.xlu0 %367
      %369 = vrot.lane.b32.xlu0 %v237, 127
      %v370 = vpop.permute.xlu0 %369
      %v374 = vsel %vm269, %v361, 0
      %v377 = vsel %vm269, %v362, 0
      %v380 = vsel %vm269, %v363, 0
      %v383 = vsel %vm269, %v364, 0
      %385 = vmatpush.bf16.msra.mxu0 0
      %386 = vmatpush.bf16.msra.mxu0 0
      %387 = vmatpush.bf16.msra.mxu0 0
      %388 = vmatpush.bf16.msra.mxu0 0
      %389 = vmatpush.bf16.msra.mxu0 0
      %390 = vmatpush.bf16.msra.mxu0 0
      %391 = vmatpush.bf16.msra.mxu0 %v370
      %392 = vmatpush.bf16.msra.mxu0 %v368
      %393 = vmatmul.bf16.gmra.mxu0 %v374
      %v394 = vpop.f32.mrf.mxu0
      %v395 = vadd.f32 0.0, %v394
      %v396 = vpop.f32.mrf.mxu0
      %v397 = vadd.f32 0.0, %v396
      %398 = vmatmul.bf16.gmra.mxu0 %v377
      %v399 = vpop.f32.mrf.mxu0
      %v400 = vadd.f32 0.0, %v399
      %v401 = vpop.f32.mrf.mxu0
      %v402 = vadd.f32 0.0, %v401
      %403 = vmatmul.bf16.gmra.mxu0 %v380
      %v404 = vpop.f32.mrf.mxu0
      %v405 = vadd.f32 0.0, %v404
      %v406 = vpop.f32.mrf.mxu0
      %v407 = vadd.f32 0.0, %v406
      %408 = vmatmul.bf16.gmra.mxu0 %v383
      %v409 = vpop.f32.mrf.mxu0
      %v410 = vadd.f32 0.0, %v409
      %v411 = vpop.f32.mrf.mxu0
      %v412 = vadd.f32 0.0, %v411
      %413 = vdwg.mxu0
      %v414 = vadd.f32 %v333, %v395
      %v415 = vadd.f32 %v335, %v397
      %v416 = vadd.f32 %v338, %v400
      %v417 = vadd.f32 %v340, %v402
      %v418 = vadd.f32 %v343, %v405
      %v419 = vadd.f32 %v345, %v407
      %v420 = vadd.f32 %v348, %v410
      %v421 = vadd.f32 %v350, %v412
      %vm422 = vcmask 523264
      %423 = vst.msk [vmem:[%s225] sm:$0xff] %vm422, %v414
      %424 = vst.msk [vmem:[%s225 + $0x8] sm:$0xff] %vm422, %v415
      %425 = vst.msk [vmem:[%s225 + $0x10] sm:$0xff] %vm422, %v416
      %426 = vst.msk [vmem:[%s225 + $0x18] sm:$0xff] %vm422, %v417
      %427 = vst.msk [vmem:[%s225 + $0x20] sm:$0xff] %vm422, %v418
      %428 = vst.msk [vmem:[%s225 + $0x28] sm:$0xff] %vm422, %v419
      %429 = vst.msk [vmem:[%s225 + $0x30] sm:$0xff] %vm422, %v420
      %430 = vst.msk [vmem:[%s225 + $0x38] sm:$0xff] %vm422, %v421
      %v431 = vsel %vm422, %v414, 0.0
      %432 = vadd.xlane.f32.xlu0 %v431
      %v433 = vpop.xlane.xlu0 %432
      %v434 = vsel %vm422, %v415, 0.0
      %435 = vadd.xlane.f32.xlu0 %v434
      %v436 = vpop.xlane.xlu0 %435
      %v437 = vsel %vm422, %v416, 0.0
      %438 = vadd.xlane.f32.xlu0 %v437
      %v439 = vpop.xlane.xlu0 %438
      %v440 = vsel %vm422, %v417, 0.0
      %441 = vadd.xlane.f32.xlu0 %v440
      %v442 = vpop.xlane.xlu0 %441
      %v443 = vsel %vm422, %v418, 0.0
      %444 = vadd.xlane.f32.xlu0 %v443
      %v445 = vpop.xlane.xlu0 %444
      %v446 = vsel %vm422, %v419, 0.0
      %447 = vadd.xlane.f32.xlu0 %v446
      %v448 = vpop.xlane.xlu0 %447
      %v449 = vsel %vm422, %v420, 0.0
      %450 = vadd.xlane.f32.xlu0 %v449
      %v451 = vpop.xlane.xlu0 %450
      %v452 = vsel %vm422, %v421, 0.0
      %453 = vadd.xlane.f32.xlu0 %v452
      %v454 = vpop.xlane.xlu0 %453
      %vm455 = vcmask 7168
      %456 = vst.msk [vmem:[%s230] sm:$0xff] %vm455, %v433
      %457 = vst.msk [vmem:[%s230 + $0x8] sm:$0xff] %vm455, %v436
      %458 = vst.msk [vmem:[%s230 + $0x10] sm:$0xff] %vm455, %v439
      %459 = vst.msk [vmem:[%s230 + $0x18] sm:$0xff] %vm455, %v442
      %460 = vst.msk [vmem:[%s230 + $0x20] sm:$0xff] %vm455, %v445
      %461 = vst.msk [vmem:[%s230 + $0x28] sm:$0xff] %vm455, %v448
      %462 = vst.msk [vmem:[%s230 + $0x30] sm:$0xff] %vm455, %v451
      %463 = vst.msk [vmem:[%s230 + $0x38] sm:$0xff] %vm455, %v454
      %v464 = vmul.f32 %v414, %v414
      %v465 = vmul.f32 %v415, %v415
      %v466 = vmul.f32 %v416, %v416
      %v467 = vmul.f32 %v417, %v417
      %v468 = vmul.f32 %v418, %v418
      %v469 = vmul.f32 %v419, %v419
      %v470 = vmul.f32 %v420, %v420
      %v471 = vmul.f32 %v421, %v421
      %v472 = vsel %vm422, %v464, 0.0
      %473 = vadd.xlane.f32.xlu0 %v472
      %v474 = vpop.xlane.xlu0 %473
      %v475 = vsel %vm422, %v465, 0.0
      %476 = vadd.xlane.f32.xlu0 %v475
      %v477 = vpop.xlane.xlu0 %476
      %v478 = vsel %vm422, %v466, 0.0
      %479 = vadd.xlane.f32.xlu0 %v478
      %v480 = vpop.xlane.xlu0 %479
      %v481 = vsel %vm422, %v467, 0.0
      %482 = vadd.xlane.f32.xlu0 %v481
      %v483 = vpop.xlane.xlu0 %482
      %v484 = vsel %vm422, %v468, 0.0
      %485 = vadd.xlane.f32.xlu0 %v484
      %v486 = vpop.xlane.xlu0 %485
      %v487 = vsel %vm422, %v469, 0.0
      %488 = vadd.xlane.f32.xlu0 %v487
      %v489 = vpop.xlane.xlu0 %488
      %v490 = vsel %vm422, %v470, 0.0
      %491 = vadd.xlane.f32.xlu0 %v490
      %v492 = vpop.xlane.xlu0 %491
      %v493 = vsel %vm422, %v471, 0.0
      %494 = vadd.xlane.f32.xlu0 %v493
      %v495 = vpop.xlane.xlu0 %494
      %vm496 = vcmask 15368
      %497 = vst.msk [vmem:[%s230] sm:$0xff] %vm496, %v474
      %498 = vst.msk [vmem:[%s230 + $0x8] sm:$0xff] %vm496, %v477
      %499 = vst.msk [vmem:[%s230 + $0x10] sm:$0xff] %vm496, %v480
      %500 = vst.msk [vmem:[%s230 + $0x18] sm:$0xff] %vm496, %v483
      %501 = vst.msk [vmem:[%s230 + $0x20] sm:$0xff] %vm496, %v486
      %502 = vst.msk [vmem:[%s230 + $0x28] sm:$0xff] %vm496, %v489
      %503 = vst.msk [vmem:[%s230 + $0x30] sm:$0xff] %vm496, %v492
      %504 = vst.msk [vmem:[%s230 + $0x38] sm:$0xff] %vm496, %v495
      %p505 = scmp.lt.s32.totalorder %s16, 1
      %s506 = scalar_select %p505, %s16, 1
      %s507 = smul.addr %s506, 8
      %s508 = smul.addr %s507, 8
      %s509 = scalar_lea.vmem %s3, %s508
      %p510 = scmp.lt.s32.totalorder %s16, 1
      %s511 = scalar_select %p510, %s16, 1
      %s512 = smul.addr %s511, 8
      %s513 = smul.addr %s512, 8
      %s514 = scalar_lea.vmem %s4, %s513
      // Predicated region
      $region33: #{forward.26} parent=31 // pred_check
        %p515 = pneg %p107
      $region34: #{forward.26} parent=31 // pred_check_branch
        %517 = sbr.rel (%p515) target = $region36
      $region35: #{forward.26} parent=31 // pred_region
        _
      $region36: #{forward.26} parent=31 // pred_fallthru
        _
      // Predicated region
      $region37: #{forward.26} parent=31 // pred_check
        %p518 = pneg %p133
      $region38: #{forward.26} parent=31 // pred_check_branch
        %520 = sbr.rel (%p518) target = $region40
      $region39: #{forward.26} parent=31 // pred_region
        _
      $region40: #{forward.26} parent=31 // pred_fallthru
        _
    $region32: #{forward.26} parent=5 // pred_fallthru
      _
    %p521 = scmp.le.s32.totalorder 2, %s11
    // Predicated region
    $region41: #{forward.26} parent=5 // pred_check
      %p522 = pneg %p521
    $region42: #{forward.26} parent=5 // pred_check_branch
      %524 = sbr.rel (%p522) target = $region44
    $region43: #{forward.26} parent=5 // pred_region
      %s525 = ssub.s32 %s11, 2
      // Predicated region
      $region45: #{forward.26} parent=43 // pred_check
        %p526 = pneg %p113
      $region46: #{forward.26} parent=43 // pred_check_branch
        %528 = sbr.rel (%p526) target = $region48
      $region47: #{forward.26} parent=43 // pred_region
        %p529 = scmp.lt.s32.totalorder %s17, 1
        %s530 = scalar_select %p529, %s17, 1
        %s531 = smul.addr %s530, 8
        %s532 = smul.addr %s531, 8
        %s533 = scalar_lea.vmem %s3, %s532
      $region48: #{forward.26} parent=43 // pred_fallthru
        _
      // Predicated region
      $region49: #{forward.26} parent=43 // pred_check
        %p534 = pneg %p139
      $region50: #{forward.26} parent=43 // pred_check_branch
        %536 = sbr.rel (%p534) target = $region52
      $region51: #{forward.26} parent=43 // pred_region
        %p537 = scmp.lt.s32.totalorder %s17, 1
        %s538 = scalar_select %p537, %s17, 1
        %s539 = smul.addr %s538, 8
        %s540 = smul.addr %s539, 8
        %s541 = scalar_lea.vmem %s4, %s540
      $region52: #{forward.26} parent=43 // pred_fallthru
        _
    $region44: #{forward.26} parent=5 // pred_fallthru
      _
  $region6: #{forward.26} parent=0 // loop_footer
    %s15 = sadd.s32 1, %s11
  $region7: #{forward.26} parent=0 // loop_footer_branch
    %10 = sbr.rel target = $region3
  $region8: #{forward.26} parent=0 // loop_exit
    _

// kernel: forward.28
$region0: #{forward.28}
  #allocation0 [shape = 'u32[]', space=smem, size = 0x4, offset = 0x4, fixed_abs, tag = 'smem constant byte address 0x4 - core index']
  #allocation1 [shape = 'u32[72,128]{1,0:T(1,128)}', space=vmem, size = 0x9000, scoped, tag = 'internal scratch']
  %s0 = inlined_call_operand.vmem [shape: f32[2,64,66], index: 0, kind: input, shape index: {}]
  %s1 = inlined_call_operand.hbm [shape: f32[3,64,64], index: 1, kind: input, shape index: {}]
  %s2 = inlined_call_operand.vmem [shape: f32[2,64,64], index: 2, kind: output, shape index: {0}]
  %s3 = inlined_call_operand.vmem [shape: f32[2,64,2], index: 3, kind: output, shape index: {1}]
  %4 = xla_tuple %s2, %s3
  %s5 = sld [smem:[#allocation0]]
  $region53: #{forward.28} parent=0
    _
  %s7 = ssub.s32 1, %s5
  %s8 = scalar_select 0, %s7, %s5
  $region1: #{forward.28} parent=0
    #allocation2 [shape = 'u8[98304]{0}', space=vmem, size = 0x18000, scoped, tag = 'input window, operand 1, single buffered']
    #allocation3 [shape = 's32[2]{0}', space=sflag, size = 0x8, scoped, tag = 'scoped memory for forward.28']
    %9 = vsyncpa [#allocation3], 0
    loop: start=0, step=1, limit=4
    $region2: #{forward.28} parent=1 // loop_pre_header
      _
    $region3: #{forward.28} parent=1 // loop_header
      %s11 = sphi 0, %s15
      %p12 = scmp.ge.s32.totalorder %s11, 4
      %s21 = sphi 0, %s23
      %s24 = sphi 0, %s21
      %s25 = sphi 0, %s24
      %s41 = sphi 0, %s25
      %s45 = sphi 0, %s45
      %s47 = sphi 0, %s45
      %s48 = sphi 0, %s47
      %s62 = sphi 0, %s48
      %s68 = sphi 0, %s70
      %s71 = sphi 0, %s68
      %s72 = sphi 0, %s71
      %s88 = sphi 0, %s72
      %s94 = sphi 0, %s96
      %s97 = sphi 0, %s94
      %s98 = sphi 0, %s97
      %s114 = sphi 0, %s98
    $region4: #{forward.28} parent=1 // loop_header_branch
      %14 = sbr.rel (%p12) target = $region8
    $region5: #{forward.28} parent=1 // loop_body
      %s16 = ssub.s32 %s11, 1
      %s17 = ssub.s32 %s11, 2
      %s18 = sadd.s32 %s11, 1
      %s19 = ssub.s32 %s11, %s18
      %p20 = scmp.eq.s32.totalorder %s19, 0
      %s22 = sadd.s32 %s21, 1
      %s23 = scalar_select %p20, %s21, %s22
      %p26 = pneg %p20
      %p27 = scmp.eq.s32.totalorder %s11, 1
      %p28 = por %p26, %p27
      %p29 = scmp.ne.s32.totalorder %s21, %s24
      %p30 = scmp.eq.s32.totalorder %s11, 0
      %p31 = por %p29, %p30
      %p32 = scmp.ne.s32.totalorder %s21, %s24
      %p33 = scmp.eq.s32.totalorder %s16, 1
      %p34 = por %p32, %p33
      %p35 = scmp.ne.s32.totalorder %s24, %s25
      %p36 = scmp.eq.s32.totalorder %s16, 0
      %p37 = por %p35, %p36
      %p38 = scmp.ne.s32.totalorder %s24, %s25
      %p39 = scmp.eq.s32.totalorder %s17, 1
      %p40 = por %p38, %p39
      %p42 = scmp.ne.s32.totalorder %s25, %s41
      %p43 = scmp.eq.s32.totalorder %s17, 0
      %p44 = por %p42, %p43
      %s46 = sadd.s32 %s45, 1
      %p49 = scmp.eq.s32.totalorder %s11, 1
      %p50 = scmp.ne.s32.totalorder %s45, %s47
      %p51 = scmp.eq.s32.totalorder %s11, 0
      %p52 = por %p50, %p51
      %p53 = scmp.ne.s32.totalorder %s45, %s47
      %p54 = scmp.eq.s32.totalorder %s16, 1
      %p55 = por %p53, %p54
      %p56 = scmp.ne.s32.totalorder %s47, %s48
      %p57 = scmp.eq.s32.totalorder %s16, 0
      %p58 = por %p56, %p57
      %p59 = scmp.ne.s32.totalorder %s47, %s48
      %p60 = scmp.eq.s32.totalorder %s17, 1
      %p61 = por %p59, %p60
      %p63 = scmp.ne.s32.totalorder %s48, %s62
      %p64 = scmp.eq.s32.totalorder %s17, 0
      %p65 = por %p63, %p64
      %s66 = ssub.s32 %s11, %s18
      %p67 = scmp.eq.s32.totalorder %s66, 0
      %s69 = sadd.s32 %s68, 1
      %s70 = scalar_select %p67, %s68, %s69
      %p73 = pneg %p67
      %p74 = scmp.eq.s32.totalorder %s11, 1
      %p75 = por %p73, %p74
      %p76 = scmp.ne.s32.totalorder %s68, %s71
      %p77 = scmp.eq.s32.totalorder %s11, 0
      %p78 = por %p76, %p77
      %p79 = scmp.ne.s32.totalorder %s68, %s71
      %p80 = scmp.eq.s32.totalorder %s16, 1
      %p81 = por %p79, %p80
      %p82 = scmp.ne.s32.totalorder %s71, %s72
      %p83 = scmp.eq.s32.totalorder %s16, 0
      %p84 = por %p82, %p83
      %p85 = scmp.ne.s32.totalorder %s71, %s72
      %p86 = scmp.eq.s32.totalorder %s17, 1
      %p87 = por %p85, %p86
      %p89 = scmp.ne.s32.totalorder %s72, %s88
      %p90 = scmp.eq.s32.totalorder %s17, 0
      %p91 = por %p89, %p90
      %s92 = ssub.s32 %s11, %s18
      %p93 = scmp.eq.s32.totalorder %s92, 0
      %s95 = sadd.s32 %s94, 1
      %s96 = scalar_select %p93, %s94, %s95
      %p99 = pneg %p93
      %p100 = scmp.eq.s32.totalorder %s11, 1
      %p101 = por %p99, %p100
      %p102 = scmp.ne.s32.totalorder %s94, %s97
      %p103 = scmp.eq.s32.totalorder %s11, 0
      %p104 = por %p102, %p103
      %p105 = scmp.ne.s32.totalorder %s94, %s97
      %p106 = scmp.eq.s32.totalorder %s16, 1
      %p107 = por %p105, %p106
      %p108 = scmp.ne.s32.totalorder %s97, %s98
      %p109 = scmp.eq.s32.totalorder %s16, 0
      %p110 = por %p108, %p109
      %p111 = scmp.ne.s32.totalorder %s97, %s98
      %p112 = scmp.eq.s32.totalorder %s17, 1
      %p113 = por %p111, %p112
      %p115 = scmp.ne.s32.totalorder %s98, %s114
      %p116 = scmp.eq.s32.totalorder %s17, 0
      %p117 = por %p115, %p116
      %p118 = scmp.le.s32.totalorder 1, %s11
      %p119 = scmp.lt.s32.totalorder %s11, 3
      %p120 = pnand %p118, %p119
      %p121 = pneg %p120
      // Predicated region
      $region9: #{forward.28} parent=5 // pred_check
        _
      $region10: #{forward.28} parent=5 // pred_check_branch
        %123 = sbr.rel (%p120) target = $region12
      $region11: #{forward.28} parent=5 // pred_region
        %s124 = ssub.s32 %s11, 1
        // Predicated region
        $region13: #{forward.28} parent=11 // pred_check
          %p125 = pneg %p58
        $region14: #{forward.28} parent=11 // pred_check_branch
          %127 = sbr.rel (%p125) target = $region16
        $region15: #{forward.28} parent=11 // pred_region
          %129 = vsyncadd [#allocation3], 0
          %s130 = sshll.u32 %s1, 4
          %s131 = int_to_ptr.hbm [resolvable:$true] %s130
          %s132 = sshll.u32 [#allocation2], 4
          %s133 = int_to_ptr.vmem [resolvable:$true] %s132
          %138 = dma.hbm_to_vmem [thread:$0]  %s131, 3072, %s133, [#allocation3], 128, 128, 8
        $region16: #{forward.28} parent=11 // pred_fallthru
          _
      $region12: #{forward.28} parent=5 // pred_fallthru
        _
      %p139 = scmp.lt.s32.totalorder %s11, 2
      // Predicated region
      $region17: #{forward.28} parent=5 // pred_check
        %p140 = pneg %p139
      $region18: #{forward.28} parent=5 // pred_check_branch
        %142 = sbr.rel (%p140) target = $region20
      $region19: #{forward.28} parent=5 // pred_region
        // Predicated region
        $region21: #{forward.28} parent=19 // pred_check
          %p143 = pneg %p31
        $region22: #{forward.28} parent=19 // pred_check_branch
          %145 = sbr.rel (%p143) target = $region24
        $region23: #{forward.28} parent=19 // pred_region
          %p146 = scmp.lt.s32.totalorder %s11, 1
          %s147 = scalar_select %p146, %s11, 1
          %s148 = smul.addr %s147, 8
          %s149 = smul.addr %s148, 8
          %s150 = scalar_lea.vmem %s0, %s149
        $region24: #{forward.28} parent=19 // pred_fallthru
          _
      $region20: #{forward.28} parent=5 // pred_fallthru
        _
      %p151 = scmp.le.s32.totalorder 1, %s11
      %p152 = scmp.lt.s32.totalorder %s11, 3
      %p153 = pnand %p151, %p152
      %p154 = pneg %p153
      // Predicated region
      $region25: #{forward.28} parent=5 // pred_check
        _
      $region26: #{forward.28} parent=5 // pred_check_branch
        %156 = sbr.rel (%p153) target = $region28
      $region27: #{forward.28} parent=5 // pred_region
        %s157 = ssub.s32 %s11, 1
        // Predicated region
        $region29: #{forward.28} parent=27 // pred_check
          %p158 = pneg %p58
        $region30: #{forward.28} parent=27 // pred_check_branch
          %160 = sbr.rel (%p158) target = $region32
        $region31: #{forward.28} parent=27 // pred_region
          %162 = dma.done [#allocation3], 3072
        $region32: #{forward.28} parent=27 // pred_fallthru
          _
        %p163 = scmp.lt.s32.totalorder %s16, 1
        %s164 = scalar_select %p163, %s16, 1
        %s165 = smul.addr %s164, 8
        %s166 = smul.addr %s165, 8
        %s167 = scalar_lea.vmem %s0, %s166
        %p168 = pneg %p37
        %p169 = pneg %p34
        %p170 = pneg %p58
        %p171 = pneg %p55
        %p172 = pneg %p84
        %p173 = pneg %p81
        %p174 = scmp.lt.s32.totalorder %s16, 1
        %s175 = scalar_select %p174, %s16, 1
        %s176 = smul.addr %s175, 8
        %s177 = smul.addr %s176, 8
        %s178 = scalar_lea.vmem %s2, %s177
        %p179 = pneg %p110
        %p180 = pneg %p107
        %p181 = scmp.lt.s32.totalorder %s16, 1
        %s182 = scalar_select %p181, %s16, 1
        %s183 = smul.addr %s182, 8
        %s184 = smul.addr %s183, 8
        %s185 = scalar_lea.vmem %s3, %s184
        %p186 = scmp.lt.s32.totalorder %s16, 1
        %s187 = scalar_select %p186, %s16, 1
        %s188 = smul.addr %s187, 8
        %s189 = smul.addr %s188, 8
        %s190 = scalar_lea.vmem %s0, %s189
        %p191 = scmp.lt.s32.totalorder %s16, 1
        %s192 = scalar_select %p191, %s16, 1
        %s193 = smul.addr %s192, 8
        %s194 = smul.addr %s193, 8
        %s195 = scalar_lea.vmem %s2, %s194
        %p196 = scmp.lt.s32.totalorder %s16, 1
        %s197 = scalar_select %p196, %s16, 1
        %s198 = smul.addr %s197, 8
        %s199 = smul.addr %s198, 8
        %s200 = scalar_lea.vmem %s3, %s199
        %v202 = vld [vmem:[%s190] sm:$0xff]
        %v203 = vld [vmem:[%s190 + $0x8] sm:$0xff]
        %v204 = vld [vmem:[%s190 + $0x10] sm:$0xff]
        %v205 = vld [vmem:[%s190 + $0x18] sm:$0xff]
        %v206 = vld [vmem:[%s190 + $0x20] sm:$0xff]
        %v207 = vld [vmem:[%s190 + $0x28] sm:$0xff]
        %v208 = vld [vmem:[%s190 + $0x30] sm:$0xff]
        %v209 = vld [vmem:[%s190 + $0x38] sm:$0xff]
        %v210 = vpack.c.bf16 %v203, %v202
        %v211 = vpack.c.bf16 %v205, %v204
        %v212 = vpack.c.bf16 %v207, %v206
        %v213 = vpack.c.bf16 %v209, %v208
        %v214 = vld [vmem:[#allocation2] sm:$0xff]
        %v215 = vld [vmem:[#allocation2 + $0x8] sm:$0xff]
        %v216 = vld [vmem:[#allocation2 + $0x10] sm:$0xff]
        %v217 = vld [vmem:[#allocation2 + $0x18] sm:$0xff]
        %v218 = vld [vmem:[#allocation2 + $0x20] sm:$0xff]
        %v219 = vld [vmem:[#allocation2 + $0x28] sm:$0xff]
        %v220 = vld [vmem:[#allocation2 + $0x30] sm:$0xff]
        %v221 = vld [vmem:[#allocation2 + $0x38] sm:$0xff]
        %v222 = vpack.c.bf16 %v215, %v214
        %v223 = vpack.c.bf16 %v217, %v216
        %v224 = vpack.c.bf16 %v219, %v218
        %v225 = vpack.c.bf16 %v221, %v220
        %s226 = scalar_lea.vmem [#allocation2], 64
        %v227 = vld [vmem:[%s226] sm:$0xff]
        %v228 = vld [vmem:[%s226 + $0x8] sm:$0xff]
        %v229 = vld [vmem:[%s226 + $0x10] sm:$0xff]
        %v230 = vld [vmem:[%s226 + $0x18] sm:$0xff]
        %v231 = vld [vmem:[%s226 + $0x20] sm:$0xff]
        %v232 = vld [vmem:[%s226 + $0x28] sm:$0xff]
        %v233 = vld [vmem:[%s226 + $0x30] sm:$0xff]
        %v234 = vld [vmem:[%s226 + $0x38] sm:$0xff]
        %v235 = vpack.c.bf16 %v228, %v227
        %v236 = vpack.c.bf16 %v230, %v229
        %v237 = vpack.c.bf16 %v232, %v231
        %v238 = vpack.c.bf16 %v234, %v233
        %243 = vrot.lane.b32.xlu0 %v210, 127
        %v244 = vpop.permute.xlu0 %243
        %245 = vrot.lane.b32.xlu0 %v211, 127
        %v246 = vpop.permute.xlu0 %245
        %247 = vrot.lane.b32.xlu0 %v212, 127
        %v248 = vpop.permute.xlu0 %247
        %249 = vrot.lane.b32.xlu0 %v213, 127
        %v250 = vpop.permute.xlu0 %249
        %vm255 = vcmask 523264
        %v257 = vsel %vm255, %v235, 0
        %v260 = vsel %vm255, %v236, 0
        %v263 = vsel %vm255, %v237, 0
        %v266 = vsel %vm255, %v238, 0
        %268 = vmatpush.bf16.msra.mxu0 0
        %269 = vmatpush.bf16.msra.mxu0 0
        %270 = vmatpush.bf16.msra.mxu0 0
        %271 = vmatpush.bf16.msra.mxu0 0
        %272 = vmatpush.bf16.msra.mxu0 %v250
        %273 = vmatpush.bf16.msra.mxu0 %v248
        %274 = vmatpush.bf16.msra.mxu0 %v246
        %275 = vmatpush.bf16.msra.mxu0 %v244
        %276 = vmatmul.bf16.gmra.mxu0 %v257
        %v277 = vpop.f32.mrf.mxu0
        %v278 = vadd.f32 0.0, %v277
        %v279 = vpop.f32.mrf.mxu0
        %v280 = vadd.f32 0.0, %v279
        %281 = vmatmul.bf16.gmra.mxu0 %v260
        %v282 = vpop.f32.mrf.mxu0
        %v283 = vadd.f32 0.0, %v282
        %v284 = vpop.f32.mrf.mxu0
        %v285 = vadd.f32 0.0, %v284
        %286 = vmatmul.bf16.gmra.mxu0 %v263
        %v287 = vpop.f32.mrf.mxu0
        %v288 = vadd.f32 0.0, %v287
        %v289 = vpop.f32.mrf.mxu0
        %v290 = vadd.f32 0.0, %v289
        %291 = vmatmul.bf16.gmra.mxu0 %v266
        %v292 = vpop.f32.mrf.mxu0
        %v293 = vadd.f32 0.0, %v292
        %v294 = vpop.f32.mrf.mxu0
        %v295 = vadd.f32 0.0, %v294
        %296 = vdwg.mxu0
        %v298 = vsel %vm255, %v222, 0
        %v301 = vsel %vm255, %v223, 0
        %v304 = vsel %vm255, %v224, 0
        %v307 = vsel %vm255, %v225, 0
        %309 = vmatpush.bf16.msra.mxu0 0
        %310 = vmatpush.bf16.msra.mxu0 0
        %311 = vmatpush.bf16.msra.mxu0 0
        %312 = vmatpush.bf16.msra.mxu0 0
        %313 = vmatpush.bf16.msra.mxu0 %v213
        %314 = vmatpush.bf16.msra.mxu0 %v212
        %315 = vmatpush.bf16.msra.mxu0 %v211
        %316 = vmatpush.bf16.msra.mxu0 %v210
        %317 = vmatmul.bf16.gmra.mxu0 %v298
        %v318 = vpop.f32.mrf.mxu0
        %v319 = vadd.f32 %v278, %v318
        %v320 = vpop.f32.mrf.mxu0
        %v321 = vadd.f32 %v280, %v320
        %322 = vmatmul.bf16.gmra.mxu0 %v301
        %v323 = vpop.f32.mrf.mxu0
        %v324 = vadd.f32 %v283, %v323
        %v325 = vpop.f32.mrf.mxu0
        %v326 = vadd.f32 %v285, %v325
        %327 = vmatmul.bf16.gmra.mxu0 %v304
        %v328 = vpop.f32.mrf.mxu0
        %v329 = vadd.f32 %v288, %v328
        %v330 = vpop.f32.mrf.mxu0
        %v331 = vadd.f32 %v290, %v330
        %332 = vmatmul.bf16.gmra.mxu0 %v307
        %v333 = vpop.f32.mrf.mxu0
        %v334 = vadd.f32 %v293, %v333
        %v335 = vpop.f32.mrf.mxu0
        %v336 = vadd.f32 %v295, %v335
        %337 = vdwg.mxu0
        %s338 = scalar_lea.vmem [#allocation2], 128
        %v339 = vld [vmem:[%s338] sm:$0xff]
        %v340 = vld [vmem:[%s338 + $0x8] sm:$0xff]
        %v341 = vld [vmem:[%s338 + $0x10] sm:$0xff]
        %v342 = vld [vmem:[%s338 + $0x18] sm:$0xff]
        %v343 = vld [vmem:[%s338 + $0x20] sm:$0xff]
        %v344 = vld [vmem:[%s338 + $0x28] sm:$0xff]
        %v345 = vld [vmem:[%s338 + $0x30] sm:$0xff]
        %v346 = vld [vmem:[%s338 + $0x38] sm:$0xff]
        %v347 = vpack.c.bf16 %v340, %v339
        %v348 = vpack.c.bf16 %v342, %v341
        %v349 = vpack.c.bf16 %v344, %v343
        %v350 = vpack.c.bf16 %v346, %v345
        %351 = vrot.lane.b32.xlu0 %v210, 126
        %v352 = vpop.permute.xlu0 %351
        %353 = vrot.lane.b32.xlu0 %v211, 126
        %v354 = vpop.permute.xlu0 %353
        %355 = vrot.lane.b32.xlu0 %v212, 126
        %v356 = vpop.permute.xlu0 %355
        %357 = vrot.lane.b32.xlu0 %v213, 126
        %v358 = vpop.permute.xlu0 %357
        %v364 = vsel %vm255, %v347, 0
        %v367 = vsel %vm255, %v348, 0
        %v370 = vsel %vm255, %v349, 0
        %v373 = vsel %vm255, %v350, 0
        %375 = vmatpush.bf16.msra.mxu0 0
        %376 = vmatpush.bf16.msra.mxu0 0
        %377 = vmatpush.bf16.msra.mxu0 0
        %378 = vmatpush.bf16.msra.mxu0 0
        %379 = vmatpush.bf16.msra.mxu0 %v358
        %380 = vmatpush.bf16.msra.mxu0 %v356
        %381 = vmatpush.bf16.msra.mxu0 %v354
        %382 = vmatpush.bf16.msra.mxu0 %v352
        %383 = vmatmul.bf16.gmra.mxu0 %v364
        %v384 = vpop.f32.mrf.mxu0
        %v385 = vadd.f32 0.0, %v384
        %v386 = vpop.f32.mrf.mxu0
        %v387 = vadd.f32 0.0, %v386
        %388 = vmatmul.bf16.gmra.mxu0 %v367
        %v389 = vpop.f32.mrf.mxu0
        %v390 = vadd.f32 0.0, %v389
        %v391 = vpop.f32.mrf.mxu0
        %v392 = vadd.f32 0.0, %v391
        %393 = vmatmul.bf16.gmra.mxu0 %v370
        %v394 = vpop.f32.mrf.mxu0
        %v395 = vadd.f32 0.0, %v394
        %v396 = vpop.f32.mrf.mxu0
        %v397 = vadd.f32 0.0, %v396
        %398 = vmatmul.bf16.gmra.mxu0 %v373
        %v399 = vpop.f32.mrf.mxu0
        %v400 = vadd.f32 0.0, %v399
        %v401 = vpop.f32.mrf.mxu0
        %v402 = vadd.f32 0.0, %v401
        %403 = vdwg.mxu0
        %v404 = vadd.f32 %v319, %v385
        %v405 = vadd.f32 %v321, %v387
        %v406 = vadd.f32 %v324, %v390
        %v407 = vadd.f32 %v326, %v392
        %v408 = vadd.f32 %v329, %v395
        %v409 = vadd.f32 %v331, %v397
        %v410 = vadd.f32 %v334, %v400
        %v411 = vadd.f32 %v336, %v402
        %412 = vst.msk [vmem:[%s195] sm:$0xff] %vm255, %v404
        %413 = vst.msk [vmem:[%s195 + $0x8] sm:$0xff] %vm255, %v405
        %414 = vst.msk [vmem:[%s195 + $0x10] sm:$0xff] %vm255, %v406
        %415 = vst.msk [vmem:[%s195 + $0x18] sm:$0xff] %vm255, %v407
        %416 = vst.msk [vmem:[%s195 + $0x20] sm:$0xff] %vm255, %v408
        %417 = vst.msk [vmem:[%s195 + $0x28] sm:$0xff] %vm255, %v409
        %418 = vst.msk [vmem:[%s195 + $0x30] sm:$0xff] %vm255, %v410
        %419 = vst.msk [vmem:[%s195 + $0x38] sm:$0xff] %vm255, %v411
        %v420 = vsel %vm255, %v404, 0.0
        %421 = vadd.xlane.f32.xlu0 %v420
        %v422 = vpop.xlane.xlu0 %421
        %v423 = vsel %vm255, %v405, 0.0
        %424 = vadd.xlane.f32.xlu0 %v423
        %v425 = vpop.xlane.xlu0 %424
        %v426 = vsel %vm255, %v406, 0.0
        %427 = vadd.xlane.f32.xlu0 %v426
        %v428 = vpop.xlane.xlu0 %427
        %v429 = vsel %vm255, %v407, 0.0
        %430 = vadd.xlane.f32.xlu0 %v429
        %v431 = vpop.xlane.xlu0 %430
        %v432 = vsel %vm255, %v408, 0.0
        %433 = vadd.xlane.f32.xlu0 %v432
        %v434 = vpop.xlane.xlu0 %433
        %v435 = vsel %vm255, %v409, 0.0
        %436 = vadd.xlane.f32.xlu0 %v435
        %v437 = vpop.xlane.xlu0 %436
        %v438 = vsel %vm255, %v410, 0.0
        %439 = vadd.xlane.f32.xlu0 %v438
        %v440 = vpop.xlane.xlu0 %439
        %v441 = vsel %vm255, %v411, 0.0
        %442 = vadd.xlane.f32.xlu0 %v441
        %v443 = vpop.xlane.xlu0 %442
        %vm444 = vcmask 7168
        %445 = vst.msk [vmem:[%s200] sm:$0xff] %vm444, %v422
        %446 = vst.msk [vmem:[%s200 + $0x8] sm:$0xff] %vm444, %v425
        %447 = vst.msk [vmem:[%s200 + $0x10] sm:$0xff] %vm444, %v428
        %448 = vst.msk [vmem:[%s200 + $0x18] sm:$0xff] %vm444, %v431
        %449 = vst.msk [vmem:[%s200 + $0x20] sm:$0xff] %vm444, %v434
        %450 = vst.msk [vmem:[%s200 + $0x28] sm:$0xff] %vm444, %v437
        %451 = vst.msk [vmem:[%s200 + $0x30] sm:$0xff] %vm444, %v440
        %452 = vst.msk [vmem:[%s200 + $0x38] sm:$0xff] %vm444, %v443
        %v453 = vmul.f32 %v404, %v404
        %v454 = vmul.f32 %v405, %v405
        %v455 = vmul.f32 %v406, %v406
        %v456 = vmul.f32 %v407, %v407
        %v457 = vmul.f32 %v408, %v408
        %v458 = vmul.f32 %v409, %v409
        %v459 = vmul.f32 %v410, %v410
        %v460 = vmul.f32 %v411, %v411
        %v461 = vsel %vm255, %v453, 0.0
        %462 = vadd.xlane.f32.xlu0 %v461
        %v463 = vpop.xlane.xlu0 %462
        %v464 = vsel %vm255, %v454, 0.0
        %465 = vadd.xlane.f32.xlu0 %v464
        %v466 = vpop.xlane.xlu0 %465
        %v467 = vsel %vm255, %v455, 0.0
        %468 = vadd.xlane.f32.xlu0 %v467
        %v469 = vpop.xlane.xlu0 %468
        %v470 = vsel %vm255, %v456, 0.0
        %471 = vadd.xlane.f32.xlu0 %v470
        %v472 = vpop.xlane.xlu0 %471
        %v473 = vsel %vm255, %v457, 0.0
        %474 = vadd.xlane.f32.xlu0 %v473
        %v475 = vpop.xlane.xlu0 %474
        %v476 = vsel %vm255, %v458, 0.0
        %477 = vadd.xlane.f32.xlu0 %v476
        %v478 = vpop.xlane.xlu0 %477
        %v479 = vsel %vm255, %v459, 0.0
        %480 = vadd.xlane.f32.xlu0 %v479
        %v481 = vpop.xlane.xlu0 %480
        %v482 = vsel %vm255, %v460, 0.0
        %483 = vadd.xlane.f32.xlu0 %v482
        %v484 = vpop.xlane.xlu0 %483
        %vm485 = vcmask 15368
        %486 = vst.msk [vmem:[%s200] sm:$0xff] %vm485, %v463
        %487 = vst.msk [vmem:[%s200 + $0x8] sm:$0xff] %vm485, %v466
        %488 = vst.msk [vmem:[%s200 + $0x10] sm:$0xff] %vm485, %v469
        %489 = vst.msk [vmem:[%s200 + $0x18] sm:$0xff] %vm485, %v472
        %490 = vst.msk [vmem:[%s200 + $0x20] sm:$0xff] %vm485, %v475
        %491 = vst.msk [vmem:[%s200 + $0x28] sm:$0xff] %vm485, %v478
        %492 = vst.msk [vmem:[%s200 + $0x30] sm:$0xff] %vm485, %v481
        %493 = vst.msk [vmem:[%s200 + $0x38] sm:$0xff] %vm485, %v484
        %p494 = scmp.lt.s32.totalorder %s16, 1
        %s495 = scalar_select %p494, %s16, 1
        %s496 = smul.addr %s495, 8
        %s497 = smul.addr %s496, 8
        %s498 = scalar_lea.vmem %s2, %s497
        %p499 = scmp.lt.s32.totalorder %s16, 1
        %s500 = scalar_select %p499, %s16, 1
        %s501 = smul.addr %s500, 8
        %s502 = smul.addr %s501, 8
        %s503 = scalar_lea.vmem %s3, %s502
        // Predicated region
        $region33: #{forward.28} parent=27 // pred_check
          %p504 = pneg %p81
        $region34: #{forward.28} parent=27 // pred_check_branch
          %506 = sbr.rel (%p504) target = $region36
        $region35: #{forward.28} parent=27 // pred_region
          _
        $region36: #{forward.28} parent=27 // pred_fallthru
          _
        // Predicated region
        $region37: #{forward.28} parent=27 // pred_check
          %p507 = pneg %p107
        $region38: #{forward.28} parent=27 // pred_check_branch
          %509 = sbr.rel (%p507) target = $region40
        $region39: #{forward.28} parent=27 // pred_region
          _
        $region40: #{forward.28} parent=27 // pred_fallthru
          _
      $region28: #{forward.28} parent=5 // pred_fallthru
        _
      %p510 = scmp.le.s32.totalorder 2, %s11
      // Predicated region
      $region41: #{forward.28} parent=5 // pred_check
        %p511 = pneg %p510
      $region42: #{forward.28} parent=5 // pred_check_branch
        %513 = sbr.rel (%p511) target = $region44
      $region43: #{forward.28} parent=5 // pred_region
        %s514 = ssub.s32 %s11, 2
        // Predicated region
        $region45: #{forward.28} parent=43 // pred_check
          %p515 = pneg %p87
        $region46: #{forward.28} parent=43 // pred_check_branch
          %517 = sbr.rel (%p515) target = $region48
        $region47: #{forward.28} parent=43 // pred_region
          %p518 = scmp.lt.s32.totalorder %s17, 1
          %s519 = scalar_select %p518, %s17, 1
          %s520 = smul.addr %s519, 8
          %s521 = smul.addr %s520, 8
          %s522 = scalar_lea.vmem %s2, %s521
        $region48: #{forward.28} parent=43 // pred_fallthru
          _
        // Predicated region
        $region49: #{forward.28} parent=43 // pred_check
          %p523 = pneg %p113
        $region50: #{forward.28} parent=43 // pred_check_branch
          %525 = sbr.rel (%p523) target = $region52
        $region51: #{forward.28} parent=43 // pred_region
          %p526 = scmp.lt.s32.totalorder %s17, 1
          %s527 = scalar_select %p526, %s17, 1
          %s528 = smul.addr %s527, 8
          %s529 = smul.addr %s528, 8
          %s530 = scalar_lea.vmem %s3, %s529
        $region52: #{forward.28} parent=43 // pred_fallthru
          _
      $region44: #{forward.28} parent=5 // pred_fallthru
        _
    $region6: #{forward.28} parent=1 // loop_footer
      %s15 = sadd.s32 1, %s11
    $region7: #{forward.28} parent=1 // loop_footer_branch
      %10 = sbr.rel target = $region3
    $region8: #{forward.28} parent=1 // loop_exit
      _
    %531 = vsyncpa [#allocation3], 1
    %s532 = scalar_lea.sflag [#allocation3], 1
    %533 = vsyncpa %s532, 1

// kernel: forward.30
$region0: #{forward.30}
  #allocation0 [shape = 'u32[]', space=smem, size = 0x4, offset = 0x4, fixed_abs, tag = 'smem constant byte address 0x4 - core index']
  #allocation1 [shape = 'u32[72,128]{1,0:T(1,128)}', space=vmem, size = 0x9000, scoped, tag = 'internal scratch']
  %s0 = inlined_call_operand.vmem [shape: f32[2,64,64], index: 0, kind: input, shape index: {}]
  %s1 = inlined_call_operand.vmem [shape: f32[64,1], index: 1, kind: input, shape index: {}]
  %s2 = inlined_call_operand.vmem [shape: f32[64,1], index: 2, kind: input, shape index: {}]
  %s3 = inlined_call_operand.vmem [shape: f32[2,64,64], index: 3, kind: input, shape index: {}]
  %s4 = inlined_call_operand.vmem [shape: f32[64,1], index: 4, kind: input, shape index: {}]
  %s5 = inlined_call_operand.vmem [shape: f32[64,1], index: 5, kind: input, shape index: {}]
  %s6 = inlined_call_operand.vmem [shape: f32[2,64,64], index: 6, kind: output, shape index: {0}]
  %s7 = inlined_call_operand.vmem [shape: f32[2,64,2], index: 7, kind: output, shape index: {1}]
  %8 = xla_tuple %s6, %s7
  %s9 = sld [smem:[#allocation0]]
  $region65: #{forward.30} parent=0
    _
  %s11 = ssub.s32 1, %s9
  %s12 = scalar_select 0, %s11, %s9
  loop: start=0, step=1, limit=4
  $region2: #{forward.30} parent=0 // loop_pre_header
    _
  $region3: #{forward.30} parent=0 // loop_header
    %s14 = sphi 0, %s18
    %p15 = scmp.ge.s32.totalorder %s14, 4
    %s24 = sphi 0, %s26
    %s27 = sphi 0, %s24
    %s28 = sphi 0, %s27
    %s44 = sphi 0, %s28
    %s48 = sphi 0, %s48
    %s50 = sphi 0, %s48
    %s51 = sphi 0, %s50
    %s65 = sphi 0, %s51
    %s69 = sphi 0, %s69
    %s71 = sphi 0, %s69
    %s72 = sphi 0, %s71
    %s86 = sphi 0, %s72
    %s92 = sphi 0, %s94
    %s95 = sphi 0, %s92
    %s96 = sphi 0, %s95
    %s112 = sphi 0, %s96
    %s116 = sphi 0, %s116
    %s118 = sphi 0, %s116
    %s119 = sphi 0, %s118
    %s133 = sphi 0, %s119
    %s137 = sphi 0, %s137
    %s139 = sphi 0, %s137
    %s140 = sphi 0, %s139
    %s154 = sphi 0, %s140
    %s160 = sphi 0, %s162
    %s163 = sphi 0, %s160
    %s164 = sphi 0, %s163
    %s180 = sphi 0, %s164
    %s186 = sphi 0, %s188
    %s189 = sphi 0, %s186
    %s190 = sphi 0, %s189
    %s206 = sphi 0, %s190
  $region4: #{forward.30} parent=0 // loop_header_branch
    %17 = sbr.rel (%p15) target = $region8
  $region5: #{forward.30} parent=0 // loop_body
    %s19 = ssub.s32 %s14, 1
    %s20 = ssub.s32 %s14, 2
    %s21 = sadd.s32 %s14, 1
    %s22 = ssub.s32 %s14, %s21
    %p23 = scmp.eq.s32.totalorder %s22, 0
    %s25 = sadd.s32 %s24, 1
    %s26 = scalar_select %p23, %s24, %s25
    %p29 = pneg %p23
    %p30 = scmp.eq.s32.totalorder %s14, 1
    %p31 = por %p29, %p30
    %p32 = scmp.ne.s32.totalorder %s24, %s27
    %p33 = scmp.eq.s32.totalorder %s14, 0
    %p34 = por %p32, %p33
    %p35 = scmp.ne.s32.totalorder %s24, %s27
    %p36 = scmp.eq.s32.totalorder %s19, 1
    %p37 = por %p35, %p36
    %p38 = scmp.ne.s32.totalorder %s27, %s28
    %p39 = scmp.eq.s32.totalorder %s19, 0
    %p40 = por %p38, %p39
    %p41 = scmp.ne.s32.totalorder %s27, %s28
    %p42 = scmp.eq.s32.totalorder %s20, 1
    %p43 = por %p41, %p42
    %p45 = scmp.ne.s32.totalorder %s28, %s44
    %p46 = scmp.eq.s32.totalorder %s20, 0
    %p47 = por %p45, %p46
    %s49 = sadd.s32 %s48, 1
    %p52 = scmp.eq.s32.totalorder %s14, 1
    %p53 = scmp.ne.s32.totalorder %s48, %s50
    %p54 = scmp.eq.s32.totalorder %s14, 0
    %p55 = por %p53, %p54
    %p56 = scmp.ne.s32.totalorder %s48, %s50
    %p57 = scmp.eq.s32.totalorder %s19, 1
    %p58 = por %p56, %p57
    %p59 = scmp.ne.s32.totalorder %s50, %s51
    %p60 = scmp.eq.s32.totalorder %s19, 0
    %p61 = por %p59, %p60
    %p62 = scmp.ne.s32.totalorder %s50, %s51
    %p63 = scmp.eq.s32.totalorder %s20, 1
    %p64 = por %p62, %p63
    %p66 = scmp.ne.s32.totalorder %s51, %s65
    %p67 = scmp.eq.s32.totalorder %s20, 0
    %p68 = por %p66, %p67
    %s70 = sadd.s32 %s69, 1
    %p73 = scmp.eq.s32.totalorder %s14, 1
    %p74 = scmp.ne.s32.totalorder %s69, %s71
    %p75 = scmp.eq.s32.totalorder %s14, 0
    %p76 = por %p74, %p75
    %p77 = scmp.ne.s32.totalorder %s69, %s71
    %p78 = scmp.eq.s32.totalorder %s19, 1
    %p79 = por %p77, %p78
    %p80 = scmp.ne.s32.totalorder %s71, %s72
    %p81 = scmp.eq.s32.totalorder %s19, 0
    %p82 = por %p80, %p81
    %p83 = scmp.ne.s32.totalorder %s71, %s72
    %p84 = scmp.eq.s32.totalorder %s20, 1
    %p85 = por %p83, %p84
    %p87 = scmp.ne.s32.totalorder %s72, %s86
    %p88 = scmp.eq.s32.totalorder %s20, 0
    %p89 = por %p87, %p88
    %s90 = ssub.s32 %s14, %s21
    %p91 = scmp.eq.s32.totalorder %s90, 0
    %s93 = sadd.s32 %s92, 1
    %s94 = scalar_select %p91, %s92, %s93
    %p97 = pneg %p91
    %p98 = scmp.eq.s32.totalorder %s14, 1
    %p99 = por %p97, %p98
    %p100 = scmp.ne.s32.totalorder %s92, %s95
    %p101 = scmp.eq.s32.totalorder %s14, 0
    %p102 = por %p100, %p101
    %p103 = scmp.ne.s32.totalorder %s92, %s95
    %p104 = scmp.eq.s32.totalorder %s19, 1
    %p105 = por %p103, %p104
    %p106 = scmp.ne.s32.totalorder %s95, %s96
    %p107 = scmp.eq.s32.totalorder %s19, 0
    %p108 = por %p106, %p107
    %p109 = scmp.ne.s32.totalorder %s95, %s96
    %p110 = scmp.eq.s32.totalorder %s20, 1
    %p111 = por %p109, %p110
    %p113 = scmp.ne.s32.totalorder %s96, %s112
    %p114 = scmp.eq.s32.totalorder %s20, 0
    %p115 = por %p113, %p114
    %s117 = sadd.s32 %s116, 1
    %p120 = scmp.eq.s32.totalorder %s14, 1
    %p121 = scmp.ne.s32.totalorder %s116, %s118
    %p122 = scmp.eq.s32.totalorder %s14, 0
    %p123 = por %p121, %p122
    %p124 = scmp.ne.s32.totalorder %s116, %s118
    %p125 = scmp.eq.s32.totalorder %s19, 1
    %p126 = por %p124, %p125
    %p127 = scmp.ne.s32.totalorder %s118, %s119
    %p128 = scmp.eq.s32.totalorder %s19, 0
    %p129 = por %p127, %p128
    %p130 = scmp.ne.s32.totalorder %s118, %s119
    %p131 = scmp.eq.s32.totalorder %s20, 1
    %p132 = por %p130, %p131
    %p134 = scmp.ne.s32.totalorder %s119, %s133
    %p135 = scmp.eq.s32.totalorder %s20, 0
    %p136 = por %p134, %p135
    %s138 = sadd.s32 %s137, 1
    %p141 = scmp.eq.s32.totalorder %s14, 1
    %p142 = scmp.ne.s32.totalorder %s137, %s139
    %p143 = scmp.eq.s32.totalorder %s14, 0
    %p144 = por %p142, %p143
    %p145 = scmp.ne.s32.totalorder %s137, %s139
    %p146 = scmp.eq.s32.totalorder %s19, 1
    %p147 = por %p145, %p146
    %p148 = scmp.ne.s32.totalorder %s139, %s140
    %p149 = scmp.eq.s32.totalorder %s19, 0
    %p150 = por %p148, %p149
    %p151 = scmp.ne.s32.totalorder %s139, %s140
    %p152 = scmp.eq.s32.totalorder %s20, 1
    %p153 = por %p151, %p152
    %p155 = scmp.ne.s32.totalorder %s140, %s154
    %p156 = scmp.eq.s32.totalorder %s20, 0
    %p157 = por %p155, %p156
    %s158 = ssub.s32 %s14, %s21
    %p159 = scmp.eq.s32.totalorder %s158, 0
    %s161 = sadd.s32 %s160, 1
    %s162 = scalar_select %p159, %s160, %s161
    %p165 = pneg %p159
    %p166 = scmp.eq.s32.totalorder %s14, 1
    %p167 = por %p165, %p166
    %p168 = scmp.ne.s32.totalorder %s160, %s163
    %p169 = scmp.eq.s32.totalorder %s14, 0
    %p170 = por %p168, %p169
    %p171 = scmp.ne.s32.totalorder %s160, %s163
    %p172 = scmp.eq.s32.totalorder %s19, 1
    %p173 = por %p171, %p172
    %p174 = scmp.ne.s32.totalorder %s163, %s164
    %p175 = scmp.eq.s32.totalorder %s19, 0
    %p176 = por %p174, %p175
    %p177 = scmp.ne.s32.totalorder %s163, %s164
    %p178 = scmp.eq.s32.totalorder %s20, 1
    %p179 = por %p177, %p178
    %p181 = scmp.ne.s32.totalorder %s164, %s180
    %p182 = scmp.eq.s32.totalorder %s20, 0
    %p183 = por %p181, %p182
    %s184 = ssub.s32 %s14, %s21
    %p185 = scmp.eq.s32.totalorder %s184, 0
    %s187 = sadd.s32 %s186, 1
    %s188 = scalar_select %p185, %s186, %s187
    %p191 = pneg %p185
    %p192 = scmp.eq.s32.totalorder %s14, 1
    %p193 = por %p191, %p192
    %p194 = scmp.ne.s32.totalorder %s186, %s189
    %p195 = scmp.eq.s32.totalorder %s14, 0
    %p196 = por %p194, %p195
    %p197 = scmp.ne.s32.totalorder %s186, %s189
    %p198 = scmp.eq.s32.totalorder %s19, 1
    %p199 = por %p197, %p198
    %p200 = scmp.ne.s32.totalorder %s189, %s190
    %p201 = scmp.eq.s32.totalorder %s19, 0
    %p202 = por %p200, %p201
    %p203 = scmp.ne.s32.totalorder %s189, %s190
    %p204 = scmp.eq.s32.totalorder %s20, 1
    %p205 = por %p203, %p204
    %p207 = scmp.ne.s32.totalorder %s190, %s206
    %p208 = scmp.eq.s32.totalorder %s20, 0
    %p209 = por %p207, %p208
    %p210 = scmp.le.s32.totalorder 1, %s14
    %p211 = scmp.lt.s32.totalorder %s14, 3
    %p212 = pnand %p210, %p211
    %p213 = pneg %p212
    // Predicated region
    $region9: #{forward.30} parent=5 // pred_check
      _
    $region10: #{forward.30} parent=5 // pred_check_branch
      %215 = sbr.rel (%p212) target = $region12
    $region11: #{forward.30} parent=5 // pred_region
      %s216 = ssub.s32 %s14, 1
      // Predicated region
      $region13: #{forward.30} parent=11 // pred_check
        %p217 = pneg %p61
      $region14: #{forward.30} parent=11 // pred_check_branch
        %219 = sbr.rel (%p217) target = $region16
      $region15: #{forward.30} parent=11 // pred_region
        _
      $region16: #{forward.30} parent=11 // pred_fallthru
        _
      // Predicated region
      $region17: #{forward.30} parent=11 // pred_check
        %p220 = pneg %p82
      $region18: #{forward.30} parent=11 // pred_check_branch
        %222 = sbr.rel (%p220) target = $region20
      $region19: #{forward.30} parent=11 // pred_region
        _
      $region20: #{forward.30} parent=11 // pred_fallthru
        _
      // Predicated region
      $region21: #{forward.30} parent=11 // pred_check
        %p223 = pneg %p129
      $region22: #{forward.30} parent=11 // pred_check_branch
        %225 = sbr.rel (%p223) target = $region24
      $region23: #{forward.30} parent=11 // pred_region
        _
      $region24: #{forward.30} parent=11 // pred_fallthru
        _
      // Predicated region
      $region25: #{forward.30} parent=11 // pred_check
        %p226 = pneg %p150
      $region26: #{forward.30} parent=11 // pred_check_branch
        %228 = sbr.rel (%p226) target = $region28
      $region27: #{forward.30} parent=11 // pred_region
        _
      $region28: #{forward.30} parent=11 // pred_fallthru
        _
    $region12: #{forward.30} parent=5 // pred_fallthru
      _
    %p229 = scmp.lt.s32.totalorder %s14, 2
    // Predicated region
    $region29: #{forward.30} parent=5 // pred_check
      %p230 = pneg %p229
    $region30: #{forward.30} parent=5 // pred_check_branch
      %232 = sbr.rel (%p230) target = $region32
    $region31: #{forward.30} parent=5 // pred_region
      // Predicated region
      $region33: #{forward.30} parent=31 // pred_check
        %p233 = pneg %p34
      $region34: #{forward.30} parent=31 // pred_check_branch
        %235 = sbr.rel (%p233) target = $region36
      $region35: #{forward.30} parent=31 // pred_region
        %p236 = scmp.lt.s32.totalorder %s14, 1
        %s237 = scalar_select %p236, %s14, 1
        %s238 = smul.addr %s237, 8
        %s239 = smul.addr %s238, 8
        %s240 = scalar_lea.vmem %s0, %s239
      $region36: #{forward.30} parent=31 // pred_fallthru
        _
      // Predicated region
      $region37: #{forward.30} parent=31 // pred_check
        %p241 = pneg %p102
      $region38: #{forward.30} parent=31 // pred_check_branch
        %243 = sbr.rel (%p241) target = $region40
      $region39: #{forward.30} parent=31 // pred_region
        %p244 = scmp.lt.s32.totalorder %s14, 1
        %s245 = scalar_select %p244, %s14, 1
        %s246 = smul.addr %s245, 8
        %s247 = smul.addr %s246, 8
        %s248 = scalar_lea.vmem %s3, %s247
      $region40: #{forward.30} parent=31 // pred_fallthru
        _
    $region32: #{forward.30} parent=5 // pred_fallthru
      _
    %p249 = scmp.le.s32.totalorder 1, %s14
    %p250 = scmp.lt.s32.totalorder %s14, 3
    %p251 = pnand %p249, %p250
    %p252 = pneg %p251
    // Predicated region
    $region41: #{forward.30} parent=5 // pred_check
      _
    $region42: #{forward.30} parent=5 // pred_check_branch
      %254 = sbr.rel (%p251) target = $region44
    $region43: #{forward.30} parent=5 // pred_region
      %s255 = ssub.s32 %s14, 1
      %p256 = scmp.lt.s32.totalorder %s19, 1
      %s257 = scalar_select %p256, %s19, 1
      %s258 = smul.addr %s257, 8
      %s259 = smul.addr %s258, 8
      %s260 = scalar_lea.vmem %s0, %s259
      %p261 = pneg %p40
      %p262 = pneg %p37
      %p263 = pneg %p61
      %p264 = pneg %p58
      %p265 = pneg %p82
      %p266 = pneg %p79
      %p267 = scmp.lt.s32.totalorder %s19, 1
      %s268 = scalar_select %p267, %s19, 1
      %s269 = smul.addr %s268, 8
      %s270 = smul.addr %s269, 8
      %s271 = scalar_lea.vmem %s3, %s270
      %p272 = pneg %p108
      %p273 = pneg %p105
      %p274 = pneg %p129
      %p275 = pneg %p126
      %p276 = pneg %p150
      %p277 = pneg %p147
      %p278 = pneg %p176
      %p279 = pneg %p173
      %p280 = scmp.lt.s32.totalorder %s19, 1
      %s281 = scalar_select %p280, %s19, 1
      %s282 = smul.addr %s281, 8
      %s283 = smul.addr %s282, 8
      %s284 = scalar_lea.vmem %s6, %s283
      %p285 = pneg %p202
      %p286 = pneg %p199
      %p287 = scmp.lt.s32.totalorder %s19, 1
      %s288 = scalar_select %p287, %s19, 1
      %s289 = smul.addr %s288, 8
      %s290 = smul.addr %s289, 8
      %s291 = scalar_lea.vmem %s7, %s290
      %p292 = scmp.lt.s32.totalorder %s19, 1
      %s293 = scalar_select %p292, %s19, 1
      %s294 = smul.addr %s293, 8
      %s295 = smul.addr %s294, 8
      %s296 = scalar_lea.vmem %s0, %s295
      %p297 = scmp.lt.s32.totalorder %s19, 1
      %s298 = scalar_select %p297, %s19, 1
      %s299 = smul.addr %s298, 8
      %s300 = smul.addr %s299, 8
      %s301 = scalar_lea.vmem %s3, %s300
      %p302 = scmp.lt.s32.totalorder %s19, 1
      %s303 = scalar_select %p302, %s19, 1
      %s304 = smul.addr %s303, 8
      %s305 = smul.addr %s304, 8
      %s306 = scalar_lea.vmem %s6, %s305
      %p307 = scmp.lt.s32.totalorder %s19, 1
      %s308 = scalar_select %p307, %s19, 1
      %s309 = smul.addr %s308, 8
      %s310 = smul.addr %s309, 8
      %s311 = scalar_lea.vmem %s7, %s310
      %v312 = vld [vmem:[%s296] sm:$0xff]
      %v313 = vld [vmem:[%s296 + $0x8] sm:$0xff]
      %v314 = vld [vmem:[%s296 + $0x10] sm:$0xff]
      %v315 = vld [vmem:[%s296 + $0x18] sm:$0xff]
      %v316 = vld [vmem:[%s296 + $0x20] sm:$0xff]
      %v317 = vld [vmem:[%s296 + $0x28] sm:$0xff]
      %v318 = vld [vmem:[%s296 + $0x30] sm:$0xff]
      %v319 = vld [vmem:[%s296 + $0x38] sm:$0xff]
      %v320 = vld [vmem:[%s1] sm:$0xff]
      %v321 = vld [vmem:[%s1 + $0x8] sm:$0xff]
      %v322 = vld [vmem:[%s1 + $0x10] sm:$0xff]
      %v323 = vld [vmem:[%s1 + $0x18] sm:$0xff]
      %v324 = vld [vmem:[%s1 + $0x20] sm:$0xff]
      %v325 = vld [vmem:[%s1 + $0x28] sm:$0xff]
      %v326 = vld [vmem:[%s1 + $0x30] sm:$0xff]
      %v327 = vld [vmem:[%s1 + $0x38] sm:$0xff]
      %329 = vset.pattern.permute.xlu0 0
      %330 = vperm.xlu0 %329, %v320
      %v331 = vpop.permute.xlu0 %330
      %334 = vset.pattern.permute.xlu0 0
      %335 = vperm.xlu0 %334, %v321
      %v336 = vpop.permute.xlu0 %335
      %339 = vset.pattern.permute.xlu0 0
      %340 = vperm.xlu0 %339, %v322
      %v341 = vpop.permute.xlu0 %340
      %344 = vset.pattern.permute.xlu0 0
      %345 = vperm.xlu0 %344, %v323
      %v346 = vpop.permute.xlu0 %345
      %349 = vset.pattern.permute.xlu0 0
      %350 = vperm.xlu0 %349, %v324
      %v351 = vpop.permute.xlu0 %350
      %354 = vset.pattern.permute.xlu0 0
      %355 = vperm.xlu0 %354, %v325
      %v356 = vpop.permute.xlu0 %355
      %359 = vset.pattern.permute.xlu0 0
      %360 = vperm.xlu0 %359, %v326
      %v361 = vpop.permute.xlu0 %360
      %364 = vset.pattern.permute.xlu0 0
      %365 = vperm.xlu0 %364, %v327
      %v366 = vpop.permute.xlu0 %365
      %v368 = vmul.f32 %v312, %v331
      %v369 = vmul.f32 %v313, %v336
      %v370 = vmul.f32 %v314, %v341
      %v371 = vmul.f32 %v315, %v346
      %v372 = vmul.f32 %v316, %v351
      %v373 = vmul.f32 %v317, %v356
      %v374 = vmul.f32 %v318, %v361
      %v375 = vmul.f32 %v319, %v366
      %v376 = vld [vmem:[%s2] sm:$0xff]
      %v377 = vld [vmem:[%s2 + $0x8] sm:$0xff]
      %v378 = vld [vmem:[%s2 + $0x10] sm:$0xff]
      %v379 = vld [vmem:[%s2 + $0x18] sm:$0xff]
      %v380 = vld [vmem:[%s2 + $0x20] sm:$0xff]
      %v381 = vld [vmem:[%s2 + $0x28] sm:$0xff]
      %v382 = vld [vmem:[%s2 + $0x30] sm:$0xff]
      %v383 = vld [vmem:[%s2 + $0x38] sm:$0xff]
      %385 = vset.pattern.permute.xlu0 0
      %386 = vperm.xlu0 %385, %v376
      %v387 = vpop.permute.xlu0 %386
      %390 = vset.pattern.permute.xlu0 0
      %391 = vperm.xlu0 %390, %v377
      %v392 = vpop.permute.xlu0 %391
      %395 = vset.pattern.permute.xlu0 0
      %396 = vperm.xlu0 %395, %v378
      %v397 = vpop.permute.xlu0 %396
      %400 = vset.pattern.permute.xlu0 0
      %401 = vperm.xlu0 %400, %v379
      %v402 = vpop.permute.xlu0 %401
      %405 = vset.pattern.permute.xlu0 0
      %406 = vperm.xlu0 %405, %v380
      %v407 = vpop.permute.xlu0 %406
      %410 = vset.pattern.permute.xlu0 0
      %411 = vperm.xlu0 %410, %v381
      %v412 = vpop.permute.xlu0 %411
      %415 = vset.pattern.permute.xlu0 0
      %416 = vperm.xlu0 %415, %v382
      %v417 = vpop.permute.xlu0 %416
      %420 = vset.pattern.permute.xlu0 0
      %421 = vperm.xlu0 %420, %v383
      %v422 = vpop.permute.xlu0 %421
      %v424 = vadd.f32 %v368, %v387
      %v425 = vadd.f32 %v369, %v392
      %v426 = vadd.f32 %v370, %v397
      %v427 = vadd.f32 %v371, %v402
      %v428 = vadd.f32 %v372, %v407
      %v429 = vadd.f32 %v373, %v412
      %v430 = vadd.f32 %v374, %v417
      %v431 = vadd.f32 %v375, %v422
      %v432 = vld [vmem:[%s301] sm:$0xff]
      %v433 = vld [vmem:[%s301 + $0x8] sm:$0xff]
      %v434 = vld [vmem:[%s301 + $0x10] sm:$0xff]
      %v435 = vld [vmem:[%s301 + $0x18] sm:$0xff]
      %v436 = vld [vmem:[%s301 + $0x20] sm:$0xff]
      %v437 = vld [vmem:[%s301 + $0x28] sm:$0xff]
      %v438 = vld [vmem:[%s301 + $0x30] sm:$0xff]
      %v439 = vld [vmem:[%s301 + $0x38] sm:$0xff]
      %v440 = vld [vmem:[%s4] sm:$0xff]
      %v441 = vld [vmem:[%s4 + $0x8] sm:$0xff]
      %v442 = vld [vmem:[%s4 + $0x10] sm:$0xff]
      %v443 = vld [vmem:[%s4 + $0x18] sm:$0xff]
      %v444 = vld [vmem:[%s4 + $0x20] sm:$0xff]
      %v445 = vld [vmem:[%s4 + $0x28] sm:$0xff]
      %v446 = vld [vmem:[%s4 + $0x30] sm:$0xff]
      %v447 = vld [vmem:[%s4 + $0x38] sm:$0xff]
      %449 = vset.pattern.permute.xlu0 0
      %450 = vperm.xlu0 %449, %v440
      %v451 = vpop.permute.xlu0 %450
      %454 = vset.pattern.permute.xlu0 0
      %455 = vperm.xlu0 %454, %v441
      %v456 = vpop.permute.xlu0 %455
      %459 = vset.pattern.permute.xlu0 0
      %460 = vperm.xlu0 %459, %v442
      %v461 = vpop.permute.xlu0 %460
      %464 = vset.pattern.permute.xlu0 0
      %465 = vperm.xlu0 %464, %v443
      %v466 = vpop.permute.xlu0 %465
      %469 = vset.pattern.permute.xlu0 0
      %470 = vperm.xlu0 %469, %v444
      %v471 = vpop.permute.xlu0 %470
      %474 = vset.pattern.permute.xlu0 0
      %475 = vperm.xlu0 %474, %v445
      %v476 = vpop.permute.xlu0 %475
      %479 = vset.pattern.permute.xlu0 0
      %480 = vperm.xlu0 %479, %v446
      %v481 = vpop.permute.xlu0 %480
      %484 = vset.pattern.permute.xlu0 0
      %485 = vperm.xlu0 %484, %v447
      %v486 = vpop.permute.xlu0 %485
      %v488 = vmul.f32 %v432, %v451
      %v489 = vmul.f32 %v433, %v456
      %v490 = vmul.f32 %v434, %v461
      %v491 = vmul.f32 %v435, %v466
      %v492 = vmul.f32 %v436, %v471
      %v493 = vmul.f32 %v437, %v476
      %v494 = vmul.f32 %v438, %v481
      %v495 = vmul.f32 %v439, %v486
      %v496 = vld [vmem:[%s5] sm:$0xff]
      %v497 = vld [vmem:[%s5 + $0x8] sm:$0xff]
      %v498 = vld [vmem:[%s5 + $0x10] sm:$0xff]
      %v499 = vld [vmem:[%s5 + $0x18] sm:$0xff]
      %v500 = vld [vmem:[%s5 + $0x20] sm:$0xff]
      %v501 = vld [vmem:[%s5 + $0x28] sm:$0xff]
      %v502 = vld [vmem:[%s5 + $0x30] sm:$0xff]
      %v503 = vld [vmem:[%s5 + $0x38] sm:$0xff]
      %505 = vset.pattern.permute.xlu0 0
      %506 = vperm.xlu0 %505, %v496
      %v507 = vpop.permute.xlu0 %506
      %510 = vset.pattern.permute.xlu0 0
      %511 = vperm.xlu0 %510, %v497
      %v512 = vpop.permute.xlu0 %511
      %515 = vset.pattern.permute.xlu0 0
      %516 = vperm.xlu0 %515, %v498
      %v517 = vpop.permute.xlu0 %516
      %520 = vset.pattern.permute.xlu0 0
      %521 = vperm.xlu0 %520, %v499
      %v522 = vpop.permute.xlu0 %521
      %525 = vset.pattern.permute.xlu0 0
      %526 = vperm.xlu0 %525, %v500
      %v527 = vpop.permute.xlu0 %526
      %530 = vset.pattern.permute.xlu0 0
      %531 = vperm.xlu0 %530, %v501
      %v532 = vpop.permute.xlu0 %531
      %535 = vset.pattern.permute.xlu0 0
      %536 = vperm.xlu0 %535, %v502
      %v537 = vpop.permute.xlu0 %536
      %540 = vset.pattern.permute.xlu0 0
      %541 = vperm.xlu0 %540, %v503
      %v542 = vpop.permute.xlu0 %541
      %v544 = vadd.f32 %v488, %v507
      %v545 = vadd.f32 %v489, %v512
      %v546 = vadd.f32 %v490, %v517
      %v547 = vadd.f32 %v491, %v522
      %v548 = vadd.f32 %v492, %v527
      %v549 = vadd.f32 %v493, %v532
      %v550 = vadd.f32 %v494, %v537
      %v551 = vadd.f32 %v495, %v542
      %v552 = vadd.f32 %v424, %v544
      %v553 = vadd.f32 %v425, %v545
      %v554 = vadd.f32 %v426, %v546
      %v555 = vadd.f32 %v427, %v547
      %v556 = vadd.f32 %v428, %v548
      %v557 = vadd.f32 %v429, %v549
      %v558 = vadd.f32 %v430, %v550
      %v559 = vadd.f32 %v431, %v551
      %v560 = vmax.f32 %v552, 0.0
      %v561 = vmax.f32 %v553, 0.0
      %v562 = vmax.f32 %v554, 0.0
      %v563 = vmax.f32 %v555, 0.0
      %v564 = vmax.f32 %v556, 0.0
      %v565 = vmax.f32 %v557, 0.0
      %v566 = vmax.f32 %v558, 0.0
      %v567 = vmax.f32 %v559, 0.0
      %vm568 = vcmask 523264
      %569 = vst.msk [vmem:[%s306] sm:$0xff] %vm568, %v560
      %570 = vst.msk [vmem:[%s306 + $0x8] sm:$0xff] %vm568, %v561
      %571 = vst.msk [vmem:[%s306 + $0x10] sm:$0xff] %vm568, %v562
      %572 = vst.msk [vmem:[%s306 + $0x18] sm:$0xff] %vm568, %v563
      %573 = vst.msk [vmem:[%s306 + $0x20] sm:$0xff] %vm568, %v564
      %574 = vst.msk [vmem:[%s306 + $0x28] sm:$0xff] %vm568, %v565
      %575 = vst.msk [vmem:[%s306 + $0x30] sm:$0xff] %vm568, %v566
      %576 = vst.msk [vmem:[%s306 + $0x38] sm:$0xff] %vm568, %v567
      %v577 = vsel %vm568, %v560, 0.0
      %578 = vadd.xlane.f32.xlu0 %v577
      %v579 = vpop.xlane.xlu0 %578
      %v580 = vsel %vm568, %v561, 0.0
      %581 = vadd.xlane.f32.xlu0 %v580
      %v582 = vpop.xlane.xlu0 %581
      %v583 = vsel %vm568, %v562, 0.0
      %584 = vadd.xlane.f32.xlu0 %v583
      %v585 = vpop.xlane.xlu0 %584
      %v586 = vsel %vm568, %v563, 0.0
      %587 = vadd.xlane.f32.xlu0 %v586
      %v588 = vpop.xlane.xlu0 %587
      %v589 = vsel %vm568, %v564, 0.0
      %590 = vadd.xlane.f32.xlu0 %v589
      %v591 = vpop.xlane.xlu0 %590
      %v592 = vsel %vm568, %v565, 0.0
      %593 = vadd.xlane.f32.xlu0 %v592
      %v594 = vpop.xlane.xlu0 %593
      %v595 = vsel %vm568, %v566, 0.0
      %596 = vadd.xlane.f32.xlu0 %v595
      %v597 = vpop.xlane.xlu0 %596
      %v598 = vsel %vm568, %v567, 0.0
      %599 = vadd.xlane.f32.xlu0 %v598
      %v600 = vpop.xlane.xlu0 %599
      %v601 = vrcp.pop 64.0
      %v602 = vmul.f32 64.0, %v601
      %v603 = vsub.f32 1.0, %v602
      %v604 = vmul.f32 %v601, %v603
      %v605 = vadd.f32 %v601, %v604
      %vm606 = vweird.f32 %v601
      %v607 = vsel %vm606, %v601, %v605
      %v608 = vmul.f32 %v579, %v607
      %v609 = vmul.f32 %v582, %v607
      %v610 = vmul.f32 %v585, %v607
      %v611 = vmul.f32 %v588, %v607
      %v612 = vmul.f32 %v591, %v607
      %v613 = vmul.f32 %v594, %v607
      %v614 = vmul.f32 %v597, %v607
      %v615 = vmul.f32 %v600, %v607
      %vm616 = vcmask 7168
      %617 = vst.msk [vmem:[%s311] sm:$0xff] %vm616, %v608
      %618 = vst.msk [vmem:[%s311 + $0x8] sm:$0xff] %vm616, %v609
      %619 = vst.msk [vmem:[%s311 + $0x10] sm:$0xff] %vm616, %v610
      %620 = vst.msk [vmem:[%s311 + $0x18] sm:$0xff] %vm616, %v611
      %621 = vst.msk [vmem:[%s311 + $0x20] sm:$0xff] %vm616, %v612
      %622 = vst.msk [vmem:[%s311 + $0x28] sm:$0xff] %vm616, %v613
      %623 = vst.msk [vmem:[%s311 + $0x30] sm:$0xff] %vm616, %v614
      %624 = vst.msk [vmem:[%s311 + $0x38] sm:$0xff] %vm616, %v615
      %v625 = vsel %vm568, %v560, -inf
      %626 = vmax.xlane.f32.xlu0 %v625
      %v627 = vpop.xlane.xlu0 %626
      %v628 = vsel %vm568, %v561, -inf
      %629 = vmax.xlane.f32.xlu0 %v628
      %v630 = vpop.xlane.xlu0 %629
      %v631 = vsel %vm568, %v562, -inf
      %632 = vmax.xlane.f32.xlu0 %v631
      %v633 = vpop.xlane.xlu0 %632
      %v634 = vsel %vm568, %v563, -inf
      %635 = vmax.xlane.f32.xlu0 %v634
      %v636 = vpop.xlane.xlu0 %635
      %v637 = vsel %vm568, %v564, -inf
      %638 = vmax.xlane.f32.xlu0 %v637
      %v639 = vpop.xlane.xlu0 %638
      %v640 = vsel %vm568, %v565, -inf
      %641 = vmax.xlane.f32.xlu0 %v640
      %v642 = vpop.xlane.xlu0 %641
      %v643 = vsel %vm568, %v566, -inf
      %644 = vmax.xlane.f32.xlu0 %v643
      %v645 = vpop.xlane.xlu0 %644
      %v646 = vsel %vm568, %v567, -inf
      %647 = vmax.xlane.f32.xlu0 %v646
      %v648 = vpop.xlane.xlu0 %647
      %vm649 = vcmask 15368
      %650 = vst.msk [vmem:[%s311] sm:$0xff] %vm649, %v627
      %651 = vst.msk [vmem:[%s311 + $0x8] sm:$0xff] %vm649, %v630
      %652 = vst.msk [vmem:[%s311 + $0x10] sm:$0xff] %vm649, %v633
      %653 = vst.msk [vmem:[%s311 + $0x18] sm:$0xff] %vm649, %v636
      %654 = vst.msk [vmem:[%s311 + $0x20] sm:$0xff] %vm649, %v639
      %655 = vst.msk [vmem:[%s311 + $0x28] sm:$0xff] %vm649, %v642
      %656 = vst.msk [vmem:[%s311 + $0x30] sm:$0xff] %vm649, %v645
      %657 = vst.msk [vmem:[%s311 + $0x38] sm:$0xff] %vm649, %v648
      %p658 = scmp.lt.s32.totalorder %s19, 1
      %s659 = scalar_select %p658, %s19, 1
      %s660 = smul.addr %s659, 8
      %s661 = smul.addr %s660, 8
      %s662 = scalar_lea.vmem %s6, %s661
      %p663 = scmp.lt.s32.totalorder %s19, 1
      %s664 = scalar_select %p663, %s19, 1
      %s665 = smul.addr %s664, 8
      %s666 = smul.addr %s665, 8
      %s667 = scalar_lea.vmem %s7, %s666
      // Predicated region
      $region45: #{forward.30} parent=43 // pred_check
        %p668 = pneg %p173
      $region46: #{forward.30} parent=43 // pred_check_branch
        %670 = sbr.rel (%p668) target = $region48
      $region47: #{forward.30} parent=43 // pred_region
        _
      $region48: #{forward.30} parent=43 // pred_fallthru
        _
      // Predicated region
      $region49: #{forward.30} parent=43 // pred_check
        %p671 = pneg %p199
      $region50: #{forward.30} parent=43 // pred_check_branch
        %673 = sbr.rel (%p671) target = $region52
      $region51: #{forward.30} parent=43 // pred_region
        _
      $region52: #{forward.30} parent=43 // pred_fallthru
        _
    $region44: #{forward.30} parent=5 // pred_fallthru
      _
    %p674 = scmp.le.s32.totalorder 2, %s14
    // Predicated region
    $region53: #{forward.30} parent=5 // pred_check
      %p675 = pneg %p674
    $region54: #{forward.30} parent=5 // pred_check_branch
      %677 = sbr.rel (%p675) target = $region56
    $region55: #{forward.30} parent=5 // pred_region
      %s678 = ssub.s32 %s14, 2
      // Predicated region
      $region57: #{forward.30} parent=55 // pred_check
        %p679 = pneg %p179
      $region58: #{forward.30} parent=55 // pred_check_branch
        %681 = sbr.rel (%p679) target = $region60
      $region59: #{forward.30} parent=55 // pred_region
        %p682 = scmp.lt.s32.totalorder %s20, 1
        %s683 = scalar_select %p682, %s20, 1
        %s684 = smul.addr %s683, 8
        %s685 = smul.addr %s684, 8
        %s686 = scalar_lea.vmem %s6, %s685
      $region60: #{forward.30} parent=55 // pred_fallthru
        _
      // Predicated region
      $region61: #{forward.30} parent=55 // pred_check
        %p687 = pneg %p205
      $region62: #{forward.30} parent=55 // pred_check_branch
        %689 = sbr.rel (%p687) target = $region64
      $region63: #{forward.30} parent=55 // pred_region
        %p690 = scmp.lt.s32.totalorder %s20, 1
        %s691 = scalar_select %p690, %s20, 1
        %s692 = smul.addr %s691, 8
        %s693 = smul.addr %s692, 8
        %s694 = scalar_lea.vmem %s7, %s693
      $region64: #{forward.30} parent=55 // pred_fallthru
        _
    $region56: #{forward.30} parent=5 // pred_fallthru
      _
  $region6: #{forward.30} parent=0 // loop_footer
    %s18 = sadd.s32 1, %s14
  $region7: #{forward.30} parent=0 // loop_footer_branch
    %13 = sbr.rel target = $region3
  $region8: #{forward.30} parent=0 // loop_exit
    _

// kernel: forward.35
$region0: #{forward.35}
  #allocation0 [shape = 'u32[]', space=smem, size = 0x4, offset = 0x4, fixed_abs, tag = 'smem constant byte address 0x4 - core index']
  #allocation1 [shape = 'u32[72,128]{1,0:T(1,128)}', space=vmem, size = 0x9000, scoped, tag = 'internal scratch']
  %s0 = inlined_call_operand.vmem [shape: f32[2,64,64], index: 0, kind: input, shape index: {}]
  %s1 = inlined_call_operand.vmem [shape: f32[64,1], index: 1, kind: input, shape index: {}]
  %s2 = inlined_call_operand.vmem [shape: f32[64,1], index: 2, kind: input, shape index: {}]
  %s3 = inlined_call_operand.vmem [shape: f32[2,64,64], index: 3, kind: input, shape index: {}]
  %s4 = inlined_call_operand.vmem [shape: f32[2,64,64], index: 4, kind: output, shape index: {}]
  %s5 = sld [smem:[#allocation0]]
  $region49: #{forward.35} parent=0
    _
  %s7 = ssub.s32 1, %s5
  %s8 = scalar_select 0, %s7, %s5
  loop: start=0, step=1, limit=4
  $region2: #{forward.35} parent=0 // loop_pre_header
    _
  $region3: #{forward.35} parent=0 // loop_header
    %s10 = sphi 0, %s14
    %p11 = scmp.ge.s32.totalorder %s10, 4
    %s20 = sphi 0, %s22
    %s23 = sphi 0, %s20
    %s24 = sphi 0, %s23
    %s40 = sphi 0, %s24
    %s44 = sphi 0, %s44
    %s46 = sphi 0, %s44
    %s47 = sphi 0, %s46
    %s61 = sphi 0, %s47
    %s65 = sphi 0, %s65
    %s67 = sphi 0, %s65
    %s68 = sphi 0, %s67
    %s82 = sphi 0, %s68
    %s88 = sphi 0, %s90
    %s91 = sphi 0, %s88
    %s92 = sphi 0, %s91
    %s108 = sphi 0, %s92
    %s114 = sphi 0, %s116
    %s117 = sphi 0, %s114
    %s118 = sphi 0, %s117
    %s134 = sphi 0, %s118
  $region4: #{forward.35} parent=0 // loop_header_branch
    %13 = sbr.rel (%p11) target = $region8
  $region5: #{forward.35} parent=0 // loop_body
    %s15 = ssub.s32 %s10, 1
    %s16 = ssub.s32 %s10, 2
    %s17 = sadd.s32 %s10, 1
    %s18 = ssub.s32 %s10, %s17
    %p19 = scmp.eq.s32.totalorder %s18, 0
    %s21 = sadd.s32 %s20, 1
    %s22 = scalar_select %p19, %s20, %s21
    %p25 = pneg %p19
    %p26 = scmp.eq.s32.totalorder %s10, 1
    %p27 = por %p25, %p26
    %p28 = scmp.ne.s32.totalorder %s20, %s23
    %p29 = scmp.eq.s32.totalorder %s10, 0
    %p30 = por %p28, %p29
    %p31 = scmp.ne.s32.totalorder %s20, %s23
    %p32 = scmp.eq.s32.totalorder %s15, 1
    %p33 = por %p31, %p32
    %p34 = scmp.ne.s32.totalorder %s23, %s24
    %p35 = scmp.eq.s32.totalorder %s15, 0
    %p36 = por %p34, %p35
    %p37 = scmp.ne.s32.totalorder %s23, %s24
    %p38 = scmp.eq.s32.totalorder %s16, 1
    %p39 = por %p37, %p38
    %p41 = scmp.ne.s32.totalorder %s24, %s40
    %p42 = scmp.eq.s32.totalorder %s16, 0
    %p43 = por %p41, %p42
    %s45 = sadd.s32 %s44, 1
    %p48 = scmp.eq.s32.totalorder %s10, 1
    %p49 = scmp.ne.s32.totalorder %s44, %s46
    %p50 = scmp.eq.s32.totalorder %s10, 0
    %p51 = por %p49, %p50
    %p52 = scmp.ne.s32.totalorder %s44, %s46
    %p53 = scmp.eq.s32.totalorder %s15, 1
    %p54 = por %p52, %p53
    %p55 = scmp.ne.s32.totalorder %s46, %s47
    %p56 = scmp.eq.s32.totalorder %s15, 0
    %p57 = por %p55, %p56
    %p58 = scmp.ne.s32.totalorder %s46, %s47
    %p59 = scmp.eq.s32.totalorder %s16, 1
    %p60 = por %p58, %p59
    %p62 = scmp.ne.s32.totalorder %s47, %s61
    %p63 = scmp.eq.s32.totalorder %s16, 0
    %p64 = por %p62, %p63
    %s66 = sadd.s32 %s65, 1
    %p69 = scmp.eq.s32.totalorder %s10, 1
    %p70 = scmp.ne.s32.totalorder %s65, %s67
    %p71 = scmp.eq.s32.totalorder %s10, 0
    %p72 = por %p70, %p71
    %p73 = scmp.ne.s32.totalorder %s65, %s67
    %p74 = scmp.eq.s32.totalorder %s15, 1
    %p75 = por %p73, %p74
    %p76 = scmp.ne.s32.totalorder %s67, %s68
    %p77 = scmp.eq.s32.totalorder %s15, 0
    %p78 = por %p76, %p77
    %p79 = scmp.ne.s32.totalorder %s67, %s68
    %p80 = scmp.eq.s32.totalorder %s16, 1
    %p81 = por %p79, %p80
    %p83 = scmp.ne.s32.totalorder %s68, %s82
    %p84 = scmp.eq.s32.totalorder %s16, 0
    %p85 = por %p83, %p84
    %s86 = ssub.s32 %s10, %s17
    %p87 = scmp.eq.s32.totalorder %s86, 0
    %s89 = sadd.s32 %s88, 1
    %s90 = scalar_select %p87, %s88, %s89
    %p93 = pneg %p87
    %p94 = scmp.eq.s32.totalorder %s10, 1
    %p95 = por %p93, %p94
    %p96 = scmp.ne.s32.totalorder %s88, %s91
    %p97 = scmp.eq.s32.totalorder %s10, 0
    %p98 = por %p96, %p97
    %p99 = scmp.ne.s32.totalorder %s88, %s91
    %p100 = scmp.eq.s32.totalorder %s15, 1
    %p101 = por %p99, %p100
    %p102 = scmp.ne.s32.totalorder %s91, %s92
    %p103 = scmp.eq.s32.totalorder %s15, 0
    %p104 = por %p102, %p103
    %p105 = scmp.ne.s32.totalorder %s91, %s92
    %p106 = scmp.eq.s32.totalorder %s16, 1
    %p107 = por %p105, %p106
    %p109 = scmp.ne.s32.totalorder %s92, %s108
    %p110 = scmp.eq.s32.totalorder %s16, 0
    %p111 = por %p109, %p110
    %s112 = ssub.s32 %s10, %s17
    %p113 = scmp.eq.s32.totalorder %s112, 0
    %s115 = sadd.s32 %s114, 1
    %s116 = scalar_select %p113, %s114, %s115
    %p119 = pneg %p113
    %p120 = scmp.eq.s32.totalorder %s10, 1
    %p121 = por %p119, %p120
    %p122 = scmp.ne.s32.totalorder %s114, %s117
    %p123 = scmp.eq.s32.totalorder %s10, 0
    %p124 = por %p122, %p123
    %p125 = scmp.ne.s32.totalorder %s114, %s117
    %p126 = scmp.eq.s32.totalorder %s15, 1
    %p127 = por %p125, %p126
    %p128 = scmp.ne.s32.totalorder %s117, %s118
    %p129 = scmp.eq.s32.totalorder %s15, 0
    %p130 = por %p128, %p129
    %p131 = scmp.ne.s32.totalorder %s117, %s118
    %p132 = scmp.eq.s32.totalorder %s16, 1
    %p133 = por %p131, %p132
    %p135 = scmp.ne.s32.totalorder %s118, %s134
    %p136 = scmp.eq.s32.totalorder %s16, 0
    %p137 = por %p135, %p136
    %p138 = scmp.le.s32.totalorder 1, %s10
    %p139 = scmp.lt.s32.totalorder %s10, 3
    %p140 = pnand %p138, %p139
    %p141 = pneg %p140
    // Predicated region
    $region9: #{forward.35} parent=5 // pred_check
      _
    $region10: #{forward.35} parent=5 // pred_check_branch
      %143 = sbr.rel (%p140) target = $region12
    $region11: #{forward.35} parent=5 // pred_region
      %s144 = ssub.s32 %s10, 1
      // Predicated region
      $region13: #{forward.35} parent=11 // pred_check
        %p145 = pneg %p57
      $region14: #{forward.35} parent=11 // pred_check_branch
        %147 = sbr.rel (%p145) target = $region16
      $region15: #{forward.35} parent=11 // pred_region
        _
      $region16: #{forward.35} parent=11 // pred_fallthru
        _
      // Predicated region
      $region17: #{forward.35} parent=11 // pred_check
        %p148 = pneg %p78
      $region18: #{forward.35} parent=11 // pred_check_branch
        %150 = sbr.rel (%p148) target = $region20
      $region19: #{forward.35} parent=11 // pred_region
        _
      $region20: #{forward.35} parent=11 // pred_fallthru
        _
    $region12: #{forward.35} parent=5 // pred_fallthru
      _
    %p151 = scmp.lt.s32.totalorder %s10, 2
    // Predicated region
    $region21: #{forward.35} parent=5 // pred_check
      %p152 = pneg %p151
    $region22: #{forward.35} parent=5 // pred_check_branch
      %154 = sbr.rel (%p152) target = $region24
    $region23: #{forward.35} parent=5 // pred_region
      // Predicated region
      $region25: #{forward.35} parent=23 // pred_check
        %p155 = pneg %p30
      $region26: #{forward.35} parent=23 // pred_check_branch
        %157 = sbr.rel (%p155) target = $region28
      $region27: #{forward.35} parent=23 // pred_region
        %p158 = scmp.lt.s32.totalorder %s10, 1
        %s159 = scalar_select %p158, %s10, 1
        %s160 = smul.addr %s159, 8
        %s161 = smul.addr %s160, 8
        %s162 = scalar_lea.vmem %s0, %s161
      $region28: #{forward.35} parent=23 // pred_fallthru
        _
      // Predicated region
      $region29: #{forward.35} parent=23 // pred_check
        %p163 = pneg %p98
      $region30: #{forward.35} parent=23 // pred_check_branch
        %165 = sbr.rel (%p163) target = $region32
      $region31: #{forward.35} parent=23 // pred_region
        %p166 = scmp.lt.s32.totalorder %s10, 1
        %s167 = scalar_select %p166, %s10, 1
        %s168 = smul.addr %s167, 8
        %s169 = smul.addr %s168, 8
        %s170 = scalar_lea.vmem %s3, %s169
      $region32: #{forward.35} parent=23 // pred_fallthru
        _
    $region24: #{forward.35} parent=5 // pred_fallthru
      _
    %p171 = scmp.le.s32.totalorder 1, %s10
    %p172 = scmp.lt.s32.totalorder %s10, 3
    %p173 = pnand %p171, %p172
    %p174 = pneg %p173
    // Predicated region
    $region33: #{forward.35} parent=5 // pred_check
      _
    $region34: #{forward.35} parent=5 // pred_check_branch
      %176 = sbr.rel (%p173) target = $region36
    $region35: #{forward.35} parent=5 // pred_region
      %s177 = ssub.s32 %s10, 1
      %p178 = scmp.lt.s32.totalorder %s15, 1
      %s179 = scalar_select %p178, %s15, 1
      %s180 = smul.addr %s179, 8
      %s181 = smul.addr %s180, 8
      %s182 = scalar_lea.vmem %s0, %s181
      %p183 = pneg %p36
      %p184 = pneg %p33
      %p185 = pneg %p57
      %p186 = pneg %p54
      %p187 = pneg %p78
      %p188 = pneg %p75
      %p189 = scmp.lt.s32.totalorder %s15, 1
      %s190 = scalar_select %p189, %s15, 1
      %s191 = smul.addr %s190, 8
      %s192 = smul.addr %s191, 8
      %s193 = scalar_lea.vmem %s3, %s192
      %p194 = pneg %p104
      %p195 = pneg %p101
      %p196 = pneg %p130
      %p197 = pneg %p127
      %p198 = scmp.lt.s32.totalorder %s15, 1
      %s199 = scalar_select %p198, %s15, 1
      %s200 = smul.addr %s199, 8
      %s201 = smul.addr %s200, 8
      %s202 = scalar_lea.vmem %s4, %s201
      %p203 = scmp.lt.s32.totalorder %s15, 1
      %s204 = scalar_select %p203, %s15, 1
      %s205 = smul.addr %s204, 8
      %s206 = smul.addr %s205, 8
      %s207 = scalar_lea.vmem %s0, %s206
      %p208 = scmp.lt.s32.totalorder %s15, 1
      %s209 = scalar_select %p208, %s15, 1
      %s210 = smul.addr %s209, 8
      %s211 = smul.addr %s210, 8
      %s212 = scalar_lea.vmem %s3, %s211
      %p213 = scmp.lt.s32.totalorder %s15, 1
      %s214 = scalar_select %p213, %s15, 1
      %s215 = smul.addr %s214, 8
      %s216 = smul.addr %s215, 8
      %s217 = scalar_lea.vmem %s4, %s216
      %v218 = vld [vmem:[%s207] sm:$0xff]
      %v219 = vld [vmem:[%s207 + $0x8] sm:$0xff]
      %v220 = vld [vmem:[%s207 + $0x10] sm:$0xff]
      %v221 = vld [vmem:[%s207 + $0x18] sm:$0xff]
      %v222 = vld [vmem:[%s207 + $0x20] sm:$0xff]
      %v223 = vld [vmem:[%s207 + $0x28] sm:$0xff]
      %v224 = vld [vmem:[%s207 + $0x30] sm:$0xff]
      %v225 = vld [vmem:[%s207 + $0x38] sm:$0xff]
      %v226 = vld [vmem:[%s1] sm:$0xff]
      %v227 = vld [vmem:[%s1 + $0x8] sm:$0xff]
      %v228 = vld [vmem:[%s1 + $0x10] sm:$0xff]
      %v229 = vld [vmem:[%s1 + $0x18] sm:$0xff]
      %v230 = vld [vmem:[%s1 + $0x20] sm:$0xff]
      %v231 = vld [vmem:[%s1 + $0x28] sm:$0xff]
      %v232 = vld [vmem:[%s1 + $0x30] sm:$0xff]
      %v233 = vld [vmem:[%s1 + $0x38] sm:$0xff]
      %235 = vset.pattern.permute.xlu0 0
      %236 = vperm.xlu0 %235, %v226
      %v237 = vpop.permute.xlu0 %236
      %240 = vset.pattern.permute.xlu0 0
      %241 = vperm.xlu0 %240, %v227
      %v242 = vpop.permute.xlu0 %241
      %245 = vset.pattern.permute.xlu0 0
      %246 = vperm.xlu0 %245, %v228
      %v247 = vpop.permute.xlu0 %246
      %250 = vset.pattern.permute.xlu0 0
      %251 = vperm.xlu0 %250, %v229
      %v252 = vpop.permute.xlu0 %251
      %255 = vset.pattern.permute.xlu0 0
      %256 = vperm.xlu0 %255, %v230
      %v257 = vpop.permute.xlu0 %256
      %260 = vset.pattern.permute.xlu0 0
      %261 = vperm.xlu0 %260, %v231
      %v262 = vpop.permute.xlu0 %261
      %265 = vset.pattern.permute.xlu0 0
      %266 = vperm.xlu0 %265, %v232
      %v267 = vpop.permute.xlu0 %266
      %270 = vset.pattern.permute.xlu0 0
      %271 = vperm.xlu0 %270, %v233
      %v272 = vpop.permute.xlu0 %271
      %v274 = vmul.f32 %v218, %v237
      %v275 = vmul.f32 %v219, %v242
      %v276 = vmul.f32 %v220, %v247
      %v277 = vmul.f32 %v221, %v252
      %v278 = vmul.f32 %v222, %v257
      %v279 = vmul.f32 %v223, %v262
      %v280 = vmul.f32 %v224, %v267
      %v281 = vmul.f32 %v225, %v272
      %v282 = vld [vmem:[%s2] sm:$0xff]
      %v283 = vld [vmem:[%s2 + $0x8] sm:$0xff]
      %v284 = vld [vmem:[%s2 + $0x10] sm:$0xff]
      %v285 = vld [vmem:[%s2 + $0x18] sm:$0xff]
      %v286 = vld [vmem:[%s2 + $0x20] sm:$0xff]
      %v287 = vld [vmem:[%s2 + $0x28] sm:$0xff]
      %v288 = vld [vmem:[%s2 + $0x30] sm:$0xff]
      %v289 = vld [vmem:[%s2 + $0x38] sm:$0xff]
      %291 = vset.pattern.permute.xlu0 0
      %292 = vperm.xlu0 %291, %v282
      %v293 = vpop.permute.xlu0 %292
      %296 = vset.pattern.permute.xlu0 0
      %297 = vperm.xlu0 %296, %v283
      %v298 = vpop.permute.xlu0 %297
      %301 = vset.pattern.permute.xlu0 0
      %302 = vperm.xlu0 %301, %v284
      %v303 = vpop.permute.xlu0 %302
      %306 = vset.pattern.permute.xlu0 0
      %307 = vperm.xlu0 %306, %v285
      %v308 = vpop.permute.xlu0 %307
      %311 = vset.pattern.permute.xlu0 0
      %312 = vperm.xlu0 %311, %v286
      %v313 = vpop.permute.xlu0 %312
      %316 = vset.pattern.permute.xlu0 0
      %317 = vperm.xlu0 %316, %v287
      %v318 = vpop.permute.xlu0 %317
      %321 = vset.pattern.permute.xlu0 0
      %322 = vperm.xlu0 %321, %v288
      %v323 = vpop.permute.xlu0 %322
      %326 = vset.pattern.permute.xlu0 0
      %327 = vperm.xlu0 %326, %v289
      %v328 = vpop.permute.xlu0 %327
      %v330 = vadd.f32 %v274, %v293
      %v331 = vadd.f32 %v275, %v298
      %v332 = vadd.f32 %v276, %v303
      %v333 = vadd.f32 %v277, %v308
      %v334 = vadd.f32 %v278, %v313
      %v335 = vadd.f32 %v279, %v318
      %v336 = vadd.f32 %v280, %v323
      %v337 = vadd.f32 %v281, %v328
      %v338 = vld [vmem:[%s212] sm:$0xff]
      %v339 = vld [vmem:[%s212 + $0x8] sm:$0xff]
      %v340 = vld [vmem:[%s212 + $0x10] sm:$0xff]
      %v341 = vld [vmem:[%s212 + $0x18] sm:$0xff]
      %v342 = vld [vmem:[%s212 + $0x20] sm:$0xff]
      %v343 = vld [vmem:[%s212 + $0x28] sm:$0xff]
      %v344 = vld [vmem:[%s212 + $0x30] sm:$0xff]
      %v345 = vld [vmem:[%s212 + $0x38] sm:$0xff]
      %v346 = vadd.f32 %v330, %v338
      %v347 = vadd.f32 %v331, %v339
      %v348 = vadd.f32 %v332, %v340
      %v349 = vadd.f32 %v333, %v341
      %v350 = vadd.f32 %v334, %v342
      %v351 = vadd.f32 %v335, %v343
      %v352 = vadd.f32 %v336, %v344
      %v353 = vadd.f32 %v337, %v345
      %v354 = vmax.f32 %v346, 0.0
      %v355 = vmax.f32 %v347, 0.0
      %v356 = vmax.f32 %v348, 0.0
      %v357 = vmax.f32 %v349, 0.0
      %v358 = vmax.f32 %v350, 0.0
      %v359 = vmax.f32 %v351, 0.0
      %v360 = vmax.f32 %v352, 0.0
      %v361 = vmax.f32 %v353, 0.0
      %vm362 = vcmask 523264
      %363 = vst.msk [vmem:[%s217] sm:$0xff] %vm362, %v354
      %364 = vst.msk [vmem:[%s217 + $0x8] sm:$0xff] %vm362, %v355
      %365 = vst.msk [vmem:[%s217 + $0x10] sm:$0xff] %vm362, %v356
      %366 = vst.msk [vmem:[%s217 + $0x18] sm:$0xff] %vm362, %v357
      %367 = vst.msk [vmem:[%s217 + $0x20] sm:$0xff] %vm362, %v358
      %368 = vst.msk [vmem:[%s217 + $0x28] sm:$0xff] %vm362, %v359
      %369 = vst.msk [vmem:[%s217 + $0x30] sm:$0xff] %vm362, %v360
      %370 = vst.msk [vmem:[%s217 + $0x38] sm:$0xff] %vm362, %v361
      %p371 = scmp.lt.s32.totalorder %s15, 1
      %s372 = scalar_select %p371, %s15, 1
      %s373 = smul.addr %s372, 8
      %s374 = smul.addr %s373, 8
      %s375 = scalar_lea.vmem %s4, %s374
      // Predicated region
      $region37: #{forward.35} parent=35 // pred_check
        %p376 = pneg %p127
      $region38: #{forward.35} parent=35 // pred_check_branch
        %378 = sbr.rel (%p376) target = $region40
      $region39: #{forward.35} parent=35 // pred_region
        _
      $region40: #{forward.35} parent=35 // pred_fallthru
        _
    $region36: #{forward.35} parent=5 // pred_fallthru
      _
    %p379 = scmp.le.s32.totalorder 2, %s10
    // Predicated region
    $region41: #{forward.35} parent=5 // pred_check
      %p380 = pneg %p379
    $region42: #{forward.35} parent=5 // pred_check_branch
      %382 = sbr.rel (%p380) target = $region44
    $region43: #{forward.35} parent=5 // pred_region
      %s383 = ssub.s32 %s10, 2
      // Predicated region
      $region45: #{forward.35} parent=43 // pred_check
        %p384 = pneg %p133
      $region46: #{forward.35} parent=43 // pred_check_branch
        %386 = sbr.rel (%p384) target = $region48
      $region47: #{forward.35} parent=43 // pred_region
        %p387 = scmp.lt.s32.totalorder %s16, 1
        %s388 = scalar_select %p387, %s16, 1
        %s389 = smul.addr %s388, 8
        %s390 = smul.addr %s389, 8
        %s391 = scalar_lea.vmem %s4, %s390
      $region48: #{forward.35} parent=43 // pred_fallthru
        _
    $region44: #{forward.35} parent=5 // pred_fallthru
      _
  $region6: #{forward.35} parent=0 // loop_footer
    %s14 = sadd.s32 1, %s10
  $region7: #{forward.35} parent=0 // loop_footer_branch
    %9 = sbr.rel target = $region3
  $region8: #{forward.35} parent=0 // loop_exit
    _

// kernel: forward.32
$region0: #{forward.32}
  #allocation0 [shape = 'u32[]', space=smem, size = 0x4, offset = 0x4, fixed_abs, tag = 'smem constant byte address 0x4 - core index']
  #allocation1 [shape = 'u32[72,128]{1,0:T(1,128)}', space=vmem, size = 0x9000, scoped, tag = 'internal scratch']
  %s0 = inlined_call_operand.vmem [shape: f32[2,64,66], index: 0, kind: input, shape index: {}]
  %s1 = inlined_call_operand.vmem [shape: f32[3,64,64], index: 1, kind: input, shape index: {}]
  %s2 = inlined_call_operand.vmem [shape: f32[2,64,64], index: 2, kind: output, shape index: {0}]
  %s3 = inlined_call_operand.vmem [shape: f32[2,64,2], index: 3, kind: output, shape index: {1}]
  %4 = xla_tuple %s2, %s3
  %s5 = sld [smem:[#allocation0]]
  $region49: #{forward.32} parent=0
    _
  %s7 = ssub.s32 1, %s5
  %s8 = scalar_select 0, %s7, %s5
  loop: start=0, step=1, limit=4
  $region2: #{forward.32} parent=0 // loop_pre_header
    _
  $region3: #{forward.32} parent=0 // loop_header
    %s10 = sphi 0, %s14
    %p11 = scmp.ge.s32.totalorder %s10, 4
    %s20 = sphi 0, %s22
    %s23 = sphi 0, %s20
    %s24 = sphi 0, %s23
    %s40 = sphi 0, %s24
    %s44 = sphi 0, %s44
    %s46 = sphi 0, %s44
    %s47 = sphi 0, %s46
    %s61 = sphi 0, %s47
    %s67 = sphi 0, %s69
    %s70 = sphi 0, %s67
    %s71 = sphi 0, %s70
    %s87 = sphi 0, %s71
    %s93 = sphi 0, %s95
    %s96 = sphi 0, %s93
    %s97 = sphi 0, %s96
    %s113 = sphi 0, %s97
  $region4: #{forward.32} parent=0 // loop_header_branch
    %13 = sbr.rel (%p11) target = $region8
  $region5: #{forward.32} parent=0 // loop_body
    %s15 = ssub.s32 %s10, 1
    %s16 = ssub.s32 %s10, 2
    %s17 = sadd.s32 %s10, 1
    %s18 = ssub.s32 %s10, %s17
    %p19 = scmp.eq.s32.totalorder %s18, 0
    %s21 = sadd.s32 %s20, 1
    %s22 = scalar_select %p19, %s20, %s21
    %p25 = pneg %p19
    %p26 = scmp.eq.s32.totalorder %s10, 1
    %p27 = por %p25, %p26
    %p28 = scmp.ne.s32.totalorder %s20, %s23
    %p29 = scmp.eq.s32.totalorder %s10, 0
    %p30 = por %p28, %p29
    %p31 = scmp.ne.s32.totalorder %s20, %s23
    %p32 = scmp.eq.s32.totalorder %s15, 1
    %p33 = por %p31, %p32
    %p34 = scmp.ne.s32.totalorder %s23, %s24
    %p35 = scmp.eq.s32.totalorder %s15, 0
    %p36 = por %p34, %p35
    %p37 = scmp.ne.s32.totalorder %s23, %s24
    %p38 = scmp.eq.s32.totalorder %s16, 1
    %p39 = por %p37, %p38
    %p41 = scmp.ne.s32.totalorder %s24, %s40
    %p42 = scmp.eq.s32.totalorder %s16, 0
    %p43 = por %p41, %p42
    %s45 = sadd.s32 %s44, 1
    %p48 = scmp.eq.s32.totalorder %s10, 1
    %p49 = scmp.ne.s32.totalorder %s44, %s46
    %p50 = scmp.eq.s32.totalorder %s10, 0
    %p51 = por %p49, %p50
    %p52 = scmp.ne.s32.totalorder %s44, %s46
    %p53 = scmp.eq.s32.totalorder %s15, 1
    %p54 = por %p52, %p53
    %p55 = scmp.ne.s32.totalorder %s46, %s47
    %p56 = scmp.eq.s32.totalorder %s15, 0
    %p57 = por %p55, %p56
    %p58 = scmp.ne.s32.totalorder %s46, %s47
    %p59 = scmp.eq.s32.totalorder %s16, 1
    %p60 = por %p58, %p59
    %p62 = scmp.ne.s32.totalorder %s47, %s61
    %p63 = scmp.eq.s32.totalorder %s16, 0
    %p64 = por %p62, %p63
    %s65 = ssub.s32 %s10, %s17
    %p66 = scmp.eq.s32.totalorder %s65, 0
    %s68 = sadd.s32 %s67, 1
    %s69 = scalar_select %p66, %s67, %s68
    %p72 = pneg %p66
    %p73 = scmp.eq.s32.totalorder %s10, 1
    %p74 = por %p72, %p73
    %p75 = scmp.ne.s32.totalorder %s67, %s70
    %p76 = scmp.eq.s32.totalorder %s10, 0
    %p77 = por %p75, %p76
    %p78 = scmp.ne.s32.totalorder %s67, %s70
    %p79 = scmp.eq.s32.totalorder %s15, 1
    %p80 = por %p78, %p79
    %p81 = scmp.ne.s32.totalorder %s70, %s71
    %p82 = scmp.eq.s32.totalorder %s15, 0
    %p83 = por %p81, %p82
    %p84 = scmp.ne.s32.totalorder %s70, %s71
    %p85 = scmp.eq.s32.totalorder %s16, 1
    %p86 = por %p84, %p85
    %p88 = scmp.ne.s32.totalorder %s71, %s87
    %p89 = scmp.eq.s32.totalorder %s16, 0
    %p90 = por %p88, %p89
    %s91 = ssub.s32 %s10, %s17
    %p92 = scmp.eq.s32.totalorder %s91, 0
    %s94 = sadd.s32 %s93, 1
    %s95 = scalar_select %p92, %s93, %s94
    %p98 = pneg %p92
    %p99 = scmp.eq.s32.totalorder %s10, 1
    %p100 = por %p98, %p99
    %p101 = scmp.ne.s32.totalorder %s93, %s96
    %p102 = scmp.eq.s32.totalorder %s10, 0
    %p103 = por %p101, %p102
    %p104 = scmp.ne.s32.totalorder %s93, %s96
    %p105 = scmp.eq.s32.totalorder %s15, 1
    %p106 = por %p104, %p105
    %p107 = scmp.ne.s32.totalorder %s96, %s97
    %p108 = scmp.eq.s32.totalorder %s15, 0
    %p109 = por %p107, %p108
    %p110 = scmp.ne.s32.totalorder %s96, %s97
    %p111 = scmp.eq.s32.totalorder %s16, 1
    %p112 = por %p110, %p111
    %p114 = scmp.ne.s32.totalorder %s97, %s113
    %p115 = scmp.eq.s32.totalorder %s16, 0
    %p116 = por %p114, %p115
    %p117 = scmp.le.s32.totalorder 1, %s10
    %p118 = scmp.lt.s32.totalorder %s10, 3
    %p119 = pnand %p117, %p118
    %p120 = pneg %p119
    // Predicated region
    $region9: #{forward.32} parent=5 // pred_check
      _
    $region10: #{forward.32} parent=5 // pred_check_branch
      %122 = sbr.rel (%p119) target = $region12
    $region11: #{forward.32} parent=5 // pred_region
      %s123 = ssub.s32 %s10, 1
      // Predicated region
      $region13: #{forward.32} parent=11 // pred_check
        %p124 = pneg %p57
      $region14: #{forward.32} parent=11 // pred_check_branch
        %126 = sbr.rel (%p124) target = $region16
      $region15: #{forward.32} parent=11 // pred_region
        _
      $region16: #{forward.32} parent=11 // pred_fallthru
        _
    $region12: #{forward.32} parent=5 // pred_fallthru
      _
    %p127 = scmp.lt.s32.totalorder %s10, 2
    // Predicated region
    $region17: #{forward.32} parent=5 // pred_check
      %p128 = pneg %p127
    $region18: #{forward.32} parent=5 // pred_check_branch
      %130 = sbr.rel (%p128) target = $region20
    $region19: #{forward.32} parent=5 // pred_region
      // Predicated region
      $region21: #{forward.32} parent=19 // pred_check
        %p131 = pneg %p30
      $region22: #{forward.32} parent=19 // pred_check_branch
        %133 = sbr.rel (%p131) target = $region24
      $region23: #{forward.32} parent=19 // pred_region
        %p134 = scmp.lt.s32.totalorder %s10, 1
        %s135 = scalar_select %p134, %s10, 1
        %s136 = smul.addr %s135, 8
        %s137 = smul.addr %s136, 8
        %s138 = scalar_lea.vmem %s0, %s137
      $region24: #{forward.32} parent=19 // pred_fallthru
        _
    $region20: #{forward.32} parent=5 // pred_fallthru
      _
    %p139 = scmp.le.s32.totalorder 1, %s10
    %p140 = scmp.lt.s32.totalorder %s10, 3
    %p141 = pnand %p139, %p140
    %p142 = pneg %p141
    // Predicated region
    $region25: #{forward.32} parent=5 // pred_check
      _
    $region26: #{forward.32} parent=5 // pred_check_branch
      %144 = sbr.rel (%p141) target = $region28
    $region27: #{forward.32} parent=5 // pred_region
      %s145 = ssub.s32 %s10, 1
      %p146 = scmp.lt.s32.totalorder %s15, 1
      %s147 = scalar_select %p146, %s15, 1
      %s148 = smul.addr %s147, 8
      %s149 = smul.addr %s148, 8
      %s150 = scalar_lea.vmem %s0, %s149
      %p151 = pneg %p36
      %p152 = pneg %p33
      %p153 = pneg %p57
      %p154 = pneg %p54
      %p155 = pneg %p83
      %p156 = pneg %p80
      %p157 = scmp.lt.s32.totalorder %s15, 1
      %s158 = scalar_select %p157, %s15, 1
      %s159 = smul.addr %s158, 8
      %s160 = smul.addr %s159, 8
      %s161 = scalar_lea.vmem %s2, %s160
      %p162 = pneg %p109
      %p163 = pneg %p106
      %p164 = scmp.lt.s32.totalorder %s15, 1
      %s165 = scalar_select %p164, %s15, 1
      %s166 = smul.addr %s165, 8
      %s167 = smul.addr %s166, 8
      %s168 = scalar_lea.vmem %s3, %s167
      %p169 = scmp.lt.s32.totalorder %s15, 1
      %s170 = scalar_select %p169, %s15, 1
      %s171 = smul.addr %s170, 8
      %s172 = smul.addr %s171, 8
      %s173 = scalar_lea.vmem %s0, %s172
      %p174 = scmp.lt.s32.totalorder %s15, 1
      %s175 = scalar_select %p174, %s15, 1
      %s176 = smul.addr %s175, 8
      %s177 = smul.addr %s176, 8
      %s178 = scalar_lea.vmem %s2, %s177
      %p179 = scmp.lt.s32.totalorder %s15, 1
      %s180 = scalar_select %p179, %s15, 1
      %s181 = smul.addr %s180, 8
      %s182 = smul.addr %s181, 8
      %s183 = scalar_lea.vmem %s3, %s182
      %v185 = vld [vmem:[%s173] sm:$0xff]
      %v186 = vld [vmem:[%s173 + $0x8] sm:$0xff]
      %v187 = vld [vmem:[%s173 + $0x10] sm:$0xff]
      %v188 = vld [vmem:[%s173 + $0x18] sm:$0xff]
      %v189 = vld [vmem:[%s173 + $0x20] sm:$0xff]
      %v190 = vld [vmem:[%s173 + $0x28] sm:$0xff]
      %v191 = vld [vmem:[%s173 + $0x30] sm:$0xff]
      %v192 = vld [vmem:[%s173 + $0x38] sm:$0xff]
      %v193 = vpack.c.bf16 %v186, %v185
      %v194 = vpack.c.bf16 %v188, %v187
      %v195 = vpack.c.bf16 %v190, %v189
      %v196 = vpack.c.bf16 %v192, %v191
      %v197 = vld [vmem:[%s1] sm:$0xff]
      %v198 = vld [vmem:[%s1 + $0x8] sm:$0xff]
      %v199 = vld [vmem:[%s1 + $0x10] sm:$0xff]
      %v200 = vld [vmem:[%s1 + $0x18] sm:$0xff]
      %v201 = vld [vmem:[%s1 + $0x20] sm:$0xff]
      %v202 = vld [vmem:[%s1 + $0x28] sm:$0xff]
      %v203 = vld [vmem:[%s1 + $0x30] sm:$0xff]
      %v204 = vld [vmem:[%s1 + $0x38] sm:$0xff]
      %v205 = vpack.c.bf16 %v198, %v197
      %v206 = vpack.c.bf16 %v200, %v199
      %v207 = vpack.c.bf16 %v202, %v201
      %v208 = vpack.c.bf16 %v204, %v203
      %s209 = scalar_lea.vmem %s1, 64
      %v210 = vld [vmem:[%s209] sm:$0xff]
      %v211 = vld [vmem:[%s209 + $0x8] sm:$0xff]
      %v212 = vld [vmem:[%s209 + $0x10] sm:$0xff]
      %v213 = vld [vmem:[%s209 + $0x18] sm:$0xff]
      %v214 = vld [vmem:[%s209 + $0x20] sm:$0xff]
      %v215 = vld [vmem:[%s209 + $0x28] sm:$0xff]
      %v216 = vld [vmem:[%s209 + $0x30] sm:$0xff]
      %v217 = vld [vmem:[%s209 + $0x38] sm:$0xff]
      %v218 = vpack.c.bf16 %v211, %v210
      %v219 = vpack.c.bf16 %v213, %v212
      %v220 = vpack.c.bf16 %v215, %v214
      %v221 = vpack.c.bf16 %v217, %v216
      %226 = vrot.lane.b32.xlu0 %v193, 127
      %v227 = vpop.permute.xlu0 %226
      %228 = vrot.lane.b32.xlu0 %v194, 127
      %v229 = vpop.permute.xlu0 %228
      %230 = vrot.lane.b32.xlu0 %v195, 127
      %v231 = vpop.permute.xlu0 %230
      %232 = vrot.lane.b32.xlu0 %v196, 127
      %v233 = vpop.permute.xlu0 %232
      %vm238 = vcmask 523264
      %v240 = vsel %vm238, %v218, 0
      %v243 = vsel %vm238, %v219, 0
      %v246 = vsel %vm238, %v220, 0
      %v249 = vsel %vm238, %v221, 0
      %251 = vmatpush.bf16.msra.mxu0 0
      %252 = vmatpush.bf16.msra.mxu0 0
      %253 = vmatpush.bf16.msra.mxu0 0
      %254 = vmatpush.bf16.msra.mxu0 0
      %255 = vmatpush.bf16.msra.mxu0 %v233
      %256 = vmatpush.bf16.msra.mxu0 %v231
      %257 = vmatpush.bf16.msra.mxu0 %v229
      %258 = vmatpush.bf16.msra.mxu0 %v227
      %259 = vmatmul.bf16.gmra.mxu0 %v240
      %v260 = vpop.f32.mrf.mxu0
      %v261 = vadd.f32 0.0, %v260
      %v262 = vpop.f32.mrf.mxu0
      %v263 = vadd.f32 0.0, %v262
      %264 = vmatmul.bf16.gmra.mxu0 %v243
      %v265 = vpop.f32.mrf.mxu0
      %v266 = vadd.f32 0.0, %v265
      %v267 = vpop.f32.mrf.mxu0
      %v268 = vadd.f32 0.0, %v267
      %269 = vmatmul.bf16.gmra.mxu0 %v246
      %v270 = vpop.f32.mrf.mxu0
      %v271 = vadd.f32 0.0, %v270
      %v272 = vpop.f32.mrf.mxu0
      %v273 = vadd.f32 0.0, %v272
      %274 = vmatmul.bf16.gmra.mxu0 %v249
      %v275 = vpop.f32.mrf.mxu0
      %v276 = vadd.f32 0.0, %v275
      %v277 = vpop.f32.mrf.mxu0
      %v278 = vadd.f32 0.0, %v277
      %279 = vdwg.mxu0
      %v281 = vsel %vm238, %v205, 0
      %v284 = vsel %vm238, %v206, 0
      %v287 = vsel %vm238, %v207, 0
      %v290 = vsel %vm238, %v208, 0
      %292 = vmatpush.bf16.msra.mxu0 0
      %293 = vmatpush.bf16.msra.mxu0 0
      %294 = vmatpush.bf16.msra.mxu0 0
      %295 = vmatpush.bf16.msra.mxu0 0
      %296 = vmatpush.bf16.msra.mxu0 %v196
      %297 = vmatpush.bf16.msra.mxu0 %v195
      %298 = vmatpush.bf16.msra.mxu0 %v194
      %299 = vmatpush.bf16.msra.mxu0 %v193
      %300 = vmatmul.bf16.gmra.mxu0 %v281
      %v301 = vpop.f32.mrf.mxu0
      %v302 = vadd.f32 %v261, %v301
      %v303 = vpop.f32.mrf.mxu0
      %v304 = vadd.f32 %v263, %v303
      %305 = vmatmul.bf16.gmra.mxu0 %v284
      %v306 = vpop.f32.mrf.mxu0
      %v307 = vadd.f32 %v266, %v306
      %v308 = vpop.f32.mrf.mxu0
      %v309 = vadd.f32 %v268, %v308
      %310 = vmatmul.bf16.gmra.mxu0 %v287
      %v311 = vpop.f32.mrf.mxu0
      %v312 = vadd.f32 %v271, %v311
      %v313 = vpop.f32.mrf.mxu0
      %v314 = vadd.f32 %v273, %v313
      %315 = vmatmul.bf16.gmra.mxu0 %v290
      %v316 = vpop.f32.mrf.mxu0
      %v317 = vadd.f32 %v276, %v316
      %v318 = vpop.f32.mrf.mxu0
      %v319 = vadd.f32 %v278, %v318
      %320 = vdwg.mxu0
      %s321 = scalar_lea.vmem %s1, 128
      %v322 = vld [vmem:[%s321] sm:$0xff]
      %v323 = vld [vmem:[%s321 + $0x8] sm:$0xff]
      %v324 = vld [vmem:[%s321 + $0x10] sm:$0xff]
      %v325 = vld [vmem:[%s321 + $0x18] sm:$0xff]
      %v326 = vld [vmem:[%s321 + $0x20] sm:$0xff]
      %v327 = vld [vmem:[%s321 + $0x28] sm:$0xff]
      %v328 = vld [vmem:[%s321 + $0x30] sm:$0xff]
      %v329 = vld [vmem:[%s321 + $0x38] sm:$0xff]
      %v330 = vpack.c.bf16 %v323, %v322
      %v331 = vpack.c.bf16 %v325, %v324
      %v332 = vpack.c.bf16 %v327, %v326
      %v333 = vpack.c.bf16 %v329, %v328
      %334 = vrot.lane.b32.xlu0 %v193, 126
      %v335 = vpop.permute.xlu0 %334
      %336 = vrot.lane.b32.xlu0 %v194, 126
      %v337 = vpop.permute.xlu0 %336
      %338 = vrot.lane.b32.xlu0 %v195, 126
      %v339 = vpop.permute.xlu0 %338
      %340 = vrot.lane.b32.xlu0 %v196, 126
      %v341 = vpop.permute.xlu0 %340
      %v347 = vsel %vm238, %v330, 0
      %v350 = vsel %vm238, %v331, 0
      %v353 = vsel %vm238, %v332, 0
      %v356 = vsel %vm238, %v333, 0
      %358 = vmatpush.bf16.msra.mxu0 0
      %359 = vmatpush.bf16.msra.mxu0 0
      %360 = vmatpush.bf16.msra.mxu0 0
      %361 = vmatpush.bf16.msra.mxu0 0
      %362 = vmatpush.bf16.msra.mxu0 %v341
      %363 = vmatpush.bf16.msra.mxu0 %v339
      %364 = vmatpush.bf16.msra.mxu0 %v337
      %365 = vmatpush.bf16.msra.mxu0 %v335
      %366 = vmatmul.bf16.gmra.mxu0 %v347
      %v367 = vpop.f32.mrf.mxu0
      %v368 = vadd.f32 0.0, %v367
      %v369 = vpop.f32.mrf.mxu0
      %v370 = vadd.f32 0.0, %v369
      %371 = vmatmul.bf16.gmra.mxu0 %v350
      %v372 = vpop.f32.mrf.mxu0
      %v373 = vadd.f32 0.0, %v372
      %v374 = vpop.f32.mrf.mxu0
      %v375 = vadd.f32 0.0, %v374
      %376 = vmatmul.bf16.gmra.mxu0 %v353
      %v377 = vpop.f32.mrf.mxu0
      %v378 = vadd.f32 0.0, %v377
      %v379 = vpop.f32.mrf.mxu0
      %v380 = vadd.f32 0.0, %v379
      %381 = vmatmul.bf16.gmra.mxu0 %v356
      %v382 = vpop.f32.mrf.mxu0
      %v383 = vadd.f32 0.0, %v382
      %v384 = vpop.f32.mrf.mxu0
      %v385 = vadd.f32 0.0, %v384
      %386 = vdwg.mxu0
      %v387 = vadd.f32 %v302, %v368
      %v388 = vadd.f32 %v304, %v370
      %v389 = vadd.f32 %v307, %v373
      %v390 = vadd.f32 %v309, %v375
      %v391 = vadd.f32 %v312, %v378
      %v392 = vadd.f32 %v314, %v380
      %v393 = vadd.f32 %v317, %v383
      %v394 = vadd.f32 %v319, %v385
      %395 = vst.msk [vmem:[%s178] sm:$0xff] %vm238, %v387
      %396 = vst.msk [vmem:[%s178 + $0x8] sm:$0xff] %vm238, %v388
      %397 = vst.msk [vmem:[%s178 + $0x10] sm:$0xff] %vm238, %v389
      %398 = vst.msk [vmem:[%s178 + $0x18] sm:$0xff] %vm238, %v390
      %399 = vst.msk [vmem:[%s178 + $0x20] sm:$0xff] %vm238, %v391
      %400 = vst.msk [vmem:[%s178 + $0x28] sm:$0xff] %vm238, %v392
      %401 = vst.msk [vmem:[%s178 + $0x30] sm:$0xff] %vm238, %v393
      %402 = vst.msk [vmem:[%s178 + $0x38] sm:$0xff] %vm238, %v394
      %v403 = vsel %vm238, %v387, 0.0
      %404 = vadd.xlane.f32.xlu0 %v403
      %v405 = vpop.xlane.xlu0 %404
      %v406 = vsel %vm238, %v388, 0.0
      %407 = vadd.xlane.f32.xlu0 %v406
      %v408 = vpop.xlane.xlu0 %407
      %v409 = vsel %vm238, %v389, 0.0
      %410 = vadd.xlane.f32.xlu0 %v409
      %v411 = vpop.xlane.xlu0 %410
      %v412 = vsel %vm238, %v390, 0.0
      %413 = vadd.xlane.f32.xlu0 %v412
      %v414 = vpop.xlane.xlu0 %413
      %v415 = vsel %vm238, %v391, 0.0
      %416 = vadd.xlane.f32.xlu0 %v415
      %v417 = vpop.xlane.xlu0 %416
      %v418 = vsel %vm238, %v392, 0.0
      %419 = vadd.xlane.f32.xlu0 %v418
      %v420 = vpop.xlane.xlu0 %419
      %v421 = vsel %vm238, %v393, 0.0
      %422 = vadd.xlane.f32.xlu0 %v421
      %v423 = vpop.xlane.xlu0 %422
      %v424 = vsel %vm238, %v394, 0.0
      %425 = vadd.xlane.f32.xlu0 %v424
      %v426 = vpop.xlane.xlu0 %425
      %vm427 = vcmask 7168
      %428 = vst.msk [vmem:[%s183] sm:$0xff] %vm427, %v405
      %429 = vst.msk [vmem:[%s183 + $0x8] sm:$0xff] %vm427, %v408
      %430 = vst.msk [vmem:[%s183 + $0x10] sm:$0xff] %vm427, %v411
      %431 = vst.msk [vmem:[%s183 + $0x18] sm:$0xff] %vm427, %v414
      %432 = vst.msk [vmem:[%s183 + $0x20] sm:$0xff] %vm427, %v417
      %433 = vst.msk [vmem:[%s183 + $0x28] sm:$0xff] %vm427, %v420
      %434 = vst.msk [vmem:[%s183 + $0x30] sm:$0xff] %vm427, %v423
      %435 = vst.msk [vmem:[%s183 + $0x38] sm:$0xff] %vm427, %v426
      %v436 = vmul.f32 %v387, %v387
      %v437 = vmul.f32 %v388, %v388
      %v438 = vmul.f32 %v389, %v389
      %v439 = vmul.f32 %v390, %v390
      %v440 = vmul.f32 %v391, %v391
      %v441 = vmul.f32 %v392, %v392
      %v442 = vmul.f32 %v393, %v393
      %v443 = vmul.f32 %v394, %v394
      %v444 = vsel %vm238, %v436, 0.0
      %445 = vadd.xlane.f32.xlu0 %v444
      %v446 = vpop.xlane.xlu0 %445
      %v447 = vsel %vm238, %v437, 0.0
      %448 = vadd.xlane.f32.xlu0 %v447
      %v449 = vpop.xlane.xlu0 %448
      %v450 = vsel %vm238, %v438, 0.0
      %451 = vadd.xlane.f32.xlu0 %v450
      %v452 = vpop.xlane.xlu0 %451
      %v453 = vsel %vm238, %v439, 0.0
      %454 = vadd.xlane.f32.xlu0 %v453
      %v455 = vpop.xlane.xlu0 %454
      %v456 = vsel %vm238, %v440, 0.0
      %457 = vadd.xlane.f32.xlu0 %v456
      %v458 = vpop.xlane.xlu0 %457
      %v459 = vsel %vm238, %v441, 0.0
      %460 = vadd.xlane.f32.xlu0 %v459
      %v461 = vpop.xlane.xlu0 %460
      %v462 = vsel %vm238, %v442, 0.0
      %463 = vadd.xlane.f32.xlu0 %v462
      %v464 = vpop.xlane.xlu0 %463
      %v465 = vsel %vm238, %v443, 0.0
      %466 = vadd.xlane.f32.xlu0 %v465
      %v467 = vpop.xlane.xlu0 %466
      %vm468 = vcmask 15368
      %469 = vst.msk [vmem:[%s183] sm:$0xff] %vm468, %v446
      %470 = vst.msk [vmem:[%s183 + $0x8] sm:$0xff] %vm468, %v449
      %471 = vst.msk [vmem:[%s183 + $0x10] sm:$0xff] %vm468, %v452
      %472 = vst.msk [vmem:[%s183 + $0x18] sm:$0xff] %vm468, %v455
      %473 = vst.msk [vmem:[%s183 + $0x20] sm:$0xff] %vm468, %v458
      %474 = vst.msk [vmem:[%s183 + $0x28] sm:$0xff] %vm468, %v461
      %475 = vst.msk [vmem:[%s183 + $0x30] sm:$0xff] %vm468, %v464
      %476 = vst.msk [vmem:[%s183 + $0x38] sm:$0xff] %vm468, %v467
      %p477 = scmp.lt.s32.totalorder %s15, 1
      %s478 = scalar_select %p477, %s15, 1
      %s479 = smul.addr %s478, 8
      %s480 = smul.addr %s479, 8
      %s481 = scalar_lea.vmem %s2, %s480
      %p482 = scmp.lt.s32.totalorder %s15, 1
      %s483 = scalar_select %p482, %s15, 1
      %s484 = smul.addr %s483, 8
      %s485 = smul.addr %s484, 8
      %s486 = scalar_lea.vmem %s3, %s485
      // Predicated region
      $region29: #{forward.32} parent=27 // pred_check
        %p487 = pneg %p80
      $region30: #{forward.32} parent=27 // pred_check_branch
        %489 = sbr.rel (%p487) target = $region32
      $region31: #{forward.32} parent=27 // pred_region
        _
      $region32: #{forward.32} parent=27 // pred_fallthru
        _
      // Predicated region
      $region33: #{forward.32} parent=27 // pred_check
        %p490 = pneg %p106
      $region34: #{forward.32} parent=27 // pred_check_branch
        %492 = sbr.rel (%p490) target = $region36
      $region35: #{forward.32} parent=27 // pred_region
        _
      $region36: #{forward.32} parent=27 // pred_fallthru
        _
    $region28: #{forward.32} parent=5 // pred_fallthru
      _
    %p493 = scmp.le.s32.totalorder 2, %s10
    // Predicated region
    $region37: #{forward.32} parent=5 // pred_check
      %p494 = pneg %p493
    $region38: #{forward.32} parent=5 // pred_check_branch
      %496 = sbr.rel (%p494) target = $region40
    $region39: #{forward.32} parent=5 // pred_region
      %s497 = ssub.s32 %s10, 2
      // Predicated region
      $region41: #{forward.32} parent=39 // pred_check
        %p498 = pneg %p86
      $region42: #{forward.32} parent=39 // pred_check_branch
        %500 = sbr.rel (%p498) target = $region44
      $region43: #{forward.32} parent=39 // pred_region
        %p501 = scmp.lt.s32.totalorder %s16, 1
        %s502 = scalar_select %p501, %s16, 1
        %s503 = smul.addr %s502, 8
        %s504 = smul.addr %s503, 8
        %s505 = scalar_lea.vmem %s2, %s504
      $region44: #{forward.32} parent=39 // pred_fallthru
        _
      // Predicated region
      $region45: #{forward.32} parent=39 // pred_check
        %p506 = pneg %p112
      $region46: #{forward.32} parent=39 // pred_check_branch
        %508 = sbr.rel (%p506) target = $region48
      $region47: #{forward.32} parent=39 // pred_region
        %p509 = scmp.lt.s32.totalorder %s16, 1
        %s510 = scalar_select %p509, %s16, 1
        %s511 = smul.addr %s510, 8
        %s512 = smul.addr %s511, 8
        %s513 = scalar_lea.vmem %s3, %s512
      $region48: #{forward.32} parent=39 // pred_fallthru
        _
    $region40: #{forward.32} parent=5 // pred_fallthru
      _
  $region6: #{forward.32} parent=0 // loop_footer
    %s14 = sadd.s32 1, %s10
  $region7: #{forward.32} parent=0 // loop_footer_branch
    %9 = sbr.rel target = $region3
  $region8: #{forward.32} parent=0 // loop_exit
    _

// kernel: forward.31
$region0: #{forward.31}
  #allocation0 [shape = 'u32[]', space=smem, size = 0x4, offset = 0x4, fixed_abs, tag = 'smem constant byte address 0x4 - core index']
  #allocation1 [shape = 'u32[72,128]{1,0:T(1,128)}', space=vmem, size = 0x9000, scoped, tag = 'internal scratch']
  #allocation2 [shape = 'f32[2,70]{1,0:T(2,128)}', space=vmem, size = 0x400, scoped, tag = 'scratch operand']
  %s0 = inlined_call_operand.vmem [shape: f32[2,64,64], index: 0, kind: input, shape index: {}]
  %s1 = inlined_call_operand.vmem [shape: f32[2,64,1], index: 1, kind: input, shape index: {}]
  %s2 = inlined_call_operand.vmem [shape: f32[2,7], index: 2, kind: input, shape index: {}]
  %s3 = inlined_call_operand.vmem [shape: f32[2,64,64], index: 3, kind: output, shape index: {}]
  %s4 = sld [smem:[#allocation0]]
  $region45: #{forward.31} parent=0
    _
  %s6 = ssub.s32 1, %s4
  %s7 = scalar_select 0, %s6, %s4
  loop: start=0, step=1, limit=4
  $region2: #{forward.31} parent=0 // loop_pre_header
    _
  $region3: #{forward.31} parent=0 // loop_header
    %s9 = sphi 0, %s13
    %p10 = scmp.ge.s32.totalorder %s9, 4
    %s19 = sphi 0, %s21
    %s22 = sphi 0, %s19
    %s23 = sphi 0, %s22
    %s39 = sphi 0, %s23
    %s45 = sphi 0, %s47
    %s48 = sphi 0, %s45
    %s49 = sphi 0, %s48
    %s65 = sphi 0, %s49
    %s69 = sphi 0, %s69
    %s71 = sphi 0, %s69
    %s72 = sphi 0, %s71
    %s86 = sphi 0, %s72
    %s92 = sphi 0, %s94
    %s95 = sphi 0, %s92
    %s96 = sphi 0, %s95
    %s112 = sphi 0, %s96
  $region4: #{forward.31} parent=0 // loop_header_branch
    %12 = sbr.rel (%p10) target = $region8
  $region5: #{forward.31} parent=0 // loop_body
    %s14 = ssub.s32 %s9, 1
    %s15 = ssub.s32 %s9, 2
    %s16 = sadd.s32 %s9, 1
    %s17 = ssub.s32 %s9, %s16
    %p18 = scmp.eq.s32.totalorder %s17, 0
    %s20 = sadd.s32 %s19, 1
    %s21 = scalar_select %p18, %s19, %s20
    %p24 = pneg %p18
    %p25 = scmp.eq.s32.totalorder %s9, 1
    %p26 = por %p24, %p25
    %p27 = scmp.ne.s32.totalorder %s19, %s22
    %p28 = scmp.eq.s32.totalorder %s9, 0
    %p29 = por %p27, %p28
    %p30 = scmp.ne.s32.totalorder %s19, %s22
    %p31 = scmp.eq.s32.totalorder %s14, 1
    %p32 = por %p30, %p31
    %p33 = scmp.ne.s32.totalorder %s22, %s23
    %p34 = scmp.eq.s32.totalorder %s14, 0
    %p35 = por %p33, %p34
    %p36 = scmp.ne.s32.totalorder %s22, %s23
    %p37 = scmp.eq.s32.totalorder %s15, 1
    %p38 = por %p36, %p37
    %p40 = scmp.ne.s32.totalorder %s23, %s39
    %p41 = scmp.eq.s32.totalorder %s15, 0
    %p42 = por %p40, %p41
    %s43 = ssub.s32 %s9, %s16
    %p44 = scmp.eq.s32.totalorder %s43, 0
    %s46 = sadd.s32 %s45, 1
    %s47 = scalar_select %p44, %s45, %s46
    %p50 = pneg %p44
    %p51 = scmp.eq.s32.totalorder %s9, 1
    %p52 = por %p50, %p51
    %p53 = scmp.ne.s32.totalorder %s45, %s48
    %p54 = scmp.eq.s32.totalorder %s9, 0
    %p55 = por %p53, %p54
    %p56 = scmp.ne.s32.totalorder %s45, %s48
    %p57 = scmp.eq.s32.totalorder %s14, 1
    %p58 = por %p56, %p57
    %p59 = scmp.ne.s32.totalorder %s48, %s49
    %p60 = scmp.eq.s32.totalorder %s14, 0
    %p61 = por %p59, %p60
    %p62 = scmp.ne.s32.totalorder %s48, %s49
    %p63 = scmp.eq.s32.totalorder %s15, 1
    %p64 = por %p62, %p63
    %p66 = scmp.ne.s32.totalorder %s49, %s65
    %p67 = scmp.eq.s32.totalorder %s15, 0
    %p68 = por %p66, %p67
    %s70 = sadd.s32 %s69, 1
    %p73 = scmp.eq.s32.totalorder %s9, 1
    %p74 = scmp.ne.s32.totalorder %s69, %s71
    %p75 = scmp.eq.s32.totalorder %s9, 0
    %p76 = por %p74, %p75
    %p77 = scmp.ne.s32.totalorder %s69, %s71
    %p78 = scmp.eq.s32.totalorder %s14, 1
    %p79 = por %p77, %p78
    %p80 = scmp.ne.s32.totalorder %s71, %s72
    %p81 = scmp.eq.s32.totalorder %s14, 0
    %p82 = por %p80, %p81
    %p83 = scmp.ne.s32.totalorder %s71, %s72
    %p84 = scmp.eq.s32.totalorder %s15, 1
    %p85 = por %p83, %p84
    %p87 = scmp.ne.s32.totalorder %s72, %s86
    %p88 = scmp.eq.s32.totalorder %s15, 0
    %p89 = por %p87, %p88
    %s90 = ssub.s32 %s9, %s16
    %p91 = scmp.eq.s32.totalorder %s90, 0
    %s93 = sadd.s32 %s92, 1
    %s94 = scalar_select %p91, %s92, %s93
    %p97 = pneg %p91
    %p98 = scmp.eq.s32.totalorder %s9, 1
    %p99 = por %p97, %p98
    %p100 = scmp.ne.s32.totalorder %s92, %s95
    %p101 = scmp.eq.s32.totalorder %s9, 0
    %p102 = por %p100, %p101
    %p103 = scmp.ne.s32.totalorder %s92, %s95
    %p104 = scmp.eq.s32.totalorder %s14, 1
    %p105 = por %p103, %p104
    %p106 = scmp.ne.s32.totalorder %s95, %s96
    %p107 = scmp.eq.s32.totalorder %s14, 0
    %p108 = por %p106, %p107
    %p109 = scmp.ne.s32.totalorder %s95, %s96
    %p110 = scmp.eq.s32.totalorder %s15, 1
    %p111 = por %p109, %p110
    %p113 = scmp.ne.s32.totalorder %s96, %s112
    %p114 = scmp.eq.s32.totalorder %s15, 0
    %p115 = por %p113, %p114
    %p116 = scmp.le.s32.totalorder 1, %s9
    %p117 = scmp.lt.s32.totalorder %s9, 3
    %p118 = pnand %p116, %p117
    %p119 = pneg %p118
    // Predicated region
    $region9: #{forward.31} parent=5 // pred_check
      _
    $region10: #{forward.31} parent=5 // pred_check_branch
      %121 = sbr.rel (%p118) target = $region12
    $region11: #{forward.31} parent=5 // pred_region
      %s122 = ssub.s32 %s9, 1
      // Predicated region
      $region13: #{forward.31} parent=11 // pred_check
        %p123 = pneg %p82
      $region14: #{forward.31} parent=11 // pred_check_branch
        %125 = sbr.rel (%p123) target = $region16
      $region15: #{forward.31} parent=11 // pred_region
        _
      $region16: #{forward.31} parent=11 // pred_fallthru
        _
    $region12: #{forward.31} parent=5 // pred_fallthru
      _
    %p126 = scmp.lt.s32.totalorder %s9, 2
    // Predicated region
    $region17: #{forward.31} parent=5 // pred_check
      %p127 = pneg %p126
    $region18: #{forward.31} parent=5 // pred_check_branch
      %129 = sbr.rel (%p127) target = $region20
    $region19: #{forward.31} parent=5 // pred_region
      // Predicated region
      $region21: #{forward.31} parent=19 // pred_check
        %p130 = pneg %p29
      $region22: #{forward.31} parent=19 // pred_check_branch
        %132 = sbr.rel (%p130) target = $region24
      $region23: #{forward.31} parent=19 // pred_region
        %p133 = scmp.lt.s32.totalorder %s9, 1
        %s134 = scalar_select %p133, %s9, 1
        %s135 = smul.addr %s134, 8
        %s136 = smul.addr %s135, 8
        %s137 = scalar_lea.vmem %s0, %s136
      $region24: #{forward.31} parent=19 // pred_fallthru
        _
      // Predicated region
      $region25: #{forward.31} parent=19 // pred_check
        %p138 = pneg %p55
      $region26: #{forward.31} parent=19 // pred_check_branch
        %140 = sbr.rel (%p138) target = $region28
      $region27: #{forward.31} parent=19 // pred_region
        %p141 = scmp.lt.s32.totalorder %s9, 1
        %s142 = scalar_select %p141, %s9, 1
        %s143 = smul.addr %s142, 8
        %s144 = smul.addr %s143, 8
        %s145 = scalar_lea.vmem %s1, %s144
      $region28: #{forward.31} parent=19 // pred_fallthru
        _
    $region20: #{forward.31} parent=5 // pred_fallthru
      _
    %p146 = scmp.le.s32.totalorder 1, %s9
    %p147 = scmp.lt.s32.totalorder %s9, 3
    %p148 = pnand %p146, %p147
    %p149 = pneg %p148
    // Predicated region
    $region29: #{forward.31} parent=5 // pred_check
      _
    $region30: #{forward.31} parent=5 // pred_check_branch
      %151 = sbr.rel (%p148) target = $region32
    $region31: #{forward.31} parent=5 // pred_region
      %s152 = ssub.s32 %s9, 1
      %p153 = scmp.lt.s32.totalorder %s14, 1
      %s154 = scalar_select %p153, %s14, 1
      %s155 = smul.addr %s154, 8
      %s156 = smul.addr %s155, 8
      %s157 = scalar_lea.vmem %s0, %s156
      %p158 = pneg %p35
      %p159 = pneg %p32
      %p160 = scmp.lt.s32.totalorder %s14, 1
      %s161 = scalar_select %p160, %s14, 1
      %s162 = smul.addr %s161, 8
      %s163 = smul.addr %s162, 8
      %s164 = scalar_lea.vmem %s1, %s163
      %p165 = pneg %p61
      %p166 = pneg %p58
      %p167 = pneg %p82
      %p168 = pneg %p79
      %p169 = pneg %p108
      %p170 = pneg %p105
      %p171 = scmp.lt.s32.totalorder %s14, 1
      %s172 = scalar_select %p171, %s14, 1
      %s173 = smul.addr %s172, 8
      %s174 = smul.addr %s173, 8
      %s175 = scalar_lea.vmem %s3, %s174
      %p176 = scmp.lt.s32.totalorder %s14, 1
      %s177 = scalar_select %p176, %s14, 1
      %s178 = smul.addr %s177, 8
      %s179 = smul.addr %s178, 8
      %s180 = scalar_lea.vmem %s0, %s179
      %p181 = scmp.lt.s32.totalorder %s14, 1
      %s182 = scalar_select %p181, %s14, 1
      %s183 = smul.addr %s182, 8
      %s184 = smul.addr %s183, 8
      %s185 = scalar_lea.vmem %s1, %s184
      %p186 = scmp.lt.s32.totalorder %s14, 1
      %s187 = scalar_select %p186, %s14, 1
      %s188 = smul.addr %s187, 8
      %s189 = smul.addr %s188, 8
      %s190 = scalar_lea.vmem %s3, %s189
      %v191 = vld [vmem:[%s180] sm:$0xff]
      %v192 = vld [vmem:[%s180 + $0x8] sm:$0xff]
      %v193 = vld [vmem:[%s180 + $0x10] sm:$0xff]
      %v194 = vld [vmem:[%s180 + $0x18] sm:$0xff]
      %v195 = vld [vmem:[%s180 + $0x20] sm:$0xff]
      %v196 = vld [vmem:[%s180 + $0x28] sm:$0xff]
      %v197 = vld [vmem:[%s180 + $0x30] sm:$0xff]
      %v198 = vld [vmem:[%s180 + $0x38] sm:$0xff]
      %v199 = vld [vmem:[%s185] sm:$0xff]
      %v200 = vld [vmem:[%s185 + $0x8] sm:$0xff]
      %v201 = vld [vmem:[%s185 + $0x10] sm:$0xff]
      %v202 = vld [vmem:[%s185 + $0x18] sm:$0xff]
      %v203 = vld [vmem:[%s185 + $0x20] sm:$0xff]
      %v204 = vld [vmem:[%s185 + $0x28] sm:$0xff]
      %v205 = vld [vmem:[%s185 + $0x30] sm:$0xff]
      %v206 = vld [vmem:[%s185 + $0x38] sm:$0xff]
      %208 = vset.pattern.permute.xlu0 0
      %209 = vperm.xlu0 %208, %v199
      %v210 = vpop.permute.xlu0 %209
      %213 = vset.pattern.permute.xlu0 0
      %214 = vperm.xlu0 %213, %v200
      %v215 = vpop.permute.xlu0 %214
      %218 = vset.pattern.permute.xlu0 0
      %219 = vperm.xlu0 %218, %v201
      %v220 = vpop.permute.xlu0 %219
      %223 = vset.pattern.permute.xlu0 0
      %224 = vperm.xlu0 %223, %v202
      %v225 = vpop.permute.xlu0 %224
      %228 = vset.pattern.permute.xlu0 0
      %229 = vperm.xlu0 %228, %v203
      %v230 = vpop.permute.xlu0 %229
      %233 = vset.pattern.permute.xlu0 0
      %234 = vperm.xlu0 %233, %v204
      %v235 = vpop.permute.xlu0 %234
      %238 = vset.pattern.permute.xlu0 0
      %239 = vperm.xlu0 %238, %v205
      %v240 = vpop.permute.xlu0 %239
      %243 = vset.pattern.permute.xlu0 0
      %244 = vperm.xlu0 %243, %v206
      %v245 = vpop.permute.xlu0 %244
      %v247 = vmul.f32 %v191, %v210
      %v248 = vmul.f32 %v192, %v215
      %v249 = vmul.f32 %v193, %v220
      %v250 = vmul.f32 %v194, %v225
      %v251 = vmul.f32 %v195, %v230
      %v252 = vmul.f32 %v196, %v235
      %v253 = vmul.f32 %v197, %v240
      %v254 = vmul.f32 %v198, %v245
      %vm255 = vcmask 566272
      %256 = vst.msk [vmem:[#allocation2] sm:$0x3] %vm255, 0.0
      %vm257 = vcmask 523264
      %v258 = vsel %vm257, %v247, 0.0
      %v259 = vsel %vm257, %v248, 0.0
      %v260 = vadd.f32 %v258, %v259
      %v261 = vsel %vm257, %v249, 0.0
      %v262 = vadd.f32 %v260, %v261
      %v263 = vsel %vm257, %v250, 0.0
      %v264 = vadd.f32 %v262, %v263
      %v265 = vsel %vm257, %v251, 0.0
      %v266 = vadd.f32 %v264, %v265
      %v267 = vsel %vm257, %v252, 0.0
      %v268 = vadd.f32 %v266, %v267
      %v269 = vsel %vm257, %v253, 0.0
      %v270 = vadd.f32 %v268, %v269
      %v271 = vsel %vm257, %v254, 0.0
      %v272 = vadd.f32 %v270, %v271
      %v273 = vrot.slane %v272, 4
      %v274 = vadd.f32 %v272, %v273
      %v275 = vrot.slane %v274, 2
      %v276 = vadd.f32 %v274, %v275
      %v277 = vrot.slane %v276, 1
      %v278 = vadd.f32 %v276, %v277
      %v279 = vrcp.pop 64.0
      %v280 = vmul.f32 64.0, %v279
      %v281 = vsub.f32 1.0, %v280
      %v282 = vmul.f32 %v279, %v281
      %v283 = vadd.f32 %v279, %v282
      %vm284 = vweird.f32 %v279
      %v285 = vsel %vm284, %v279, %v283
      %v286 = vmul.f32 %v278, %v285
      %288 = vrot.lane.b32.xlu0 %v286, 3
      %v289 = vpop.permute.xlu0 %288
      %vm291 = vcmask 540696
      %292 = vst.msk [vmem:[#allocation2] sm:$0x1] %vm291, %v289
      %v293 = vsel %vm257, %v247, -inf
      %v294 = vsel %vm257, %v248, -inf
      %v295 = vsel %vm257, %v249, -inf
      %v296 = vsel %vm257, %v250, -inf
      %v297 = vsel %vm257, %v251, -inf
      %v298 = vmax.f32 %v293, %v297
      %v299 = vsel %vm257, %v252, -inf
      %v300 = vmax.f32 %v294, %v299
      %v301 = vsel %vm257, %v253, -inf
      %v302 = vmax.f32 %v295, %v301
      %v303 = vsel %vm257, %v254, -inf
      %v304 = vmax.f32 %v296, %v303
      %v305 = vmax.f32 %v298, %v300
      %v306 = vmax.f32 %v302, %v304
      %v307 = vmax.f32 %v305, %v306
      %v308 = vrot.slane %v307, 4
      %v309 = vmax.f32 %v307, %v308
      %v310 = vrot.slane %v309, 2
      %v311 = vmax.f32 %v309, %v310
      %v312 = vrot.slane %v311, 1
      %v313 = vmax.f32 %v311, %v312
      %315 = vrot.lane.b32.xlu0 %v313, 3
      %v316 = vpop.permute.xlu0 %315
      %318 = vst.msk [vmem:[#allocation2 + $0x1] sm:$0x1] %vm291, %v316
      %v319 = vld [vmem:[%s2] sm:$0x1]
      %v320 = vld [vmem:[#allocation2] sm:$0x1]
      %322 = vset.pattern.permute.xlu0 0
      %323 = vperm.xlu0 %322, %v319
      %v324 = vpop.permute.xlu0 %323
      %v326 = vmul.f32 %v324, %v320
      %v327 = vadd.f32 %v326, 0.0
      %v328 = vld [vmem:[%s2 + $0x1] sm:$0x1]
      %v329 = vld [vmem:[#allocation2 + $0x1] sm:$0x1]
      %331 = vset.pattern.permute.xlu0 0
      %332 = vperm.xlu0 %331, %v328
      %v333 = vpop.permute.xlu0 %332
      %v335 = vmul.f32 %v333, %v329
      %v336 = vadd.f32 %v327, %v335
      %337 = vset.pattern.permute.xlu0 1
      %338 = vperm.xlu0 %337, %v319
      %v339 = vpop.permute.xlu0 %338
      %v341 = vmul.f32 %v339, %v320
      %343 = vrot.lane.b32.xlu0 %v341, 127
      %v344 = vpop.permute.xlu0 %343
      %v346 = vadd.f32 %v336, %v344
      %347 = vset.pattern.permute.xlu0 1
      %348 = vperm.xlu0 %347, %v328
      %v349 = vpop.permute.xlu0 %348
      %v351 = vmul.f32 %v349, %v329
      %353 = vrot.lane.b32.xlu0 %v351, 127
      %v354 = vpop.permute.xlu0 %353
      %v356 = vadd.f32 %v346, %v354
      %357 = vset.pattern.permute.xlu0 2
      %358 = vperm.xlu0 %357, %v319
      %v359 = vpop.permute.xlu0 %358
      %v361 = vmul.f32 %v359, %v320
      %363 = vrot.lane.b32.xlu0 %v361, 126
      %v364 = vpop.permute.xlu0 %363
      %v366 = vadd.f32 %v356, %v364
      %367 = vset.pattern.permute.xlu0 2
      %368 = vperm.xlu0 %367, %v328
      %v369 = vpop.permute.xlu0 %368
      %v371 = vmul.f32 %v369, %v329
      %373 = vrot.lane.b32.xlu0 %v371, 126
      %v374 = vpop.permute.xlu0 %373
      %v376 = vadd.f32 %v366, %v374
      %377 = vset.pattern.permute.xlu0 3
      %378 = vperm.xlu0 %377, %v319
      %v379 = vpop.permute.xlu0 %378
      %v381 = vmul.f32 %v379, %v320
      %383 = vrot.lane.b32.xlu0 %v381, 125
      %v384 = vpop.permute.xlu0 %383
      %v386 = vadd.f32 %v376, %v384
      %387 = vset.pattern.permute.xlu0 3
      %388 = vperm.xlu0 %387, %v328
      %v389 = vpop.permute.xlu0 %388
      %v391 = vmul.f32 %v389, %v329
      %393 = vrot.lane.b32.xlu0 %v391, 125
      %v394 = vpop.permute.xlu0 %393
      %v396 = vadd.f32 %v386, %v394
      %397 = vset.pattern.permute.xlu0 4
      %398 = vperm.xlu0 %397, %v319
      %v399 = vpop.permute.xlu0 %398
      %v401 = vmul.f32 %v399, %v320
      %403 = vrot.lane.b32.xlu0 %v401, 124
      %v404 = vpop.permute.xlu0 %403
      %v406 = vadd.f32 %v396, %v404
      %407 = vset.pattern.permute.xlu0 4
      %408 = vperm.xlu0 %407, %v328
      %v409 = vpop.permute.xlu0 %408
      %v411 = vmul.f32 %v409, %v329
      %413 = vrot.lane.b32.xlu0 %v411, 124
      %v414 = vpop.permute.xlu0 %413
      %v416 = vadd.f32 %v406, %v414
      %417 = vset.pattern.permute.xlu0 5
      %418 = vperm.xlu0 %417, %v319
      %v419 = vpop.permute.xlu0 %418
      %v421 = vmul.f32 %v419, %v320
      %423 = vrot.lane.b32.xlu0 %v421, 123
      %v424 = vpop.permute.xlu0 %423
      %v426 = vadd.f32 %v416, %v424
      %427 = vset.pattern.permute.xlu0 5
      %428 = vperm.xlu0 %427, %v328
      %v429 = vpop.permute.xlu0 %428
      %v431 = vmul.f32 %v429, %v329
      %433 = vrot.lane.b32.xlu0 %v431, 123
      %v434 = vpop.permute.xlu0 %433
      %v436 = vadd.f32 %v426, %v434
      %437 = vset.pattern.permute.xlu0 6
      %438 = vperm.xlu0 %437, %v319
      %v439 = vpop.permute.xlu0 %438
      %v441 = vmul.f32 %v439, %v320
      %443 = vrot.lane.b32.xlu0 %v441, 122
      %v444 = vpop.permute.xlu0 %443
      %v446 = vadd.f32 %v436, %v444
      %447 = vset.pattern.permute.xlu0 6
      %448 = vperm.xlu0 %447, %v328
      %v449 = vpop.permute.xlu0 %448
      %v451 = vmul.f32 %v449, %v329
      %453 = vrot.lane.b32.xlu0 %v451, 122
      %v454 = vpop.permute.xlu0 %453
      %v456 = vadd.f32 %v446, %v454
      %v457 = vxor.u32 %v456, 2147483648
      %v458 = vmul.f32 %v457, 1.442695
      %v459 = vpow.pop %v458
      %v460 = vadd.f32 %v459, 1.0
      %v461 = vrcp.pop %v460
      %v462 = vmul.f32 %v460, %v461
      %v463 = vsub.f32 1.0, %v462
      %v464 = vmul.f32 %v461, %v463
      %v465 = vadd.f32 %v461, %v464
      %vm466 = vweird.f32 %v460
      %vm467 = vweird.f32 %v461
      %vm468 = vmor %vm466, %vm467
      %v469 = vsel %vm468, %v461, %v465
      %v470 = vand.u32 2147483647, %v460
      %vm471 = vcmp.eq.f32.partialorder %v470, 8.507059e+37
      %v472 = vand.u32 %v460, 2147483648
      %v473 = vor.u32 1.1754944e-38, %v472
      %v474 = vsel %vm471, %v473, %v469
      %v475 = vmul.f32 1.0, %v474
      %v476 = vperm.slane %v475, 0
      %v477 = vmul.f32 %v247, %v476
      %v478 = vmul.f32 %v248, %v476
      %v479 = vmul.f32 %v249, %v476
      %v480 = vmul.f32 %v250, %v476
      %v481 = vmul.f32 %v251, %v476
      %v482 = vmul.f32 %v252, %v476
      %v483 = vmul.f32 %v253, %v476
      %v484 = vmul.f32 %v254, %v476
      %485 = vst.msk [vmem:[%s190] sm:$0xff] %vm257, %v477
      %486 = vst.msk [vmem:[%s190 + $0x8] sm:$0xff] %vm257, %v478
      %487 = vst.msk [vmem:[%s190 + $0x10] sm:$0xff] %vm257, %v479
      %488 = vst.msk [vmem:[%s190 + $0x18] sm:$0xff] %vm257, %v480
      %489 = vst.msk [vmem:[%s190 + $0x20] sm:$0xff] %vm257, %v481
      %490 = vst.msk [vmem:[%s190 + $0x28] sm:$0xff] %vm257, %v482
      %491 = vst.msk [vmem:[%s190 + $0x30] sm:$0xff] %vm257, %v483
      %492 = vst.msk [vmem:[%s190 + $0x38] sm:$0xff] %vm257, %v484
      %p493 = scmp.lt.s32.totalorder %s14, 1
      %s494 = scalar_select %p493, %s14, 1
      %s495 = smul.addr %s494, 8
      %s496 = smul.addr %s495, 8
      %s497 = scalar_lea.vmem %s3, %s496
      // Predicated region
      $region33: #{forward.31} parent=31 // pred_check
        %p498 = pneg %p105
      $region34: #{forward.31} parent=31 // pred_check_branch
        %500 = sbr.rel (%p498) target = $region36
      $region35: #{forward.31} parent=31 // pred_region
        _
      $region36: #{forward.31} parent=31 // pred_fallthru
        _
    $region32: #{forward.31} parent=5 // pred_fallthru
      _
    %p501 = scmp.le.s32.totalorder 2, %s9
    // Predicated region
    $region37: #{forward.31} parent=5 // pred_check
      %p502 = pneg %p501
    $region38: #{forward.31} parent=5 // pred_check_branch
      %504 = sbr.rel (%p502) target = $region40
    $region39: #{forward.31} parent=5 // pred_region
      %s505 = ssub.s32 %s9, 2
      // Predicated region
      $region41: #{forward.31} parent=39 // pred_check
        %p506 = pneg %p111
      $region42: #{forward.31} parent=39 // pred_check_branch
        %508 = sbr.rel (%p506) target = $region44
      $region43: #{forward.31} parent=39 // pred_region
        %p509 = scmp.lt.s32.totalorder %s15, 1
        %s510 = scalar_select %p509, %s15, 1
        %s511 = smul.addr %s510, 8
        %s512 = smul.addr %s511, 8
        %s513 = scalar_lea.vmem %s3, %s512
      $region44: #{forward.31} parent=39 // pred_fallthru
        _
    $region40: #{forward.31} parent=5 // pred_fallthru
      _
  $region6: #{forward.31} parent=0 // loop_footer
    %s13 = sadd.s32 1, %s9
  $region7: #{forward.31} parent=0 // loop_footer_branch
    %8 = sbr.rel target = $region3
  $region8: #{forward.31} parent=0 // loop_exit
    _

// kernel: forward.37
$region0: #{forward.37}
  #allocation0 [shape = 'u32[]', space=smem, size = 0x4, offset = 0x4, fixed_abs, tag = 'smem constant byte address 0x4 - core index']
  #allocation1 [shape = 'u32[72,128]{1,0:T(1,128)}', space=vmem, size = 0x9000, scoped, tag = 'internal scratch']
  %s0 = inlined_call_operand.vmem [shape: f32[2,6], index: 0, kind: input, shape index: {}]
  %s1 = inlined_call_operand.vmem [shape: f32[6,32], index: 1, kind: input, shape index: {}]
  %s2 = inlined_call_operand.vmem [shape: f32[1,32], index: 2, kind: input, shape index: {}]
  %s3 = inlined_call_operand.vmem [shape: f32[2,32], index: 3, kind: output, shape index: {}]
  %s4 = sld [smem:[#allocation0]]
  $region22: #{forward.37} parent=0
    _
  %s6 = ssub.s32 1, %s4
  %s7 = scalar_select 0, %s6, %s4
  // Predicated region
  $region2: #{forward.37} parent=0 // pred_check
    _
  $region3: #{forward.37} parent=0 // pred_check_branch
    %9 = sbr.rel (0) target = $region5
  $region4: #{forward.37} parent=0 // pred_region
    _
  $region5: #{forward.37} parent=0 // pred_fallthru
    _
  // Predicated region
  $region6: #{forward.37} parent=0 // pred_check
    _
  $region7: #{forward.37} parent=0 // pred_check_branch
    %11 = sbr.rel (0) target = $region9
  $region8: #{forward.37} parent=0 // pred_region
    _
  $region9: #{forward.37} parent=0 // pred_fallthru
    _
  // Predicated region
  $region10: #{forward.37} parent=0 // pred_check
    _
  $region11: #{forward.37} parent=0 // pred_check_branch
    %13 = sbr.rel (0) target = $region13
  $region12: #{forward.37} parent=0 // pred_region
    _
  $region13: #{forward.37} parent=0 // pred_fallthru
    _
  %v15 = vld [vmem:[%s0] sm:$0x3]
  %v16 = vpack.c.bf16 %v15, %v15
  %v17 = vld [vmem:[%s1] sm:$0x3f]
  %v18 = vpack.c.bf16 %v17, %v17
  %v19 = vld [vmem:[%s2] sm:$0x1]
  %v21 = vperm.slane %v19, 0
  %vm23 = vcmask 48128
  %v25 = vsel %vm23, %v16, 0
  %vm27 = vcmask 1042432
  %v29 = vsel %vm27, %v18, 0
  %31 = vmatpush.bf16.msra.mxu0 0
  %32 = vmatpush.bf16.msra.mxu0 0
  %33 = vmatpush.bf16.msra.mxu0 0
  %34 = vmatpush.bf16.msra.mxu0 0
  %35 = vmatpush.bf16.msra.mxu0 0
  %36 = vmatpush.bf16.msra.mxu0 0
  %37 = vmatpush.bf16.msra.mxu0 0
  %38 = vmatpush.bf16.msra.mxu0 %v29
  %39 = vmatmul.bf16.gmra.mxu0 %v25
  %v40 = vpop.f32.mrf.mxu0
  %v41 = vadd.f32 %v21, %v40
  %v42 = vpop.f32.mrf.mxu0
  %43 = vdwg.mxu0
  %v44 = vmax.f32 %v41, 0.0
  %vm45 = vcmask 254976
  %46 = vst.msk [vmem:[%s3] sm:$0x3] %vm45, %v44
  // Predicated region
  $region14: #{forward.37} parent=0 // pred_check
    _
  $region15: #{forward.37} parent=0 // pred_check_branch
    %48 = sbr.rel (0) target = $region17
  $region16: #{forward.37} parent=0 // pred_region
    _
  $region17: #{forward.37} parent=0 // pred_fallthru
    _
  // Predicated region
  $region18: #{forward.37} parent=0 // pred_check
    _
  $region19: #{forward.37} parent=0 // pred_check_branch
    %50 = sbr.rel (0) target = $region21
  $region20: #{forward.37} parent=0 // pred_region
    _
  $region21: #{forward.37} parent=0 // pred_fallthru
    _

// kernel: forward.39
$region0: #{forward.39}
  #allocation0 [shape = 'u32[]', space=smem, size = 0x4, offset = 0x4, fixed_abs, tag = 'smem constant byte address 0x4 - core index']
  #allocation1 [shape = 'u32[72,128]{1,0:T(1,128)}', space=vmem, size = 0x9000, scoped, tag = 'internal scratch']
  %s0 = inlined_call_operand.vmem [shape: f32[2,64], index: 0, kind: input, shape index: {}]
  %s1 = inlined_call_operand.vmem [shape: f32[64,2], index: 1, kind: input, shape index: {}]
  %s2 = inlined_call_operand.vmem [shape: f32[1,2], index: 2, kind: input, shape index: {}]
  %s3 = inlined_call_operand.hbm [shape: f32[2,2], index: 3, kind: output, shape index: {}]
  %s4 = sld [smem:[#allocation0]]
  $region22: #{forward.39} parent=0
    _
  %s6 = ssub.s32 1, %s4
  %s7 = scalar_select 0, %s6, %s4
  $region1: #{forward.39} parent=0
    #allocation2 [shape = 'u8[1024]{0}', space=vmem, size = 0x400, scoped, tag = 'output window, operand 0, single buffered']
    #allocation3 [shape = 's32[1]{0}', space=sflag, size = 0x4, scoped, tag = 'scoped memory for forward.39']
    %8 = vsyncpa [#allocation3], 0
    // Predicated region
    $region2: #{forward.39} parent=1 // pred_check
      _
    $region3: #{forward.39} parent=1 // pred_check_branch
      %10 = sbr.rel (0) target = $region5
    $region4: #{forward.39} parent=1 // pred_region
      _
    $region5: #{forward.39} parent=1 // pred_fallthru
      _
    // Predicated region
    $region6: #{forward.39} parent=1 // pred_check
      _
    $region7: #{forward.39} parent=1 // pred_check_branch
      %12 = sbr.rel (0) target = $region9
    $region8: #{forward.39} parent=1 // pred_region
      _
    $region9: #{forward.39} parent=1 // pred_fallthru
      _
    // Predicated region
    $region10: #{forward.39} parent=1 // pred_check
      _
    $region11: #{forward.39} parent=1 // pred_check_branch
      %14 = sbr.rel (0) target = $region13
    $region12: #{forward.39} parent=1 // pred_region
      _
    $region13: #{forward.39} parent=1 // pred_fallthru
      _
    %v16 = vld [vmem:[%s0] sm:$0x3]
    %v17 = vpack.c.bf16 %v16, %v16
    %v18 = vld [vmem:[%s1] sm:$0xff]
    %v19 = vld [vmem:[%s1 + $0x8] sm:$0xff]
    %v20 = vld [vmem:[%s1 + $0x10] sm:$0xff]
    %v21 = vld [vmem:[%s1 + $0x18] sm:$0xff]
    %v22 = vld [vmem:[%s1 + $0x20] sm:$0xff]
    %v23 = vld [vmem:[%s1 + $0x28] sm:$0xff]
    %v24 = vld [vmem:[%s1 + $0x30] sm:$0xff]
    %v25 = vld [vmem:[%s1 + $0x38] sm:$0xff]
    %v26 = vpack.c.bf16 %v19, %v18
    %v27 = vpack.c.bf16 %v21, %v20
    %v28 = vpack.c.bf16 %v23, %v22
    %v29 = vpack.c.bf16 %v25, %v24
    %v30 = vld [vmem:[%s2] sm:$0x1]
    %v32 = vperm.slane %v30, 0
    %vm34 = vcmask 523264
    %v36 = vsel %vm34, %v17, 0
    %38 = vmatpush.bf16.msra.mxu0 0
    %39 = vmatpush.bf16.msra.mxu0 0
    %40 = vmatpush.bf16.msra.mxu0 0
    %41 = vmatpush.bf16.msra.mxu0 0
    %42 = vmatpush.bf16.msra.mxu0 %v29
    %43 = vmatpush.bf16.msra.mxu0 %v28
    %44 = vmatpush.bf16.msra.mxu0 %v27
    %45 = vmatpush.bf16.msra.mxu0 %v26
    %46 = vmatmul.bf16.gmra.mxu0 %v36
    %v47 = vpop.f32.mrf.mxu0
    %v48 = vadd.f32 %v32, %v47
    %v49 = vpop.f32.mrf.mxu0
    %50 = vdwg.mxu0
    %vm51 = vcmask 9216
    %52 = vst.msk [vmem:[#allocation2] sm:$0x3] %vm51, %v48
    // Predicated region
    $region14: #{forward.39} parent=1 // pred_check
      _
    $region15: #{forward.39} parent=1 // pred_check_branch
      %54 = sbr.rel (0) target = $region17
    $region16: #{forward.39} parent=1 // pred_region
      %56 = vsyncadd [#allocation3], 0
      %s58 = sshll.u32 [#allocation2], 4
      %s59 = int_to_ptr.vmem [resolvable:$true] %s58
      %s60 = sshll.u32 %s3, 4
      %s61 = int_to_ptr.hbm [resolvable:$true] %s60
      %63 = dma.vmem_to_hbm [thread:$0]  %s59, 32, %s61, [#allocation3]
    $region17: #{forward.39} parent=1 // pred_fallthru
      _
    // Predicated region
    $region18: #{forward.39} parent=1 // pred_check
      _
    $region19: #{forward.39} parent=1 // pred_check_branch
      %65 = sbr.rel (0) target = $region21
    $region20: #{forward.39} parent=1 // pred_region
      %67 = dma.done [#allocation3], 32
    $region21: #{forward.39} parent=1 // pred_fallthru
      _
    %68 = vsyncpa [#allocation3], 1

// kernel: forward.38
$region0: #{forward.38}
  #allocation0 [shape = 'u32[]', space=smem, size = 0x4, offset = 0x4, fixed_abs, tag = 'smem constant byte address 0x4 - core index']
  #allocation1 [shape = 'u32[72,128]{1,0:T(1,128)}', space=vmem, size = 0x9000, scoped, tag = 'internal scratch']
  %s0 = inlined_call_operand.vmem [shape: f32[2,160], index: 0, kind: input, shape index: {}]
  %s1 = inlined_call_operand.vmem [shape: f32[160,64], index: 1, kind: input, shape index: {}]
  %s2 = inlined_call_operand.vmem [shape: f32[1,64], index: 2, kind: input, shape index: {}]
  %s3 = inlined_call_operand.vmem [shape: f32[2,64], index: 3, kind: output, shape index: {}]
  %s4 = sld [smem:[#allocation0]]
  $region22: #{forward.38} parent=0
    _
  %s6 = ssub.s32 1, %s4
  %s7 = scalar_select 0, %s6, %s4
  // Predicated region
  $region2: #{forward.38} parent=0 // pred_check
    _
  $region3: #{forward.38} parent=0 // pred_check_branch
    %9 = sbr.rel (0) target = $region5
  $region4: #{forward.38} parent=0 // pred_region
    _
  $region5: #{forward.38} parent=0 // pred_fallthru
    _
  // Predicated region
  $region6: #{forward.38} parent=0 // pred_check
    _
  $region7: #{forward.38} parent=0 // pred_check_branch
    %11 = sbr.rel (0) target = $region9
  $region8: #{forward.38} parent=0 // pred_region
    _
  $region9: #{forward.38} parent=0 // pred_fallthru
    _
  // Predicated region
  $region10: #{forward.38} parent=0 // pred_check
    _
  $region11: #{forward.38} parent=0 // pred_check_branch
    %13 = sbr.rel (0) target = $region13
  $region12: #{forward.38} parent=0 // pred_region
    _
  $region13: #{forward.38} parent=0 // pred_fallthru
    _
  %v15 = vld [vmem:[%s0] sm:$0xf]
  %17 = vst [vmem:[#allocation1] ss:$4 sm:$0xff] %v15
  %v18 = vld.sshfl [vmem:[#allocation1] sm:$0xff pattern:$0x73625140]
  %v19 = vld.sshfl [vmem:[#allocation1 + $0x8] sm:$0xff pattern:$0x73625140]
  %v22 = vpack.c.bf16 %v18, %v18
  %v23 = vpack.c.bf16 %v19, %v19
  %v24 = vld [vmem:[%s1] sm:$0xff]
  %v25 = vld [vmem:[%s1 + $0x8] sm:$0xff]
  %v26 = vld [vmem:[%s1 + $0x10] sm:$0xff]
  %v27 = vld [vmem:[%s1 + $0x18] sm:$0xff]
  %v28 = vld [vmem:[%s1 + $0x20] sm:$0xff]
  %v29 = vld [vmem:[%s1 + $0x28] sm:$0xff]
  %v30 = vld [vmem:[%s1 + $0x30] sm:$0xff]
  %v31 = vld [vmem:[%s1 + $0x38] sm:$0xff]
  %v32 = vld [vmem:[%s1 + $0x40] sm:$0xff]
  %v33 = vld [vmem:[%s1 + $0x48] sm:$0xff]
  %v34 = vld [vmem:[%s1 + $0x50] sm:$0xff]
  %v35 = vld [vmem:[%s1 + $0x58] sm:$0xff]
  %v36 = vld [vmem:[%s1 + $0x60] sm:$0xff]
  %v37 = vld [vmem:[%s1 + $0x68] sm:$0xff]
  %v38 = vld [vmem:[%s1 + $0x70] sm:$0xff]
  %v39 = vld [vmem:[%s1 + $0x78] sm:$0xff]
  %v40 = vld [vmem:[%s1 + $0x80] sm:$0xff]
  %v41 = vld [vmem:[%s1 + $0x88] sm:$0xff]
  %v42 = vld [vmem:[%s1 + $0x90] sm:$0xff]
  %v43 = vld [vmem:[%s1 + $0x98] sm:$0xff]
  %v44 = vpack.c.bf16 %v25, %v24
  %v45 = vpack.c.bf16 %v27, %v26
  %v46 = vpack.c.bf16 %v29, %v28
  %v47 = vpack.c.bf16 %v31, %v30
  %v48 = vpack.c.bf16 %v33, %v32
  %v49 = vpack.c.bf16 %v35, %v34
  %v50 = vpack.c.bf16 %v37, %v36
  %v51 = vpack.c.bf16 %v39, %v38
  %v52 = vpack.c.bf16 %v41, %v40
  %v53 = vpack.c.bf16 %v43, %v42
  %v54 = vld [vmem:[%s2] sm:$0x1]
  %v56 = vperm.slane %v54, 0
  %vm58 = vcmask 261120
  %v60 = vsel %vm58, %v23, 0
  %62 = vmatpush.bf16.msra.mxu0 %v51
  %63 = vmatpush.bf16.msra.mxu0 %v50
  %64 = vmatpush.bf16.msra.mxu0 %v49
  %65 = vmatpush.bf16.msra.mxu0 %v48
  %66 = vmatpush.bf16.msra.mxu0 %v47
  %67 = vmatpush.bf16.msra.mxu0 %v46
  %68 = vmatpush.bf16.msra.mxu0 %v45
  %69 = vmatpush.bf16.msra.mxu0 %v44
  %70 = vmatmul.bf16.gmra.mxu0 %v22
  %v71 = vpop.f32.mrf.mxu0
  %v72 = vadd.f32 %v56, %v71
  %v73 = vpop.f32.mrf.mxu0
  %74 = vdwg.mxu0
  %75 = vmatpush.bf16.msra.mxu0 0
  %76 = vmatpush.bf16.msra.mxu0 0
  %77 = vmatpush.bf16.msra.mxu0 0
  %78 = vmatpush.bf16.msra.mxu0 0
  %79 = vmatpush.bf16.msra.mxu0 0
  %80 = vmatpush.bf16.msra.mxu0 0
  %81 = vmatpush.bf16.msra.mxu0 %v53
  %82 = vmatpush.bf16.msra.mxu0 %v52
  %83 = vmatmul.bf16.gmra.mxu0 %v60
  %v84 = vpop.f32.mrf.mxu0
  %v85 = vadd.f32 %v72, %v84
  %v86 = vpop.f32.mrf.mxu0
  %87 = vdwg.mxu0
  %v88 = vmax.f32 %v85, 0.0
  %vm89 = vcmask 517120
  %90 = vst.msk [vmem:[%s3] sm:$0x3] %vm89, %v88
  // Predicated region
  $region14: #{forward.38} parent=0 // pred_check
    _
  $region15: #{forward.38} parent=0 // pred_check_branch
    %92 = sbr.rel (0) target = $region17
  $region16: #{forward.38} parent=0 // pred_region
    _
  $region17: #{forward.38} parent=0 // pred_fallthru
    _
  // Predicated region
  $region18: #{forward.38} parent=0 // pred_check
    _
  $region19: #{forward.38} parent=0 // pred_check_branch
    %94 = sbr.rel (0) target = $region21
  $region20: #{forward.38} parent=0 // pred_region
    _
  $region21: #{forward.38} parent=0 // pred_fallthru
    _

// kernel: forward.36
$region0: #{forward.36}
  #allocation0 [shape = 'u32[]', space=smem, size = 0x4, offset = 0x4, fixed_abs, tag = 'smem constant byte address 0x4 - core index']
  #allocation1 [shape = 'u32[72,128]{1,0:T(1,128)}', space=vmem, size = 0x9000, scoped, tag = 'internal scratch']
  #allocation2 [shape = 'f32[2,128]{1,0:T(2,128)}', space=vmem, size = 0x400, scoped, tag = 'scratch operand']
  %s0 = inlined_call_operand.vmem [shape: f32[4096,2], index: 0, kind: input, shape index: {}]
  %s1 = inlined_call_operand.vmem [shape: f32[4096,128], index: 1, kind: input, shape index: {}]
  %s2 = inlined_call_operand.vmem [shape: f32[1,128], index: 2, kind: input, shape index: {}]
  %s3 = inlined_call_operand.vmem [shape: f32[2,128], index: 3, kind: output, shape index: {}]
  %s4 = sld [smem:[#allocation0]]
  $region53: #{forward.36} parent=0
    _
  %s6 = ssub.s32 1, %s4
  %s7 = scalar_select 0, %s6, %s4
  loop: start=0, step=1, limit=4
  $region2: #{forward.36} parent=0 // loop_pre_header
    _
  $region3: #{forward.36} parent=0 // loop_header
    %s9 = sphi 0, %s13
    %p10 = scmp.ge.s32.totalorder %s9, 4
    %s19 = sphi 0, %s21
    %s22 = sphi 0, %s19
    %s23 = sphi 0, %s22
    %s39 = sphi 0, %s23
    %s45 = sphi 0, %s47
    %s48 = sphi 0, %s45
    %s49 = sphi 0, %s48
    %s65 = sphi 0, %s49
    %s69 = sphi 0, %s69
    %s71 = sphi 0, %s69
    %s72 = sphi 0, %s71
    %s86 = sphi 0, %s72
    %s90 = sphi 0, %s90
    %s92 = sphi 0, %s90
    %s93 = sphi 0, %s92
    %s107 = sphi 0, %s93
  $region4: #{forward.36} parent=0 // loop_header_branch
    %12 = sbr.rel (%p10) target = $region8
  $region5: #{forward.36} parent=0 // loop_body
    %s14 = ssub.s32 %s9, 1
    %s15 = ssub.s32 %s9, 2
    %s16 = sadd.s32 %s9, 1
    %s17 = ssub.s32 %s9, %s16
    %p18 = scmp.eq.s32.totalorder %s17, 0
    %s20 = sadd.s32 %s19, 1
    %s21 = scalar_select %p18, %s19, %s20
    %p24 = pneg %p18
    %p25 = scmp.eq.s32.totalorder %s9, 1
    %p26 = por %p24, %p25
    %p27 = scmp.ne.s32.totalorder %s19, %s22
    %p28 = scmp.eq.s32.totalorder %s9, 0
    %p29 = por %p27, %p28
    %p30 = scmp.ne.s32.totalorder %s19, %s22
    %p31 = scmp.eq.s32.totalorder %s14, 1
    %p32 = por %p30, %p31
    %p33 = scmp.ne.s32.totalorder %s22, %s23
    %p34 = scmp.eq.s32.totalorder %s14, 0
    %p35 = por %p33, %p34
    %p36 = scmp.ne.s32.totalorder %s22, %s23
    %p37 = scmp.eq.s32.totalorder %s15, 1
    %p38 = por %p36, %p37
    %p40 = scmp.ne.s32.totalorder %s23, %s39
    %p41 = scmp.eq.s32.totalorder %s15, 0
    %p42 = por %p40, %p41
    %s43 = ssub.s32 %s9, %s16
    %p44 = scmp.eq.s32.totalorder %s43, 0
    %s46 = sadd.s32 %s45, 1
    %s47 = scalar_select %p44, %s45, %s46
    %p50 = pneg %p44
    %p51 = scmp.eq.s32.totalorder %s9, 1
    %p52 = por %p50, %p51
    %p53 = scmp.ne.s32.totalorder %s45, %s48
    %p54 = scmp.eq.s32.totalorder %s9, 0
    %p55 = por %p53, %p54
    %p56 = scmp.ne.s32.totalorder %s45, %s48
    %p57 = scmp.eq.s32.totalorder %s14, 1
    %p58 = por %p56, %p57
    %p59 = scmp.ne.s32.totalorder %s48, %s49
    %p60 = scmp.eq.s32.totalorder %s14, 0
    %p61 = por %p59, %p60
    %p62 = scmp.ne.s32.totalorder %s48, %s49
    %p63 = scmp.eq.s32.totalorder %s15, 1
    %p64 = por %p62, %p63
    %p66 = scmp.ne.s32.totalorder %s49, %s65
    %p67 = scmp.eq.s32.totalorder %s15, 0
    %p68 = por %p66, %p67
    %s70 = sadd.s32 %s69, 1
    %p73 = scmp.eq.s32.totalorder %s9, 1
    %p74 = scmp.ne.s32.totalorder %s69, %s71
    %p75 = scmp.eq.s32.totalorder %s9, 0
    %p76 = por %p74, %p75
    %p77 = scmp.ne.s32.totalorder %s69, %s71
    %p78 = scmp.eq.s32.totalorder %s14, 1
    %p79 = por %p77, %p78
    %p80 = scmp.ne.s32.totalorder %s71, %s72
    %p81 = scmp.eq.s32.totalorder %s14, 0
    %p82 = por %p80, %p81
    %p83 = scmp.ne.s32.totalorder %s71, %s72
    %p84 = scmp.eq.s32.totalorder %s15, 1
    %p85 = por %p83, %p84
    %p87 = scmp.ne.s32.totalorder %s72, %s86
    %p88 = scmp.eq.s32.totalorder %s15, 0
    %p89 = por %p87, %p88
    %s91 = sadd.s32 %s90, 1
    %p94 = scmp.eq.s32.totalorder %s9, 1
    %p95 = scmp.ne.s32.totalorder %s90, %s92
    %p96 = scmp.eq.s32.totalorder %s9, 0
    %p97 = por %p95, %p96
    %p98 = scmp.ne.s32.totalorder %s90, %s92
    %p99 = scmp.eq.s32.totalorder %s14, 1
    %p100 = por %p98, %p99
    %p101 = scmp.ne.s32.totalorder %s92, %s93
    %p102 = scmp.eq.s32.totalorder %s14, 0
    %p103 = por %p101, %p102
    %p104 = scmp.ne.s32.totalorder %s92, %s93
    %p105 = scmp.eq.s32.totalorder %s15, 1
    %p106 = por %p104, %p105
    %p108 = scmp.ne.s32.totalorder %s93, %s107
    %p109 = scmp.eq.s32.totalorder %s15, 0
    %p110 = por %p108, %p109
    %p111 = scmp.le.s32.totalorder 1, %s9
    %p112 = scmp.lt.s32.totalorder %s9, 3
    %p113 = pnand %p111, %p112
    %p114 = pneg %p113
    // Predicated region
    $region9: #{forward.36} parent=5 // pred_check
      _
    $region10: #{forward.36} parent=5 // pred_check_branch
      %116 = sbr.rel (%p113) target = $region12
    $region11: #{forward.36} parent=5 // pred_region
      %s117 = ssub.s32 %s9, 1
      // Predicated region
      $region13: #{forward.36} parent=11 // pred_check
        %p118 = pneg %p82
      $region14: #{forward.36} parent=11 // pred_check_branch
        %120 = sbr.rel (%p118) target = $region16
      $region15: #{forward.36} parent=11 // pred_region
        _
      $region16: #{forward.36} parent=11 // pred_fallthru
        _
    $region12: #{forward.36} parent=5 // pred_fallthru
      _
    %p121 = scmp.lt.s32.totalorder %s9, 2
    // Predicated region
    $region17: #{forward.36} parent=5 // pred_check
      %p122 = pneg %p121
    $region18: #{forward.36} parent=5 // pred_check_branch
      %124 = sbr.rel (%p122) target = $region20
    $region19: #{forward.36} parent=5 // pred_region
      // Predicated region
      $region21: #{forward.36} parent=19 // pred_check
        %p125 = pneg %p29
      $region22: #{forward.36} parent=19 // pred_check_branch
        %127 = sbr.rel (%p125) target = $region24
      $region23: #{forward.36} parent=19 // pred_region
        %s128 = smul.u32 256, %s9
        %p129 = scmp.lt.s32.totalorder %s128, 511
        %s130 = scalar_select %p129, %s128, 511
        %s131 = smul.addr %s130, 8
        %s132 = scalar_lea.vmem %s0, %s131
        %s133 = smul.u32 256, %s9
      $region24: #{forward.36} parent=19 // pred_fallthru
        _
      // Predicated region
      $region25: #{forward.36} parent=19 // pred_check
        %p134 = pneg %p55
      $region26: #{forward.36} parent=19 // pred_check_branch
        %136 = sbr.rel (%p134) target = $region28
      $region27: #{forward.36} parent=19 // pred_region
        %s137 = smul.u32 256, %s9
        %p138 = scmp.lt.s32.totalorder %s137, 511
        %s139 = scalar_select %p138, %s137, 511
        %s140 = smul.addr %s139, 8
        %s141 = scalar_lea.vmem %s1, %s140
        %s142 = smul.u32 256, %s9
      $region28: #{forward.36} parent=19 // pred_fallthru
        _
    $region20: #{forward.36} parent=5 // pred_fallthru
      _
    %p143 = scmp.le.s32.totalorder 1, %s9
    %p144 = scmp.lt.s32.totalorder %s9, 3
    %p145 = pnand %p143, %p144
    %p146 = pneg %p145
    // Predicated region
    $region29: #{forward.36} parent=5 // pred_check
      _
    $region30: #{forward.36} parent=5 // pred_check_branch
      %148 = sbr.rel (%p145) target = $region32
    $region31: #{forward.36} parent=5 // pred_region
      %s149 = ssub.s32 %s9, 1
      %s150 = smul.u32 256, %s14
      %p151 = scmp.lt.s32.totalorder %s150, 511
      %s152 = scalar_select %p151, %s150, 511
      %s153 = smul.addr %s152, 8
      %s154 = scalar_lea.vmem %s0, %s153
      %p155 = pneg %p35
      %p156 = pneg %p32
      %s157 = smul.u32 256, %s14
      %p158 = scmp.lt.s32.totalorder %s157, 511
      %s159 = scalar_select %p158, %s157, 511
      %s160 = smul.addr %s159, 8
      %s161 = scalar_lea.vmem %s1, %s160
      %p162 = pneg %p61
      %p163 = pneg %p58
      %p164 = pneg %p82
      %p165 = pneg %p79
      %p166 = pneg %p103
      %p167 = pneg %p100
      %s168 = smul.u32 256, %s14
      %p169 = scmp.lt.s32.totalorder %s168, 511
      %s170 = scalar_select %p169, %s168, 511
      %s171 = smul.addr %s170, 8
      %s172 = scalar_lea.vmem %s0, %s171
      %s173 = smul.u32 256, %s14
      %s174 = smul.u32 256, %s14
      %p175 = scmp.lt.s32.totalorder %s174, 511
      %s176 = scalar_select %p175, %s174, 511
      %s177 = smul.addr %s176, 8
      %s178 = scalar_lea.vmem %s1, %s177
      %s179 = smul.u32 256, %s14
      %p180 = scmp.eq.s32.totalorder %s14, 0
      // Predicated region
      $region33: #{forward.36} parent=31 // pred_check
        %p181 = pneg %p180
      $region34: #{forward.36} parent=31 // pred_check_branch
        %183 = sbr.rel (%p181) target = $region36
      $region35: #{forward.36} parent=31 // pred_region
        %184 = vst [vmem:[#allocation2] sm:$0x3] 0.0
      $region36: #{forward.36} parent=31 // pred_fallthru
        _
      %v185 = vld [vmem:[#allocation2] sm:$0x3]
      %v186 = vld [vmem:[%s172] sm:$0xff]
      %v187 = vld [vmem:[%s172 + $0x8] sm:$0xff]
      %v188 = vld [vmem:[%s172 + $0x10] sm:$0xff]
      %v189 = vld [vmem:[%s172 + $0x18] sm:$0xff]
      %v190 = vld [vmem:[%s172 + $0x20] sm:$0xff]
      %v191 = vld [vmem:[%s172 + $0x28] sm:$0xff]
      %v192 = vld [vmem:[%s172 + $0x30] sm:$0xff]
      %v193 = vld [vmem:[%s172 + $0x38] sm:$0xff]
      %v194 = vld [vmem:[%s172 + $0x40] sm:$0xff]
      %v195 = vld [vmem:[%s172 + $0x48] sm:$0xff]
      %v196 = vld [vmem:[%s172 + $0x50] sm:$0xff]
      %v197 = vld [vmem:[%s172 + $0x58] sm:$0xff]
      %v198 = vld [vmem:[%s172 + $0x60] sm:$0xff]
      %v199 = vld [vmem:[%s172 + $0x68] sm:$0xff]
      %v200 = vld [vmem:[%s172 + $0x70] sm:$0xff]
      %v201 = vld [vmem:[%s172 + $0x78] sm:$0xff]
      %v202 = vld [vmem:[%s172 + $0x80] sm:$0xff]
      %v203 = vld [vmem:[%s172 + $0x88] sm:$0xff]
      %v204 = vld [vmem:[%s172 + $0x90] sm:$0xff]
      %v205 = vld [vmem:[%s172 + $0x98] sm:$0xff]
      %v206 = vld [vmem:[%s172 + $0xa0] sm:$0xff]
      %v207 = vld [vmem:[%s172 + $0xa8] sm:$0xff]
      %v208 = vld [vmem:[%s172 + $0xb0] sm:$0xff]
      %v209 = vld [vmem:[%s172 + $0xb8] sm:$0xff]
      %v210 = vld [vmem:[%s172 + $0xc0] sm:$0xff]
      %v211 = vld [vmem:[%s172 + $0xc8] sm:$0xff]
      %v212 = vld [vmem:[%s172 + $0xd0] sm:$0xff]
      %v213 = vld [vmem:[%s172 + $0xd8] sm:$0xff]
      %v214 = vld [vmem:[%s172 + $0xe0] sm:$0xff]
      %v215 = vld [vmem:[%s172 + $0xe8] sm:$0xff]
      %v216 = vld [vmem:[%s172 + $0xf0] sm:$0xff]
      %v217 = vld [vmem:[%s172 + $0xf8] sm:$0xff]
      %v218 = vld [vmem:[%s172 + $0x100] sm:$0xff]
      %v219 = vld [vmem:[%s172 + $0x108] sm:$0xff]
      %v220 = vld [vmem:[%s172 + $0x110] sm:$0xff]
      %v221 = vld [vmem:[%s172 + $0x118] sm:$0xff]
      %v222 = vld [vmem:[%s172 + $0x120] sm:$0xff]
      %v223 = vld [vmem:[%s172 + $0x128] sm:$0xff]
      %v224 = vld [vmem:[%s172 + $0x130] sm:$0xff]
      %v225 = vld [vmem:[%s172 + $0x138] sm:$0xff]
      %v226 = vld [vmem:[%s172 + $0x140] sm:$0xff]
      %v227 = vld [vmem:[%s172 + $0x148] sm:$0xff]
      %v228 = vld [vmem:[%s172 + $0x150] sm:$0xff]
      %v229 = vld [vmem:[%s172 + $0x158] sm:$0xff]
      %v230 = vld [vmem:[%s172 + $0x160] sm:$0xff]
      %v231 = vld [vmem:[%s172 + $0x168] sm:$0xff]
      %v232 = vld [vmem:[%s172 + $0x170] sm:$0xff]
      %v233 = vld [vmem:[%s172 + $0x178] sm:$0xff]
      %v234 = vld [vmem:[%s172 + $0x180] sm:$0xff]
      %v235 = vld [vmem:[%s172 + $0x188] sm:$0xff]
      %v236 = vld [vmem:[%s172 + $0x190] sm:$0xff]
      %v237 = vld [vmem:[%s172 + $0x198] sm:$0xff]
      %v238 = vld [vmem:[%s172 + $0x1a0] sm:$0xff]
      %v239 = vld [vmem:[%s172 + $0x1a8] sm:$0xff]
      %v240 = vld [vmem:[%s172 + $0x1b0] sm:$0xff]
      %v241 = vld [vmem:[%s172 + $0x1b8] sm:$0xff]
      %v242 = vld [vmem:[%s172 + $0x1c0] sm:$0xff]
      %v243 = vld [vmem:[%s172 + $0x1c8] sm:$0xff]
      %v244 = vld [vmem:[%s172 + $0x1d0] sm:$0xff]
      %v245 = vld [vmem:[%s172 + $0x1d8] sm:$0xff]
      %v246 = vld [vmem:[%s172 + $0x1e0] sm:$0xff]
      %v247 = vld [vmem:[%s172 + $0x1e8] sm:$0xff]
      %v248 = vld [vmem:[%s172 + $0x1f0] sm:$0xff]
      %v249 = vld [vmem:[%s172 + $0x1f8] sm:$0xff]
      %v250 = vld [vmem:[%s172 + $0x200] sm:$0xff]
      %v251 = vld [vmem:[%s172 + $0x208] sm:$0xff]
      %v252 = vld [vmem:[%s172 + $0x210] sm:$0xff]
      %v253 = vld [vmem:[%s172 + $0x218] sm:$0xff]
      %v254 = vld [vmem:[%s172 + $0x220] sm:$0xff]
      %v255 = vld [vmem:[%s172 + $0x228] sm:$0xff]
      %v256 = vld [vmem:[%s172 + $0x230] sm:$0xff]
      %v257 = vld [vmem:[%s172 + $0x238] sm:$0xff]
      %v258 = vld [vmem:[%s172 + $0x240] sm:$0xff]
      %v259 = vld [vmem:[%s172 + $0x248] sm:$0xff]
      %v260 = vld [vmem:[%s172 + $0x250] sm:$0xff]
      %v261 = vld [vmem:[%s172 + $0x258] sm:$0xff]
      %v262 = vld [vmem:[%s172 + $0x260] sm:$0xff]
      %v263 = vld [vmem:[%s172 + $0x268] sm:$0xff]
      %v264 = vld [vmem:[%s172 + $0x270] sm:$0xff]
      %v265 = vld [vmem:[%s172 + $0x278] sm:$0xff]
      %v266 = vld [vmem:[%s172 + $0x280] sm:$0xff]
      %v267 = vld [vmem:[%s172 + $0x288] sm:$0xff]
      %v268 = vld [vmem:[%s172 + $0x290] sm:$0xff]
      %v269 = vld [vmem:[%s172 + $0x298] sm:$0xff]
      %v270 = vld [vmem:[%s172 + $0x2a0] sm:$0xff]
      %v271 = vld [vmem:[%s172 + $0x2a8] sm:$0xff]
      %v272 = vld [vmem:[%s172 + $0x2b0] sm:$0xff]
      %v273 = vld [vmem:[%s172 + $0x2b8] sm:$0xff]
      %v274 = vld [vmem:[%s172 + $0x2c0] sm:$0xff]
      %v275 = vld [vmem:[%s172 + $0x2c8] sm:$0xff]
      %v276 = vld [vmem:[%s172 + $0x2d0] sm:$0xff]
      %v277 = vld [vmem:[%s172 + $0x2d8] sm:$0xff]
      %v278 = vld [vmem:[%s172 + $0x2e0] sm:$0xff]
      %v279 = vld [vmem:[%s172 + $0x2e8] sm:$0xff]
      %v280 = vld [vmem:[%s172 + $0x2f0] sm:$0xff]
      %v281 = vld [vmem:[%s172 + $0x2f8] sm:$0xff]
      %v282 = vld [vmem:[%s172 + $0x300] sm:$0xff]
      %v283 = vld [vmem:[%s172 + $0x308] sm:$0xff]
      %v284 = vld [vmem:[%s172 + $0x310] sm:$0xff]
      %v285 = vld [vmem:[%s172 + $0x318] sm:$0xff]
      %v286 = vld [vmem:[%s172 + $0x320] sm:$0xff]
      %v287 = vld [vmem:[%s172 + $0x328] sm:$0xff]
      %v288 = vld [vmem:[%s172 + $0x330] sm:$0xff]
      %v289 = vld [vmem:[%s172 + $0x338] sm:$0xff]
      %v290 = vld [vmem:[%s172 + $0x340] sm:$0xff]
      %v291 = vld [vmem:[%s172 + $0x348] sm:$0xff]
      %v292 = vld [vmem:[%s172 + $0x350] sm:$0xff]
      %v293 = vld [vmem:[%s172 + $0x358] sm:$0xff]
      %v294 = vld [vmem:[%s172 + $0x360] sm:$0xff]
      %v295 = vld [vmem:[%s172 + $0x368] sm:$0xff]
      %v296 = vld [vmem:[%s172 + $0x370] sm:$0xff]
      %v297 = vld [vmem:[%s172 + $0x378] sm:$0xff]
      %v298 = vld [vmem:[%s172 + $0x380] sm:$0xff]
      %v299 = vld [vmem:[%s172 + $0x388] sm:$0xff]
      %v300 = vld [vmem:[%s172 + $0x390] sm:$0xff]
      %v301 = vld [vmem:[%s172 + $0x398] sm:$0xff]
      %v302 = vld [vmem:[%s172 + $0x3a0] sm:$0xff]
      %v303 = vld [vmem:[%s172 + $0x3a8] sm:$0xff]
      %v304 = vld [vmem:[%s172 + $0x3b0] sm:$0xff]
      %v305 = vld [vmem:[%s172 + $0x3b8] sm:$0xff]
      %v306 = vld [vmem:[%s172 + $0x3c0] sm:$0xff]
      %v307 = vld [vmem:[%s172 + $0x3c8] sm:$0xff]
      %v308 = vld [vmem:[%s172 + $0x3d0] sm:$0xff]
      %v309 = vld [vmem:[%s172 + $0x3d8] sm:$0xff]
      %v310 = vld [vmem:[%s172 + $0x3e0] sm:$0xff]
      %v311 = vld [vmem:[%s172 + $0x3e8] sm:$0xff]
      %v312 = vld [vmem:[%s172 + $0x3f0] sm:$0xff]
      %v313 = vld [vmem:[%s172 + $0x3f8] sm:$0xff]
      %v314 = vld [vmem:[%s172 + $0x400] sm:$0xff]
      %v315 = vld [vmem:[%s172 + $0x408] sm:$0xff]
      %v316 = vld [vmem:[%s172 + $0x410] sm:$0xff]
      %v317 = vld [vmem:[%s172 + $0x418] sm:$0xff]
      %v318 = vld [vmem:[%s172 + $0x420] sm:$0xff]
      %v319 = vld [vmem:[%s172 + $0x428] sm:$0xff]
      %v320 = vld [vmem:[%s172 + $0x430] sm:$0xff]
      %v321 = vld [vmem:[%s172 + $0x438] sm:$0xff]
      %v322 = vld [vmem:[%s172 + $0x440] sm:$0xff]
      %v323 = vld [vmem:[%s172 + $0x448] sm:$0xff]
      %v324 = vld [vmem:[%s172 + $0x450] sm:$0xff]
      %v325 = vld [vmem:[%s172 + $0x458] sm:$0xff]
      %v326 = vld [vmem:[%s172 + $0x460] sm:$0xff]
      %v327 = vld [vmem:[%s172 + $0x468] sm:$0xff]
      %v328 = vld [vmem:[%s172 + $0x470] sm:$0xff]
      %v329 = vld [vmem:[%s172 + $0x478] sm:$0xff]
      %v330 = vld [vmem:[%s172 + $0x480] sm:$0xff]
      %v331 = vld [vmem:[%s172 + $0x488] sm:$0xff]
      %v332 = vld [vmem:[%s172 + $0x490] sm:$0xff]
      %v333 = vld [vmem:[%s172 + $0x498] sm:$0xff]
      %v334 = vld [vmem:[%s172 + $0x4a0] sm:$0xff]
      %v335 = vld [vmem:[%s172 + $0x4a8] sm:$0xff]
      %v336 = vld [vmem:[%s172 + $0x4b0] sm:$0xff]
      %v337 = vld [vmem:[%s172 + $0x4b8] sm:$0xff]
      %v338 = vld [vmem:[%s172 + $0x4c0] sm:$0xff]
      %v339 = vld [vmem:[%s172 + $0x4c8] sm:$0xff]
      %v340 = vld [vmem:[%s172 + $0x4d0] sm:$0xff]
      %v341 = vld [vmem:[%s172 + $0x4d8] sm:$0xff]
      %v342 = vld [vmem:[%s172 + $0x4e0] sm:$0xff]
      %v343 = vld [vmem:[%s172 + $0x4e8] sm:$0xff]
      %v344 = vld [vmem:[%s172 + $0x4f0] sm:$0xff]
      %v345 = vld [vmem:[%s172 + $0x4f8] sm:$0xff]
      %v346 = vld [vmem:[%s172 + $0x500] sm:$0xff]
      %v347 = vld [vmem:[%s172 + $0x508] sm:$0xff]
      %v348 = vld [vmem:[%s172 + $0x510] sm:$0xff]
      %v349 = vld [vmem:[%s172 + $0x518] sm:$0xff]
      %v350 = vld [vmem:[%s172 + $0x520] sm:$0xff]
      %v351 = vld [vmem:[%s172 + $0x528] sm:$0xff]
      %v352 = vld [vmem:[%s172 + $0x530] sm:$0xff]
      %v353 = vld [vmem:[%s172 + $0x538] sm:$0xff]
      %v354 = vld [vmem:[%s172 + $0x540] sm:$0xff]
      %v355 = vld [vmem:[%s172 + $0x548] sm:$0xff]
      %v356 = vld [vmem:[%s172 + $0x550] sm:$0xff]
      %v357 = vld [vmem:[%s172 + $0x558] sm:$0xff]
      %v358 = vld [vmem:[%s172 + $0x560] sm:$0xff]
      %v359 = vld [vmem:[%s172 + $0x568] sm:$0xff]
      %v360 = vld [vmem:[%s172 + $0x570] sm:$0xff]
      %v361 = vld [vmem:[%s172 + $0x578] sm:$0xff]
      %v362 = vld [vmem:[%s172 + $0x580] sm:$0xff]
      %v363 = vld [vmem:[%s172 + $0x588] sm:$0xff]
      %v364 = vld [vmem:[%s172 + $0x590] sm:$0xff]
      %v365 = vld [vmem:[%s172 + $0x598] sm:$0xff]
      %v366 = vld [vmem:[%s172 + $0x5a0] sm:$0xff]
      %v367 = vld [vmem:[%s172 + $0x5a8] sm:$0xff]
      %v368 = vld [vmem:[%s172 + $0x5b0] sm:$0xff]
      %v369 = vld [vmem:[%s172 + $0x5b8] sm:$0xff]
      %v370 = vld [vmem:[%s172 + $0x5c0] sm:$0xff]
      %v371 = vld [vmem:[%s172 + $0x5c8] sm:$0xff]
      %v372 = vld [vmem:[%s172 + $0x5d0] sm:$0xff]
      %v373 = vld [vmem:[%s172 + $0x5d8] sm:$0xff]
      %v374 = vld [vmem:[%s172 + $0x5e0] sm:$0xff]
      %v375 = vld [vmem:[%s172 + $0x5e8] sm:$0xff]
      %v376 = vld [vmem:[%s172 + $0x5f0] sm:$0xff]
      %v377 = vld [vmem:[%s172 + $0x5f8] sm:$0xff]
      %v378 = vld [vmem:[%s172 + $0x600] sm:$0xff]
      %v379 = vld [vmem:[%s172 + $0x608] sm:$0xff]
      %v380 = vld [vmem:[%s172 + $0x610] sm:$0xff]
      %v381 = vld [vmem:[%s172 + $0x618] sm:$0xff]
      %v382 = vld [vmem:[%s172 + $0x620] sm:$0xff]
      %v383 = vld [vmem:[%s172 + $0x628] sm:$0xff]
      %v384 = vld [vmem:[%s172 + $0x630] sm:$0xff]
      %v385 = vld [vmem:[%s172 + $0x638] sm:$0xff]
      %v386 = vld [vmem:[%s172 + $0x640] sm:$0xff]
      %v387 = vld [vmem:[%s172 + $0x648] sm:$0xff]
      %v388 = vld [vmem:[%s172 + $0x650] sm:$0xff]
      %v389 = vld [vmem:[%s172 + $0x658] sm:$0xff]
      %v390 = vld [vmem:[%s172 + $0x660] sm:$0xff]
      %v391 = vld [vmem:[%s172 + $0x668] sm:$0xff]
      %v392 = vld [vmem:[%s172 + $0x670] sm:$0xff]
      %v393 = vld [vmem:[%s172 + $0x678] sm:$0xff]
      %v394 = vld [vmem:[%s172 + $0x680] sm:$0xff]
      %v395 = vld [vmem:[%s172 + $0x688] sm:$0xff]
      %v396 = vld [vmem:[%s172 + $0x690] sm:$0xff]
      %v397 = vld [vmem:[%s172 + $0x698] sm:$0xff]
      %v398 = vld [vmem:[%s172 + $0x6a0] sm:$0xff]
      %v399 = vld [vmem:[%s172 + $0x6a8] sm:$0xff]
      %v400 = vld [vmem:[%s172 + $0x6b0] sm:$0xff]
      %v401 = vld [vmem:[%s172 + $0x6b8] sm:$0xff]
      %v402 = vld [vmem:[%s172 + $0x6c0] sm:$0xff]
      %v403 = vld [vmem:[%s172 + $0x6c8] sm:$0xff]
      %v404 = vld [vmem:[%s172 + $0x6d0] sm:$0xff]
      %v405 = vld [vmem:[%s172 + $0x6d8] sm:$0xff]
      %v406 = vld [vmem:[%s172 + $0x6e0] sm:$0xff]
      %v407 = vld [vmem:[%s172 + $0x6e8] sm:$0xff]
      %v408 = vld [vmem:[%s172 + $0x6f0] sm:$0xff]
      %v409 = vld [vmem:[%s172 + $0x6f8] sm:$0xff]
      %v410 = vld [vmem:[%s172 + $0x700] sm:$0xff]
      %v411 = vld [vmem:[%s172 + $0x708] sm:$0xff]
      %v412 = vld [vmem:[%s172 + $0x710] sm:$0xff]
      %v413 = vld [vmem:[%s172 + $0x718] sm:$0xff]
      %v414 = vld [vmem:[%s172 + $0x720] sm:$0xff]
      %v415 = vld [vmem:[%s172 + $0x728] sm:$0xff]
      %v416 = vld [vmem:[%s172 + $0x730] sm:$0xff]
      %v417 = vld [vmem:[%s172 + $0x738] sm:$0xff]
      %v418 = vld [vmem:[%s172 + $0x740] sm:$0xff]
      %v419 = vld [vmem:[%s172 + $0x748] sm:$0xff]
      %v420 = vld [vmem:[%s172 + $0x750] sm:$0xff]
      %v421 = vld [vmem:[%s172 + $0x758] sm:$0xff]
      %v422 = vld [vmem:[%s172 + $0x760] sm:$0xff]
      %v423 = vld [vmem:[%s172 + $0x768] sm:$0xff]
      %v424 = vld [vmem:[%s172 + $0x770] sm:$0xff]
      %v425 = vld [vmem:[%s172 + $0x778] sm:$0xff]
      %v426 = vld [vmem:[%s172 + $0x780] sm:$0xff]
      %v427 = vld [vmem:[%s172 + $0x788] sm:$0xff]
      %v428 = vld [vmem:[%s172 + $0x790] sm:$0xff]
      %v429 = vld [vmem:[%s172 + $0x798] sm:$0xff]
      %v430 = vld [vmem:[%s172 + $0x7a0] sm:$0xff]
      %v431 = vld [vmem:[%s172 + $0x7a8] sm:$0xff]
      %v432 = vld [vmem:[%s172 + $0x7b0] sm:$0xff]
      %v433 = vld [vmem:[%s172 + $0x7b8] sm:$0xff]
      %v434 = vld [vmem:[%s172 + $0x7c0] sm:$0xff]
      %v435 = vld [vmem:[%s172 + $0x7c8] sm:$0xff]
      %v436 = vld [vmem:[%s172 + $0x7d0] sm:$0xff]
      %v437 = vld [vmem:[%s172 + $0x7d8] sm:$0xff]
      %v438 = vld [vmem:[%s172 + $0x7e0] sm:$0xff]
      %v439 = vld [vmem:[%s172 + $0x7e8] sm:$0xff]
      %v440 = vld [vmem:[%s172 + $0x7f0] sm:$0xff]
      %v441 = vld [vmem:[%s172 + $0x7f8] sm:$0xff]
      %v442 = vpack.c.bf16 %v187, %v186
      %v443 = vpack.c.bf16 %v189, %v188
      %v444 = vpack.c.bf16 %v191, %v190
      %v445 = vpack.c.bf16 %v193, %v192
      %v446 = vpack.c.bf16 %v195, %v194
      %v447 = vpack.c.bf16 %v197, %v196
      %v448 = vpack.c.bf16 %v199, %v198
      %v449 = vpack.c.bf16 %v201, %v200
      %v450 = vpack.c.bf16 %v203, %v202
      %v451 = vpack.c.bf16 %v205, %v204
      %v452 = vpack.c.bf16 %v207, %v206
      %v453 = vpack.c.bf16 %v209, %v208
      %v454 = vpack.c.bf16 %v211, %v210
      %v455 = vpack.c.bf16 %v213, %v212
      %v456 = vpack.c.bf16 %v215, %v214
      %v457 = vpack.c.bf16 %v217, %v216
      %v458 = vpack.c.bf16 %v219, %v218
      %v459 = vpack.c.bf16 %v221, %v220
      %v460 = vpack.c.bf16 %v223, %v222
      %v461 = vpack.c.bf16 %v225, %v224
      %v462 = vpack.c.bf16 %v227, %v226
      %v463 = vpack.c.bf16 %v229, %v228
      %v464 = vpack.c.bf16 %v231, %v230
      %v465 = vpack.c.bf16 %v233, %v232
      %v466 = vpack.c.bf16 %v235, %v234
      %v467 = vpack.c.bf16 %v237, %v236
      %v468 = vpack.c.bf16 %v239, %v238
      %v469 = vpack.c.bf16 %v241, %v240
      %v470 = vpack.c.bf16 %v243, %v242
      %v471 = vpack.c.bf16 %v245, %v244
      %v472 = vpack.c.bf16 %v247, %v246
      %v473 = vpack.c.bf16 %v249, %v248
      %v474 = vpack.c.bf16 %v251, %v250
      %v475 = vpack.c.bf16 %v253, %v252
      %v476 = vpack.c.bf16 %v255, %v254
      %v477 = vpack.c.bf16 %v257, %v256
      %v478 = vpack.c.bf16 %v259, %v258
      %v479 = vpack.c.bf16 %v261, %v260
      %v480 = vpack.c.bf16 %v263, %v262
      %v481 = vpack.c.bf16 %v265, %v264
      %v482 = vpack.c.bf16 %v267, %v266
      %v483 = vpack.c.bf16 %v269, %v268
      %v484 = vpack.c.bf16 %v271, %v270
      %v485 = vpack.c.bf16 %v273, %v272
      %v486 = vpack.c.bf16 %v275, %v274
      %v487 = vpack.c.bf16 %v277, %v276
      %v488 = vpack.c.bf16 %v279, %v278
      %v489 = vpack.c.bf16 %v281, %v280
      %v490 = vpack.c.bf16 %v283, %v282
      %v491 = vpack.c.bf16 %v285, %v284
      %v492 = vpack.c.bf16 %v287, %v286
      %v493 = vpack.c.bf16 %v289, %v288
      %v494 = vpack.c.bf16 %v291, %v290
      %v495 = vpack.c.bf16 %v293, %v292
      %v496 = vpack.c.bf16 %v295, %v294
      %v497 = vpack.c.bf16 %v297, %v296
      %v498 = vpack.c.bf16 %v299, %v298
      %v499 = vpack.c.bf16 %v301, %v300
      %v500 = vpack.c.bf16 %v303, %v302
      %v501 = vpack.c.bf16 %v305, %v304
      %v502 = vpack.c.bf16 %v307, %v306
      %v503 = vpack.c.bf16 %v309, %v308
      %v504 = vpack.c.bf16 %v311, %v310
      %v505 = vpack.c.bf16 %v313, %v312
      %v506 = vpack.c.bf16 %v315, %v314
      %v507 = vpack.c.bf16 %v317, %v316
      %v508 = vpack.c.bf16 %v319, %v318
      %v509 = vpack.c.bf16 %v321, %v320
      %v510 = vpack.c.bf16 %v323, %v322
      %v511 = vpack.c.bf16 %v325, %v324
      %v512 = vpack.c.bf16 %v327, %v326
      %v513 = vpack.c.bf16 %v329, %v328
      %v514 = vpack.c.bf16 %v331, %v330
      %v515 = vpack.c.bf16 %v333, %v332
      %v516 = vpack.c.bf16 %v335, %v334
      %v517 = vpack.c.bf16 %v337, %v336
      %v518 = vpack.c.bf16 %v339, %v338
      %v519 = vpack.c.bf16 %v341, %v340
      %v520 = vpack.c.bf16 %v343, %v342
      %v521 = vpack.c.bf16 %v345, %v344
      %v522 = vpack.c.bf16 %v347, %v346
      %v523 = vpack.c.bf16 %v349, %v348
      %v524 = vpack.c.bf16 %v351, %v350
      %v525 = vpack.c.bf16 %v353, %v352
      %v526 = vpack.c.bf16 %v355, %v354
      %v527 = vpack.c.bf16 %v357, %v356
      %v528 = vpack.c.bf16 %v359, %v358
      %v529 = vpack.c.bf16 %v361, %v360
      %v530 = vpack.c.bf16 %v363, %v362
      %v531 = vpack.c.bf16 %v365, %v364
      %v532 = vpack.c.bf16 %v367, %v366
      %v533 = vpack.c.bf16 %v369, %v368
      %v534 = vpack.c.bf16 %v371, %v370
      %v535 = vpack.c.bf16 %v373, %v372
      %v536 = vpack.c.bf16 %v375, %v374
      %v537 = vpack.c.bf16 %v377, %v376
      %v538 = vpack.c.bf16 %v379, %v378
      %v539 = vpack.c.bf16 %v381, %v380
      %v540 = vpack.c.bf16 %v383, %v382
      %v541 = vpack.c.bf16 %v385, %v384
      %v542 = vpack.c.bf16 %v387, %v386
      %v543 = vpack.c.bf16 %v389, %v388
      %v544 = vpack.c.bf16 %v391, %v390
      %v545 = vpack.c.bf16 %v393, %v392
      %v546 = vpack.c.bf16 %v395, %v394
      %v547 = vpack.c.bf16 %v397, %v396
      %v548 = vpack.c.bf16 %v399, %v398
      %v549 = vpack.c.bf16 %v401, %v400
      %v550 = vpack.c.bf16 %v403, %v402
      %v551 = vpack.c.bf16 %v405, %v404
      %v552 = vpack.c.bf16 %v407, %v406
      %v553 = vpack.c.bf16 %v409, %v408
      %v554 = vpack.c.bf16 %v411, %v410
      %v555 = vpack.c.bf16 %v413, %v412
      %v556 = vpack.c.bf16 %v415, %v414
      %v557 = vpack.c.bf16 %v417, %v416
      %v558 = vpack.c.bf16 %v419, %v418
      %v559 = vpack.c.bf16 %v421, %v420
      %v560 = vpack.c.bf16 %v423, %v422
      %v561 = vpack.c.bf16 %v425, %v424
      %v562 = vpack.c.bf16 %v427, %v426
      %v563 = vpack.c.bf16 %v429, %v428
      %v564 = vpack.c.bf16 %v431, %v430
      %v565 = vpack.c.bf16 %v433, %v432
      %v566 = vpack.c.bf16 %v435, %v434
      %v567 = vpack.c.bf16 %v437, %v436
      %v568 = vpack.c.bf16 %v439, %v438
      %v569 = vpack.c.bf16 %v441, %v440
      %v570 = vld [vmem:[%s178] sm:$0xff]
      %v571 = vld [vmem:[%s178 + $0x8] sm:$0xff]
      %v572 = vld [vmem:[%s178 + $0x10] sm:$0xff]
      %v573 = vld [vmem:[%s178 + $0x18] sm:$0xff]
      %v574 = vld [vmem:[%s178 + $0x20] sm:$0xff]
      %v575 = vld [vmem:[%s178 + $0x28] sm:$0xff]
      %v576 = vld [vmem:[%s178 + $0x30] sm:$0xff]
      %v577 = vld [vmem:[%s178 + $0x38] sm:$0xff]
      %v578 = vld [vmem:[%s178 + $0x40] sm:$0xff]
      %v579 = vld [vmem:[%s178 + $0x48] sm:$0xff]
      %v580 = vld [vmem:[%s178 + $0x50] sm:$0xff]
      %v581 = vld [vmem:[%s178 + $0x58] sm:$0xff]
      %v582 = vld [vmem:[%s178 + $0x60] sm:$0xff]
      %v583 = vld [vmem:[%s178 + $0x68] sm:$0xff]
      %v584 = vld [vmem:[%s178 + $0x70] sm:$0xff]
      %v585 = vld [vmem:[%s178 + $0x78] sm:$0xff]
      %v586 = vld [vmem:[%s178 + $0x80] sm:$0xff]
      %v587 = vld [vmem:[%s178 + $0x88] sm:$0xff]
      %v588 = vld [vmem:[%s178 + $0x90] sm:$0xff]
      %v589 = vld [vmem:[%s178 + $0x98] sm:$0xff]
      %v590 = vld [vmem:[%s178 + $0xa0] sm:$0xff]
      %v591 = vld [vmem:[%s178 + $0xa8] sm:$0xff]
      %v592 = vld [vmem:[%s178 + $0xb0] sm:$0xff]
      %v593 = vld [vmem:[%s178 + $0xb8] sm:$0xff]
      %v594 = vld [vmem:[%s178 + $0xc0] sm:$0xff]
      %v595 = vld [vmem:[%s178 + $0xc8] sm:$0xff]
      %v596 = vld [vmem:[%s178 + $0xd0] sm:$0xff]
      %v597 = vld [vmem:[%s178 + $0xd8] sm:$0xff]
      %v598 = vld [vmem:[%s178 + $0xe0] sm:$0xff]
      %v599 = vld [vmem:[%s178 + $0xe8] sm:$0xff]
      %v600 = vld [vmem:[%s178 + $0xf0] sm:$0xff]
      %v601 = vld [vmem:[%s178 + $0xf8] sm:$0xff]
      %v602 = vld [vmem:[%s178 + $0x100] sm:$0xff]
      %v603 = vld [vmem:[%s178 + $0x108] sm:$0xff]
      %v604 = vld [vmem:[%s178 + $0x110] sm:$0xff]
      %v605 = vld [vmem:[%s178 + $0x118] sm:$0xff]
      %v606 = vld [vmem:[%s178 + $0x120] sm:$0xff]
      %v607 = vld [vmem:[%s178 + $0x128] sm:$0xff]
      %v608 = vld [vmem:[%s178 + $0x130] sm:$0xff]
      %v609 = vld [vmem:[%s178 + $0x138] sm:$0xff]
      %v610 = vld [vmem:[%s178 + $0x140] sm:$0xff]
      %v611 = vld [vmem:[%s178 + $0x148] sm:$0xff]
      %v612 = vld [vmem:[%s178 + $0x150] sm:$0xff]
      %v613 = vld [vmem:[%s178 + $0x158] sm:$0xff]
      %v614 = vld [vmem:[%s178 + $0x160] sm:$0xff]
      %v615 = vld [vmem:[%s178 + $0x168] sm:$0xff]
      %v616 = vld [vmem:[%s178 + $0x170] sm:$0xff]
      %v617 = vld [vmem:[%s178 + $0x178] sm:$0xff]
      %v618 = vld [vmem:[%s178 + $0x180] sm:$0xff]
      %v619 = vld [vmem:[%s178 + $0x188] sm:$0xff]
      %v620 = vld [vmem:[%s178 + $0x190] sm:$0xff]
      %v621 = vld [vmem:[%s178 + $0x198] sm:$0xff]
      %v622 = vld [vmem:[%s178 + $0x1a0] sm:$0xff]
      %v623 = vld [vmem:[%s178 + $0x1a8] sm:$0xff]
      %v624 = vld [vmem:[%s178 + $0x1b0] sm:$0xff]
      %v625 = vld [vmem:[%s178 + $0x1b8] sm:$0xff]
      %v626 = vld [vmem:[%s178 + $0x1c0] sm:$0xff]
      %v627 = vld [vmem:[%s178 + $0x1c8] sm:$0xff]
      %v628 = vld [vmem:[%s178 + $0x1d0] sm:$0xff]
      %v629 = vld [vmem:[%s178 + $0x1d8] sm:$0xff]
      %v630 = vld [vmem:[%s178 + $0x1e0] sm:$0xff]
      %v631 = vld [vmem:[%s178 + $0x1e8] sm:$0xff]
      %v632 = vld [vmem:[%s178 + $0x1f0] sm:$0xff]
      %v633 = vld [vmem:[%s178 + $0x1f8] sm:$0xff]
      %v634 = vld [vmem:[%s178 + $0x200] sm:$0xff]
      %v635 = vld [vmem:[%s178 + $0x208] sm:$0xff]
      %v636 = vld [vmem:[%s178 + $0x210] sm:$0xff]
      %v637 = vld [vmem:[%s178 + $0x218] sm:$0xff]
      %v638 = vld [vmem:[%s178 + $0x220] sm:$0xff]
      %v639 = vld [vmem:[%s178 + $0x228] sm:$0xff]
      %v640 = vld [vmem:[%s178 + $0x230] sm:$0xff]
      %v641 = vld [vmem:[%s178 + $0x238] sm:$0xff]
      %v642 = vld [vmem:[%s178 + $0x240] sm:$0xff]
      %v643 = vld [vmem:[%s178 + $0x248] sm:$0xff]
      %v644 = vld [vmem:[%s178 + $0x250] sm:$0xff]
      %v645 = vld [vmem:[%s178 + $0x258] sm:$0xff]
      %v646 = vld [vmem:[%s178 + $0x260] sm:$0xff]
      %v647 = vld [vmem:[%s178 + $0x268] sm:$0xff]
      %v648 = vld [vmem:[%s178 + $0x270] sm:$0xff]
      %v649 = vld [vmem:[%s178 + $0x278] sm:$0xff]
      %v650 = vld [vmem:[%s178 + $0x280] sm:$0xff]
      %v651 = vld [vmem:[%s178 + $0x288] sm:$0xff]
      %v652 = vld [vmem:[%s178 + $0x290] sm:$0xff]
      %v653 = vld [vmem:[%s178 + $0x298] sm:$0xff]
      %v654 = vld [vmem:[%s178 + $0x2a0] sm:$0xff]
      %v655 = vld [vmem:[%s178 + $0x2a8] sm:$0xff]
      %v656 = vld [vmem:[%s178 + $0x2b0] sm:$0xff]
      %v657 = vld [vmem:[%s178 + $0x2b8] sm:$0xff]
      %v658 = vld [vmem:[%s178 + $0x2c0] sm:$0xff]
      %v659 = vld [vmem:[%s178 + $0x2c8] sm:$0xff]
      %v660 = vld [vmem:[%s178 + $0x2d0] sm:$0xff]
      %v661 = vld [vmem:[%s178 + $0x2d8] sm:$0xff]
      %v662 = vld [vmem:[%s178 + $0x2e0] sm:$0xff]
      %v663 = vld [vmem:[%s178 + $0x2e8] sm:$0xff]
      %v664 = vld [vmem:[%s178 + $0x2f0] sm:$0xff]
      %v665 = vld [vmem:[%s178 + $0x2f8] sm:$0xff]
      %v666 = vld [vmem:[%s178 + $0x300] sm:$0xff]
      %v667 = vld [vmem:[%s178 + $0x308] sm:$0xff]
      %v668 = vld [vmem:[%s178 + $0x310] sm:$0xff]
      %v669 = vld [vmem:[%s178 + $0x318] sm:$0xff]
      %v670 = vld [vmem:[%s178 + $0x320] sm:$0xff]
      %v671 = vld [vmem:[%s178 + $0x328] sm:$0xff]
      %v672 = vld [vmem:[%s178 + $0x330] sm:$0xff]
      %v673 = vld [vmem:[%s178 + $0x338] sm:$0xff]
      %v674 = vld [vmem:[%s178 + $0x340] sm:$0xff]
      %v675 = vld [vmem:[%s178 + $0x348] sm:$0xff]
      %v676 = vld [vmem:[%s178 + $0x350] sm:$0xff]
      %v677 = vld [vmem:[%s178 + $0x358] sm:$0xff]
      %v678 = vld [vmem:[%s178 + $0x360] sm:$0xff]
      %v679 = vld [vmem:[%s178 + $0x368] sm:$0xff]
      %v680 = vld [vmem:[%s178 + $0x370] sm:$0xff]
      %v681 = vld [vmem:[%s178 + $0x378] sm:$0xff]
      %v682 = vld [vmem:[%s178 + $0x380] sm:$0xff]
      %v683 = vld [vmem:[%s178 + $0x388] sm:$0xff]
      %v684 = vld [vmem:[%s178 + $0x390] sm:$0xff]
      %v685 = vld [vmem:[%s178 + $0x398] sm:$0xff]
      %v686 = vld [vmem:[%s178 + $0x3a0] sm:$0xff]
      %v687 = vld [vmem:[%s178 + $0x3a8] sm:$0xff]
      %v688 = vld [vmem:[%s178 + $0x3b0] sm:$0xff]
      %v689 = vld [vmem:[%s178 + $0x3b8] sm:$0xff]
      %v690 = vld [vmem:[%s178 + $0x3c0] sm:$0xff]
      %v691 = vld [vmem:[%s178 + $0x3c8] sm:$0xff]
      %v692 = vld [vmem:[%s178 + $0x3d0] sm:$0xff]
      %v693 = vld [vmem:[%s178 + $0x3d8] sm:$0xff]
      %v694 = vld [vmem:[%s178 + $0x3e0] sm:$0xff]
      %v695 = vld [vmem:[%s178 + $0x3e8] sm:$0xff]
      %v696 = vld [vmem:[%s178 + $0x3f0] sm:$0xff]
      %v697 = vld [vmem:[%s178 + $0x3f8] sm:$0xff]
      %v698 = vld [vmem:[%s178 + $0x400] sm:$0xff]
      %v699 = vld [vmem:[%s178 + $0x408] sm:$0xff]
      %v700 = vld [vmem:[%s178 + $0x410] sm:$0xff]
      %v701 = vld [vmem:[%s178 + $0x418] sm:$0xff]
      %v702 = vld [vmem:[%s178 + $0x420] sm:$0xff]
      %v703 = vld [vmem:[%s178 + $0x428] sm:$0xff]
      %v704 = vld [vmem:[%s178 + $0x430] sm:$0xff]
      %v705 = vld [vmem:[%s178 + $0x438] sm:$0xff]
      %v706 = vld [vmem:[%s178 + $0x440] sm:$0xff]
      %v707 = vld [vmem:[%s178 + $0x448] sm:$0xff]
      %v708 = vld [vmem:[%s178 + $0x450] sm:$0xff]
      %v709 = vld [vmem:[%s178 + $0x458] sm:$0xff]
      %v710 = vld [vmem:[%s178 + $0x460] sm:$0xff]
      %v711 = vld [vmem:[%s178 + $0x468] sm:$0xff]
      %v712 = vld [vmem:[%s178 + $0x470] sm:$0xff]
      %v713 = vld [vmem:[%s178 + $0x478] sm:$0xff]
      %v714 = vld [vmem:[%s178 + $0x480] sm:$0xff]
      %v715 = vld [vmem:[%s178 + $0x488] sm:$0xff]
      %v716 = vld [vmem:[%s178 + $0x490] sm:$0xff]
      %v717 = vld [vmem:[%s178 + $0x498] sm:$0xff]
      %v718 = vld [vmem:[%s178 + $0x4a0] sm:$0xff]
      %v719 = vld [vmem:[%s178 + $0x4a8] sm:$0xff]
      %v720 = vld [vmem:[%s178 + $0x4b0] sm:$0xff]
      %v721 = vld [vmem:[%s178 + $0x4b8] sm:$0xff]
      %v722 = vld [vmem:[%s178 + $0x4c0] sm:$0xff]
      %v723 = vld [vmem:[%s178 + $0x4c8] sm:$0xff]
      %v724 = vld [vmem:[%s178 + $0x4d0] sm:$0xff]
      %v725 = vld [vmem:[%s178 + $0x4d8] sm:$0xff]
      %v726 = vld [vmem:[%s178 + $0x4e0] sm:$0xff]
      %v727 = vld [vmem:[%s178 + $0x4e8] sm:$0xff]
      %v728 = vld [vmem:[%s178 + $0x4f0] sm:$0xff]
      %v729 = vld [vmem:[%s178 + $0x4f8] sm:$0xff]
      %v730 = vld [vmem:[%s178 + $0x500] sm:$0xff]
      %v731 = vld [vmem:[%s178 + $0x508] sm:$0xff]
      %v732 = vld [vmem:[%s178 + $0x510] sm:$0xff]
      %v733 = vld [vmem:[%s178 + $0x518] sm:$0xff]
      %v734 = vld [vmem:[%s178 + $0x520] sm:$0xff]
      %v735 = vld [vmem:[%s178 + $0x528] sm:$0xff]
      %v736 = vld [vmem:[%s178 + $0x530] sm:$0xff]
      %v737 = vld [vmem:[%s178 + $0x538] sm:$0xff]
      %v738 = vld [vmem:[%s178 + $0x540] sm:$0xff]
      %v739 = vld [vmem:[%s178 + $0x548] sm:$0xff]
      %v740 = vld [vmem:[%s178 + $0x550] sm:$0xff]
      %v741 = vld [vmem:[%s178 + $0x558] sm:$0xff]
      %v742 = vld [vmem:[%s178 + $0x560] sm:$0xff]
      %v743 = vld [vmem:[%s178 + $0x568] sm:$0xff]
      %v744 = vld [vmem:[%s178 + $0x570] sm:$0xff]
      %v745 = vld [vmem:[%s178 + $0x578] sm:$0xff]
      %v746 = vld [vmem:[%s178 + $0x580] sm:$0xff]
      %v747 = vld [vmem:[%s178 + $0x588] sm:$0xff]
      %v748 = vld [vmem:[%s178 + $0x590] sm:$0xff]
      %v749 = vld [vmem:[%s178 + $0x598] sm:$0xff]
      %v750 = vld [vmem:[%s178 + $0x5a0] sm:$0xff]
      %v751 = vld [vmem:[%s178 + $0x5a8] sm:$0xff]
      %v752 = vld [vmem:[%s178 + $0x5b0] sm:$0xff]
      %v753 = vld [vmem:[%s178 + $0x5b8] sm:$0xff]
      %v754 = vld [vmem:[%s178 + $0x5c0] sm:$0xff]
      %v755 = vld [vmem:[%s178 + $0x5c8] sm:$0xff]
      %v756 = vld [vmem:[%s178 + $0x5d0] sm:$0xff]
      %v757 = vld [vmem:[%s178 + $0x5d8] sm:$0xff]
      %v758 = vld [vmem:[%s178 + $0x5e0] sm:$0xff]
      %v759 = vld [vmem:[%s178 + $0x5e8] sm:$0xff]
      %v760 = vld [vmem:[%s178 + $0x5f0] sm:$0xff]
      %v761 = vld [vmem:[%s178 + $0x5f8] sm:$0xff]
      %v762 = vld [vmem:[%s178 + $0x600] sm:$0xff]
      %v763 = vld [vmem:[%s178 + $0x608] sm:$0xff]
      %v764 = vld [vmem:[%s178 + $0x610] sm:$0xff]
      %v765 = vld [vmem:[%s178 + $0x618] sm:$0xff]
      %v766 = vld [vmem:[%s178 + $0x620] sm:$0xff]
      %v767 = vld [vmem:[%s178 + $0x628] sm:$0xff]
      %v768 = vld [vmem:[%s178 + $0x630] sm:$0xff]
      %v769 = vld [vmem:[%s178 + $0x638] sm:$0xff]
      %v770 = vld [vmem:[%s178 + $0x640] sm:$0xff]
      %v771 = vld [vmem:[%s178 + $0x648] sm:$0xff]
      %v772 = vld [vmem:[%s178 + $0x650] sm:$0xff]
      %v773 = vld [vmem:[%s178 + $0x658] sm:$0xff]
      %v774 = vld [vmem:[%s178 + $0x660] sm:$0xff]
      %v775 = vld [vmem:[%s178 + $0x668] sm:$0xff]
      %v776 = vld [vmem:[%s178 + $0x670] sm:$0xff]
      %v777 = vld [vmem:[%s178 + $0x678] sm:$0xff]
      %v778 = vld [vmem:[%s178 + $0x680] sm:$0xff]
      %v779 = vld [vmem:[%s178 + $0x688] sm:$0xff]
      %v780 = vld [vmem:[%s178 + $0x690] sm:$0xff]
      %v781 = vld [vmem:[%s178 + $0x698] sm:$0xff]
      %v782 = vld [vmem:[%s178 + $0x6a0] sm:$0xff]
      %v783 = vld [vmem:[%s178 + $0x6a8] sm:$0xff]
      %v784 = vld [vmem:[%s178 + $0x6b0] sm:$0xff]
      %v785 = vld [vmem:[%s178 + $0x6b8] sm:$0xff]
      %v786 = vld [vmem:[%s178 + $0x6c0] sm:$0xff]
      %v787 = vld [vmem:[%s178 + $0x6c8] sm:$0xff]
      %v788 = vld [vmem:[%s178 + $0x6d0] sm:$0xff]
      %v789 = vld [vmem:[%s178 + $0x6d8] sm:$0xff]
      %v790 = vld [vmem:[%s178 + $0x6e0] sm:$0xff]
      %v791 = vld [vmem:[%s178 + $0x6e8] sm:$0xff]
      %v792 = vld [vmem:[%s178 + $0x6f0] sm:$0xff]
      %v793 = vld [vmem:[%s178 + $0x6f8] sm:$0xff]
      %v794 = vld [vmem:[%s178 + $0x700] sm:$0xff]
      %v795 = vld [vmem:[%s178 + $0x708] sm:$0xff]
      %v796 = vld [vmem:[%s178 + $0x710] sm:$0xff]
      %v797 = vld [vmem:[%s178 + $0x718] sm:$0xff]
      %v798 = vld [vmem:[%s178 + $0x720] sm:$0xff]
      %v799 = vld [vmem:[%s178 + $0x728] sm:$0xff]
      %v800 = vld [vmem:[%s178 + $0x730] sm:$0xff]
      %v801 = vld [vmem:[%s178 + $0x738] sm:$0xff]
      %v802 = vld [vmem:[%s178 + $0x740] sm:$0xff]
      %v803 = vld [vmem:[%s178 + $0x748] sm:$0xff]
      %v804 = vld [vmem:[%s178 + $0x750] sm:$0xff]
      %v805 = vld [vmem:[%s178 + $0x758] sm:$0xff]
      %v806 = vld [vmem:[%s178 + $0x760] sm:$0xff]
      %v807 = vld [vmem:[%s178 + $0x768] sm:$0xff]
      %v808 = vld [vmem:[%s178 + $0x770] sm:$0xff]
      %v809 = vld [vmem:[%s178 + $0x778] sm:$0xff]
      %v810 = vld [vmem:[%s178 + $0x780] sm:$0xff]
      %v811 = vld [vmem:[%s178 + $0x788] sm:$0xff]
      %v812 = vld [vmem:[%s178 + $0x790] sm:$0xff]
      %v813 = vld [vmem:[%s178 + $0x798] sm:$0xff]
      %v814 = vld [vmem:[%s178 + $0x7a0] sm:$0xff]
      %v815 = vld [vmem:[%s178 + $0x7a8] sm:$0xff]
      %v816 = vld [vmem:[%s178 + $0x7b0] sm:$0xff]
      %v817 = vld [vmem:[%s178 + $0x7b8] sm:$0xff]
      %v818 = vld [vmem:[%s178 + $0x7c0] sm:$0xff]
      %v819 = vld [vmem:[%s178 + $0x7c8] sm:$0xff]
      %v820 = vld [vmem:[%s178 + $0x7d0] sm:$0xff]
      %v821 = vld [vmem:[%s178 + $0x7d8] sm:$0xff]
      %v822 = vld [vmem:[%s178 + $0x7e0] sm:$0xff]
      %v823 = vld [vmem:[%s178 + $0x7e8] sm:$0xff]
      %v824 = vld [vmem:[%s178 + $0x7f0] sm:$0xff]
      %v825 = vld [vmem:[%s178 + $0x7f8] sm:$0xff]
      %v826 = vpack.c.bf16 %v571, %v570
      %v827 = vpack.c.bf16 %v573, %v572
      %v828 = vpack.c.bf16 %v575, %v574
      %v829 = vpack.c.bf16 %v577, %v576
      %v830 = vpack.c.bf16 %v579, %v578
      %v831 = vpack.c.bf16 %v581, %v580
      %v832 = vpack.c.bf16 %v583, %v582
      %v833 = vpack.c.bf16 %v585, %v584
      %v834 = vpack.c.bf16 %v587, %v586
      %v835 = vpack.c.bf16 %v589, %v588
      %v836 = vpack.c.bf16 %v591, %v590
      %v837 = vpack.c.bf16 %v593, %v592
      %v838 = vpack.c.bf16 %v595, %v594
      %v839 = vpack.c.bf16 %v597, %v596
      %v840 = vpack.c.bf16 %v599, %v598
      %v841 = vpack.c.bf16 %v601, %v600
      %v842 = vpack.c.bf16 %v603, %v602
      %v843 = vpack.c.bf16 %v605, %v604
      %v844 = vpack.c.bf16 %v607, %v606
      %v845 = vpack.c.bf16 %v609, %v608
      %v846 = vpack.c.bf16 %v611, %v610
      %v847 = vpack.c.bf16 %v613, %v612
      %v848 = vpack.c.bf16 %v615, %v614
      %v849 = vpack.c.bf16 %v617, %v616
      %v850 = vpack.c.bf16 %v619, %v618
      %v851 = vpack.c.bf16 %v621, %v620
      %v852 = vpack.c.bf16 %v623, %v622
      %v853 = vpack.c.bf16 %v625, %v624
      %v854 = vpack.c.bf16 %v627, %v626
      %v855 = vpack.c.bf16 %v629, %v628
      %v856 = vpack.c.bf16 %v631, %v630
      %v857 = vpack.c.bf16 %v633, %v632
      %v858 = vpack.c.bf16 %v635, %v634
      %v859 = vpack.c.bf16 %v637, %v636
      %v860 = vpack.c.bf16 %v639, %v638
      %v861 = vpack.c.bf16 %v641, %v640
      %v862 = vpack.c.bf16 %v643, %v642
      %v863 = vpack.c.bf16 %v645, %v644
      %v864 = vpack.c.bf16 %v647, %v646
      %v865 = vpack.c.bf16 %v649, %v648
      %v866 = vpack.c.bf16 %v651, %v650
      %v867 = vpack.c.bf16 %v653, %v652
      %v868 = vpack.c.bf16 %v655, %v654
      %v869 = vpack.c.bf16 %v657, %v656
      %v870 = vpack.c.bf16 %v659, %v658
      %v871 = vpack.c.bf16 %v661, %v660
      %v872 = vpack.c.bf16 %v663, %v662
      %v873 = vpack.c.bf16 %v665, %v664
      %v874 = vpack.c.bf16 %v667, %v666
      %v875 = vpack.c.bf16 %v669, %v668
      %v876 = vpack.c.bf16 %v671, %v670
      %v877 = vpack.c.bf16 %v673, %v672
      %v878 = vpack.c.bf16 %v675, %v674
      %v879 = vpack.c.bf16 %v677, %v676
      %v880 = vpack.c.bf16 %v679, %v678
      %v881 = vpack.c.bf16 %v681, %v680
      %v882 = vpack.c.bf16 %v683, %v682
      %v883 = vpack.c.bf16 %v685, %v684
      %v884 = vpack.c.bf16 %v687, %v686
      %v885 = vpack.c.bf16 %v689, %v688
      %v886 = vpack.c.bf16 %v691, %v690
      %v887 = vpack.c.bf16 %v693, %v692
      %v888 = vpack.c.bf16 %v695, %v694
      %v889 = vpack.c.bf16 %v697, %v696
      %v890 = vpack.c.bf16 %v699, %v698
      %v891 = vpack.c.bf16 %v701, %v700
      %v892 = vpack.c.bf16 %v703, %v702
      %v893 = vpack.c.bf16 %v705, %v704
      %v894 = vpack.c.bf16 %v707, %v706
      %v895 = vpack.c.bf16 %v709, %v708
      %v896 = vpack.c.bf16 %v711, %v710
      %v897 = vpack.c.bf16 %v713, %v712
      %v898 = vpack.c.bf16 %v715, %v714
      %v899 = vpack.c.bf16 %v717, %v716
      %v900 = vpack.c.bf16 %v719, %v718
      %v901 = vpack.c.bf16 %v721, %v720
      %v902 = vpack.c.bf16 %v723, %v722
      %v903 = vpack.c.bf16 %v725, %v724
      %v904 = vpack.c.bf16 %v727, %v726
      %v905 = vpack.c.bf16 %v729, %v728
      %v906 = vpack.c.bf16 %v731, %v730
      %v907 = vpack.c.bf16 %v733, %v732
      %v908 = vpack.c.bf16 %v735, %v734
      %v909 = vpack.c.bf16 %v737, %v736
      %v910 = vpack.c.bf16 %v739, %v738
      %v911 = vpack.c.bf16 %v741, %v740
      %v912 = vpack.c.bf16 %v743, %v742
      %v913 = vpack.c.bf16 %v745, %v744
      %v914 = vpack.c.bf16 %v747, %v746
      %v915 = vpack.c.bf16 %v749, %v748
      %v916 = vpack.c.bf16 %v751, %v750
      %v917 = vpack.c.bf16 %v753, %v752
      %v918 = vpack.c.bf16 %v755, %v754
      %v919 = vpack.c.bf16 %v757, %v756
      %v920 = vpack.c.bf16 %v759, %v758
      %v921 = vpack.c.bf16 %v761, %v760
      %v922 = vpack.c.bf16 %v763, %v762
      %v923 = vpack.c.bf16 %v765, %v764
      %v924 = vpack.c.bf16 %v767, %v766
      %v925 = vpack.c.bf16 %v769, %v768
      %v926 = vpack.c.bf16 %v771, %v770
      %v927 = vpack.c.bf16 %v773, %v772
      %v928 = vpack.c.bf16 %v775, %v774
      %v929 = vpack.c.bf16 %v777, %v776
      %v930 = vpack.c.bf16 %v779, %v778
      %v931 = vpack.c.bf16 %v781, %v780
      %v932 = vpack.c.bf16 %v783, %v782
      %v933 = vpack.c.bf16 %v785, %v784
      %v934 = vpack.c.bf16 %v787, %v786
      %v935 = vpack.c.bf16 %v789, %v788
      %v936 = vpack.c.bf16 %v791, %v790
      %v937 = vpack.c.bf16 %v793, %v792
      %v938 = vpack.c.bf16 %v795, %v794
      %v939 = vpack.c.bf16 %v797, %v796
      %v940 = vpack.c.bf16 %v799, %v798
      %v941 = vpack.c.bf16 %v801, %v800
      %v942 = vpack.c.bf16 %v803, %v802
      %v943 = vpack.c.bf16 %v805, %v804
      %v944 = vpack.c.bf16 %v807, %v806
      %v945 = vpack.c.bf16 %v809, %v808
      %v946 = vpack.c.bf16 %v811, %v810
      %v947 = vpack.c.bf16 %v813, %v812
      %v948 = vpack.c.bf16 %v815, %v814
      %v949 = vpack.c.bf16 %v817, %v816
      %v950 = vpack.c.bf16 %v819, %v818
      %v951 = vpack.c.bf16 %v821, %v820
      %v952 = vpack.c.bf16 %v823, %v822
      %v953 = vpack.c.bf16 %v825, %v824
      %954 = vxpose.xlu0.c.b16.start [1/8] %v442, 128
      %955 = vxpose.xlu0.c.b16.cont [2/8] %v443, 128
      %956 = vxpose.xlu0.c.b16.cont [3/8] %v444, 128
      %957 = vxpose.xlu0.c.b16.cont [4/8] %v445, 128
      %958 = vxpose.xlu0.c.b16.cont [5/8] %v446, 128
      %959 = vxpose.xlu0.c.b16.cont [6/8] %v447, 128
      %960 = vxpose.xlu0.c.b16.cont [7/8] %v448, 128
      %961 = vxpose.xlu0.c.b16.end [8/8] %v449, 128
      %v962 = vpop.trf.xlu0
      %v963 = vpop.trf.xlu0
      %v964 = vpop.trf.xlu0
      %v965 = vpop.trf.xlu0
      %v966 = vpop.trf.xlu0
      %v967 = vpop.trf.xlu0
      %v968 = vpop.trf.xlu0
      %v969 = vpop.trf.xlu0
      %970 = vxpose.xlu0.c.b16.start [1/8] %v450, 128
      %971 = vxpose.xlu0.c.b16.cont [2/8] %v451, 128
      %972 = vxpose.xlu0.c.b16.cont [3/8] %v452, 128
      %973 = vxpose.xlu0.c.b16.cont [4/8] %v453, 128
      %974 = vxpose.xlu0.c.b16.cont [5/8] %v454, 128
      %975 = vxpose.xlu0.c.b16.cont [6/8] %v455, 128
      %976 = vxpose.xlu0.c.b16.cont [7/8] %v456, 128
      %977 = vxpose.xlu0.c.b16.end [8/8] %v457, 128
      %v978 = vpop.trf.xlu0
      %v979 = vpop.trf.xlu0
      %v980 = vpop.trf.xlu0
      %v981 = vpop.trf.xlu0
      %v982 = vpop.trf.xlu0
      %v983 = vpop.trf.xlu0
      %v984 = vpop.trf.xlu0
      %v985 = vpop.trf.xlu0
      %986 = vxpose.xlu0.c.b16.start [1/8] %v458, 128
      %987 = vxpose.xlu0.c.b16.cont [2/8] %v459, 128
      %988 = vxpose.xlu0.c.b16.cont [3/8] %v460, 128
      %989 = vxpose.xlu0.c.b16.cont [4/8] %v461, 128
      %990 = vxpose.xlu0.c.b16.cont [5/8] %v462, 128
      %991 = vxpose.xlu0.c.b16.cont [6/8] %v463, 128
      %992 = vxpose.xlu0.c.b16.cont [7/8] %v464, 128
      %993 = vxpose.xlu0.c.b16.end [8/8] %v465, 128
      %v994 = vpop.trf.xlu0
      %v995 = vpop.trf.xlu0
      %v996 = vpop.trf.xlu0
      %v997 = vpop.trf.xlu0
      %v998 = vpop.trf.xlu0
      %v999 = vpop.trf.xlu0
      %v1000 = vpop.trf.xlu0
      %v1001 = vpop.trf.xlu0
      %1002 = vxpose.xlu0.c.b16.start [1/8] %v466, 128
      %1003 = vxpose.xlu0.c.b16.cont [2/8] %v467, 128
      %1004 = vxpose.xlu0.c.b16.cont [3/8] %v468, 128
      %1005 = vxpose.xlu0.c.b16.cont [4/8] %v469, 128
      %1006 = vxpose.xlu0.c.b16.cont [5/8] %v470, 128
      %1007 = vxpose.xlu0.c.b16.cont [6/8] %v471, 128
      %1008 = vxpose.xlu0.c.b16.cont [7/8] %v472, 128
      %1009 = vxpose.xlu0.c.b16.end [8/8] %v473, 128
      %v1010 = vpop.trf.xlu0
      %v1011 = vpop.trf.xlu0
      %v1012 = vpop.trf.xlu0
      %v1013 = vpop.trf.xlu0
      %v1014 = vpop.trf.xlu0
      %v1015 = vpop.trf.xlu0
      %v1016 = vpop.trf.xlu0
      %v1017 = vpop.trf.xlu0
      %1018 = vxpose.xlu0.c.b16.start [1/8] %v474, 128
      %1019 = vxpose.xlu0.c.b16.cont [2/8] %v475, 128
      %1020 = vxpose.xlu0.c.b16.cont [3/8] %v476, 128
      %1021 = vxpose.xlu0.c.b16.cont [4/8] %v477, 128
      %1022 = vxpose.xlu0.c.b16.cont [5/8] %v478, 128
      %1023 = vxpose.xlu0.c.b16.cont [6/8] %v479, 128
      %1024 = vxpose.xlu0.c.b16.cont [7/8] %v480, 128
      %1025 = vxpose.xlu0.c.b16.end [8/8] %v481, 128
      %v1026 = vpop.trf.xlu0
      %v1027 = vpop.trf.xlu0
      %v1028 = vpop.trf.xlu0
      %v1029 = vpop.trf.xlu0
      %v1030 = vpop.trf.xlu0
      %v1031 = vpop.trf.xlu0
      %v1032 = vpop.trf.xlu0
      %v1033 = vpop.trf.xlu0
      %1034 = vxpose.xlu0.c.b16.start [1/8] %v482, 128
      %1035 = vxpose.xlu0.c.b16.cont [2/8] %v483, 128
      %1036 = vxpose.xlu0.c.b16.cont [3/8] %v484, 128
      %1037 = vxpose.xlu0.c.b16.cont [4/8] %v485, 128
      %1038 = vxpose.xlu0.c.b16.cont [5/8] %v486, 128
      %1039 = vxpose.xlu0.c.b16.cont [6/8] %v487, 128
      %1040 = vxpose.xlu0.c.b16.cont [7/8] %v488, 128
      %1041 = vxpose.xlu0.c.b16.end [8/8] %v489, 128
      %v1042 = vpop.trf.xlu0
      %v1043 = vpop.trf.xlu0
      %v1044 = vpop.trf.xlu0
      %v1045 = vpop.trf.xlu0
      %v1046 = vpop.trf.xlu0
      %v1047 = vpop.trf.xlu0
      %v1048 = vpop.trf.xlu0
      %v1049 = vpop.trf.xlu0
      %1050 = vxpose.xlu0.c.b16.start [1/8] %v490, 128
      %1051 = vxpose.xlu0.c.b16.cont [2/8] %v491, 128
      %1052 = vxpose.xlu0.c.b16.cont [3/8] %v492, 128
      %1053 = vxpose.xlu0.c.b16.cont [4/8] %v493, 128
      %1054 = vxpose.xlu0.c.b16.cont [5/8] %v494, 128
      %1055 = vxpose.xlu0.c.b16.cont [6/8] %v495, 128
      %1056 = vxpose.xlu0.c.b16.cont [7/8] %v496, 128
      %1057 = vxpose.xlu0.c.b16.end [8/8] %v497, 128
      %v1058 = vpop.trf.xlu0
      %v1059 = vpop.trf.xlu0
      %v1060 = vpop.trf.xlu0
      %v1061 = vpop.trf.xlu0
      %v1062 = vpop.trf.xlu0
      %v1063 = vpop.trf.xlu0
      %v1064 = vpop.trf.xlu0
      %v1065 = vpop.trf.xlu0
      %1066 = vxpose.xlu0.c.b16.start [1/8] %v498, 128
      %1067 = vxpose.xlu0.c.b16.cont [2/8] %v499, 128
      %1068 = vxpose.xlu0.c.b16.cont [3/8] %v500, 128
      %1069 = vxpose.xlu0.c.b16.cont [4/8] %v501, 128
      %1070 = vxpose.xlu0.c.b16.cont [5/8] %v502, 128
      %1071 = vxpose.xlu0.c.b16.cont [6/8] %v503, 128
      %1072 = vxpose.xlu0.c.b16.cont [7/8] %v504, 128
      %1073 = vxpose.xlu0.c.b16.end [8/8] %v505, 128
      %v1074 = vpop.trf.xlu0
      %v1075 = vpop.trf.xlu0
      %v1076 = vpop.trf.xlu0
      %v1077 = vpop.trf.xlu0
      %v1078 = vpop.trf.xlu0
      %v1079 = vpop.trf.xlu0
      %v1080 = vpop.trf.xlu0
      %v1081 = vpop.trf.xlu0
      %1082 = vxpose.xlu0.c.b16.start [1/8] %v506, 128
      %1083 = vxpose.xlu0.c.b16.cont [2/8] %v507, 128
      %1084 = vxpose.xlu0.c.b16.cont [3/8] %v508, 128
      %1085 = vxpose.xlu0.c.b16.cont [4/8] %v509, 128
      %1086 = vxpose.xlu0.c.b16.cont [5/8] %v510, 128
      %1087 = vxpose.xlu0.c.b16.cont [6/8] %v511, 128
      %1088 = vxpose.xlu0.c.b16.cont [7/8] %v512, 128
      %1089 = vxpose.xlu0.c.b16.end [8/8] %v513, 128
      %v1090 = vpop.trf.xlu0
      %v1091 = vpop.trf.xlu0
      %v1092 = vpop.trf.xlu0
      %v1093 = vpop.trf.xlu0
      %v1094 = vpop.trf.xlu0
      %v1095 = vpop.trf.xlu0
      %v1096 = vpop.trf.xlu0
      %v1097 = vpop.trf.xlu0
      %1098 = vxpose.xlu0.c.b16.start [1/8] %v514, 128
      %1099 = vxpose.xlu0.c.b16.cont [2/8] %v515, 128
      %1100 = vxpose.xlu0.c.b16.cont [3/8] %v516, 128
      %1101 = vxpose.xlu0.c.b16.cont [4/8] %v517, 128
      %1102 = vxpose.xlu0.c.b16.cont [5/8] %v518, 128
      %1103 = vxpose.xlu0.c.b16.cont [6/8] %v519, 128
      %1104 = vxpose.xlu0.c.b16.cont [7/8] %v520, 128
      %1105 = vxpose.xlu0.c.b16.end [8/8] %v521, 128
      %v1106 = vpop.trf.xlu0
      %v1107 = vpop.trf.xlu0
      %v1108 = vpop.trf.xlu0
      %v1109 = vpop.trf.xlu0
      %v1110 = vpop.trf.xlu0
      %v1111 = vpop.trf.xlu0
      %v1112 = vpop.trf.xlu0
      %v1113 = vpop.trf.xlu0
      %1114 = vxpose.xlu0.c.b16.start [1/8] %v522, 128
      %1115 = vxpose.xlu0.c.b16.cont [2/8] %v523, 128
      %1116 = vxpose.xlu0.c.b16.cont [3/8] %v524, 128
      %1117 = vxpose.xlu0.c.b16.cont [4/8] %v525, 128
      %1118 = vxpose.xlu0.c.b16.cont [5/8] %v526, 128
      %1119 = vxpose.xlu0.c.b16.cont [6/8] %v527, 128
      %1120 = vxpose.xlu0.c.b16.cont [7/8] %v528, 128
      %1121 = vxpose.xlu0.c.b16.end [8/8] %v529, 128
      %v1122 = vpop.trf.xlu0
      %v1123 = vpop.trf.xlu0
      %v1124 = vpop.trf.xlu0
      %v1125 = vpop.trf.xlu0
      %v1126 = vpop.trf.xlu0
      %v1127 = vpop.trf.xlu0
      %v1128 = vpop.trf.xlu0
      %v1129 = vpop.trf.xlu0
      %1130 = vxpose.xlu0.c.b16.start [1/8] %v530, 128
      %1131 = vxpose.xlu0.c.b16.cont [2/8] %v531, 128
      %1132 = vxpose.xlu0.c.b16.cont [3/8] %v532, 128
      %1133 = vxpose.xlu0.c.b16.cont [4/8] %v533, 128
      %1134 = vxpose.xlu0.c.b16.cont [5/8] %v534, 128
      %1135 = vxpose.xlu0.c.b16.cont [6/8] %v535, 128
      %1136 = vxpose.xlu0.c.b16.cont [7/8] %v536, 128
      %1137 = vxpose.xlu0.c.b16.end [8/8] %v537, 128
      %v1138 = vpop.trf.xlu0
      %v1139 = vpop.trf.xlu0
      %v1140 = vpop.trf.xlu0
      %v1141 = vpop.trf.xlu0
      %v1142 = vpop.trf.xlu0
      %v1143 = vpop.trf.xlu0
      %v1144 = vpop.trf.xlu0
      %v1145 = vpop.trf.xlu0
      %1146 = vxpose.xlu0.c.b16.start [1/8] %v538, 128
      %1147 = vxpose.xlu0.c.b16.cont [2/8] %v539, 128
      %1148 = vxpose.xlu0.c.b16.cont [3/8] %v540, 128
      %1149 = vxpose.xlu0.c.b16.cont [4/8] %v541, 128
      %1150 = vxpose.xlu0.c.b16.cont [5/8] %v542, 128
      %1151 = vxpose.xlu0.c.b16.cont [6/8] %v543, 128
      %1152 = vxpose.xlu0.c.b16.cont [7/8] %v544, 128
      %1153 = vxpose.xlu0.c.b16.end [8/8] %v545, 128
      %v1154 = vpop.trf.xlu0
      %v1155 = vpop.trf.xlu0
      %v1156 = vpop.trf.xlu0
      %v1157 = vpop.trf.xlu0
      %v1158 = vpop.trf.xlu0
      %v1159 = vpop.trf.xlu0
      %v1160 = vpop.trf.xlu0
      %v1161 = vpop.trf.xlu0
      %1162 = vxpose.xlu0.c.b16.start [1/8] %v546, 128
      %1163 = vxpose.xlu0.c.b16.cont [2/8] %v547, 128
      %1164 = vxpose.xlu0.c.b16.cont [3/8] %v548, 128
      %1165 = vxpose.xlu0.c.b16.cont [4/8] %v549, 128
      %1166 = vxpose.xlu0.c.b16.cont [5/8] %v550, 128
      %1167 = vxpose.xlu0.c.b16.cont [6/8] %v551, 128
      %1168 = vxpose.xlu0.c.b16.cont [7/8] %v552, 128
      %1169 = vxpose.xlu0.c.b16.end [8/8] %v553, 128
      %v1170 = vpop.trf.xlu0
      %v1171 = vpop.trf.xlu0
      %v1172 = vpop.trf.xlu0
      %v1173 = vpop.trf.xlu0
      %v1174 = vpop.trf.xlu0
      %v1175 = vpop.trf.xlu0
      %v1176 = vpop.trf.xlu0
      %v1177 = vpop.trf.xlu0
      %1178 = vxpose.xlu0.c.b16.start [1/8] %v554, 128
      %1179 = vxpose.xlu0.c.b16.cont [2/8] %v555, 128
      %1180 = vxpose.xlu0.c.b16.cont [3/8] %v556, 128
      %1181 = vxpose.xlu0.c.b16.cont [4/8] %v557, 128
      %1182 = vxpose.xlu0.c.b16.cont [5/8] %v558, 128
      %1183 = vxpose.xlu0.c.b16.cont [6/8] %v559, 128
      %1184 = vxpose.xlu0.c.b16.cont [7/8] %v560, 128
      %1185 = vxpose.xlu0.c.b16.end [8/8] %v561, 128
      %v1186 = vpop.trf.xlu0
      %v1187 = vpop.trf.xlu0
      %v1188 = vpop.trf.xlu0
      %v1189 = vpop.trf.xlu0
      %v1190 = vpop.trf.xlu0
      %v1191 = vpop.trf.xlu0
      %v1192 = vpop.trf.xlu0
      %v1193 = vpop.trf.xlu0
      %1194 = vxpose.xlu0.c.b16.start [1/8] %v562, 128
      %1195 = vxpose.xlu0.c.b16.cont [2/8] %v563, 128
      %1196 = vxpose.xlu0.c.b16.cont [3/8] %v564, 128
      %1197 = vxpose.xlu0.c.b16.cont [4/8] %v565, 128
      %1198 = vxpose.xlu0.c.b16.cont [5/8] %v566, 128
      %1199 = vxpose.xlu0.c.b16.cont [6/8] %v567, 128
      %1200 = vxpose.xlu0.c.b16.cont [7/8] %v568, 128
      %1201 = vxpose.xlu0.c.b16.end [8/8] %v569, 128
      %v1202 = vpop.trf.xlu0
      %v1203 = vpop.trf.xlu0
      %v1204 = vpop.trf.xlu0
      %v1205 = vpop.trf.xlu0
      %v1206 = vpop.trf.xlu0
      %v1207 = vpop.trf.xlu0
      %v1208 = vpop.trf.xlu0
      %v1209 = vpop.trf.xlu0
      %1210 = vmatpush.bf16.msra.mxu0 %v833
      %1211 = vmatpush.bf16.msra.mxu0 %v832
      %1212 = vmatpush.bf16.msra.mxu0 %v831
      %1213 = vmatpush.bf16.msra.mxu0 %v830
      %1214 = vmatpush.bf16.msra.mxu0 %v829
      %1215 = vmatpush.bf16.msra.mxu0 %v828
      %1216 = vmatpush.bf16.msra.mxu0 %v827
      %1217 = vmatpush.bf16.msra.mxu0 %v826
      %1218 = vmatmul.bf16.gmra.mxu0 %v962
      %v1219 = vpop.f32.mrf.mxu0
      %v1220 = vadd.f32 0.0, %v1219
      %v1221 = vpop.f32.mrf.mxu0
      %1222 = vdwg.mxu0
      %1223 = vmatpush.bf16.msra.mxu0 %v841
      %1224 = vmatpush.bf16.msra.mxu0 %v840
      %1225 = vmatpush.bf16.msra.mxu0 %v839
      %1226 = vmatpush.bf16.msra.mxu0 %v838
      %1227 = vmatpush.bf16.msra.mxu0 %v837
      %1228 = vmatpush.bf16.msra.mxu0 %v836
      %1229 = vmatpush.bf16.msra.mxu0 %v835
      %1230 = vmatpush.bf16.msra.mxu0 %v834
      %1231 = vmatmul.bf16.gmra.mxu0 %v978
      %v1232 = vpop.f32.mrf.mxu0
      %v1233 = vadd.f32 %v1220, %v1232
      %v1234 = vpop.f32.mrf.mxu0
      %1235 = vdwg.mxu0
      %1236 = vmatpush.bf16.msra.mxu0 %v849
      %1237 = vmatpush.bf16.msra.mxu0 %v848
      %1238 = vmatpush.bf16.msra.mxu0 %v847
      %1239 = vmatpush.bf16.msra.mxu0 %v846
      %1240 = vmatpush.bf16.msra.mxu0 %v845
      %1241 = vmatpush.bf16.msra.mxu0 %v844
      %1242 = vmatpush.bf16.msra.mxu0 %v843
      %1243 = vmatpush.bf16.msra.mxu0 %v842
      %1244 = vmatmul.bf16.gmra.mxu0 %v994
      %v1245 = vpop.f32.mrf.mxu0
      %v1246 = vadd.f32 %v1233, %v1245
      %v1247 = vpop.f32.mrf.mxu0
      %1248 = vdwg.mxu0
      %1249 = vmatpush.bf16.msra.mxu0 %v857
      %1250 = vmatpush.bf16.msra.mxu0 %v856
      %1251 = vmatpush.bf16.msra.mxu0 %v855
      %1252 = vmatpush.bf16.msra.mxu0 %v854
      %1253 = vmatpush.bf16.msra.mxu0 %v853
      %1254 = vmatpush.bf16.msra.mxu0 %v852
      %1255 = vmatpush.bf16.msra.mxu0 %v851
      %1256 = vmatpush.bf16.msra.mxu0 %v850
      %1257 = vmatmul.bf16.gmra.mxu0 %v1010
      %v1258 = vpop.f32.mrf.mxu0
      %v1259 = vadd.f32 %v1246, %v1258
      %v1260 = vpop.f32.mrf.mxu0
      %1261 = vdwg.mxu0
      %1262 = vmatpush.bf16.msra.mxu0 %v865
      %1263 = vmatpush.bf16.msra.mxu0 %v864
      %1264 = vmatpush.bf16.msra.mxu0 %v863
      %1265 = vmatpush.bf16.msra.mxu0 %v862
      %1266 = vmatpush.bf16.msra.mxu0 %v861
      %1267 = vmatpush.bf16.msra.mxu0 %v860
      %1268 = vmatpush.bf16.msra.mxu0 %v859
      %1269 = vmatpush.bf16.msra.mxu0 %v858
      %1270 = vmatmul.bf16.gmra.mxu0 %v1026
      %v1271 = vpop.f32.mrf.mxu0
      %v1272 = vadd.f32 %v1259, %v1271
      %v1273 = vpop.f32.mrf.mxu0
      %1274 = vdwg.mxu0
      %1275 = vmatpush.bf16.msra.mxu0 %v873
      %1276 = vmatpush.bf16.msra.mxu0 %v872
      %1277 = vmatpush.bf16.msra.mxu0 %v871
      %1278 = vmatpush.bf16.msra.mxu0 %v870
      %1279 = vmatpush.bf16.msra.mxu0 %v869
      %1280 = vmatpush.bf16.msra.mxu0 %v868
      %1281 = vmatpush.bf16.msra.mxu0 %v867
      %1282 = vmatpush.bf16.msra.mxu0 %v866
      %1283 = vmatmul.bf16.gmra.mxu0 %v1042
      %v1284 = vpop.f32.mrf.mxu0
      %v1285 = vadd.f32 %v1272, %v1284
      %v1286 = vpop.f32.mrf.mxu0
      %1287 = vdwg.mxu0
      %1288 = vmatpush.bf16.msra.mxu0 %v881
      %1289 = vmatpush.bf16.msra.mxu0 %v880
      %1290 = vmatpush.bf16.msra.mxu0 %v879
      %1291 = vmatpush.bf16.msra.mxu0 %v878
      %1292 = vmatpush.bf16.msra.mxu0 %v877
      %1293 = vmatpush.bf16.msra.mxu0 %v876
      %1294 = vmatpush.bf16.msra.mxu0 %v875
      %1295 = vmatpush.bf16.msra.mxu0 %v874
      %1296 = vmatmul.bf16.gmra.mxu0 %v1058
      %v1297 = vpop.f32.mrf.mxu0
      %v1298 = vadd.f32 %v1285, %v1297
      %v1299 = vpop.f32.mrf.mxu0
      %1300 = vdwg.mxu0
      %1301 = vmatpush.bf16.msra.mxu0 %v889
      %1302 = vmatpush.bf16.msra.mxu0 %v888
      %1303 = vmatpush.bf16.msra.mxu0 %v887
      %1304 = vmatpush.bf16.msra.mxu0 %v886
      %1305 = vmatpush.bf16.msra.mxu0 %v885
      %1306 = vmatpush.bf16.msra.mxu0 %v884
      %1307 = vmatpush.bf16.msra.mxu0 %v883
      %1308 = vmatpush.bf16.msra.mxu0 %v882
      %1309 = vmatmul.bf16.gmra.mxu0 %v1074
      %v1310 = vpop.f32.mrf.mxu0
      %v1311 = vadd.f32 %v1298, %v1310
      %v1312 = vpop.f32.mrf.mxu0
      %1313 = vdwg.mxu0
      %1314 = vmatpush.bf16.msra.mxu0 %v897
      %1315 = vmatpush.bf16.msra.mxu0 %v896
      %1316 = vmatpush.bf16.msra.mxu0 %v895
      %1317 = vmatpush.bf16.msra.mxu0 %v894
      %1318 = vmatpush.bf16.msra.mxu0 %v893
      %1319 = vmatpush.bf16.msra.mxu0 %v892
      %1320 = vmatpush.bf16.msra.mxu0 %v891
      %1321 = vmatpush.bf16.msra.mxu0 %v890
      %1322 = vmatmul.bf16.gmra.mxu0 %v1090
      %v1323 = vpop.f32.mrf.mxu0
      %v1324 = vadd.f32 %v1311, %v1323
      %v1325 = vpop.f32.mrf.mxu0
      %1326 = vdwg.mxu0
      %1327 = vmatpush.bf16.msra.mxu0 %v905
      %1328 = vmatpush.bf16.msra.mxu0 %v904
      %1329 = vmatpush.bf16.msra.mxu0 %v903
      %1330 = vmatpush.bf16.msra.mxu0 %v902
      %1331 = vmatpush.bf16.msra.mxu0 %v901
      %1332 = vmatpush.bf16.msra.mxu0 %v900
      %1333 = vmatpush.bf16.msra.mxu0 %v899
      %1334 = vmatpush.bf16.msra.mxu0 %v898
      %1335 = vmatmul.bf16.gmra.mxu0 %v1106
      %v1336 = vpop.f32.mrf.mxu0
      %v1337 = vadd.f32 %v1324, %v1336
      %v1338 = vpop.f32.mrf.mxu0
      %1339 = vdwg.mxu0
      %1340 = vmatpush.bf16.msra.mxu0 %v913
      %1341 = vmatpush.bf16.msra.mxu0 %v912
      %1342 = vmatpush.bf16.msra.mxu0 %v911
      %1343 = vmatpush.bf16.msra.mxu0 %v910
      %1344 = vmatpush.bf16.msra.mxu0 %v909
      %1345 = vmatpush.bf16.msra.mxu0 %v908
      %1346 = vmatpush.bf16.msra.mxu0 %v907
      %1347 = vmatpush.bf16.msra.mxu0 %v906
      %1348 = vmatmul.bf16.gmra.mxu0 %v1122
      %v1349 = vpop.f32.mrf.mxu0
      %v1350 = vadd.f32 %v1337, %v1349
      %v1351 = vpop.f32.mrf.mxu0
      %1352 = vdwg.mxu0
      %1353 = vmatpush.bf16.msra.mxu0 %v921
      %1354 = vmatpush.bf16.msra.mxu0 %v920
      %1355 = vmatpush.bf16.msra.mxu0 %v919
      %1356 = vmatpush.bf16.msra.mxu0 %v918
      %1357 = vmatpush.bf16.msra.mxu0 %v917
      %1358 = vmatpush.bf16.msra.mxu0 %v916
      %1359 = vmatpush.bf16.msra.mxu0 %v915
      %1360 = vmatpush.bf16.msra.mxu0 %v914
      %1361 = vmatmul.bf16.gmra.mxu0 %v1138
      %v1362 = vpop.f32.mrf.mxu0
      %v1363 = vadd.f32 %v1350, %v1362
      %v1364 = vpop.f32.mrf.mxu0
      %1365 = vdwg.mxu0
      %1366 = vmatpush.bf16.msra.mxu0 %v929
      %1367 = vmatpush.bf16.msra.mxu0 %v928
      %1368 = vmatpush.bf16.msra.mxu0 %v927
      %1369 = vmatpush.bf16.msra.mxu0 %v926
      %1370 = vmatpush.bf16.msra.mxu0 %v925
      %1371 = vmatpush.bf16.msra.mxu0 %v924
      %1372 = vmatpush.bf16.msra.mxu0 %v923
      %1373 = vmatpush.bf16.msra.mxu0 %v922
      %1374 = vmatmul.bf16.gmra.mxu0 %v1154
      %v1375 = vpop.f32.mrf.mxu0
      %v1376 = vadd.f32 %v1363, %v1375
      %v1377 = vpop.f32.mrf.mxu0
      %1378 = vdwg.mxu0
      %1379 = vmatpush.bf16.msra.mxu0 %v937
      %1380 = vmatpush.bf16.msra.mxu0 %v936
      %1381 = vmatpush.bf16.msra.mxu0 %v935
      %1382 = vmatpush.bf16.msra.mxu0 %v934
      %1383 = vmatpush.bf16.msra.mxu0 %v933
      %1384 = vmatpush.bf16.msra.mxu0 %v932
      %1385 = vmatpush.bf16.msra.mxu0 %v931
      %1386 = vmatpush.bf16.msra.mxu0 %v930
      %1387 = vmatmul.bf16.gmra.mxu0 %v1170
      %v1388 = vpop.f32.mrf.mxu0
      %v1389 = vadd.f32 %v1376, %v1388
      %v1390 = vpop.f32.mrf.mxu0
      %1391 = vdwg.mxu0
      %1392 = vmatpush.bf16.msra.mxu0 %v945
      %1393 = vmatpush.bf16.msra.mxu0 %v944
      %1394 = vmatpush.bf16.msra.mxu0 %v943
      %1395 = vmatpush.bf16.msra.mxu0 %v942
      %1396 = vmatpush.bf16.msra.mxu0 %v941
      %1397 = vmatpush.bf16.msra.mxu0 %v940
      %1398 = vmatpush.bf16.msra.mxu0 %v939
      %1399 = vmatpush.bf16.msra.mxu0 %v938
      %1400 = vmatmul.bf16.gmra.mxu0 %v1186
      %v1401 = vpop.f32.mrf.mxu0
      %v1402 = vadd.f32 %v1389, %v1401
      %v1403 = vpop.f32.mrf.mxu0
      %1404 = vdwg.mxu0
      %1405 = vmatpush.bf16.msra.mxu0 %v953
      %1406 = vmatpush.bf16.msra.mxu0 %v952
      %1407 = vmatpush.bf16.msra.mxu0 %v951
      %1408 = vmatpush.bf16.msra.mxu0 %v950
      %1409 = vmatpush.bf16.msra.mxu0 %v949
      %1410 = vmatpush.bf16.msra.mxu0 %v948
      %1411 = vmatpush.bf16.msra.mxu0 %v947
      %1412 = vmatpush.bf16.msra.mxu0 %v946
      %1413 = vmatmul.bf16.gmra.mxu0 %v1202
      %v1414 = vpop.f32.mrf.mxu0
      %v1415 = vadd.f32 %v1402, %v1414
      %v1416 = vpop.f32.mrf.mxu0
      %1417 = vdwg.mxu0
      %v1418 = vadd.f32 %v185, %v1415
      %1419 = vst [vmem:[#allocation2] sm:$0x3] %v1418
      %p1420 = scmp.eq.s32.totalorder %s14, 1
      // Predicated region
      $region37: #{forward.36} parent=31 // pred_check
        %p1421 = pneg %p1420
      $region38: #{forward.36} parent=31 // pred_check_branch
        %1423 = sbr.rel (%p1421) target = $region40
      $region39: #{forward.36} parent=31 // pred_region
        %v1424 = vld [vmem:[#allocation2] sm:$0x3]
        %v1425 = vld [vmem:[%s2] sm:$0x1]
        %v1427 = vperm.slane %v1425, 0
        %v1429 = vadd.f32 %v1424, %v1427
        %v1430 = vmax.f32 %v1429, 0.0
        %1431 = vst [vmem:[%s3] sm:$0x3] %v1430
      $region40: #{forward.36} parent=31 // pred_fallthru
        _
      // Predicated region
      $region41: #{forward.36} parent=31 // pred_check
        %p1432 = pneg %p100
      $region42: #{forward.36} parent=31 // pred_check_branch
        %1434 = sbr.rel (%p1432) target = $region44
      $region43: #{forward.36} parent=31 // pred_region
        _
      $region44: #{forward.36} parent=31 // pred_fallthru
        _
      // Predicated region
      $region45: #{forward.36} parent=31 // pred_check
        %p1435 = pneg %p100
      $region46: #{forward.36} parent=31 // pred_check_branch
        %1437 = sbr.rel (%p1435) target = $region48
      $region47: #{forward.36} parent=31 // pred_region
        _
      $region48: #{forward.36} parent=31 // pred_fallthru
        _
    $region32: #{forward.36} parent=5 // pred_fallthru
      _
    %p1438 = scmp.le.s32.totalorder 2, %s9
    // Predicated region
    $region49: #{forward.36} parent=5 // pred_check
      %p1439 = pneg %p1438
    $region50: #{forward.36} parent=5 // pred_check_branch
      %1441 = sbr.rel (%p1439) target = $region52
    $region51: #{forward.36} parent=5 // pred_region
      %s1442 = ssub.s32 %s9, 2
    $region52: #{forward.36} parent=5 // pred_fallthru
      _
  $region6: #{forward.36} parent=0 // loop_footer
    %s13 = sadd.s32 1, %s9
  $region7: #{forward.36} parent=0 // loop_footer_branch
    %8 = sbr.rel target = $region3
  $region8: #{forward.36} parent=0 // loop_exit
    _

</llo_original>
